<compile_context>
chip_gen: v7x
topology: tpu7x:2x2x1
jax: 0.10.0
libtpu: 0.0.40
codegen_flags: <defaults>
</compile_context>

<pallas_src>
import functools

import jax
import jax.numpy as jnp
from jax.experimental import pallas as pl
from jax.experimental.pallas import tpu as pltpu

_BN_EPS = 1e-5
_LANE = 128
_MAX_TK = 1024    # Kd = 4*Cin <= 1024 for every layer here -> single K tile
_BN_TM = 1024     # row-tile cap for the HBM-bound BN/ReLU pass


def _chip_budgets():
    """(vmem_limit_bytes, max M tile) derived from the chip generation."""
    try:
        cap = int(pltpu.get_tpu_info().vmem_capacity_bytes)
    except Exception:
        cap = 64 * 1024 * 1024              # conservative: v7x physical VMEM
    vmem_limit = min((cap * 3) // 4, 96 * 1024 * 1024)
    # Double-buffered LHS/RHS/out blocks at tm=4096, tk=1024, Ncols=128 bf16
    # are ~19 MiB — fine on v5e/v6e's 96 MiB budget; halve tm for v7x's
    # 48 MiB budget so batch growth never spills.
    max_tm = 4096 if cap >= (100 << 20) else 2048
    return vmem_limit, max_tm


_VMEM_LIMIT, _MAX_TM = _chip_budgets()


def _round_up(x, m):
    return ((x + m - 1) // m) * m


def _pad_dim(x, axis, target):
    pad = target - x.shape[axis]
    if pad == 0:
        return x
    cfg = [(0, 0)] * x.ndim
    cfg[axis] = (0, pad)
    return jnp.pad(x, cfg)


def _row_tile(rows, cap):
    t = min(cap, rows)
    while rows % t:                      # rows is always a multiple of 8
        t -= 8
    return t


# ----------------------------- Pallas kernels ------------------------------


def _col_stats(a):
    """Fold f32 (tm, N) into lane-dense (8, N) partial column sum / sumsq."""
    a3 = a.reshape(a.shape[0] // 8, 8, a.shape[1])
    return a3.sum(axis=0), (a3 * a3).sum(axis=0)


def _gemm_stats_kernel_k1(p_ref, w_ref, y_ref, s_ref, ss_ref):
    """Single-K-tile GEMM: dot -> store y (bf16) + column stats (f32)."""
    a = jnp.dot(p_ref[...], w_ref[...], preferred_element_type=jnp.float32)
    y_ref[...] = a.astype(y_ref.dtype)
    s, ss = _col_stats(a)
    s_ref[...] = s
    ss_ref[...] = ss


def _gemm_act_kernel_k1(p_ref, w_ref, y_ref, *, act):
    """Single-K-tile GEMM + optional tanh epilogue (final layer, no BN)."""
    a = jnp.dot(p_ref[...], w_ref[...], preferred_element_type=jnp.float32)
    if act == "tanh":
        a = jnp.tanh(a)
    y_ref[...] = a.astype(y_ref.dtype)


def _gemm_stats_kernel(p_ref, w_ref, y_ref, s_ref, ss_ref, acc_ref):
    """K-tiled fallback: canonical accumulate form (MRB-friendly on v7x)."""
    @pl.when(pl.program_id(2) == 0)
    def _():
        acc_ref[...] = jnp.zeros_like(acc_ref)

    acc_ref[...] += jnp.dot(p_ref[...], w_ref[...],
                            preferred_element_type=jnp.float32)

    @pl.when(pl.program_id(2) == pl.num_programs(2) - 1)
    def _():
        a = acc_ref[...]
        y_ref[...] = a.astype(y_ref.dtype)
        s, ss = _col_stats(a)
        s_ref[...] = s
        ss_ref[...] = ss


def _gemm_act_kernel(p_ref, w_ref, y_ref, acc_ref, *, act):
    @pl.when(pl.program_id(2) == 0)
    def _():
        acc_ref[...] = jnp.zeros_like(acc_ref)

    acc_ref[...] += jnp.dot(p_ref[...], w_ref[...],
                            preferred_element_type=jnp.float32)

    @pl.when(pl.program_id(2) == pl.num_programs(2) - 1)
    def _():
        a = acc_ref[...]
        if act == "tanh":
            a = jnp.tanh(a)
        y_ref[...] = a.astype(y_ref.dtype)


def _bn_act_kernel(y_ref, sc_ref, sh_ref, o_ref):
    # bf16 in, math in f32 (v5e has no bf16 VPU/EUP), bf16 out.
    y = y_ref[...].astype(jnp.float32) * sc_ref[...] + sh_ref[...]
    o_ref[...] = jnp.maximum(y, 0.0).astype(o_ref.dtype)


# ----------------------------- GEMM dispatch --------------------------------


def _gemm(patches, weights, *, with_stats, act=None, out_dtype=jnp.float32):
    """patches: (P, M, Kd) bf16, weights: (P, Kd, Ncols) bf16, Ncols % 128 == 0.

    Returns y (P, Mp, Ncols) in `out_dtype` (+ per-column f32 sum / sumsq if
    with_stats; stats come from the f32 MXU accumulator, not the stored y).
    Grid = (P, M-tiles[, K-tiles]); padded rows/cols are exact zeros so they
    do not perturb the column statistics.
    """
    P, M, Kd = patches.shape
    Ncols = weights.shape[-1]
    assert Ncols % _LANE == 0

    tm = min(_MAX_TM, _round_up(M, 8))       # whole M in one tile when it fits
    Mp = _round_up(M, tm)
    Kdp = _round_up(Kd, _LANE)
    tk = min(_MAX_TK, Kdp)
    Kdp = _round_up(Kdp, tk)

    patches = _pad_dim(_pad_dim(patches, 1, Mp), 2, Kdp)
    weights = _pad_dim(weights, 1, Kdp)
    mt, kt = Mp // tm, Kdp // tk

    if kt == 1:
        # Specialized path: no K grid axis, no accumulator VMEM round trip.
        grid = (P, mt)
        in_specs = [
            pl.BlockSpec((None, tm, tk), lambda p, i: (p, i, 0)),
            pl.BlockSpec((None, tk, Ncols), lambda p, i: (p, 0, 0)),
        ]
        y_spec = pl.BlockSpec((None, tm, Ncols), lambda p, i: (p, i, 0))
        stat_spec = pl.BlockSpec((None, 8, Ncols), lambda p, i: (p, i, 0))
        dims = ("parallel", "parallel")
        scratch = []
        stats_kernel = _gemm_stats_kernel_k1
        act_kernel = functools.partial(_gemm_act_kernel_k1, act=act)
    else:
        grid = (P, mt, kt)
        in_specs = [
            pl.BlockSpec((None, tm, tk), lambda p, i, k: (p, i, k)),
            pl.BlockSpec((None, tk, Ncols), lambda p, i, k: (p, k, 0)),
        ]
        y_spec = pl.BlockSpec((None, tm, Ncols), lambda p, i, k: (p, i, 0))
        stat_spec = pl.BlockSpec((None, 8, Ncols), lambda p, i, k: (p, i, 0))
        dims = ("parallel", "parallel", "arbitrary")
        scratch = [pltpu.VMEM((tm, Ncols), jnp.float32)]
        stats_kernel = _gemm_stats_kernel
        act_kernel = functools.partial(_gemm_act_kernel, act=act)

    cparams = pltpu.CompilerParams(
        dimension_semantics=dims, vmem_limit_bytes=_VMEM_LIMIT)

    if with_stats:
        y, s, ss = pl.pallas_call(
            stats_kernel,
            out_shape=(jax.ShapeDtypeStruct((P, Mp, Ncols), out_dtype),
                       jax.ShapeDtypeStruct((P, mt * 8, Ncols), jnp.float32),
                       jax.ShapeDtypeStruct((P, mt * 8, Ncols), jnp.float32)),
            grid=grid, in_specs=in_specs,
            out_specs=(y_spec, stat_spec, stat_spec),
            scratch_shapes=scratch, compiler_params=cparams,
        )(patches, weights)
        return y, jnp.sum(s, axis=(0, 1)), jnp.sum(ss, axis=(0, 1))

    y = pl.pallas_call(
        act_kernel,
        out_shape=jax.ShapeDtypeStruct((P, Mp, Ncols), out_dtype),
        grid=grid, in_specs=in_specs, out_specs=y_spec,
        scratch_shapes=scratch, compiler_params=cparams,
    )(patches, weights)
    return y


def _bn_relu(y, scale, shift):
    """Pass 2: ReLU(y * scale + shift), tiled over rows; bf16 in/out."""
    # TODO(synk): fuse this scale/shift+ReLU (and the sub-pixel interleave)
    # into the consumer layer's patch staging to drop one HBM round trip.
    P, Mp, Ncols = y.shape
    rows = P * Mp
    tm = _row_tile(rows, _BN_TM)
    act = pl.pallas_call(
        _bn_act_kernel,
        out_shape=jax.ShapeDtypeStruct((rows, Ncols), jnp.bfloat16),
        grid=(rows // tm,),
        in_specs=[pl.BlockSpec((tm, Ncols), lambda i: (i, 0)),
                  pl.BlockSpec((1, Ncols), lambda i: (0, 0)),
                  pl.BlockSpec((1, Ncols), lambda i: (0, 0))],
        out_specs=pl.BlockSpec((tm, Ncols), lambda i: (i, 0)),
        compiler_params=pltpu.CompilerParams(
            dimension_semantics=("parallel",), vmem_limit_bytes=_VMEM_LIMIT),
    )(y.reshape(rows, Ncols), scale.reshape(1, Ncols), shift.reshape(1, Ncols))
    return act.reshape(P, Mp, Ncols)


def _bn_coeffs(col_sum, col_sq, count, gamma, beta):
    mean = col_sum / count
    var = jnp.maximum(col_sq / count - mean * mean, 0.0)   # biased, train-mode
    scale = gamma * jax.lax.rsqrt(var + _BN_EPS)
    shift = beta - mean * scale
    return scale, shift


# ------------------ ConvTranspose2d(4, 2, 1) parity lowering ----------------

# For K=4, stride=2, padding=1: output row 2m+r receives contributions from
# input rows {m-1, m} (taps kh=3,1) when r=0, or {m, m+1} (taps kh=2,0) when
# r=1 (same for columns).  (oh, kh): oh = row offset into the 1-zero-padded x.
_PARITY_SEL = {0: ((0, 3), (1, 1)), 1: ((1, 2), (2, 0))}


def _parity_patches(x, w_pt):
    """stride-2 ConvTranspose2d as 4 parity GEMMs (no dilation zeros).

    x: (N, H, W, Cin) bf16; w_pt: (Cin, Cout, 4, 4) f32 (PyTorch layout).
    Returns patches (4, N*H*W, 4*Cin) and weights (4, 4*Cin, Cout).
    """
    # TODO(synk): the remaining 4x per-pixel patch duplication could be fused
    # into the GEMM kernel via tap-shifted input blocks / manual halo DMA,
    # cutting LHS HBM traffic 4x and removing the XLA concat pass.
    N, H, W, Cin = x.shape
    xpad = jnp.pad(x, ((0, 0), (1, 1), (1, 1), (0, 0)))
    patches, weights = [], []
    for r in (0, 1):
        for s in (0, 1):
            cols, wts = [], []
            for oh, kh in _PARITY_SEL[r]:
                for ow, kw in _PARITY_SEL[s]:
                    cols.append(xpad[:, oh:oh + H, ow:ow + W, :])
                    wts.append(w_pt[:, :, kh, kw])
            patches.append(
                jnp.concatenate(cols, axis=-1).reshape(N * H * W, 4 * Cin))
            weights.append(jnp.concatenate(wts, axis=0))
    return jnp.stack(patches), jnp.stack(weights)


def _interleave(out_par, N, H, W, C):
    """(4, N*H*W, C) parity-major -> (N, 2H, 2W, C)."""
    # TODO(synk): keep activations parity-major between layers (and teach
    # _parity_patches to read it) to drop this XLA transpose round trip.
    o = out_par.reshape(2, 2, N, H, W, C)
    o = jnp.transpose(o, (2, 3, 0, 4, 1, 5))
    return o.reshape(N, 2 * H, 2 * W, C)


# --------------------------------- layers -----------------------------------


def _up_block(x, w_pt, gamma, beta):
    """ConvTranspose2d(Cin, Cout, 4, 2, 1) + BatchNorm2d + ReLU."""
    N, H, W, _ = x.shape
    Cout = w_pt.shape[1]
    Ncols = _round_up(Cout, _LANE)              # lane-dense output
    patches, weights = _parity_patches(x, w_pt)
    weights = _pad_dim(weights, 2, Ncols).astype(jnp.bfloat16)
    y, col_sum, col_sq = _gemm(patches.astype(jnp.bfloat16), weights,
                               with_stats=True, out_dtype=jnp.bfloat16)
    count = jnp.float32(4 * N * H * W)          # = N * Ho * Wo
    scale, shift = _bn_coeffs(col_sum, col_sq, count,
                              _pad_dim(gamma, 0, Ncols),
                              _pad_dim(beta, 0, Ncols))
    act = _bn_relu(y, scale, shift)
    act = act[:, :N * H * W, :Cout]
    return _interleave(act, N, H, W, Cout)


def _final_block(x, w_pt):
    """ConvTranspose2d(Cin, out_channels, 4, 2, 1) + Tanh (no BatchNorm)."""
    N, H, W, _ = x.shape
    Cout = w_pt.shape[1]
    Ncols = _round_up(Cout, _LANE)
    patches, weights = _parity_patches(x, w_pt)
    weights = _pad_dim(weights, 2, Ncols).astype(jnp.bfloat16)
    y = _gemm(patches.astype(jnp.bfloat16), weights,
              with_stats=False, act="tanh", out_dtype=jnp.float32)
    y = y[:, :N * H * W, :Cout]
    return _interleave(y, N, H, W, Cout)


def _project_block(z, w_pt, gamma, beta):
    """ConvTranspose2d(z_dims, C, 4, 1, 0) on a 1x1 input + BN + ReLU.

    out[n, kh, kw, co] = sum_ci z[n, ci] * W[ci, co, kh, kw]: one dense GEMM
    with a K*K*Cout-wide lane-dense output, no im2col.
    """
    N = z.shape[0]
    Cin, Cout, K, _ = w_pt.shape
    Cp = _round_up(Cout, 8)                     # makes K*K*Cp a multiple of 128
    Ncols = K * K * Cp
    w = _pad_dim(jnp.transpose(w_pt, (0, 2, 3, 1)), 3, Cp).reshape(Cin, Ncols)
    y, col_sum, col_sq = _gemm(z.reshape(N, Cin).astype(jnp.bfloat16)[None],
                               w.astype(jnp.bfloat16)[None],
                               with_stats=True, out_dtype=jnp.bfloat16)
    # Columns are (kh, kw, co): fold the spatial taps into the channel stats.
    count = jnp.float32(N * K * K)
    s_c = jnp.sum(col_sum.reshape(K * K, Cp), axis=0)
    ss_c = jnp.sum(col_sq.reshape(K * K, Cp), axis=0)
    scale_c, shift_c = _bn_coeffs(s_c, ss_c, count,
                                  _pad_dim(gamma, 0, Cp), _pad_dim(beta, 0, Cp))
    act = _bn_relu(y, jnp.tile(scale_c, K * K), jnp.tile(shift_c, K * K))
    return act[0, :N].reshape(N, K, K, Cp)[:, :, :, :Cout]


# ----------------------------- params / forward -----------------------------


def init_generator_params(key, z_dims, features, out_channels):
    """DCGAN-style N(0, 0.02) conv weights, BatchNorm gamma=1 / beta=0."""
    chans = [z_dims, features * 16, features * 8, features * 4,
             features * 2, out_channels]
    params = {}
    keys = jax.random.split(key, 5)
    for i in range(5):
        cin, cout = chans[i], chans[i + 1]
        params[f"w{i}"] = 0.02 * jax.random.normal(
            keys[i], (cin, cout, 4, 4), jnp.float32)
        if i < 4:                                # last layer has no BatchNorm
            params[f"gamma{i}"] = jnp.ones((cout,), jnp.float32)
            params[f"beta{i}"] = jnp.zeros((cout,), jnp.float32)
    return params


@jax.jit
def generator_forward(z_nchw, params):
    """z_nchw: (N, z_dims, 1, 1) NCHW -> (N, out_channels, 64, 64) NCHW."""
    x = jnp.transpose(z_nchw, (0, 2, 3, 1)).astype(jnp.bfloat16)  # NCHW->NHWC
    x = _project_block(x, params["w0"], params["gamma0"], params["beta0"])
    for i in (1, 2, 3):
        x = _up_block(x, params[f"w{i}"],
                      params[f"gamma{i}"], params[f"beta{i}"])
    x = _final_block(x, params["w4"])                              # f32, tanh
    return jnp.transpose(x, (0, 3, 1, 2)).astype(jnp.float32)      # NHWC->NCHW


if __name__ == "__main__":
    key = jax.random.PRNGKey(0)
    k_params, k_z = jax.random.split(key)

    # Small shapes consistent with the module: z of shape (N, z_dims, 1, 1).
    batch, z_dims, features, out_channels = 2, 16, 8, 3
    params = init_generator_params(k_params, z_dims, features, out_channels)
    z = jax.random.normal(k_z, (batch, z_dims, 1, 1), jnp.float32)

    out = jax.block_until_ready(generator_forward(z, params))

    # 1x1 -> 4x4 -> 8x8 -> 16x16 -> 32x32 -> 64x64, tanh-bounded output.
    assert out.shape == (batch, out_channels, 64, 64), out.shape
    assert bool(jnp.all(jnp.isfinite(out)))
    assert bool(jnp.all(jnp.abs(out) <= 1.0 + 1e-6))
    print("KERNEL_OK")
</pallas_src>

<mosaic_0001>
module attributes {stable_mosaic.version = 11 : i64} {
  func.func @_gemm_stats_kernel_k1(%arg0: i32, %arg1: i32, %arg2: memref<1x8x128xbf16, #tpu.memory_space<vmem>>, %arg3: memref<1x128x2048xbf16, #tpu.memory_space<vmem>>, %arg4: memref<1x8x2048xbf16, #tpu.memory_space<vmem>>, %arg5: memref<1x8x2048xf32, #tpu.memory_space<vmem>>, %arg6: memref<1x8x2048xf32, #tpu.memory_space<vmem>>) attributes {dimension_semantics = [#tpu.dimension_semantics<parallel>, #tpu.dimension_semantics<parallel>], iteration_bounds = array<i64: 1, 1>, scalar_prefetch = 0 : i64, scratch_operands = 0 : i64, tpu.core_type = #tpu.core_type<tc>, window_params = [{transform_indices = @transform_0, window_bounds = array<i64: 1, 8, 128>}, {transform_indices = @transform_1, window_bounds = array<i64: 1, 128, 2048>}, {transform_indices = @transform_2, window_bounds = array<i64: 1, 8, 2048>}, {transform_indices = @transform_3, window_bounds = array<i64: 1, 8, 2048>}, {transform_indices = @transform_4, window_bounds = array<i64: 1, 8, 2048>}]} {
    %c0 = arith.constant 0 : index
    %c0_0 = arith.constant 0 : index
    %c0_1 = arith.constant 0 : index
    %0 = vector.load %arg2[%c0, %c0_0, %c0_1] : memref<1x8x128xbf16, #tpu.memory_space<vmem>>, vector<1x8x128xbf16>
    %1 = vector.shape_cast %0 : vector<1x8x128xbf16> to vector<8x128xbf16>
    %c0_2 = arith.constant 0 : index
    %c0_3 = arith.constant 0 : index
    %c0_4 = arith.constant 0 : index
    %2 = vector.load %arg3[%c0_2, %c0_3, %c0_4] : memref<1x128x2048xbf16, #tpu.memory_space<vmem>>, vector<1x128x2048xbf16>
    %3 = vector.shape_cast %2 : vector<1x128x2048xbf16> to vector<128x2048xbf16>
    %cst = arith.constant dense<0.000000e+00> : vector<8x2048xf32>
    %4 = tpu.matmul %1, %3, %cst {dimension_numbers = #tpu.dot_dimension_numbers<[1], [0], [0], [1], [0, 0, 1, 1], [], []>} : vector<8x128xbf16>, vector<128x2048xbf16>, vector<8x2048xf32> -> vector<8x2048xf32>
    %5 = arith.truncf %4 : vector<8x2048xf32> to vector<8x2048xbf16>
    %c0_5 = arith.constant 0 : index
    %c0_6 = arith.constant 0 : index
    %c0_7 = arith.constant 0 : index
    %6 = vector.load %arg4[%c0_5, %c0_6, %c0_7] : memref<1x8x2048xbf16, #tpu.memory_space<vmem>>, vector<1x8x2048xbf16>
    %7 = vector.shape_cast %6 : vector<1x8x2048xbf16> to vector<8x2048xbf16>
    %8 = vector.shape_cast %5 : vector<8x2048xbf16> to vector<1x8x2048xbf16>
    tpu.vector_store %arg4[%c0_5, %c0_6, %c0_7], %8 {strides = array<i32>} : memref<1x8x2048xbf16, #tpu.memory_space<vmem>>, vector<1x8x2048xbf16>,
    %9 = vector.shape_cast %4 : vector<8x2048xf32> to vector<1x8x2048xf32>
    %cst_8 = arith.constant dense<0.000000e+00> : vector<8x2048xf32>
    %10 = vector.multi_reduction <add>, %9, %cst_8 [0] : vector<1x8x2048xf32> to vector<8x2048xf32>
    %11 = arith.mulf %9, %9 : vector<1x8x2048xf32>
    %cst_9 = arith.constant dense<0.000000e+00> : vector<8x2048xf32>
    %12 = vector.multi_reduction <add>, %11, %cst_9 [0] : vector<1x8x2048xf32> to vector<8x2048xf32>
    %c0_10 = arith.constant 0 : index
    %c0_11 = arith.constant 0 : index
    %c0_12 = arith.constant 0 : index
    %13 = vector.load %arg5[%c0_10, %c0_11, %c0_12] : memref<1x8x2048xf32, #tpu.memory_space<vmem>>, vector<1x8x2048xf32>
    %14 = vector.shape_cast %13 : vector<1x8x2048xf32> to vector<8x2048xf32>
    %15 = vector.shape_cast %10 : vector<8x2048xf32> to vector<1x8x2048xf32>
    tpu.vector_store %arg5[%c0_10, %c0_11, %c0_12], %15 {strides = array<i32>} : memref<1x8x2048xf32, #tpu.memory_space<vmem>>, vector<1x8x2048xf32>,
    %c0_13 = arith.constant 0 : index
    %c0_14 = arith.constant 0 : index
    %c0_15 = arith.constant 0 : index
    %16 = vector.load %arg6[%c0_13, %c0_14, %c0_15] : memref<1x8x2048xf32, #tpu.memory_space<vmem>>, vector<1x8x2048xf32>
    %17 = vector.shape_cast %16 : vector<1x8x2048xf32> to vector<8x2048xf32>
    %18 = vector.shape_cast %12 : vector<8x2048xf32> to vector<1x8x2048xf32>
    tpu.vector_store %arg6[%c0_13, %c0_14, %c0_15], %18 {strides = array<i32>} : memref<1x8x2048xf32, #tpu.memory_space<vmem>>, vector<1x8x2048xf32>,
    return
  }
  func.func @transform_0(%arg0: i32, %arg1: i32) -> (i32, i32, i32) {
    %c0_i32 = arith.constant 0 : i32
    %c0_i32_0 = arith.constant 0 : i32
    return %arg0, %arg1, %c0_i32 : i32, i32, i32
  }
  func.func @transform_1(%arg0: i32, %arg1: i32) -> (i32, i32, i32) {
    %c0_i32 = arith.constant 0 : i32
    %c0_i32_0 = arith.constant 0 : i32
    %c0_i32_1 = arith.constant 0 : i32
    return %arg0, %c0_i32, %c0_i32_0 : i32, i32, i32
  }
  func.func @transform_2(%arg0: i32, %arg1: i32) -> (i32, i32, i32) {
    %c0_i32 = arith.constant 0 : i32
    %c0_i32_0 = arith.constant 0 : i32
    return %arg0, %arg1, %c0_i32 : i32, i32, i32
  }
  func.func @transform_3(%arg0: i32, %arg1: i32) -> (i32, i32, i32) {
    %c0_i32 = arith.constant 0 : i32
    %c0_i32_0 = arith.constant 0 : i32
    return %arg0, %arg1, %c0_i32 : i32, i32, i32
  }
  func.func @transform_4(%arg0: i32, %arg1: i32) -> (i32, i32, i32) {
    %c0_i32 = arith.constant 0 : i32
    %c0_i32_0 = arith.constant 0 : i32
    return %arg0, %arg1, %c0_i32 : i32, i32, i32
  }
}

module attributes {stable_mosaic.version = 11 : i64} {
  func.func @_bn_act_kernel(%arg0: i32, %arg1: memref<8x2048xbf16, #tpu.memory_space<vmem>>, %arg2: memref<1x2048xf32, #tpu.memory_space<vmem>>, %arg3: memref<1x2048xf32, #tpu.memory_space<vmem>>, %arg4: memref<8x2048xbf16, #tpu.memory_space<vmem>>) attributes {dimension_semantics = [#tpu.dimension_semantics<parallel>], iteration_bounds = array<i64: 1>, scalar_prefetch = 0 : i64, scratch_operands = 0 : i64, tpu.core_type = #tpu.core_type<tc>, window_params = [{transform_indices = @transform_0, window_bounds = array<i64: 8, 2048>}, {pipeline_mode = #tpu.pipeline_mode<synchronous>, transform_indices = @transform_1, window_bounds = array<i64: 1, 2048>}, {pipeline_mode = #tpu.pipeline_mode<synchronous>, transform_indices = @transform_2, window_bounds = array<i64: 1, 2048>}, {transform_indices = @transform_3, window_bounds = array<i64: 8, 2048>}]} {
    %c0 = arith.constant 0 : index
    %c0_0 = arith.constant 0 : index
    %0 = vector.load %arg1[%c0, %c0_0] : memref<8x2048xbf16, #tpu.memory_space<vmem>>, vector<8x2048xbf16>
    %1 = arith.extf %0 : vector<8x2048xbf16> to vector<8x2048xf32>
    %c0_1 = arith.constant 0 : index
    %c0_2 = arith.constant 0 : index
    %2 = vector.load %arg2[%c0_1, %c0_2] : memref<1x2048xf32, #tpu.memory_space<vmem>>, vector<1x2048xf32>
    %3 = vector.broadcast %2 : vector<1x2048xf32> to vector<8x2048xf32>
    %4 = arith.mulf %1, %3 : vector<8x2048xf32>
    %c0_3 = arith.constant 0 : index
    %c0_4 = arith.constant 0 : index
    %5 = vector.load %arg3[%c0_3, %c0_4] : memref<1x2048xf32, #tpu.memory_space<vmem>>, vector<1x2048xf32>
    %6 = vector.broadcast %5 : vector<1x2048xf32> to vector<8x2048xf32>
    %7 = arith.addf %4, %6 : vector<8x2048xf32>
    %cst = arith.constant 0.000000e+00 : f32
    %8 = vector.broadcast %cst : f32 to vector<8x2048xf32>
    %9 = arith.maximumf %7, %8 : vector<8x2048xf32>
    %10 = arith.truncf %9 : vector<8x2048xf32> to vector<8x2048xbf16>
    %c0_5 = arith.constant 0 : index
    %c0_6 = arith.constant 0 : index
    %11 = vector.load %arg4[%c0_5, %c0_6] : memref<8x2048xbf16, #tpu.memory_space<vmem>>, vector<8x2048xbf16>
    tpu.vector_store %arg4[%c0_5, %c0_6], %10 {strides = array<i32>} : memref<8x2048xbf16, #tpu.memory_space<vmem>>, vector<8x2048xbf16>,
    return
  }
  func.func @transform_0(%arg0: i32) -> (i32, i32) {
    %c0_i32 = arith.constant 0 : i32
    %c0_i32_0 = arith.constant 0 : i32
    return %arg0, %c0_i32 : i32, i32
  }
  func.func @transform_1(%arg0: i32) -> (i32, i32) {
    %c0_i32 = arith.constant 0 : i32
    %c0_i32_0 = arith.constant 0 : i32
    %c0_i32_1 = arith.constant 0 : i32
    return %c0_i32, %c0_i32_0 : i32, i32
  }
  func.func @transform_2(%arg0: i32) -> (i32, i32) {
    %c0_i32 = arith.constant 0 : i32
    %c0_i32_0 = arith.constant 0 : i32
    %c0_i32_1 = arith.constant 0 : i32
    return %c0_i32, %c0_i32_0 : i32, i32
  }
  func.func @transform_3(%arg0: i32) -> (i32, i32) {
    %c0_i32 = arith.constant 0 : i32
    %c0_i32_0 = arith.constant 0 : i32
    return %arg0, %c0_i32 : i32, i32
  }
}

module attributes {stable_mosaic.version = 11 : i64} {
  func.func @_gemm_stats_kernel_k1(%arg0: i32, %arg1: i32, %arg2: memref<1x32x512xbf16, #tpu.memory_space<vmem>>, %arg3: memref<1x512x128xbf16, #tpu.memory_space<vmem>>, %arg4: memref<1x32x128xbf16, #tpu.memory_space<vmem>>, %arg5: memref<1x8x128xf32, #tpu.memory_space<vmem>>, %arg6: memref<1x8x128xf32, #tpu.memory_space<vmem>>) attributes {dimension_semantics = [#tpu.dimension_semantics<parallel>, #tpu.dimension_semantics<parallel>], iteration_bounds = array<i64: 4, 1>, scalar_prefetch = 0 : i64, scratch_operands = 0 : i64, tpu.core_type = #tpu.core_type<tc>, window_params = [{transform_indices = @transform_0, window_bounds = array<i64: 1, 32, 512>}, {transform_indices = @transform_1, window_bounds = array<i64: 1, 512, 128>}, {transform_indices = @transform_2, window_bounds = array<i64: 1, 32, 128>}, {transform_indices = @transform_3, window_bounds = array<i64: 1, 8, 128>}, {transform_indices = @transform_4, window_bounds = array<i64: 1, 8, 128>}]} {
    %c0 = arith.constant 0 : index
    %c0_0 = arith.constant 0 : index
    %c0_1 = arith.constant 0 : index
    %0 = vector.load %arg2[%c0, %c0_0, %c0_1] : memref<1x32x512xbf16, #tpu.memory_space<vmem>>, vector<1x32x512xbf16>
    %1 = vector.shape_cast %0 : vector<1x32x512xbf16> to vector<32x512xbf16>
    %c0_2 = arith.constant 0 : index
    %c0_3 = arith.constant 0 : index
    %c0_4 = arith.constant 0 : index
    %2 = vector.load %arg3[%c0_2, %c0_3, %c0_4] : memref<1x512x128xbf16, #tpu.memory_space<vmem>>, vector<1x512x128xbf16>
    %3 = vector.shape_cast %2 : vector<1x512x128xbf16> to vector<512x128xbf16>
    %cst = arith.constant dense<0.000000e+00> : vector<32x128xf32>
    %4 = tpu.matmul %1, %3, %cst {dimension_numbers = #tpu.dot_dimension_numbers<[1], [0], [0], [1], [0, 0, 1, 1], [], []>} : vector<32x512xbf16>, vector<512x128xbf16>, vector<32x128xf32> -> vector<32x128xf32>
    %5 = arith.truncf %4 : vector<32x128xf32> to vector<32x128xbf16>
    %c0_5 = arith.constant 0 : index
    %c0_6 = arith.constant 0 : index
    %c0_7 = arith.constant 0 : index
    %6 = vector.load %arg4[%c0_5, %c0_6, %c0_7] : memref<1x32x128xbf16, #tpu.memory_space<vmem>>, vector<1x32x128xbf16>
    %7 = vector.shape_cast %6 : vector<1x32x128xbf16> to vector<32x128xbf16>
    %8 = vector.shape_cast %5 : vector<32x128xbf16> to vector<1x32x128xbf16>
    tpu.vector_store %arg4[%c0_5, %c0_6, %c0_7], %8 {strides = array<i32>} : memref<1x32x128xbf16, #tpu.memory_space<vmem>>, vector<1x32x128xbf16>,
    %9 = vector.shape_cast %4 : vector<32x128xf32> to vector<4x8x128xf32>
    %cst_8 = arith.constant dense<0.000000e+00> : vector<8x128xf32>
    %10 = vector.multi_reduction <add>, %9, %cst_8 [0] : vector<4x8x128xf32> to vector<8x128xf32>
    %11 = arith.mulf %9, %9 : vector<4x8x128xf32>
    %cst_9 = arith.constant dense<0.000000e+00> : vector<8x128xf32>
    %12 = vector.multi_reduction <add>, %11, %cst_9 [0] : vector<4x8x128xf32> to vector<8x128xf32>
    %c0_10 = arith.constant 0 : index
    %c0_11 = arith.constant 0 : index
    %c0_12 = arith.constant 0 : index
    %13 = vector.load %arg5[%c0_10, %c0_11, %c0_12] : memref<1x8x128xf32, #tpu.memory_space<vmem>>, vector<1x8x128xf32>
    %14 = vector.shape_cast %13 : vector<1x8x128xf32> to vector<8x128xf32>
    %15 = vector.shape_cast %10 : vector<8x128xf32> to vector<1x8x128xf32>
    tpu.vector_store %arg5[%c0_10, %c0_11, %c0_12], %15 {strides = array<i32>} : memref<1x8x128xf32, #tpu.memory_space<vmem>>, vector<1x8x128xf32>,
    %c0_13 = arith.constant 0 : index
    %c0_14 = arith.constant 0 : index
    %c0_15 = arith.constant 0 : index
    %16 = vector.load %arg6[%c0_13, %c0_14, %c0_15] : memref<1x8x128xf32, #tpu.memory_space<vmem>>, vector<1x8x128xf32>
    %17 = vector.shape_cast %16 : vector<1x8x128xf32> to vector<8x128xf32>
    %18 = vector.shape_cast %12 : vector<8x128xf32> to vector<1x8x128xf32>
    tpu.vector_store %arg6[%c0_13, %c0_14, %c0_15], %18 {strides = array<i32>} : memref<1x8x128xf32, #tpu.memory_space<vmem>>, vector<1x8x128xf32>,
    return
  }
  func.func @transform_0(%arg0: i32, %arg1: i32) -> (i32, i32, i32) {
    %c0_i32 = arith.constant 0 : i32
    %c0_i32_0 = arith.constant 0 : i32
    return %arg0, %arg1, %c0_i32 : i32, i32, i32
  }
  func.func @transform_1(%arg0: i32, %arg1: i32) -> (i32, i32, i32) {
    %c0_i32 = arith.constant 0 : i32
    %c0_i32_0 = arith.constant 0 : i32
    %c0_i32_1 = arith.constant 0 : i32
    return %arg0, %c0_i32, %c0_i32_0 : i32, i32, i32
  }
  func.func @transform_2(%arg0: i32, %arg1: i32) -> (i32, i32, i32) {
    %c0_i32 = arith.constant 0 : i32
    %c0_i32_0 = arith.constant 0 : i32
    return %arg0, %arg1, %c0_i32 : i32, i32, i32
  }
  func.func @transform_3(%arg0: i32, %arg1: i32) -> (i32, i32, i32) {
    %c0_i32 = arith.constant 0 : i32
    %c0_i32_0 = arith.constant 0 : i32
    return %arg0, %arg1, %c0_i32 : i32, i32, i32
  }
  func.func @transform_4(%arg0: i32, %arg1: i32) -> (i32, i32, i32) {
    %c0_i32 = arith.constant 0 : i32
    %c0_i32_0 = arith.constant 0 : i32
    return %arg0, %arg1, %c0_i32 : i32, i32, i32
  }
}

module attributes {stable_mosaic.version = 11 : i64} {
  func.func @_bn_act_kernel(%arg0: i32, %arg1: memref<128x128xbf16, #tpu.memory_space<vmem>>, %arg2: memref<1x128xf32, #tpu.memory_space<vmem>>, %arg3: memref<1x128xf32, #tpu.memory_space<vmem>>, %arg4: memref<128x128xbf16, #tpu.memory_space<vmem>>) attributes {dimension_semantics = [#tpu.dimension_semantics<parallel>], iteration_bounds = array<i64: 1>, scalar_prefetch = 0 : i64, scratch_operands = 0 : i64, tpu.core_type = #tpu.core_type<tc>, window_params = [{transform_indices = @transform_0, window_bounds = array<i64: 128, 128>}, {pipeline_mode = #tpu.pipeline_mode<synchronous>, transform_indices = @transform_1, window_bounds = array<i64: 1, 128>}, {pipeline_mode = #tpu.pipeline_mode<synchronous>, transform_indices = @transform_2, window_bounds = array<i64: 1, 128>}, {transform_indices = @transform_3, window_bounds = array<i64: 128, 128>}]} {
    %c0 = arith.constant 0 : index
    %c0_0 = arith.constant 0 : index
    %0 = vector.load %arg1[%c0, %c0_0] : memref<128x128xbf16, #tpu.memory_space<vmem>>, vector<128x128xbf16>
    %1 = arith.extf %0 : vector<128x128xbf16> to vector<128x128xf32>
    %c0_1 = arith.constant 0 : index
    %c0_2 = arith.constant 0 : index
    %2 = vector.load %arg2[%c0_1, %c0_2] : memref<1x128xf32, #tpu.memory_space<vmem>>, vector<1x128xf32>
    %3 = vector.broadcast %2 : vector<1x128xf32> to vector<128x128xf32>
    %4 = arith.mulf %1, %3 : vector<128x128xf32>
    %c0_3 = arith.constant 0 : index
    %c0_4 = arith.constant 0 : index
    %5 = vector.load %arg3[%c0_3, %c0_4] : memref<1x128xf32, #tpu.memory_space<vmem>>, vector<1x128xf32>
    %6 = vector.broadcast %5 : vector<1x128xf32> to vector<128x128xf32>
    %7 = arith.addf %4, %6 : vector<128x128xf32>
    %cst = arith.constant 0.000000e+00 : f32
    %8 = vector.broadcast %cst : f32 to vector<128x128xf32>
    %9 = arith.maximumf %7, %8 : vector<128x128xf32>
    %10 = arith.truncf %9 : vector<128x128xf32> to vector<128x128xbf16>
    %c0_5 = arith.constant 0 : index
    %c0_6 = arith.constant 0 : index
    %11 = vector.load %arg4[%c0_5, %c0_6] : memref<128x128xbf16, #tpu.memory_space<vmem>>, vector<128x128xbf16>
    tpu.vector_store %arg4[%c0_5, %c0_6], %10 {strides = array<i32>} : memref<128x128xbf16, #tpu.memory_space<vmem>>, vector<128x128xbf16>,
    return
  }
  func.func @transform_0(%arg0: i32) -> (i32, i32) {
    %c0_i32 = arith.constant 0 : i32
    %c0_i32_0 = arith.constant 0 : i32
    return %arg0, %c0_i32 : i32, i32
  }
  func.func @transform_1(%arg0: i32) -> (i32, i32) {
    %c0_i32 = arith.constant 0 : i32
    %c0_i32_0 = arith.constant 0 : i32
    %c0_i32_1 = arith.constant 0 : i32
    return %c0_i32, %c0_i32_0 : i32, i32
  }
  func.func @transform_2(%arg0: i32) -> (i32, i32) {
    %c0_i32 = arith.constant 0 : i32
    %c0_i32_0 = arith.constant 0 : i32
    %c0_i32_1 = arith.constant 0 : i32
    return %c0_i32, %c0_i32_0 : i32, i32
  }
  func.func @transform_3(%arg0: i32) -> (i32, i32) {
    %c0_i32 = arith.constant 0 : i32
    %c0_i32_0 = arith.constant 0 : i32
    return %arg0, %c0_i32 : i32, i32
  }
}

module attributes {stable_mosaic.version = 11 : i64} {
  func.func @_gemm_stats_kernel_k1(%arg0: i32, %arg1: i32, %arg2: memref<1x128x256xbf16, #tpu.memory_space<vmem>>, %arg3: memref<1x256x128xbf16, #tpu.memory_space<vmem>>, %arg4: memref<1x128x128xbf16, #tpu.memory_space<vmem>>, %arg5: memref<1x8x128xf32, #tpu.memory_space<vmem>>, %arg6: memref<1x8x128xf32, #tpu.memory_space<vmem>>) attributes {dimension_semantics = [#tpu.dimension_semantics<parallel>, #tpu.dimension_semantics<parallel>], iteration_bounds = array<i64: 4, 1>, scalar_prefetch = 0 : i64, scratch_operands = 0 : i64, tpu.core_type = #tpu.core_type<tc>, window_params = [{transform_indices = @transform_0, window_bounds = array<i64: 1, 128, 256>}, {transform_indices = @transform_1, window_bounds = array<i64: 1, 256, 128>}, {transform_indices = @transform_2, window_bounds = array<i64: 1, 128, 128>}, {transform_indices = @transform_3, window_bounds = array<i64: 1, 8, 128>}, {transform_indices = @transform_4, window_bounds = array<i64: 1, 8, 128>}]} {
    %c0 = arith.constant 0 : index
    %c0_0 = arith.constant 0 : index
    %c0_1 = arith.constant 0 : index
    %0 = vector.load %arg2[%c0, %c0_0, %c0_1] : memref<1x128x256xbf16, #tpu.memory_space<vmem>>, vector<1x128x256xbf16>
    %1 = vector.shape_cast %0 : vector<1x128x256xbf16> to vector<128x256xbf16>
    %c0_2 = arith.constant 0 : index
    %c0_3 = arith.constant 0 : index
    %c0_4 = arith.constant 0 : index
    %2 = vector.load %arg3[%c0_2, %c0_3, %c0_4] : memref<1x256x128xbf16, #tpu.memory_space<vmem>>, vector<1x256x128xbf16>
    %3 = vector.shape_cast %2 : vector<1x256x128xbf16> to vector<256x128xbf16>
    %cst = arith.constant dense<0.000000e+00> : vector<128x128xf32>
    %4 = tpu.matmul %1, %3, %cst {dimension_numbers = #tpu.dot_dimension_numbers<[1], [0], [0], [1], [0, 0, 1, 1], [], []>} : vector<128x256xbf16>, vector<256x128xbf16>, vector<128x128xf32> -> vector<128x128xf32>
    %5 = arith.truncf %4 : vector<128x128xf32> to vector<128x128xbf16>
    %c0_5 = arith.constant 0 : index
    %c0_6 = arith.constant 0 : index
    %c0_7 = arith.constant 0 : index
    %6 = vector.load %arg4[%c0_5, %c0_6, %c0_7] : memref<1x128x128xbf16, #tpu.memory_space<vmem>>, vector<1x128x128xbf16>
    %7 = vector.shape_cast %6 : vector<1x128x128xbf16> to vector<128x128xbf16>
    %8 = vector.shape_cast %5 : vector<128x128xbf16> to vector<1x128x128xbf16>
    tpu.vector_store %arg4[%c0_5, %c0_6, %c0_7], %8 {strides = array<i32>} : memref<1x128x128xbf16, #tpu.memory_space<vmem>>, vector<1x128x128xbf16>,
    %9 = vector.shape_cast %4 : vector<128x128xf32> to vector<16x8x128xf32>
    %cst_8 = arith.constant dense<0.000000e+00> : vector<8x128xf32>
    %10 = vector.multi_reduction <add>, %9, %cst_8 [0] : vector<16x8x128xf32> to vector<8x128xf32>
    %11 = arith.mulf %9, %9 : vector<16x8x128xf32>
    %cst_9 = arith.constant dense<0.000000e+00> : vector<8x128xf32>
    %12 = vector.multi_reduction <add>, %11, %cst_9 [0] : vector<16x8x128xf32> to vector<8x128xf32>
    %c0_10 = arith.constant 0 : index
    %c0_11 = arith.constant 0 : index
    %c0_12 = arith.constant 0 : index
    %13 = vector.load %arg5[%c0_10, %c0_11, %c0_12] : memref<1x8x128xf32, #tpu.memory_space<vmem>>, vector<1x8x128xf32>
    %14 = vector.shape_cast %13 : vector<1x8x128xf32> to vector<8x128xf32>
    %15 = vector.shape_cast %10 : vector<8x128xf32> to vector<1x8x128xf32>
    tpu.vector_store %arg5[%c0_10, %c0_11, %c0_12], %15 {strides = array<i32>} : memref<1x8x128xf32, #tpu.memory_space<vmem>>, vector<1x8x128xf32>,
    %c0_13 = arith.constant 0 : index
    %c0_14 = arith.constant 0 : index
    %c0_15 = arith.constant 0 : index
    %16 = vector.load %arg6[%c0_13, %c0_14, %c0_15] : memref<1x8x128xf32, #tpu.memory_space<vmem>>, vector<1x8x128xf32>
    %17 = vector.shape_cast %16 : vector<1x8x128xf32> to vector<8x128xf32>
    %18 = vector.shape_cast %12 : vector<8x128xf32> to vector<1x8x128xf32>
    tpu.vector_store %arg6[%c0_13, %c0_14, %c0_15], %18 {strides = array<i32>} : memref<1x8x128xf32, #tpu.memory_space<vmem>>, vector<1x8x128xf32>,
    return
  }
  func.func @transform_0(%arg0: i32, %arg1: i32) -> (i32, i32, i32) {
    %c0_i32 = arith.constant 0 : i32
    %c0_i32_0 = arith.constant 0 : i32
    return %arg0, %arg1, %c0_i32 : i32, i32, i32
  }
  func.func @transform_1(%arg0: i32, %arg1: i32) -> (i32, i32, i32) {
    %c0_i32 = arith.constant 0 : i32
    %c0_i32_0 = arith.constant 0 : i32
    %c0_i32_1 = arith.constant 0 : i32
    return %arg0, %c0_i32, %c0_i32_0 : i32, i32, i32
  }
  func.func @transform_2(%arg0: i32, %arg1: i32) -> (i32, i32, i32) {
    %c0_i32 = arith.constant 0 : i32
    %c0_i32_0 = arith.constant 0 : i32
    return %arg0, %arg1, %c0_i32 : i32, i32, i32
  }
  func.func @transform_3(%arg0: i32, %arg1: i32) -> (i32, i32, i32) {
    %c0_i32 = arith.constant 0 : i32
    %c0_i32_0 = arith.constant 0 : i32
    return %arg0, %arg1, %c0_i32 : i32, i32, i32
  }
  func.func @transform_4(%arg0: i32, %arg1: i32) -> (i32, i32, i32) {
    %c0_i32 = arith.constant 0 : i32
    %c0_i32_0 = arith.constant 0 : i32
    return %arg0, %arg1, %c0_i32 : i32, i32, i32
  }
}

module attributes {stable_mosaic.version = 11 : i64} {
  func.func @_bn_act_kernel(%arg0: i32, %arg1: memref<512x128xbf16, #tpu.memory_space<vmem>>, %arg2: memref<1x128xf32, #tpu.memory_space<vmem>>, %arg3: memref<1x128xf32, #tpu.memory_space<vmem>>, %arg4: memref<512x128xbf16, #tpu.memory_space<vmem>>) attributes {dimension_semantics = [#tpu.dimension_semantics<parallel>], iteration_bounds = array<i64: 1>, scalar_prefetch = 0 : i64, scratch_operands = 0 : i64, tpu.core_type = #tpu.core_type<tc>, window_params = [{transform_indices = @transform_0, window_bounds = array<i64: 512, 128>}, {pipeline_mode = #tpu.pipeline_mode<synchronous>, transform_indices = @transform_1, window_bounds = array<i64: 1, 128>}, {pipeline_mode = #tpu.pipeline_mode<synchronous>, transform_indices = @transform_2, window_bounds = array<i64: 1, 128>}, {transform_indices = @transform_3, window_bounds = array<i64: 512, 128>}]} {
    %c0 = arith.constant 0 : index
    %c0_0 = arith.constant 0 : index
    %0 = vector.load %arg1[%c0, %c0_0] : memref<512x128xbf16, #tpu.memory_space<vmem>>, vector<512x128xbf16>
    %1 = arith.extf %0 : vector<512x128xbf16> to vector<512x128xf32>
    %c0_1 = arith.constant 0 : index
    %c0_2 = arith.constant 0 : index
    %2 = vector.load %arg2[%c0_1, %c0_2] : memref<1x128xf32, #tpu.memory_space<vmem>>, vector<1x128xf32>
    %3 = vector.broadcast %2 : vector<1x128xf32> to vector<512x128xf32>
    %4 = arith.mulf %1, %3 : vector<512x128xf32>
    %c0_3 = arith.constant 0 : index
    %c0_4 = arith.constant 0 : index
    %5 = vector.load %arg3[%c0_3, %c0_4] : memref<1x128xf32, #tpu.memory_space<vmem>>, vector<1x128xf32>
    %6 = vector.broadcast %5 : vector<1x128xf32> to vector<512x128xf32>
    %7 = arith.addf %4, %6 : vector<512x128xf32>
    %cst = arith.constant 0.000000e+00 : f32
    %8 = vector.broadcast %cst : f32 to vector<512x128xf32>
    %9 = arith.maximumf %7, %8 : vector<512x128xf32>
    %10 = arith.truncf %9 : vector<512x128xf32> to vector<512x128xbf16>
    %c0_5 = arith.constant 0 : index
    %c0_6 = arith.constant 0 : index
    %11 = vector.load %arg4[%c0_5, %c0_6] : memref<512x128xbf16, #tpu.memory_space<vmem>>, vector<512x128xbf16>
    tpu.vector_store %arg4[%c0_5, %c0_6], %10 {strides = array<i32>} : memref<512x128xbf16, #tpu.memory_space<vmem>>, vector<512x128xbf16>,
    return
  }
  func.func @transform_0(%arg0: i32) -> (i32, i32) {
    %c0_i32 = arith.constant 0 : i32
    %c0_i32_0 = arith.constant 0 : i32
    return %arg0, %c0_i32 : i32, i32
  }
  func.func @transform_1(%arg0: i32) -> (i32, i32) {
    %c0_i32 = arith.constant 0 : i32
    %c0_i32_0 = arith.constant 0 : i32
    %c0_i32_1 = arith.constant 0 : i32
    return %c0_i32, %c0_i32_0 : i32, i32
  }
  func.func @transform_2(%arg0: i32) -> (i32, i32) {
    %c0_i32 = arith.constant 0 : i32
    %c0_i32_0 = arith.constant 0 : i32
    %c0_i32_1 = arith.constant 0 : i32
    return %c0_i32, %c0_i32_0 : i32, i32
  }
  func.func @transform_3(%arg0: i32) -> (i32, i32) {
    %c0_i32 = arith.constant 0 : i32
    %c0_i32_0 = arith.constant 0 : i32
    return %arg0, %c0_i32 : i32, i32
  }
}

module attributes {stable_mosaic.version = 11 : i64} {
  func.func @_gemm_stats_kernel_k1(%arg0: i32, %arg1: i32, %arg2: memref<1x512x128xbf16, #tpu.memory_space<vmem>>, %arg3: memref<1x128x128xbf16, #tpu.memory_space<vmem>>, %arg4: memref<1x512x128xbf16, #tpu.memory_space<vmem>>, %arg5: memref<1x8x128xf32, #tpu.memory_space<vmem>>, %arg6: memref<1x8x128xf32, #tpu.memory_space<vmem>>) attributes {dimension_semantics = [#tpu.dimension_semantics<parallel>, #tpu.dimension_semantics<parallel>], iteration_bounds = array<i64: 4, 1>, scalar_prefetch = 0 : i64, scratch_operands = 0 : i64, tpu.core_type = #tpu.core_type<tc>, window_params = [{transform_indices = @transform_0, window_bounds = array<i64: 1, 512, 128>}, {transform_indices = @transform_1, window_bounds = array<i64: 1, 128, 128>}, {transform_indices = @transform_2, window_bounds = array<i64: 1, 512, 128>}, {transform_indices = @transform_3, window_bounds = array<i64: 1, 8, 128>}, {transform_indices = @transform_4, window_bounds = array<i64: 1, 8, 128>}]} {
    %c0 = arith.constant 0 : index
    %c0_0 = arith.constant 0 : index
    %c0_1 = arith.constant 0 : index
    %0 = vector.load %arg2[%c0, %c0_0, %c0_1] : memref<1x512x128xbf16, #tpu.memory_space<vmem>>, vector<1x512x128xbf16>
    %1 = vector.shape_cast %0 : vector<1x512x128xbf16> to vector<512x128xbf16>
    %c0_2 = arith.constant 0 : index
    %c0_3 = arith.constant 0 : index
    %c0_4 = arith.constant 0 : index
    %2 = vector.load %arg3[%c0_2, %c0_3, %c0_4] : memref<1x128x128xbf16, #tpu.memory_space<vmem>>, vector<1x128x128xbf16>
    %3 = vector.shape_cast %2 : vector<1x128x128xbf16> to vector<128x128xbf16>
    %cst = arith.constant dense<0.000000e+00> : vector<512x128xf32>
    %4 = tpu.matmul %1, %3, %cst {dimension_numbers = #tpu.dot_dimension_numbers<[1], [0], [0], [1], [0, 0, 1, 1], [], []>} : vector<512x128xbf16>, vector<128x128xbf16>, vector<512x128xf32> -> vector<512x128xf32>
    %5 = arith.truncf %4 : vector<512x128xf32> to vector<512x128xbf16>
    %c0_5 = arith.constant 0 : index
    %c0_6 = arith.constant 0 : index
    %c0_7 = arith.constant 0 : index
    %6 = vector.load %arg4[%c0_5, %c0_6, %c0_7] : memref<1x512x128xbf16, #tpu.memory_space<vmem>>, vector<1x512x128xbf16>
    %7 = vector.shape_cast %6 : vector<1x512x128xbf16> to vector<512x128xbf16>
    %8 = vector.shape_cast %5 : vector<512x128xbf16> to vector<1x512x128xbf16>
    tpu.vector_store %arg4[%c0_5, %c0_6, %c0_7], %8 {strides = array<i32>} : memref<1x512x128xbf16, #tpu.memory_space<vmem>>, vector<1x512x128xbf16>,
    %9 = vector.shape_cast %4 : vector<512x128xf32> to vector<64x8x128xf32>
    %cst_8 = arith.constant dense<0.000000e+00> : vector<8x128xf32>
    %10 = vector.multi_reduction <add>, %9, %cst_8 [0] : vector<64x8x128xf32> to vector<8x128xf32>
    %11 = arith.mulf %9, %9 : vector<64x8x128xf32>
    %cst_9 = arith.constant dense<0.000000e+00> : vector<8x128xf32>
    %12 = vector.multi_reduction <add>, %11, %cst_9 [0] : vector<64x8x128xf32> to vector<8x128xf32>
    %c0_10 = arith.constant 0 : index
    %c0_11 = arith.constant 0 : index
    %c0_12 = arith.constant 0 : index
    %13 = vector.load %arg5[%c0_10, %c0_11, %c0_12] : memref<1x8x128xf32, #tpu.memory_space<vmem>>, vector<1x8x128xf32>
    %14 = vector.shape_cast %13 : vector<1x8x128xf32> to vector<8x128xf32>
    %15 = vector.shape_cast %10 : vector<8x128xf32> to vector<1x8x128xf32>
    tpu.vector_store %arg5[%c0_10, %c0_11, %c0_12], %15 {strides = array<i32>} : memref<1x8x128xf32, #tpu.memory_space<vmem>>, vector<1x8x128xf32>,
    %c0_13 = arith.constant 0 : index
    %c0_14 = arith.constant 0 : index
    %c0_15 = arith.constant 0 : index
    %16 = vector.load %arg6[%c0_13, %c0_14, %c0_15] : memref<1x8x128xf32, #tpu.memory_space<vmem>>, vector<1x8x128xf32>
    %17 = vector.shape_cast %16 : vector<1x8x128xf32> to vector<8x128xf32>
    %18 = vector.shape_cast %12 : vector<8x128xf32> to vector<1x8x128xf32>
    tpu.vector_store %arg6[%c0_13, %c0_14, %c0_15], %18 {strides = array<i32>} : memref<1x8x128xf32, #tpu.memory_space<vmem>>, vector<1x8x128xf32>,
    return
  }
  func.func @transform_0(%arg0: i32, %arg1: i32) -> (i32, i32, i32) {
    %c0_i32 = arith.constant 0 : i32
    %c0_i32_0 = arith.constant 0 : i32
    return %arg0, %arg1, %c0_i32 : i32, i32, i32
  }
  func.func @transform_1(%arg0: i32, %arg1: i32) -> (i32, i32, i32) {
    %c0_i32 = arith.constant 0 : i32
    %c0_i32_0 = arith.constant 0 : i32
    %c0_i32_1 = arith.constant 0 : i32
    return %arg0, %c0_i32, %c0_i32_0 : i32, i32, i32
  }
  func.func @transform_2(%arg0: i32, %arg1: i32) -> (i32, i32, i32) {
    %c0_i32 = arith.constant 0 : i32
    %c0_i32_0 = arith.constant 0 : i32
    return %arg0, %arg1, %c0_i32 : i32, i32, i32
  }
  func.func @transform_3(%arg0: i32, %arg1: i32) -> (i32, i32, i32) {
    %c0_i32 = arith.constant 0 : i32
    %c0_i32_0 = arith.constant 0 : i32
    return %arg0, %arg1, %c0_i32 : i32, i32, i32
  }
  func.func @transform_4(%arg0: i32, %arg1: i32) -> (i32, i32, i32) {
    %c0_i32 = arith.constant 0 : i32
    %c0_i32_0 = arith.constant 0 : i32
    return %arg0, %arg1, %c0_i32 : i32, i32, i32
  }
}

module attributes {stable_mosaic.version = 11 : i64} {
  func.func @_bn_act_kernel(%arg0: i32, %arg1: memref<1024x128xbf16, #tpu.memory_space<vmem>>, %arg2: memref<1x128xf32, #tpu.memory_space<vmem>>, %arg3: memref<1x128xf32, #tpu.memory_space<vmem>>, %arg4: memref<1024x128xbf16, #tpu.memory_space<vmem>>) attributes {dimension_semantics = [#tpu.dimension_semantics<parallel>], iteration_bounds = array<i64: 2>, scalar_prefetch = 0 : i64, scratch_operands = 0 : i64, tpu.core_type = #tpu.core_type<tc>, window_params = [{transform_indices = @transform_0, window_bounds = array<i64: 1024, 128>}, {pipeline_mode = #tpu.pipeline_mode<synchronous>, transform_indices = @transform_1, window_bounds = array<i64: 1, 128>}, {pipeline_mode = #tpu.pipeline_mode<synchronous>, transform_indices = @transform_2, window_bounds = array<i64: 1, 128>}, {transform_indices = @transform_3, window_bounds = array<i64: 1024, 128>}]} {
    %c0 = arith.constant 0 : index
    %c0_0 = arith.constant 0 : index
    %0 = vector.load %arg1[%c0, %c0_0] : memref<1024x128xbf16, #tpu.memory_space<vmem>>, vector<1024x128xbf16>
    %1 = arith.extf %0 : vector<1024x128xbf16> to vector<1024x128xf32>
    %c0_1 = arith.constant 0 : index
    %c0_2 = arith.constant 0 : index
    %2 = vector.load %arg2[%c0_1, %c0_2] : memref<1x128xf32, #tpu.memory_space<vmem>>, vector<1x128xf32>
    %3 = vector.broadcast %2 : vector<1x128xf32> to vector<1024x128xf32>
    %4 = arith.mulf %1, %3 : vector<1024x128xf32>
    %c0_3 = arith.constant 0 : index
    %c0_4 = arith.constant 0 : index
    %5 = vector.load %arg3[%c0_3, %c0_4] : memref<1x128xf32, #tpu.memory_space<vmem>>, vector<1x128xf32>
    %6 = vector.broadcast %5 : vector<1x128xf32> to vector<1024x128xf32>
    %7 = arith.addf %4, %6 : vector<1024x128xf32>
    %cst = arith.constant 0.000000e+00 : f32
    %8 = vector.broadcast %cst : f32 to vector<1024x128xf32>
    %9 = arith.maximumf %7, %8 : vector<1024x128xf32>
    %10 = arith.truncf %9 : vector<1024x128xf32> to vector<1024x128xbf16>
    %c0_5 = arith.constant 0 : index
    %c0_6 = arith.constant 0 : index
    %11 = vector.load %arg4[%c0_5, %c0_6] : memref<1024x128xbf16, #tpu.memory_space<vmem>>, vector<1024x128xbf16>
    tpu.vector_store %arg4[%c0_5, %c0_6], %10 {strides = array<i32>} : memref<1024x128xbf16, #tpu.memory_space<vmem>>, vector<1024x128xbf16>,
    return
  }
  func.func @transform_0(%arg0: i32) -> (i32, i32) {
    %c0_i32 = arith.constant 0 : i32
    %c0_i32_0 = arith.constant 0 : i32
    return %arg0, %c0_i32 : i32, i32
  }
  func.func @transform_1(%arg0: i32) -> (i32, i32) {
    %c0_i32 = arith.constant 0 : i32
    %c0_i32_0 = arith.constant 0 : i32
    %c0_i32_1 = arith.constant 0 : i32
    return %c0_i32, %c0_i32_0 : i32, i32
  }
  func.func @transform_2(%arg0: i32) -> (i32, i32) {
    %c0_i32 = arith.constant 0 : i32
    %c0_i32_0 = arith.constant 0 : i32
    %c0_i32_1 = arith.constant 0 : i32
    return %c0_i32, %c0_i32_0 : i32, i32
  }
  func.func @transform_3(%arg0: i32) -> (i32, i32) {
    %c0_i32 = arith.constant 0 : i32
    %c0_i32_0 = arith.constant 0 : i32
    return %arg0, %c0_i32 : i32, i32
  }
}

module attributes {stable_mosaic.version = 11 : i64} {
  func.func @_gemm_act_kernel_k1(%arg0: i32, %arg1: i32, %arg2: memref<1x2048x128xbf16, #tpu.memory_space<vmem>>, %arg3: memref<1x128x128xbf16, #tpu.memory_space<vmem>>, %arg4: memref<1x2048x128xf32, #tpu.memory_space<vmem>>) attributes {dimension_semantics = [#tpu.dimension_semantics<parallel>, #tpu.dimension_semantics<parallel>], iteration_bounds = array<i64: 4, 1>, scalar_prefetch = 0 : i64, scratch_operands = 0 : i64, tpu.core_type = #tpu.core_type<tc>, window_params = [{transform_indices = @transform_0, window_bounds = array<i64: 1, 2048, 128>}, {transform_indices = @transform_1, window_bounds = array<i64: 1, 128, 128>}, {transform_indices = @transform_2, window_bounds = array<i64: 1, 2048, 128>}]} {
    %c0 = arith.constant 0 : index
    %c0_0 = arith.constant 0 : index
    %c0_1 = arith.constant 0 : index
    %0 = vector.load %arg2[%c0, %c0_0, %c0_1] : memref<1x2048x128xbf16, #tpu.memory_space<vmem>>, vector<1x2048x128xbf16>
    %1 = vector.shape_cast %0 : vector<1x2048x128xbf16> to vector<2048x128xbf16>
    %c0_2 = arith.constant 0 : index
    %c0_3 = arith.constant 0 : index
    %c0_4 = arith.constant 0 : index
    %2 = vector.load %arg3[%c0_2, %c0_3, %c0_4] : memref<1x128x128xbf16, #tpu.memory_space<vmem>>, vector<1x128x128xbf16>
    %3 = vector.shape_cast %2 : vector<1x128x128xbf16> to vector<128x128xbf16>
    %cst = arith.constant dense<0.000000e+00> : vector<2048x128xf32>
    %4 = tpu.matmul %1, %3, %cst {dimension_numbers = #tpu.dot_dimension_numbers<[1], [0], [0], [1], [0, 0, 1, 1], [], []>} : vector<2048x128xbf16>, vector<128x128xbf16>, vector<2048x128xf32> -> vector<2048x128xf32>
    %5 = math.tanh %4 : vector<2048x128xf32>
    %c0_5 = arith.constant 0 : index
    %c0_6 = arith.constant 0 : index
    %c0_7 = arith.constant 0 : index
    %6 = vector.load %arg4[%c0_5, %c0_6, %c0_7] : memref<1x2048x128xf32, #tpu.memory_space<vmem>>, vector<1x2048x128xf32>
    %7 = vector.shape_cast %6 : vector<1x2048x128xf32> to vector<2048x128xf32>
    %8 = vector.shape_cast %5 : vector<2048x128xf32> to vector<1x2048x128xf32>
    tpu.vector_store %arg4[%c0_5, %c0_6, %c0_7], %8 {strides = array<i32>} : memref<1x2048x128xf32, #tpu.memory_space<vmem>>, vector<1x2048x128xf32>,
    return
  }
  func.func @transform_0(%arg0: i32, %arg1: i32) -> (i32, i32, i32) {
    %c0_i32 = arith.constant 0 : i32
    %c0_i32_0 = arith.constant 0 : i32
    return %arg0, %arg1, %c0_i32 : i32, i32, i32
  }
  func.func @transform_1(%arg0: i32, %arg1: i32) -> (i32, i32, i32) {
    %c0_i32 = arith.constant 0 : i32
    %c0_i32_0 = arith.constant 0 : i32
    %c0_i32_1 = arith.constant 0 : i32
    return %arg0, %c0_i32, %c0_i32_0 : i32, i32, i32
  }
  func.func @transform_2(%arg0: i32, %arg1: i32) -> (i32, i32, i32) {
    %c0_i32 = arith.constant 0 : i32
    %c0_i32_0 = arith.constant 0 : i32
    return %arg0, %arg1, %c0_i32 : i32, i32, i32
  }
}

</mosaic_0001>

<llo_original>
// kernel: tile.17
$region0: #{tile.17}
  #allocation0 [shape = 's32[1]{0}', space=sflag, size = 0x4, scoped, tag = 'scoped memory for tile.17']
  %s0 = inlined_call_operand.vmem [shape: f32[128], index: 0, kind: input, shape index: {}]
  %s1 = inlined_call_operand.vmem [shape: f32[16,128], index: 1, kind: output, shape index: {}]
  // Predicated region
  $region2: #{tile.17} parent=0 // pred_check
    _
  $region3: #{tile.17} parent=0 // pred_check_branch
    %3 = sbr.rel (0) target = $region5
  $region4: #{tile.17} parent=0 // pred_region
    _
  $region5: #{tile.17} parent=0 // pred_fallthru
    _
  %v4 = vld [vmem:[%s0] ss:$0 sm:$0xff]
  %5 = vst [vmem:[%s1] sm:$0xff] %v4
  %s6 = scalar_lea.vmem %s1, 8
  %7 = vst [vmem:[%s6] sm:$0xff] %v4

// kernel: squeeze.65
$region0: #{squeeze.65}
  %s0 = inlined_call_operand.vmem [shape: bf16[1,2,2048], index: 0, kind: input, shape index: {}]
  %s1 = inlined_call_operand.vmem [shape: bf16[2,4,4,128], index: 1, kind: output, shape index: {}]
  $region1: #{squeeze.65} parent=0
    #allocation0 [shape = 'u8[32768]{0}', space=vmem, size = 0x8000, scoped, tag = 'scoped mem for output reshape']
    #allocation1 [shape = 'u8[65536]{0}', space=vmem, size = 0x10000, scoped, tag = 'scoped mem for input reshape']
    %s3 = smul.u32 1, 2
    %s4 = sshllo.u32 0, %s3
    %s5 = smul.addr 1, 15
    %s6 = scalar_lea.vmem %s0, %s5
    %s7 = sshrl.u32 %s4, 1
    %s8 = sor.u32 %s4, %s7
    %s9 = sand.u32 %s8, 85
    %s10 = sshrl.u32 %s9, 1
    %s11 = sor.u32 %s9, %s10
    %s12 = sand.u32 51, %s11
    %s13 = sshrl.u32 %s12, 2
    %s14 = sor.u32 %s12, %s13
    %s15 = sand.u32 15, %s14
    %v16 = vld [vmem:[%s6] sm:%s15]
    %v17 = vunpack.c.l.bf16 %v16
    %v18 = vunpack.c.h.bf16 %v16
    %s19 = scalar_lea.vmem [#allocation1], 120
    %20 = vst [vmem:[%s19] sm:%s4] %v17
    %s21 = smul.addr 1, 14
    %s22 = scalar_lea.vmem %s0, %s21
    %s23 = sshrl.u32 %s4, 1
    %s24 = sor.u32 %s4, %s23
    %s25 = sand.u32 %s24, 85
    %s26 = sshrl.u32 %s25, 1
    %s27 = sor.u32 %s25, %s26
    %s28 = sand.u32 51, %s27
    %s29 = sshrl.u32 %s28, 2
    %s30 = sor.u32 %s28, %s29
    %s31 = sand.u32 15, %s30
    %v32 = vld [vmem:[%s22] sm:%s31]
    %v33 = vunpack.c.l.bf16 %v32
    %v34 = vunpack.c.h.bf16 %v32
    %s35 = scalar_lea.vmem [#allocation1], 112
    %36 = vst [vmem:[%s35] sm:%s4] %v33
    %s37 = smul.addr 1, 13
    %s38 = scalar_lea.vmem %s0, %s37
    %s39 = sshrl.u32 %s4, 1
    %s40 = sor.u32 %s4, %s39
    %s41 = sand.u32 %s40, 85
    %s42 = sshrl.u32 %s41, 1
    %s43 = sor.u32 %s41, %s42
    %s44 = sand.u32 51, %s43
    %s45 = sshrl.u32 %s44, 2
    %s46 = sor.u32 %s44, %s45
    %s47 = sand.u32 15, %s46
    %v48 = vld [vmem:[%s38] sm:%s47]
    %v49 = vunpack.c.l.bf16 %v48
    %v50 = vunpack.c.h.bf16 %v48
    %s51 = scalar_lea.vmem [#allocation1], 104
    %52 = vst [vmem:[%s51] sm:%s4] %v49
    %s53 = smul.addr 1, 12
    %s54 = scalar_lea.vmem %s0, %s53
    %s55 = sshrl.u32 %s4, 1
    %s56 = sor.u32 %s4, %s55
    %s57 = sand.u32 %s56, 85
    %s58 = sshrl.u32 %s57, 1
    %s59 = sor.u32 %s57, %s58
    %s60 = sand.u32 51, %s59
    %s61 = sshrl.u32 %s60, 2
    %s62 = sor.u32 %s60, %s61
    %s63 = sand.u32 15, %s62
    %v64 = vld [vmem:[%s54] sm:%s63]
    %v65 = vunpack.c.l.bf16 %v64
    %v66 = vunpack.c.h.bf16 %v64
    %s67 = scalar_lea.vmem [#allocation1], 96
    %68 = vst [vmem:[%s67] sm:%s4] %v65
    %s69 = smul.addr 1, 11
    %s70 = scalar_lea.vmem %s0, %s69
    %s71 = sshrl.u32 %s4, 1
    %s72 = sor.u32 %s4, %s71
    %s73 = sand.u32 %s72, 85
    %s74 = sshrl.u32 %s73, 1
    %s75 = sor.u32 %s73, %s74
    %s76 = sand.u32 51, %s75
    %s77 = sshrl.u32 %s76, 2
    %s78 = sor.u32 %s76, %s77
    %s79 = sand.u32 15, %s78
    %v80 = vld [vmem:[%s70] sm:%s79]
    %v81 = vunpack.c.l.bf16 %v80
    %v82 = vunpack.c.h.bf16 %v80
    %s83 = scalar_lea.vmem [#allocation1], 88
    %84 = vst [vmem:[%s83] sm:%s4] %v81
    %s85 = smul.addr 1, 10
    %s86 = scalar_lea.vmem %s0, %s85
    %s87 = sshrl.u32 %s4, 1
    %s88 = sor.u32 %s4, %s87
    %s89 = sand.u32 %s88, 85
    %s90 = sshrl.u32 %s89, 1
    %s91 = sor.u32 %s89, %s90
    %s92 = sand.u32 51, %s91
    %s93 = sshrl.u32 %s92, 2
    %s94 = sor.u32 %s92, %s93
    %s95 = sand.u32 15, %s94
    %v96 = vld [vmem:[%s86] sm:%s95]
    %v97 = vunpack.c.l.bf16 %v96
    %v98 = vunpack.c.h.bf16 %v96
    %s99 = scalar_lea.vmem [#allocation1], 80
    %100 = vst [vmem:[%s99] sm:%s4] %v97
    %s101 = smul.addr 1, 9
    %s102 = scalar_lea.vmem %s0, %s101
    %s103 = sshrl.u32 %s4, 1
    %s104 = sor.u32 %s4, %s103
    %s105 = sand.u32 %s104, 85
    %s106 = sshrl.u32 %s105, 1
    %s107 = sor.u32 %s105, %s106
    %s108 = sand.u32 51, %s107
    %s109 = sshrl.u32 %s108, 2
    %s110 = sor.u32 %s108, %s109
    %s111 = sand.u32 15, %s110
    %v112 = vld [vmem:[%s102] sm:%s111]
    %v113 = vunpack.c.l.bf16 %v112
    %v114 = vunpack.c.h.bf16 %v112
    %s115 = scalar_lea.vmem [#allocation1], 72
    %116 = vst [vmem:[%s115] sm:%s4] %v113
    %s117 = smul.addr 1, 8
    %s118 = scalar_lea.vmem %s0, %s117
    %s119 = sshrl.u32 %s4, 1
    %s120 = sor.u32 %s4, %s119
    %s121 = sand.u32 %s120, 85
    %s122 = sshrl.u32 %s121, 1
    %s123 = sor.u32 %s121, %s122
    %s124 = sand.u32 51, %s123
    %s125 = sshrl.u32 %s124, 2
    %s126 = sor.u32 %s124, %s125
    %s127 = sand.u32 15, %s126
    %v128 = vld [vmem:[%s118] sm:%s127]
    %v129 = vunpack.c.l.bf16 %v128
    %v130 = vunpack.c.h.bf16 %v128
    %s131 = scalar_lea.vmem [#allocation1], 64
    %132 = vst [vmem:[%s131] sm:%s4] %v129
    %s133 = smul.addr 1, 7
    %s134 = scalar_lea.vmem %s0, %s133
    %s135 = sshrl.u32 %s4, 1
    %s136 = sor.u32 %s4, %s135
    %s137 = sand.u32 %s136, 85
    %s138 = sshrl.u32 %s137, 1
    %s139 = sor.u32 %s137, %s138
    %s140 = sand.u32 51, %s139
    %s141 = sshrl.u32 %s140, 2
    %s142 = sor.u32 %s140, %s141
    %s143 = sand.u32 15, %s142
    %v144 = vld [vmem:[%s134] sm:%s143]
    %v145 = vunpack.c.l.bf16 %v144
    %v146 = vunpack.c.h.bf16 %v144
    %s147 = scalar_lea.vmem [#allocation1], 56
    %148 = vst [vmem:[%s147] sm:%s4] %v145
    %s149 = smul.addr 1, 6
    %s150 = scalar_lea.vmem %s0, %s149
    %s151 = sshrl.u32 %s4, 1
    %s152 = sor.u32 %s4, %s151
    %s153 = sand.u32 %s152, 85
    %s154 = sshrl.u32 %s153, 1
    %s155 = sor.u32 %s153, %s154
    %s156 = sand.u32 51, %s155
    %s157 = sshrl.u32 %s156, 2
    %s158 = sor.u32 %s156, %s157
    %s159 = sand.u32 15, %s158
    %v160 = vld [vmem:[%s150] sm:%s159]
    %v161 = vunpack.c.l.bf16 %v160
    %v162 = vunpack.c.h.bf16 %v160
    %s163 = scalar_lea.vmem [#allocation1], 48
    %164 = vst [vmem:[%s163] sm:%s4] %v161
    %s165 = smul.addr 1, 5
    %s166 = scalar_lea.vmem %s0, %s165
    %s167 = sshrl.u32 %s4, 1
    %s168 = sor.u32 %s4, %s167
    %s169 = sand.u32 %s168, 85
    %s170 = sshrl.u32 %s169, 1
    %s171 = sor.u32 %s169, %s170
    %s172 = sand.u32 51, %s171
    %s173 = sshrl.u32 %s172, 2
    %s174 = sor.u32 %s172, %s173
    %s175 = sand.u32 15, %s174
    %v176 = vld [vmem:[%s166] sm:%s175]
    %v177 = vunpack.c.l.bf16 %v176
    %v178 = vunpack.c.h.bf16 %v176
    %s179 = scalar_lea.vmem [#allocation1], 40
    %180 = vst [vmem:[%s179] sm:%s4] %v177
    %s181 = smul.addr 1, 4
    %s182 = scalar_lea.vmem %s0, %s181
    %s183 = sshrl.u32 %s4, 1
    %s184 = sor.u32 %s4, %s183
    %s185 = sand.u32 %s184, 85
    %s186 = sshrl.u32 %s185, 1
    %s187 = sor.u32 %s185, %s186
    %s188 = sand.u32 51, %s187
    %s189 = sshrl.u32 %s188, 2
    %s190 = sor.u32 %s188, %s189
    %s191 = sand.u32 15, %s190
    %v192 = vld [vmem:[%s182] sm:%s191]
    %v193 = vunpack.c.l.bf16 %v192
    %v194 = vunpack.c.h.bf16 %v192
    %s195 = scalar_lea.vmem [#allocation1], 32
    %196 = vst [vmem:[%s195] sm:%s4] %v193
    %s197 = smul.addr 1, 3
    %s198 = scalar_lea.vmem %s0, %s197
    %s199 = sshrl.u32 %s4, 1
    %s200 = sor.u32 %s4, %s199
    %s201 = sand.u32 %s200, 85
    %s202 = sshrl.u32 %s201, 1
    %s203 = sor.u32 %s201, %s202
    %s204 = sand.u32 51, %s203
    %s205 = sshrl.u32 %s204, 2
    %s206 = sor.u32 %s204, %s205
    %s207 = sand.u32 15, %s206
    %v208 = vld [vmem:[%s198] sm:%s207]
    %v209 = vunpack.c.l.bf16 %v208
    %v210 = vunpack.c.h.bf16 %v208
    %s211 = scalar_lea.vmem [#allocation1], 24
    %212 = vst [vmem:[%s211] sm:%s4] %v209
    %s213 = smul.addr 1, 2
    %s214 = scalar_lea.vmem %s0, %s213
    %s215 = sshrl.u32 %s4, 1
    %s216 = sor.u32 %s4, %s215
    %s217 = sand.u32 %s216, 85
    %s218 = sshrl.u32 %s217, 1
    %s219 = sor.u32 %s217, %s218
    %s220 = sand.u32 51, %s219
    %s221 = sshrl.u32 %s220, 2
    %s222 = sor.u32 %s220, %s221
    %s223 = sand.u32 15, %s222
    %v224 = vld [vmem:[%s214] sm:%s223]
    %v225 = vunpack.c.l.bf16 %v224
    %v226 = vunpack.c.h.bf16 %v224
    %s227 = scalar_lea.vmem [#allocation1], 16
    %228 = vst [vmem:[%s227] sm:%s4] %v225
    %s229 = scalar_lea.vmem %s0, 1
    %s230 = sshrl.u32 %s4, 1
    %s231 = sor.u32 %s4, %s230
    %s232 = sand.u32 %s231, 85
    %s233 = sshrl.u32 %s232, 1
    %s234 = sor.u32 %s232, %s233
    %s235 = sand.u32 51, %s234
    %s236 = sshrl.u32 %s235, 2
    %s237 = sor.u32 %s235, %s236
    %s238 = sand.u32 15, %s237
    %v239 = vld [vmem:[%s229] sm:%s238]
    %v240 = vunpack.c.l.bf16 %v239
    %v241 = vunpack.c.h.bf16 %v239
    %s242 = scalar_lea.vmem [#allocation1], 8
    %243 = vst [vmem:[%s242] sm:%s4] %v240
    %s244 = sshrl.u32 %s4, 1
    %s245 = sor.u32 %s4, %s244
    %s246 = sand.u32 %s245, 85
    %s247 = sshrl.u32 %s246, 1
    %s248 = sor.u32 %s246, %s247
    %s249 = sand.u32 51, %s248
    %s250 = sshrl.u32 %s249, 2
    %s251 = sor.u32 %s249, %s250
    %s252 = sand.u32 15, %s251
    %v253 = vld [vmem:[%s0] sm:%s252]
    %v254 = vunpack.c.l.bf16 %v253
    %v255 = vunpack.c.h.bf16 %v253
    %256 = vst [vmem:[#allocation1] sm:%s4] %v254
    %v257 = vld [vmem:[#allocation1] sm:$0x3]
    %258 = vst [vmem:[#allocation0] sm:$0x1] %v257
    %s259 = scalar_lea.vmem [#allocation0], 31
    %260 = vst [vmem:[%s259] sm:$0x2] %v257
    %s261 = scalar_lea.vmem [#allocation1], 8
    %v262 = vld [vmem:[%s261] sm:$0x3]
    %s263 = scalar_lea.vmem [#allocation0], 1
    %264 = vst [vmem:[%s263] sm:$0x1] %v262
    %s265 = scalar_lea.vmem [#allocation0], 32
    %266 = vst [vmem:[%s265] sm:$0x2] %v262
    %s267 = scalar_lea.vmem [#allocation1], 16
    %v268 = vld [vmem:[%s267] sm:$0x3]
    %s269 = scalar_lea.vmem [#allocation0], 2
    %270 = vst [vmem:[%s269] sm:$0x1] %v268
    %s271 = scalar_lea.vmem [#allocation0], 33
    %272 = vst [vmem:[%s271] sm:$0x2] %v268
    %s273 = scalar_lea.vmem [#allocation1], 24
    %v274 = vld [vmem:[%s273] sm:$0x3]
    %s275 = scalar_lea.vmem [#allocation0], 3
    %276 = vst [vmem:[%s275] sm:$0x1] %v274
    %s277 = scalar_lea.vmem [#allocation0], 34
    %278 = vst [vmem:[%s277] sm:$0x2] %v274
    %s279 = scalar_lea.vmem [#allocation1], 32
    %v280 = vld [vmem:[%s279] sm:$0x3]
    %s281 = scalar_lea.vmem [#allocation0], 8
    %282 = vst [vmem:[%s281] sm:$0x1] %v280
    %s283 = scalar_lea.vmem [#allocation0], 39
    %284 = vst [vmem:[%s283] sm:$0x2] %v280
    %s285 = scalar_lea.vmem [#allocation1], 40
    %v286 = vld [vmem:[%s285] sm:$0x3]
    %s287 = scalar_lea.vmem [#allocation0], 9
    %288 = vst [vmem:[%s287] sm:$0x1] %v286
    %s289 = scalar_lea.vmem [#allocation0], 40
    %290 = vst [vmem:[%s289] sm:$0x2] %v286
    %s291 = scalar_lea.vmem [#allocation1], 48
    %v292 = vld [vmem:[%s291] sm:$0x3]
    %s293 = scalar_lea.vmem [#allocation0], 10
    %294 = vst [vmem:[%s293] sm:$0x1] %v292
    %s295 = scalar_lea.vmem [#allocation0], 41
    %296 = vst [vmem:[%s295] sm:$0x2] %v292
    %s297 = scalar_lea.vmem [#allocation1], 56
    %v298 = vld [vmem:[%s297] sm:$0x3]
    %s299 = scalar_lea.vmem [#allocation0], 11
    %300 = vst [vmem:[%s299] sm:$0x1] %v298
    %s301 = scalar_lea.vmem [#allocation0], 42
    %302 = vst [vmem:[%s301] sm:$0x2] %v298
    %s303 = scalar_lea.vmem [#allocation1], 64
    %v304 = vld [vmem:[%s303] sm:$0x3]
    %s305 = scalar_lea.vmem [#allocation0], 16
    %306 = vst [vmem:[%s305] sm:$0x1] %v304
    %s307 = scalar_lea.vmem [#allocation0], 47
    %308 = vst [vmem:[%s307] sm:$0x2] %v304
    %s309 = scalar_lea.vmem [#allocation1], 72
    %v310 = vld [vmem:[%s309] sm:$0x3]
    %s311 = scalar_lea.vmem [#allocation0], 17
    %312 = vst [vmem:[%s311] sm:$0x1] %v310
    %s313 = scalar_lea.vmem [#allocation0], 48
    %314 = vst [vmem:[%s313] sm:$0x2] %v310
    %s315 = scalar_lea.vmem [#allocation1], 80
    %v316 = vld [vmem:[%s315] sm:$0x3]
    %s317 = scalar_lea.vmem [#allocation0], 18
    %318 = vst [vmem:[%s317] sm:$0x1] %v316
    %s319 = scalar_lea.vmem [#allocation0], 49
    %320 = vst [vmem:[%s319] sm:$0x2] %v316
    %s321 = scalar_lea.vmem [#allocation1], 88
    %v322 = vld [vmem:[%s321] sm:$0x3]
    %s323 = scalar_lea.vmem [#allocation0], 19
    %324 = vst [vmem:[%s323] sm:$0x1] %v322
    %s325 = scalar_lea.vmem [#allocation0], 50
    %326 = vst [vmem:[%s325] sm:$0x2] %v322
    %s327 = scalar_lea.vmem [#allocation1], 96
    %v328 = vld [vmem:[%s327] sm:$0x3]
    %s329 = scalar_lea.vmem [#allocation0], 24
    %330 = vst [vmem:[%s329] sm:$0x1] %v328
    %s331 = scalar_lea.vmem [#allocation0], 55
    %332 = vst [vmem:[%s331] sm:$0x2] %v328
    %s333 = scalar_lea.vmem [#allocation1], 104
    %v334 = vld [vmem:[%s333] sm:$0x3]
    %s335 = scalar_lea.vmem [#allocation0], 25
    %336 = vst [vmem:[%s335] sm:$0x1] %v334
    %s337 = scalar_lea.vmem [#allocation0], 56
    %338 = vst [vmem:[%s337] sm:$0x2] %v334
    %s339 = scalar_lea.vmem [#allocation1], 112
    %v340 = vld [vmem:[%s339] sm:$0x3]
    %s341 = scalar_lea.vmem [#allocation0], 26
    %342 = vst [vmem:[%s341] sm:$0x1] %v340
    %s343 = scalar_lea.vmem [#allocation0], 57
    %344 = vst [vmem:[%s343] sm:$0x2] %v340
    %s345 = scalar_lea.vmem [#allocation1], 120
    %v346 = vld [vmem:[%s345] sm:$0x3]
    %s347 = scalar_lea.vmem [#allocation0], 27
    %348 = vst [vmem:[%s347] sm:$0x1] %v346
    %s349 = scalar_lea.vmem [#allocation0], 58
    %350 = vst [vmem:[%s349] sm:$0x2] %v346
    %s352 = smul.u32 2, 2
    %s353 = sshllo.u32 0, %s352
    %s354 = sshrl.u32 %s352, 1
    %v355 = vld [vmem:[#allocation0] sm:%s353]
    %v356 = vpack.c.bf16 0.0, %v355
    %s357 = sshllo.u32 0, %s354
    %358 = vst [vmem:[%s1] sm:%s357] %v356
    %s359 = scalar_lea.vmem [#allocation0], 8
    %v360 = vld [vmem:[%s359] sm:%s353]
    %v361 = vpack.c.bf16 0.0, %v360
    %s362 = sshllo.u32 0, %s354
    %s363 = scalar_lea.vmem %s1, 2
    %364 = vst [vmem:[%s363] sm:%s362] %v361
    %s365 = scalar_lea.vmem [#allocation0], 16
    %v366 = vld [vmem:[%s365] sm:%s353]
    %v367 = vpack.c.bf16 0.0, %v366
    %s368 = sshllo.u32 0, %s354
    %s369 = smul.addr 2, 2
    %s370 = scalar_lea.vmem %s1, %s369
    %371 = vst [vmem:[%s370] sm:%s368] %v367
    %s372 = scalar_lea.vmem [#allocation0], 24
    %v373 = vld [vmem:[%s372] sm:%s353]
    %v374 = vpack.c.bf16 0.0, %v373
    %s375 = sshllo.u32 0, %s354
    %s376 = smul.addr 2, 3
    %s377 = scalar_lea.vmem %s1, %s376
    %378 = vst [vmem:[%s377] sm:%s375] %v374
    %s379 = scalar_lea.vmem [#allocation0], 32
    %v380 = vld [vmem:[%s379] sm:%s353]
    %v381 = vpack.c.bf16 0.0, %v380
    %s382 = sshllo.u32 0, %s354
    %s383 = smul.addr 2, 4
    %s384 = scalar_lea.vmem %s1, %s383
    %385 = vst [vmem:[%s384] sm:%s382] %v381
    %s386 = scalar_lea.vmem [#allocation0], 40
    %v387 = vld [vmem:[%s386] sm:%s353]
    %v388 = vpack.c.bf16 0.0, %v387
    %s389 = sshllo.u32 0, %s354
    %s390 = smul.addr 2, 5
    %s391 = scalar_lea.vmem %s1, %s390
    %392 = vst [vmem:[%s391] sm:%s389] %v388
    %s393 = scalar_lea.vmem [#allocation0], 48
    %v394 = vld [vmem:[%s393] sm:%s353]
    %v395 = vpack.c.bf16 0.0, %v394
    %s396 = sshllo.u32 0, %s354
    %s397 = smul.addr 2, 6
    %s398 = scalar_lea.vmem %s1, %s397
    %399 = vst [vmem:[%s398] sm:%s396] %v395
    %s400 = scalar_lea.vmem [#allocation0], 56
    %v401 = vld [vmem:[%s400] sm:%s353]
    %v402 = vpack.c.bf16 0.0, %v401
    %s403 = sshllo.u32 0, %s354
    %s404 = smul.addr 2, 7
    %s405 = scalar_lea.vmem %s1, %s404
    %406 = vst [vmem:[%s405] sm:%s403] %v402

// kernel: generator_forward.10
$region0: #{generator_forward.10}
  #allocation0 [shape = 'u32[]', space=smem, size = 0x4, offset = 0x4, fixed_abs, tag = 'smem constant byte address 0x4 - core index']
  #allocation1 [shape = 'u32[144,128]{1,0:T(1,128)}', space=vmem, size = 0x12000, scoped, tag = 'internal scratch']
  %s0 = inlined_call_operand.vmem [shape: bf16[8,2048], index: 0, kind: input, shape index: {}]
  %s1 = inlined_call_operand.vmem [shape: f32[1,2048], index: 1, kind: input, shape index: {}]
  %s2 = inlined_call_operand.vmem [shape: f32[1,2048], index: 2, kind: input, shape index: {}]
  %s3 = inlined_call_operand.vmem [shape: bf16[8,2048], index: 3, kind: output, shape index: {}]
  %s4 = sld [smem:[#allocation0]]
  $region22: #{generator_forward.10} parent=0
    _
  %s6 = ssub.s32 1, %s4
  %s7 = scalar_select 0, %s6, %s4
  // Predicated region
  $region2: #{generator_forward.10} parent=0 // pred_check
    _
  $region3: #{generator_forward.10} parent=0 // pred_check_branch
    %9 = sbr.rel (0) target = $region5
  $region4: #{generator_forward.10} parent=0 // pred_region
    _
  $region5: #{generator_forward.10} parent=0 // pred_fallthru
    _
  // Predicated region
  $region6: #{generator_forward.10} parent=0 // pred_check
    _
  $region7: #{generator_forward.10} parent=0 // pred_check_branch
    %11 = sbr.rel (0) target = $region9
  $region8: #{generator_forward.10} parent=0 // pred_region
    _
  $region9: #{generator_forward.10} parent=0 // pred_fallthru
    _
  // Predicated region
  $region10: #{generator_forward.10} parent=0 // pred_check
    _
  $region11: #{generator_forward.10} parent=0 // pred_check_branch
    %13 = sbr.rel (0) target = $region13
  $region12: #{generator_forward.10} parent=0 // pred_region
    _
  $region13: #{generator_forward.10} parent=0 // pred_fallthru
    _
  %v14 = vld [vmem:[%s0] sm:$0xff]
  %v15 = vld [vmem:[%s0 + $0x8] sm:$0xff]
  %v16 = vld [vmem:[%s0 + $0x10] sm:$0xff]
  %v17 = vld [vmem:[%s0 + $0x18] sm:$0xff]
  %v18 = vld [vmem:[%s0 + $0x20] sm:$0xff]
  %v19 = vld [vmem:[%s0 + $0x28] sm:$0xff]
  %v20 = vld [vmem:[%s0 + $0x30] sm:$0xff]
  %v21 = vld [vmem:[%s0 + $0x38] sm:$0xff]
  %v22 = vunpack.c.l.bf16 %v14
  %v23 = vunpack.c.h.bf16 %v14
  %v24 = vunpack.c.l.bf16 %v15
  %v25 = vunpack.c.h.bf16 %v15
  %v26 = vunpack.c.l.bf16 %v16
  %v27 = vunpack.c.h.bf16 %v16
  %v28 = vunpack.c.l.bf16 %v17
  %v29 = vunpack.c.h.bf16 %v17
  %v30 = vunpack.c.l.bf16 %v18
  %v31 = vunpack.c.h.bf16 %v18
  %v32 = vunpack.c.l.bf16 %v19
  %v33 = vunpack.c.h.bf16 %v19
  %v34 = vunpack.c.l.bf16 %v20
  %v35 = vunpack.c.h.bf16 %v20
  %v36 = vunpack.c.l.bf16 %v21
  %v37 = vunpack.c.h.bf16 %v21
  %v38 = vld [vmem:[%s1] sm:$0xff]
  %v39 = vld [vmem:[%s1 + $0x8] sm:$0xff]
  %v42 = vlaneseq
  %v43 = vshrl.u32 %v42, 7
  %v44 = vsub.s32 0, %v43
  %v45 = vrot.slane %v38, %v44
  %v46 = vlaneseq
  %v47 = vshrl.u32 %v46, 7
  %v48 = vsub.s32 1, %v47
  %v49 = vrot.slane %v38, %v48
  %v50 = vlaneseq
  %v51 = vshrl.u32 %v50, 7
  %v52 = vsub.s32 2, %v51
  %v53 = vrot.slane %v38, %v52
  %v54 = vlaneseq
  %v55 = vshrl.u32 %v54, 7
  %v56 = vsub.s32 3, %v55
  %v57 = vrot.slane %v38, %v56
  %v58 = vlaneseq
  %v59 = vshrl.u32 %v58, 7
  %v60 = vsub.s32 4, %v59
  %v61 = vrot.slane %v38, %v60
  %v62 = vlaneseq
  %v63 = vshrl.u32 %v62, 7
  %v64 = vsub.s32 5, %v63
  %v65 = vrot.slane %v38, %v64
  %v66 = vlaneseq
  %v67 = vshrl.u32 %v66, 7
  %v68 = vsub.s32 6, %v67
  %v69 = vrot.slane %v38, %v68
  %v70 = vlaneseq
  %v71 = vshrl.u32 %v70, 7
  %v72 = vsub.s32 7, %v71
  %v73 = vrot.slane %v38, %v72
  %v74 = vlaneseq
  %v75 = vshrl.u32 %v74, 7
  %v76 = vsub.s32 0, %v75
  %v77 = vrot.slane %v39, %v76
  %v78 = vlaneseq
  %v79 = vshrl.u32 %v78, 7
  %v80 = vsub.s32 1, %v79
  %v81 = vrot.slane %v39, %v80
  %v82 = vlaneseq
  %v83 = vshrl.u32 %v82, 7
  %v84 = vsub.s32 2, %v83
  %v85 = vrot.slane %v39, %v84
  %v86 = vlaneseq
  %v87 = vshrl.u32 %v86, 7
  %v88 = vsub.s32 3, %v87
  %v89 = vrot.slane %v39, %v88
  %v90 = vlaneseq
  %v91 = vshrl.u32 %v90, 7
  %v92 = vsub.s32 4, %v91
  %v93 = vrot.slane %v39, %v92
  %v94 = vlaneseq
  %v95 = vshrl.u32 %v94, 7
  %v96 = vsub.s32 5, %v95
  %v97 = vrot.slane %v39, %v96
  %v98 = vlaneseq
  %v99 = vshrl.u32 %v98, 7
  %v100 = vsub.s32 6, %v99
  %v101 = vrot.slane %v39, %v100
  %v102 = vlaneseq
  %v103 = vshrl.u32 %v102, 7
  %v104 = vsub.s32 7, %v103
  %v105 = vrot.slane %v39, %v104
  %v122 = vmul.f32 %v22, %v45
  %v123 = vmul.f32 %v23, %v49
  %v124 = vmul.f32 %v24, %v53
  %v125 = vmul.f32 %v25, %v57
  %v126 = vmul.f32 %v26, %v61
  %v127 = vmul.f32 %v27, %v65
  %v128 = vmul.f32 %v28, %v69
  %v129 = vmul.f32 %v29, %v73
  %v130 = vmul.f32 %v30, %v77
  %v131 = vmul.f32 %v31, %v81
  %v132 = vmul.f32 %v32, %v85
  %v133 = vmul.f32 %v33, %v89
  %v134 = vmul.f32 %v34, %v93
  %v135 = vmul.f32 %v35, %v97
  %v136 = vmul.f32 %v36, %v101
  %v137 = vmul.f32 %v37, %v105
  %v138 = vld [vmem:[%s2] sm:$0xff]
  %v139 = vld [vmem:[%s2 + $0x8] sm:$0xff]
  %v142 = vlaneseq
  %v143 = vshrl.u32 %v142, 7
  %v144 = vsub.s32 0, %v143
  %v145 = vrot.slane %v138, %v144
  %v146 = vlaneseq
  %v147 = vshrl.u32 %v146, 7
  %v148 = vsub.s32 1, %v147
  %v149 = vrot.slane %v138, %v148
  %v150 = vlaneseq
  %v151 = vshrl.u32 %v150, 7
  %v152 = vsub.s32 2, %v151
  %v153 = vrot.slane %v138, %v152
  %v154 = vlaneseq
  %v155 = vshrl.u32 %v154, 7
  %v156 = vsub.s32 3, %v155
  %v157 = vrot.slane %v138, %v156
  %v158 = vlaneseq
  %v159 = vshrl.u32 %v158, 7
  %v160 = vsub.s32 4, %v159
  %v161 = vrot.slane %v138, %v160
  %v162 = vlaneseq
  %v163 = vshrl.u32 %v162, 7
  %v164 = vsub.s32 5, %v163
  %v165 = vrot.slane %v138, %v164
  %v166 = vlaneseq
  %v167 = vshrl.u32 %v166, 7
  %v168 = vsub.s32 6, %v167
  %v169 = vrot.slane %v138, %v168
  %v170 = vlaneseq
  %v171 = vshrl.u32 %v170, 7
  %v172 = vsub.s32 7, %v171
  %v173 = vrot.slane %v138, %v172
  %v174 = vlaneseq
  %v175 = vshrl.u32 %v174, 7
  %v176 = vsub.s32 0, %v175
  %v177 = vrot.slane %v139, %v176
  %v178 = vlaneseq
  %v179 = vshrl.u32 %v178, 7
  %v180 = vsub.s32 1, %v179
  %v181 = vrot.slane %v139, %v180
  %v182 = vlaneseq
  %v183 = vshrl.u32 %v182, 7
  %v184 = vsub.s32 2, %v183
  %v185 = vrot.slane %v139, %v184
  %v186 = vlaneseq
  %v187 = vshrl.u32 %v186, 7
  %v188 = vsub.s32 3, %v187
  %v189 = vrot.slane %v139, %v188
  %v190 = vlaneseq
  %v191 = vshrl.u32 %v190, 7
  %v192 = vsub.s32 4, %v191
  %v193 = vrot.slane %v139, %v192
  %v194 = vlaneseq
  %v195 = vshrl.u32 %v194, 7
  %v196 = vsub.s32 5, %v195
  %v197 = vrot.slane %v139, %v196
  %v198 = vlaneseq
  %v199 = vshrl.u32 %v198, 7
  %v200 = vsub.s32 6, %v199
  %v201 = vrot.slane %v139, %v200
  %v202 = vlaneseq
  %v203 = vshrl.u32 %v202, 7
  %v204 = vsub.s32 7, %v203
  %v205 = vrot.slane %v139, %v204
  %v222 = vadd.f32 %v122, %v145
  %v223 = vadd.f32 %v123, %v149
  %v224 = vadd.f32 %v124, %v153
  %v225 = vadd.f32 %v125, %v157
  %v226 = vadd.f32 %v126, %v161
  %v227 = vadd.f32 %v127, %v165
  %v228 = vadd.f32 %v128, %v169
  %v229 = vadd.f32 %v129, %v173
  %v230 = vadd.f32 %v130, %v177
  %v231 = vadd.f32 %v131, %v181
  %v232 = vadd.f32 %v132, %v185
  %v233 = vadd.f32 %v133, %v189
  %v234 = vadd.f32 %v134, %v193
  %v235 = vadd.f32 %v135, %v197
  %v236 = vadd.f32 %v136, %v201
  %v237 = vadd.f32 %v137, %v205
  %v238 = vmax.f32 %v222, 0.0
  %v239 = vmax.f32 %v223, 0.0
  %v240 = vmax.f32 %v224, 0.0
  %v241 = vmax.f32 %v225, 0.0
  %v242 = vmax.f32 %v226, 0.0
  %v243 = vmax.f32 %v227, 0.0
  %v244 = vmax.f32 %v228, 0.0
  %v245 = vmax.f32 %v229, 0.0
  %v246 = vmax.f32 %v230, 0.0
  %v247 = vmax.f32 %v231, 0.0
  %v248 = vmax.f32 %v232, 0.0
  %v249 = vmax.f32 %v233, 0.0
  %v250 = vmax.f32 %v234, 0.0
  %v251 = vmax.f32 %v235, 0.0
  %v252 = vmax.f32 %v236, 0.0
  %v253 = vmax.f32 %v237, 0.0
  %v254 = vpack.c.bf16 %v238, %v238
  %v255 = vpack.c.bf16 %v239, %v239
  %v256 = vpack.c.bf16 %v240, %v240
  %v257 = vpack.c.bf16 %v241, %v241
  %v258 = vpack.c.bf16 %v242, %v242
  %v259 = vpack.c.bf16 %v243, %v243
  %v260 = vpack.c.bf16 %v244, %v244
  %v261 = vpack.c.bf16 %v245, %v245
  %v262 = vpack.c.bf16 %v246, %v246
  %v263 = vpack.c.bf16 %v247, %v247
  %v264 = vpack.c.bf16 %v248, %v248
  %v265 = vpack.c.bf16 %v249, %v249
  %v266 = vpack.c.bf16 %v250, %v250
  %v267 = vpack.c.bf16 %v251, %v251
  %v268 = vpack.c.bf16 %v252, %v252
  %v269 = vpack.c.bf16 %v253, %v253
  %v286 = vunpack.c.l.b16 %v254
  %v287 = vunpack.c.l.b16 %v255
  %v288 = vunpack.c.l.b16 %v256
  %v289 = vunpack.c.l.b16 %v257
  %v290 = vunpack.c.l.b16 %v258
  %v291 = vunpack.c.l.b16 %v259
  %v292 = vunpack.c.l.b16 %v260
  %v293 = vunpack.c.l.b16 %v261
  %v294 = vunpack.c.l.b16 %v262
  %v295 = vunpack.c.l.b16 %v263
  %v296 = vunpack.c.l.b16 %v264
  %v297 = vunpack.c.l.b16 %v265
  %v298 = vunpack.c.l.b16 %v266
  %v299 = vunpack.c.l.b16 %v267
  %v300 = vunpack.c.l.b16 %v268
  %v301 = vunpack.c.l.b16 %v269
  %v302 = vpack.c.b16 %v287, %v286
  %v303 = vpack.c.b16 %v289, %v288
  %v304 = vpack.c.b16 %v291, %v290
  %v305 = vpack.c.b16 %v293, %v292
  %v306 = vpack.c.b16 %v295, %v294
  %v307 = vpack.c.b16 %v297, %v296
  %v308 = vpack.c.b16 %v299, %v298
  %v309 = vpack.c.b16 %v301, %v300
  %318 = vst [vmem:[%s3] sm:$0xff] %v302
  %319 = vst [vmem:[%s3 + $0x8] sm:$0xff] %v303
  %320 = vst [vmem:[%s3 + $0x10] sm:$0xff] %v304
  %321 = vst [vmem:[%s3 + $0x18] sm:$0xff] %v305
  %322 = vst [vmem:[%s3 + $0x20] sm:$0xff] %v306
  %323 = vst [vmem:[%s3 + $0x28] sm:$0xff] %v307
  %324 = vst [vmem:[%s3 + $0x30] sm:$0xff] %v308
  %325 = vst [vmem:[%s3 + $0x38] sm:$0xff] %v309
  // Predicated region
  $region14: #{generator_forward.10} parent=0 // pred_check
    _
  $region15: #{generator_forward.10} parent=0 // pred_check_branch
    %327 = sbr.rel (0) target = $region17
  $region16: #{generator_forward.10} parent=0 // pred_region
    _
  $region17: #{generator_forward.10} parent=0 // pred_fallthru
    _
  // Predicated region
  $region18: #{generator_forward.10} parent=0 // pred_check
    _
  $region19: #{generator_forward.10} parent=0 // pred_check_branch
    %329 = sbr.rel (0) target = $region21
  $region20: #{generator_forward.10} parent=0 // pred_region
    _
  $region21: #{generator_forward.10} parent=0 // pred_fallthru
    _

// kernel: generator_forward.9
$region0: #{generator_forward.9}
  #allocation0 [shape = 'u32[]', space=smem, size = 0x4, offset = 0x4, fixed_abs, tag = 'smem constant byte address 0x4 - core index']
  #allocation1 [shape = 'u32[144,128]{1,0:T(1,128)}', space=vmem, size = 0x12000, scoped, tag = 'internal scratch']
  %s0 = inlined_call_operand.vmem [shape: bf16[1,8,128], index: 0, kind: input, shape index: {}]
  %s1 = inlined_call_operand.vmem [shape: bf16[1,128,2048], index: 1, kind: input, shape index: {}]
  %s2 = inlined_call_operand.vmem [shape: bf16[1,8,2048], index: 2, kind: output, shape index: {0}]
  %s3 = inlined_call_operand.vmem [shape: f32[1,8,2048], index: 3, kind: output, shape index: {1}]
  %s4 = inlined_call_operand.vmem [shape: f32[1,8,2048], index: 4, kind: output, shape index: {2}]
  %5 = xla_tuple %s2, %s3, %s4
  %s6 = sld [smem:[#allocation0]]
  $region34: #{generator_forward.9} parent=0
    _
  %s8 = ssub.s32 1, %s6
  %s9 = scalar_select 0, %s8, %s6
  // Predicated region
  $region2: #{generator_forward.9} parent=0 // pred_check
    _
  $region3: #{generator_forward.9} parent=0 // pred_check_branch
    %11 = sbr.rel (0) target = $region5
  $region4: #{generator_forward.9} parent=0 // pred_region
    _
  $region5: #{generator_forward.9} parent=0 // pred_fallthru
    _
  // Predicated region
  $region6: #{generator_forward.9} parent=0 // pred_check
    _
  $region7: #{generator_forward.9} parent=0 // pred_check_branch
    %13 = sbr.rel (0) target = $region9
  $region8: #{generator_forward.9} parent=0 // pred_region
    _
  $region9: #{generator_forward.9} parent=0 // pred_fallthru
    _
  %v15 = vld [vmem:[%s0] sm:$0xf]
  %v16 = vld [vmem:[%s1] sm:$0xff]
  %v17 = vld [vmem:[%s1 + $0x8] sm:$0xff]
  %v18 = vld [vmem:[%s1 + $0x10] sm:$0xff]
  %v19 = vld [vmem:[%s1 + $0x18] sm:$0xff]
  %v20 = vld [vmem:[%s1 + $0x20] sm:$0xff]
  %v21 = vld [vmem:[%s1 + $0x28] sm:$0xff]
  %v22 = vld [vmem:[%s1 + $0x30] sm:$0xff]
  %v23 = vld [vmem:[%s1 + $0x38] sm:$0xff]
  %v24 = vld [vmem:[%s1 + $0x40] sm:$0xff]
  %v25 = vld [vmem:[%s1 + $0x48] sm:$0xff]
  %v26 = vld [vmem:[%s1 + $0x50] sm:$0xff]
  %v27 = vld [vmem:[%s1 + $0x58] sm:$0xff]
  %v28 = vld [vmem:[%s1 + $0x60] sm:$0xff]
  %v29 = vld [vmem:[%s1 + $0x68] sm:$0xff]
  %v30 = vld [vmem:[%s1 + $0x70] sm:$0xff]
  %v31 = vld [vmem:[%s1 + $0x78] sm:$0xff]
  %v32 = vld [vmem:[%s1 + $0x80] sm:$0xff]
  %v33 = vld [vmem:[%s1 + $0x88] sm:$0xff]
  %v34 = vld [vmem:[%s1 + $0x90] sm:$0xff]
  %v35 = vld [vmem:[%s1 + $0x98] sm:$0xff]
  %v36 = vld [vmem:[%s1 + $0xa0] sm:$0xff]
  %v37 = vld [vmem:[%s1 + $0xa8] sm:$0xff]
  %v38 = vld [vmem:[%s1 + $0xb0] sm:$0xff]
  %v39 = vld [vmem:[%s1 + $0xb8] sm:$0xff]
  %v40 = vld [vmem:[%s1 + $0xc0] sm:$0xff]
  %v41 = vld [vmem:[%s1 + $0xc8] sm:$0xff]
  %v42 = vld [vmem:[%s1 + $0xd0] sm:$0xff]
  %v43 = vld [vmem:[%s1 + $0xd8] sm:$0xff]
  %v44 = vld [vmem:[%s1 + $0xe0] sm:$0xff]
  %v45 = vld [vmem:[%s1 + $0xe8] sm:$0xff]
  %v46 = vld [vmem:[%s1 + $0xf0] sm:$0xff]
  %v47 = vld [vmem:[%s1 + $0xf8] sm:$0xff]
  %v48 = vld [vmem:[%s1 + $0x100] sm:$0xff]
  %v49 = vld [vmem:[%s1 + $0x108] sm:$0xff]
  %v50 = vld [vmem:[%s1 + $0x110] sm:$0xff]
  %v51 = vld [vmem:[%s1 + $0x118] sm:$0xff]
  %v52 = vld [vmem:[%s1 + $0x120] sm:$0xff]
  %v53 = vld [vmem:[%s1 + $0x128] sm:$0xff]
  %v54 = vld [vmem:[%s1 + $0x130] sm:$0xff]
  %v55 = vld [vmem:[%s1 + $0x138] sm:$0xff]
  %v56 = vld [vmem:[%s1 + $0x140] sm:$0xff]
  %v57 = vld [vmem:[%s1 + $0x148] sm:$0xff]
  %v58 = vld [vmem:[%s1 + $0x150] sm:$0xff]
  %v59 = vld [vmem:[%s1 + $0x158] sm:$0xff]
  %v60 = vld [vmem:[%s1 + $0x160] sm:$0xff]
  %v61 = vld [vmem:[%s1 + $0x168] sm:$0xff]
  %v62 = vld [vmem:[%s1 + $0x170] sm:$0xff]
  %v63 = vld [vmem:[%s1 + $0x178] sm:$0xff]
  %v64 = vld [vmem:[%s1 + $0x180] sm:$0xff]
  %v65 = vld [vmem:[%s1 + $0x188] sm:$0xff]
  %v66 = vld [vmem:[%s1 + $0x190] sm:$0xff]
  %v67 = vld [vmem:[%s1 + $0x198] sm:$0xff]
  %v68 = vld [vmem:[%s1 + $0x1a0] sm:$0xff]
  %v69 = vld [vmem:[%s1 + $0x1a8] sm:$0xff]
  %v70 = vld [vmem:[%s1 + $0x1b0] sm:$0xff]
  %v71 = vld [vmem:[%s1 + $0x1b8] sm:$0xff]
  %v72 = vld [vmem:[%s1 + $0x1c0] sm:$0xff]
  %v73 = vld [vmem:[%s1 + $0x1c8] sm:$0xff]
  %v74 = vld [vmem:[%s1 + $0x1d0] sm:$0xff]
  %v75 = vld [vmem:[%s1 + $0x1d8] sm:$0xff]
  %v76 = vld [vmem:[%s1 + $0x1e0] sm:$0xff]
  %v77 = vld [vmem:[%s1 + $0x1e8] sm:$0xff]
  %v78 = vld [vmem:[%s1 + $0x1f0] sm:$0xff]
  %v79 = vld [vmem:[%s1 + $0x1f8] sm:$0xff]
  %v80 = vld [vmem:[%s1 + $0x200] sm:$0xff]
  %v81 = vld [vmem:[%s1 + $0x208] sm:$0xff]
  %v82 = vld [vmem:[%s1 + $0x210] sm:$0xff]
  %v83 = vld [vmem:[%s1 + $0x218] sm:$0xff]
  %v84 = vld [vmem:[%s1 + $0x220] sm:$0xff]
  %v85 = vld [vmem:[%s1 + $0x228] sm:$0xff]
  %v86 = vld [vmem:[%s1 + $0x230] sm:$0xff]
  %v87 = vld [vmem:[%s1 + $0x238] sm:$0xff]
  %v88 = vld [vmem:[%s1 + $0x240] sm:$0xff]
  %v89 = vld [vmem:[%s1 + $0x248] sm:$0xff]
  %v90 = vld [vmem:[%s1 + $0x250] sm:$0xff]
  %v91 = vld [vmem:[%s1 + $0x258] sm:$0xff]
  %v92 = vld [vmem:[%s1 + $0x260] sm:$0xff]
  %v93 = vld [vmem:[%s1 + $0x268] sm:$0xff]
  %v94 = vld [vmem:[%s1 + $0x270] sm:$0xff]
  %v95 = vld [vmem:[%s1 + $0x278] sm:$0xff]
  %v96 = vld [vmem:[%s1 + $0x280] sm:$0xff]
  %v97 = vld [vmem:[%s1 + $0x288] sm:$0xff]
  %v98 = vld [vmem:[%s1 + $0x290] sm:$0xff]
  %v99 = vld [vmem:[%s1 + $0x298] sm:$0xff]
  %v100 = vld [vmem:[%s1 + $0x2a0] sm:$0xff]
  %v101 = vld [vmem:[%s1 + $0x2a8] sm:$0xff]
  %v102 = vld [vmem:[%s1 + $0x2b0] sm:$0xff]
  %v103 = vld [vmem:[%s1 + $0x2b8] sm:$0xff]
  %v104 = vld [vmem:[%s1 + $0x2c0] sm:$0xff]
  %v105 = vld [vmem:[%s1 + $0x2c8] sm:$0xff]
  %v106 = vld [vmem:[%s1 + $0x2d0] sm:$0xff]
  %v107 = vld [vmem:[%s1 + $0x2d8] sm:$0xff]
  %v108 = vld [vmem:[%s1 + $0x2e0] sm:$0xff]
  %v109 = vld [vmem:[%s1 + $0x2e8] sm:$0xff]
  %v110 = vld [vmem:[%s1 + $0x2f0] sm:$0xff]
  %v111 = vld [vmem:[%s1 + $0x2f8] sm:$0xff]
  %v112 = vld [vmem:[%s1 + $0x300] sm:$0xff]
  %v113 = vld [vmem:[%s1 + $0x308] sm:$0xff]
  %v114 = vld [vmem:[%s1 + $0x310] sm:$0xff]
  %v115 = vld [vmem:[%s1 + $0x318] sm:$0xff]
  %v116 = vld [vmem:[%s1 + $0x320] sm:$0xff]
  %v117 = vld [vmem:[%s1 + $0x328] sm:$0xff]
  %v118 = vld [vmem:[%s1 + $0x330] sm:$0xff]
  %v119 = vld [vmem:[%s1 + $0x338] sm:$0xff]
  %v120 = vld [vmem:[%s1 + $0x340] sm:$0xff]
  %v121 = vld [vmem:[%s1 + $0x348] sm:$0xff]
  %v122 = vld [vmem:[%s1 + $0x350] sm:$0xff]
  %v123 = vld [vmem:[%s1 + $0x358] sm:$0xff]
  %v124 = vld [vmem:[%s1 + $0x360] sm:$0xff]
  %v125 = vld [vmem:[%s1 + $0x368] sm:$0xff]
  %v126 = vld [vmem:[%s1 + $0x370] sm:$0xff]
  %v127 = vld [vmem:[%s1 + $0x378] sm:$0xff]
  %v128 = vld [vmem:[%s1 + $0x380] sm:$0xff]
  %v129 = vld [vmem:[%s1 + $0x388] sm:$0xff]
  %v130 = vld [vmem:[%s1 + $0x390] sm:$0xff]
  %v131 = vld [vmem:[%s1 + $0x398] sm:$0xff]
  %v132 = vld [vmem:[%s1 + $0x3a0] sm:$0xff]
  %v133 = vld [vmem:[%s1 + $0x3a8] sm:$0xff]
  %v134 = vld [vmem:[%s1 + $0x3b0] sm:$0xff]
  %v135 = vld [vmem:[%s1 + $0x3b8] sm:$0xff]
  %v136 = vld [vmem:[%s1 + $0x3c0] sm:$0xff]
  %v137 = vld [vmem:[%s1 + $0x3c8] sm:$0xff]
  %v138 = vld [vmem:[%s1 + $0x3d0] sm:$0xff]
  %v139 = vld [vmem:[%s1 + $0x3d8] sm:$0xff]
  %v140 = vld [vmem:[%s1 + $0x3e0] sm:$0xff]
  %v141 = vld [vmem:[%s1 + $0x3e8] sm:$0xff]
  %v142 = vld [vmem:[%s1 + $0x3f0] sm:$0xff]
  %v143 = vld [vmem:[%s1 + $0x3f8] sm:$0xff]
  %v272 = vunpack.c.l.b16 %v16
  %v273 = vunpack.c.h.b16 %v16
  %v274 = vunpack.c.l.b16 %v17
  %v275 = vunpack.c.h.b16 %v17
  %v276 = vunpack.c.l.b16 %v18
  %v277 = vunpack.c.h.b16 %v18
  %v278 = vunpack.c.l.b16 %v19
  %v279 = vunpack.c.h.b16 %v19
  %v280 = vunpack.c.l.b16 %v20
  %v281 = vunpack.c.h.b16 %v20
  %v282 = vunpack.c.l.b16 %v21
  %v283 = vunpack.c.h.b16 %v21
  %v284 = vunpack.c.l.b16 %v22
  %v285 = vunpack.c.h.b16 %v22
  %v286 = vunpack.c.l.b16 %v23
  %v287 = vunpack.c.h.b16 %v23
  %v288 = vunpack.c.l.b16 %v24
  %v289 = vunpack.c.h.b16 %v24
  %v290 = vunpack.c.l.b16 %v25
  %v291 = vunpack.c.h.b16 %v25
  %v292 = vunpack.c.l.b16 %v26
  %v293 = vunpack.c.h.b16 %v26
  %v294 = vunpack.c.l.b16 %v27
  %v295 = vunpack.c.h.b16 %v27
  %v296 = vunpack.c.l.b16 %v28
  %v297 = vunpack.c.h.b16 %v28
  %v298 = vunpack.c.l.b16 %v29
  %v299 = vunpack.c.h.b16 %v29
  %v300 = vunpack.c.l.b16 %v30
  %v301 = vunpack.c.h.b16 %v30
  %v302 = vunpack.c.l.b16 %v31
  %v303 = vunpack.c.h.b16 %v31
  %v304 = vunpack.c.l.b16 %v32
  %v305 = vunpack.c.h.b16 %v32
  %v306 = vunpack.c.l.b16 %v33
  %v307 = vunpack.c.h.b16 %v33
  %v308 = vunpack.c.l.b16 %v34
  %v309 = vunpack.c.h.b16 %v34
  %v310 = vunpack.c.l.b16 %v35
  %v311 = vunpack.c.h.b16 %v35
  %v312 = vunpack.c.l.b16 %v36
  %v313 = vunpack.c.h.b16 %v36
  %v314 = vunpack.c.l.b16 %v37
  %v315 = vunpack.c.h.b16 %v37
  %v316 = vunpack.c.l.b16 %v38
  %v317 = vunpack.c.h.b16 %v38
  %v318 = vunpack.c.l.b16 %v39
  %v319 = vunpack.c.h.b16 %v39
  %v320 = vunpack.c.l.b16 %v40
  %v321 = vunpack.c.h.b16 %v40
  %v322 = vunpack.c.l.b16 %v41
  %v323 = vunpack.c.h.b16 %v41
  %v324 = vunpack.c.l.b16 %v42
  %v325 = vunpack.c.h.b16 %v42
  %v326 = vunpack.c.l.b16 %v43
  %v327 = vunpack.c.h.b16 %v43
  %v328 = vunpack.c.l.b16 %v44
  %v329 = vunpack.c.h.b16 %v44
  %v330 = vunpack.c.l.b16 %v45
  %v331 = vunpack.c.h.b16 %v45
  %v332 = vunpack.c.l.b16 %v46
  %v333 = vunpack.c.h.b16 %v46
  %v334 = vunpack.c.l.b16 %v47
  %v335 = vunpack.c.h.b16 %v47
  %v336 = vunpack.c.l.b16 %v48
  %v337 = vunpack.c.h.b16 %v48
  %v338 = vunpack.c.l.b16 %v49
  %v339 = vunpack.c.h.b16 %v49
  %v340 = vunpack.c.l.b16 %v50
  %v341 = vunpack.c.h.b16 %v50
  %v342 = vunpack.c.l.b16 %v51
  %v343 = vunpack.c.h.b16 %v51
  %v344 = vunpack.c.l.b16 %v52
  %v345 = vunpack.c.h.b16 %v52
  %v346 = vunpack.c.l.b16 %v53
  %v347 = vunpack.c.h.b16 %v53
  %v348 = vunpack.c.l.b16 %v54
  %v349 = vunpack.c.h.b16 %v54
  %v350 = vunpack.c.l.b16 %v55
  %v351 = vunpack.c.h.b16 %v55
  %v352 = vunpack.c.l.b16 %v56
  %v353 = vunpack.c.h.b16 %v56
  %v354 = vunpack.c.l.b16 %v57
  %v355 = vunpack.c.h.b16 %v57
  %v356 = vunpack.c.l.b16 %v58
  %v357 = vunpack.c.h.b16 %v58
  %v358 = vunpack.c.l.b16 %v59
  %v359 = vunpack.c.h.b16 %v59
  %v360 = vunpack.c.l.b16 %v60
  %v361 = vunpack.c.h.b16 %v60
  %v362 = vunpack.c.l.b16 %v61
  %v363 = vunpack.c.h.b16 %v61
  %v364 = vunpack.c.l.b16 %v62
  %v365 = vunpack.c.h.b16 %v62
  %v366 = vunpack.c.l.b16 %v63
  %v367 = vunpack.c.h.b16 %v63
  %v368 = vunpack.c.l.b16 %v64
  %v369 = vunpack.c.h.b16 %v64
  %v370 = vunpack.c.l.b16 %v65
  %v371 = vunpack.c.h.b16 %v65
  %v372 = vunpack.c.l.b16 %v66
  %v373 = vunpack.c.h.b16 %v66
  %v374 = vunpack.c.l.b16 %v67
  %v375 = vunpack.c.h.b16 %v67
  %v376 = vunpack.c.l.b16 %v68
  %v377 = vunpack.c.h.b16 %v68
  %v378 = vunpack.c.l.b16 %v69
  %v379 = vunpack.c.h.b16 %v69
  %v380 = vunpack.c.l.b16 %v70
  %v381 = vunpack.c.h.b16 %v70
  %v382 = vunpack.c.l.b16 %v71
  %v383 = vunpack.c.h.b16 %v71
  %v384 = vunpack.c.l.b16 %v72
  %v385 = vunpack.c.h.b16 %v72
  %v386 = vunpack.c.l.b16 %v73
  %v387 = vunpack.c.h.b16 %v73
  %v388 = vunpack.c.l.b16 %v74
  %v389 = vunpack.c.h.b16 %v74
  %v390 = vunpack.c.l.b16 %v75
  %v391 = vunpack.c.h.b16 %v75
  %v392 = vunpack.c.l.b16 %v76
  %v393 = vunpack.c.h.b16 %v76
  %v394 = vunpack.c.l.b16 %v77
  %v395 = vunpack.c.h.b16 %v77
  %v396 = vunpack.c.l.b16 %v78
  %v397 = vunpack.c.h.b16 %v78
  %v398 = vunpack.c.l.b16 %v79
  %v399 = vunpack.c.h.b16 %v79
  %v400 = vunpack.c.l.b16 %v80
  %v401 = vunpack.c.h.b16 %v80
  %v402 = vunpack.c.l.b16 %v81
  %v403 = vunpack.c.h.b16 %v81
  %v404 = vunpack.c.l.b16 %v82
  %v405 = vunpack.c.h.b16 %v82
  %v406 = vunpack.c.l.b16 %v83
  %v407 = vunpack.c.h.b16 %v83
  %v408 = vunpack.c.l.b16 %v84
  %v409 = vunpack.c.h.b16 %v84
  %v410 = vunpack.c.l.b16 %v85
  %v411 = vunpack.c.h.b16 %v85
  %v412 = vunpack.c.l.b16 %v86
  %v413 = vunpack.c.h.b16 %v86
  %v414 = vunpack.c.l.b16 %v87
  %v415 = vunpack.c.h.b16 %v87
  %v416 = vunpack.c.l.b16 %v88
  %v417 = vunpack.c.h.b16 %v88
  %v418 = vunpack.c.l.b16 %v89
  %v419 = vunpack.c.h.b16 %v89
  %v420 = vunpack.c.l.b16 %v90
  %v421 = vunpack.c.h.b16 %v90
  %v422 = vunpack.c.l.b16 %v91
  %v423 = vunpack.c.h.b16 %v91
  %v424 = vunpack.c.l.b16 %v92
  %v425 = vunpack.c.h.b16 %v92
  %v426 = vunpack.c.l.b16 %v93
  %v427 = vunpack.c.h.b16 %v93
  %v428 = vunpack.c.l.b16 %v94
  %v429 = vunpack.c.h.b16 %v94
  %v430 = vunpack.c.l.b16 %v95
  %v431 = vunpack.c.h.b16 %v95
  %v432 = vunpack.c.l.b16 %v96
  %v433 = vunpack.c.h.b16 %v96
  %v434 = vunpack.c.l.b16 %v97
  %v435 = vunpack.c.h.b16 %v97
  %v436 = vunpack.c.l.b16 %v98
  %v437 = vunpack.c.h.b16 %v98
  %v438 = vunpack.c.l.b16 %v99
  %v439 = vunpack.c.h.b16 %v99
  %v440 = vunpack.c.l.b16 %v100
  %v441 = vunpack.c.h.b16 %v100
  %v442 = vunpack.c.l.b16 %v101
  %v443 = vunpack.c.h.b16 %v101
  %v444 = vunpack.c.l.b16 %v102
  %v445 = vunpack.c.h.b16 %v102
  %v446 = vunpack.c.l.b16 %v103
  %v447 = vunpack.c.h.b16 %v103
  %v448 = vunpack.c.l.b16 %v104
  %v449 = vunpack.c.h.b16 %v104
  %v450 = vunpack.c.l.b16 %v105
  %v451 = vunpack.c.h.b16 %v105
  %v452 = vunpack.c.l.b16 %v106
  %v453 = vunpack.c.h.b16 %v106
  %v454 = vunpack.c.l.b16 %v107
  %v455 = vunpack.c.h.b16 %v107
  %v456 = vunpack.c.l.b16 %v108
  %v457 = vunpack.c.h.b16 %v108
  %v458 = vunpack.c.l.b16 %v109
  %v459 = vunpack.c.h.b16 %v109
  %v460 = vunpack.c.l.b16 %v110
  %v461 = vunpack.c.h.b16 %v110
  %v462 = vunpack.c.l.b16 %v111
  %v463 = vunpack.c.h.b16 %v111
  %v464 = vunpack.c.l.b16 %v112
  %v465 = vunpack.c.h.b16 %v112
  %v466 = vunpack.c.l.b16 %v113
  %v467 = vunpack.c.h.b16 %v113
  %v468 = vunpack.c.l.b16 %v114
  %v469 = vunpack.c.h.b16 %v114
  %v470 = vunpack.c.l.b16 %v115
  %v471 = vunpack.c.h.b16 %v115
  %v472 = vunpack.c.l.b16 %v116
  %v473 = vunpack.c.h.b16 %v116
  %v474 = vunpack.c.l.b16 %v117
  %v475 = vunpack.c.h.b16 %v117
  %v476 = vunpack.c.l.b16 %v118
  %v477 = vunpack.c.h.b16 %v118
  %v478 = vunpack.c.l.b16 %v119
  %v479 = vunpack.c.h.b16 %v119
  %v480 = vunpack.c.l.b16 %v120
  %v481 = vunpack.c.h.b16 %v120
  %v482 = vunpack.c.l.b16 %v121
  %v483 = vunpack.c.h.b16 %v121
  %v484 = vunpack.c.l.b16 %v122
  %v485 = vunpack.c.h.b16 %v122
  %v486 = vunpack.c.l.b16 %v123
  %v487 = vunpack.c.h.b16 %v123
  %v488 = vunpack.c.l.b16 %v124
  %v489 = vunpack.c.h.b16 %v124
  %v490 = vunpack.c.l.b16 %v125
  %v491 = vunpack.c.h.b16 %v125
  %v492 = vunpack.c.l.b16 %v126
  %v493 = vunpack.c.h.b16 %v126
  %v494 = vunpack.c.l.b16 %v127
  %v495 = vunpack.c.h.b16 %v127
  %v496 = vunpack.c.l.b16 %v128
  %v497 = vunpack.c.h.b16 %v128
  %v498 = vunpack.c.l.b16 %v129
  %v499 = vunpack.c.h.b16 %v129
  %v500 = vunpack.c.l.b16 %v130
  %v501 = vunpack.c.h.b16 %v130
  %v502 = vunpack.c.l.b16 %v131
  %v503 = vunpack.c.h.b16 %v131
  %v504 = vunpack.c.l.b16 %v132
  %v505 = vunpack.c.h.b16 %v132
  %v506 = vunpack.c.l.b16 %v133
  %v507 = vunpack.c.h.b16 %v133
  %v508 = vunpack.c.l.b16 %v134
  %v509 = vunpack.c.h.b16 %v134
  %v510 = vunpack.c.l.b16 %v135
  %v511 = vunpack.c.h.b16 %v135
  %v512 = vunpack.c.l.b16 %v136
  %v513 = vunpack.c.h.b16 %v136
  %v514 = vunpack.c.l.b16 %v137
  %v515 = vunpack.c.h.b16 %v137
  %v516 = vunpack.c.l.b16 %v138
  %v517 = vunpack.c.h.b16 %v138
  %v518 = vunpack.c.l.b16 %v139
  %v519 = vunpack.c.h.b16 %v139
  %v520 = vunpack.c.l.b16 %v140
  %v521 = vunpack.c.h.b16 %v140
  %v522 = vunpack.c.l.b16 %v141
  %v523 = vunpack.c.h.b16 %v141
  %v524 = vunpack.c.l.b16 %v142
  %v525 = vunpack.c.h.b16 %v142
  %v526 = vunpack.c.l.b16 %v143
  %v527 = vunpack.c.h.b16 %v143
  %v528 = vpack.c.b16 %v288, %v272
  %v529 = vpack.c.b16 %v289, %v273
  %v530 = vpack.c.b16 %v290, %v274
  %v531 = vpack.c.b16 %v291, %v275
  %v532 = vpack.c.b16 %v292, %v276
  %v533 = vpack.c.b16 %v293, %v277
  %v534 = vpack.c.b16 %v294, %v278
  %v535 = vpack.c.b16 %v295, %v279
  %v536 = vpack.c.b16 %v296, %v280
  %v537 = vpack.c.b16 %v297, %v281
  %v538 = vpack.c.b16 %v298, %v282
  %v539 = vpack.c.b16 %v299, %v283
  %v540 = vpack.c.b16 %v300, %v284
  %v541 = vpack.c.b16 %v301, %v285
  %v542 = vpack.c.b16 %v302, %v286
  %v543 = vpack.c.b16 %v303, %v287
  %v544 = vpack.c.b16 %v320, %v304
  %v545 = vpack.c.b16 %v321, %v305
  %v546 = vpack.c.b16 %v322, %v306
  %v547 = vpack.c.b16 %v323, %v307
  %v548 = vpack.c.b16 %v324, %v308
  %v549 = vpack.c.b16 %v325, %v309
  %v550 = vpack.c.b16 %v326, %v310
  %v551 = vpack.c.b16 %v327, %v311
  %v552 = vpack.c.b16 %v328, %v312
  %v553 = vpack.c.b16 %v329, %v313
  %v554 = vpack.c.b16 %v330, %v314
  %v555 = vpack.c.b16 %v331, %v315
  %v556 = vpack.c.b16 %v332, %v316
  %v557 = vpack.c.b16 %v333, %v317
  %v558 = vpack.c.b16 %v334, %v318
  %v559 = vpack.c.b16 %v335, %v319
  %v560 = vpack.c.b16 %v352, %v336
  %v561 = vpack.c.b16 %v353, %v337
  %v562 = vpack.c.b16 %v354, %v338
  %v563 = vpack.c.b16 %v355, %v339
  %v564 = vpack.c.b16 %v356, %v340
  %v565 = vpack.c.b16 %v357, %v341
  %v566 = vpack.c.b16 %v358, %v342
  %v567 = vpack.c.b16 %v359, %v343
  %v568 = vpack.c.b16 %v360, %v344
  %v569 = vpack.c.b16 %v361, %v345
  %v570 = vpack.c.b16 %v362, %v346
  %v571 = vpack.c.b16 %v363, %v347
  %v572 = vpack.c.b16 %v364, %v348
  %v573 = vpack.c.b16 %v365, %v349
  %v574 = vpack.c.b16 %v366, %v350
  %v575 = vpack.c.b16 %v367, %v351
  %v576 = vpack.c.b16 %v384, %v368
  %v577 = vpack.c.b16 %v385, %v369
  %v578 = vpack.c.b16 %v386, %v370
  %v579 = vpack.c.b16 %v387, %v371
  %v580 = vpack.c.b16 %v388, %v372
  %v581 = vpack.c.b16 %v389, %v373
  %v582 = vpack.c.b16 %v390, %v374
  %v583 = vpack.c.b16 %v391, %v375
  %v584 = vpack.c.b16 %v392, %v376
  %v585 = vpack.c.b16 %v393, %v377
  %v586 = vpack.c.b16 %v394, %v378
  %v587 = vpack.c.b16 %v395, %v379
  %v588 = vpack.c.b16 %v396, %v380
  %v589 = vpack.c.b16 %v397, %v381
  %v590 = vpack.c.b16 %v398, %v382
  %v591 = vpack.c.b16 %v399, %v383
  %v592 = vpack.c.b16 %v416, %v400
  %v593 = vpack.c.b16 %v417, %v401
  %v594 = vpack.c.b16 %v418, %v402
  %v595 = vpack.c.b16 %v419, %v403
  %v596 = vpack.c.b16 %v420, %v404
  %v597 = vpack.c.b16 %v421, %v405
  %v598 = vpack.c.b16 %v422, %v406
  %v599 = vpack.c.b16 %v423, %v407
  %v600 = vpack.c.b16 %v424, %v408
  %v601 = vpack.c.b16 %v425, %v409
  %v602 = vpack.c.b16 %v426, %v410
  %v603 = vpack.c.b16 %v427, %v411
  %v604 = vpack.c.b16 %v428, %v412
  %v605 = vpack.c.b16 %v429, %v413
  %v606 = vpack.c.b16 %v430, %v414
  %v607 = vpack.c.b16 %v431, %v415
  %v608 = vpack.c.b16 %v448, %v432
  %v609 = vpack.c.b16 %v449, %v433
  %v610 = vpack.c.b16 %v450, %v434
  %v611 = vpack.c.b16 %v451, %v435
  %v612 = vpack.c.b16 %v452, %v436
  %v613 = vpack.c.b16 %v453, %v437
  %v614 = vpack.c.b16 %v454, %v438
  %v615 = vpack.c.b16 %v455, %v439
  %v616 = vpack.c.b16 %v456, %v440
  %v617 = vpack.c.b16 %v457, %v441
  %v618 = vpack.c.b16 %v458, %v442
  %v619 = vpack.c.b16 %v459, %v443
  %v620 = vpack.c.b16 %v460, %v444
  %v621 = vpack.c.b16 %v461, %v445
  %v622 = vpack.c.b16 %v462, %v446
  %v623 = vpack.c.b16 %v463, %v447
  %v624 = vpack.c.b16 %v480, %v464
  %v625 = vpack.c.b16 %v481, %v465
  %v626 = vpack.c.b16 %v482, %v466
  %v627 = vpack.c.b16 %v483, %v467
  %v628 = vpack.c.b16 %v484, %v468
  %v629 = vpack.c.b16 %v485, %v469
  %v630 = vpack.c.b16 %v486, %v470
  %v631 = vpack.c.b16 %v487, %v471
  %v632 = vpack.c.b16 %v488, %v472
  %v633 = vpack.c.b16 %v489, %v473
  %v634 = vpack.c.b16 %v490, %v474
  %v635 = vpack.c.b16 %v491, %v475
  %v636 = vpack.c.b16 %v492, %v476
  %v637 = vpack.c.b16 %v493, %v477
  %v638 = vpack.c.b16 %v494, %v478
  %v639 = vpack.c.b16 %v495, %v479
  %v640 = vpack.c.b16 %v512, %v496
  %v641 = vpack.c.b16 %v513, %v497
  %v642 = vpack.c.b16 %v514, %v498
  %v643 = vpack.c.b16 %v515, %v499
  %v644 = vpack.c.b16 %v516, %v500
  %v645 = vpack.c.b16 %v517, %v501
  %v646 = vpack.c.b16 %v518, %v502
  %v647 = vpack.c.b16 %v519, %v503
  %v648 = vpack.c.b16 %v520, %v504
  %v649 = vpack.c.b16 %v521, %v505
  %v650 = vpack.c.b16 %v522, %v506
  %v651 = vpack.c.b16 %v523, %v507
  %v652 = vpack.c.b16 %v524, %v508
  %v653 = vpack.c.b16 %v525, %v509
  %v654 = vpack.c.b16 %v526, %v510
  %v655 = vpack.c.b16 %v527, %v511
  %784 = vmatprep.subr.bf16.mxu0 %v529
  %785 = vmatpush1.bf16.msra.mxu0 %v528
  %786 = vmatprep.subr.bf16.mxu0 %v545
  %787 = vmatpush1.bf16.msra.mxu0 %v544
  %788 = vmatprep.subr.bf16.mxu0 %v561
  %789 = vmatpush1.bf16.msra.mxu0 %v560
  %790 = vmatprep.subr.bf16.mxu0 %v577
  %791 = vmatpush1.bf16.msra.mxu0 %v576
  %792 = vmatprep.subr.bf16.mxu0 %v593
  %793 = vmatpush1.bf16.msra.mxu0 %v592
  %794 = vmatprep.subr.bf16.mxu0 %v609
  %795 = vmatpush1.bf16.msra.mxu0 %v608
  %796 = vmatprep.subr.bf16.mxu0 %v625
  %797 = vmatpush1.bf16.msra.mxu0 %v624
  %798 = vmatprep.subr.bf16.mxu0 %v641
  %799 = vmatpush1.bf16.msra.mxu0 %v640
  %800 = vmatprep.subr.bf16.mxu0 0
  %801 = vmatpush1.bf16.msra.mxu0 0
  %802 = vmatprep.subr.bf16.mxu0 0
  %803 = vmatpush1.bf16.msra.mxu0 0
  %804 = vmatprep.subr.bf16.mxu0 0
  %805 = vmatpush1.bf16.msra.mxu0 0
  %806 = vmatprep.subr.bf16.mxu0 0
  %807 = vmatpush1.bf16.msra.mxu0 0
  %808 = vmatprep.subr.bf16.mxu0 0
  %809 = vmatpush1.bf16.msra.mxu0 0
  %810 = vmatprep.subr.bf16.mxu0 0
  %811 = vmatpush1.bf16.msra.mxu0 0
  %812 = vmatprep.subr.bf16.mxu0 0
  %813 = vmatpush1.bf16.msra.mxu0 0
  %814 = vmatprep.subr.bf16.mxu0 0
  %815 = vmatpush1.bf16.msra.mxu0 0
  %816 = vmatprep.mubr.bf16.mxu0 0
  %817 = vmatmul.mubr.bf16.gmra.mrb[0].mxu0 %v15
  %v818 = vpop.f32.mrb[0].mxu0
  %v819 = vadd.f32 0.0, %v818
  %v820 = vpop.f32.mrb[0].mxu0
  %v821 = vadd.f32 0.0, %v820
  %v822 = vpop.f32.mrb[0].mxu0
  %v823 = vpop.f32.mrb[0].mxu0
  %824 = vdwg.mxu0
  %825 = vmatprep.subr.bf16.mxu0 %v531
  %826 = vmatpush1.bf16.msra.mxu0 %v530
  %827 = vmatprep.subr.bf16.mxu0 %v547
  %828 = vmatpush1.bf16.msra.mxu0 %v546
  %829 = vmatprep.subr.bf16.mxu0 %v563
  %830 = vmatpush1.bf16.msra.mxu0 %v562
  %831 = vmatprep.subr.bf16.mxu0 %v579
  %832 = vmatpush1.bf16.msra.mxu0 %v578
  %833 = vmatprep.subr.bf16.mxu0 %v595
  %834 = vmatpush1.bf16.msra.mxu0 %v594
  %835 = vmatprep.subr.bf16.mxu0 %v611
  %836 = vmatpush1.bf16.msra.mxu0 %v610
  %837 = vmatprep.subr.bf16.mxu0 %v627
  %838 = vmatpush1.bf16.msra.mxu0 %v626
  %839 = vmatprep.subr.bf16.mxu0 %v643
  %840 = vmatpush1.bf16.msra.mxu0 %v642
  %841 = vmatprep.subr.bf16.mxu0 0
  %842 = vmatpush1.bf16.msra.mxu0 0
  %843 = vmatprep.subr.bf16.mxu0 0
  %844 = vmatpush1.bf16.msra.mxu0 0
  %845 = vmatprep.subr.bf16.mxu0 0
  %846 = vmatpush1.bf16.msra.mxu0 0
  %847 = vmatprep.subr.bf16.mxu0 0
  %848 = vmatpush1.bf16.msra.mxu0 0
  %849 = vmatprep.subr.bf16.mxu0 0
  %850 = vmatpush1.bf16.msra.mxu0 0
  %851 = vmatprep.subr.bf16.mxu0 0
  %852 = vmatpush1.bf16.msra.mxu0 0
  %853 = vmatprep.subr.bf16.mxu0 0
  %854 = vmatpush1.bf16.msra.mxu0 0
  %855 = vmatprep.subr.bf16.mxu0 0
  %856 = vmatpush1.bf16.msra.mxu0 0
  %857 = vmatprep.mubr.bf16.mxu0 0
  %858 = vmatmul.mubr.bf16.gmra.mrb[0].mxu0 %v15
  %v859 = vpop.f32.mrb[0].mxu0
  %v860 = vadd.f32 0.0, %v859
  %v861 = vpop.f32.mrb[0].mxu0
  %v862 = vadd.f32 0.0, %v861
  %v863 = vpop.f32.mrb[0].mxu0
  %v864 = vpop.f32.mrb[0].mxu0
  %865 = vdwg.mxu0
  %866 = vmatprep.subr.bf16.mxu0 %v533
  %867 = vmatpush1.bf16.msra.mxu0 %v532
  %868 = vmatprep.subr.bf16.mxu0 %v549
  %869 = vmatpush1.bf16.msra.mxu0 %v548
  %870 = vmatprep.subr.bf16.mxu0 %v565
  %871 = vmatpush1.bf16.msra.mxu0 %v564
  %872 = vmatprep.subr.bf16.mxu0 %v581
  %873 = vmatpush1.bf16.msra.mxu0 %v580
  %874 = vmatprep.subr.bf16.mxu0 %v597
  %875 = vmatpush1.bf16.msra.mxu0 %v596
  %876 = vmatprep.subr.bf16.mxu0 %v613
  %877 = vmatpush1.bf16.msra.mxu0 %v612
  %878 = vmatprep.subr.bf16.mxu0 %v629
  %879 = vmatpush1.bf16.msra.mxu0 %v628
  %880 = vmatprep.subr.bf16.mxu0 %v645
  %881 = vmatpush1.bf16.msra.mxu0 %v644
  %882 = vmatprep.subr.bf16.mxu0 0
  %883 = vmatpush1.bf16.msra.mxu0 0
  %884 = vmatprep.subr.bf16.mxu0 0
  %885 = vmatpush1.bf16.msra.mxu0 0
  %886 = vmatprep.subr.bf16.mxu0 0
  %887 = vmatpush1.bf16.msra.mxu0 0
  %888 = vmatprep.subr.bf16.mxu0 0
  %889 = vmatpush1.bf16.msra.mxu0 0
  %890 = vmatprep.subr.bf16.mxu0 0
  %891 = vmatpush1.bf16.msra.mxu0 0
  %892 = vmatprep.subr.bf16.mxu0 0
  %893 = vmatpush1.bf16.msra.mxu0 0
  %894 = vmatprep.subr.bf16.mxu0 0
  %895 = vmatpush1.bf16.msra.mxu0 0
  %896 = vmatprep.subr.bf16.mxu0 0
  %897 = vmatpush1.bf16.msra.mxu0 0
  %898 = vmatprep.mubr.bf16.mxu0 0
  %899 = vmatmul.mubr.bf16.gmra.mrb[0].mxu0 %v15
  %v900 = vpop.f32.mrb[0].mxu0
  %v901 = vadd.f32 0.0, %v900
  %v902 = vpop.f32.mrb[0].mxu0
  %v903 = vadd.f32 0.0, %v902
  %v904 = vpop.f32.mrb[0].mxu0
  %v905 = vpop.f32.mrb[0].mxu0
  %906 = vdwg.mxu0
  %907 = vmatprep.subr.bf16.mxu0 %v535
  %908 = vmatpush1.bf16.msra.mxu0 %v534
  %909 = vmatprep.subr.bf16.mxu0 %v551
  %910 = vmatpush1.bf16.msra.mxu0 %v550
  %911 = vmatprep.subr.bf16.mxu0 %v567
  %912 = vmatpush1.bf16.msra.mxu0 %v566
  %913 = vmatprep.subr.bf16.mxu0 %v583
  %914 = vmatpush1.bf16.msra.mxu0 %v582
  %915 = vmatprep.subr.bf16.mxu0 %v599
  %916 = vmatpush1.bf16.msra.mxu0 %v598
  %917 = vmatprep.subr.bf16.mxu0 %v615
  %918 = vmatpush1.bf16.msra.mxu0 %v614
  %919 = vmatprep.subr.bf16.mxu0 %v631
  %920 = vmatpush1.bf16.msra.mxu0 %v630
  %921 = vmatprep.subr.bf16.mxu0 %v647
  %922 = vmatpush1.bf16.msra.mxu0 %v646
  %923 = vmatprep.subr.bf16.mxu0 0
  %924 = vmatpush1.bf16.msra.mxu0 0
  %925 = vmatprep.subr.bf16.mxu0 0
  %926 = vmatpush1.bf16.msra.mxu0 0
  %927 = vmatprep.subr.bf16.mxu0 0
  %928 = vmatpush1.bf16.msra.mxu0 0
  %929 = vmatprep.subr.bf16.mxu0 0
  %930 = vmatpush1.bf16.msra.mxu0 0
  %931 = vmatprep.subr.bf16.mxu0 0
  %932 = vmatpush1.bf16.msra.mxu0 0
  %933 = vmatprep.subr.bf16.mxu0 0
  %934 = vmatpush1.bf16.msra.mxu0 0
  %935 = vmatprep.subr.bf16.mxu0 0
  %936 = vmatpush1.bf16.msra.mxu0 0
  %937 = vmatprep.subr.bf16.mxu0 0
  %938 = vmatpush1.bf16.msra.mxu0 0
  %939 = vmatprep.mubr.bf16.mxu0 0
  %940 = vmatmul.mubr.bf16.gmra.mrb[0].mxu0 %v15
  %v941 = vpop.f32.mrb[0].mxu0
  %v942 = vadd.f32 0.0, %v941
  %v943 = vpop.f32.mrb[0].mxu0
  %v944 = vadd.f32 0.0, %v943
  %v945 = vpop.f32.mrb[0].mxu0
  %v946 = vpop.f32.mrb[0].mxu0
  %947 = vdwg.mxu0
  %948 = vmatprep.subr.bf16.mxu0 %v537
  %949 = vmatpush1.bf16.msra.mxu0 %v536
  %950 = vmatprep.subr.bf16.mxu0 %v553
  %951 = vmatpush1.bf16.msra.mxu0 %v552
  %952 = vmatprep.subr.bf16.mxu0 %v569
  %953 = vmatpush1.bf16.msra.mxu0 %v568
  %954 = vmatprep.subr.bf16.mxu0 %v585
  %955 = vmatpush1.bf16.msra.mxu0 %v584
  %956 = vmatprep.subr.bf16.mxu0 %v601
  %957 = vmatpush1.bf16.msra.mxu0 %v600
  %958 = vmatprep.subr.bf16.mxu0 %v617
  %959 = vmatpush1.bf16.msra.mxu0 %v616
  %960 = vmatprep.subr.bf16.mxu0 %v633
  %961 = vmatpush1.bf16.msra.mxu0 %v632
  %962 = vmatprep.subr.bf16.mxu0 %v649
  %963 = vmatpush1.bf16.msra.mxu0 %v648
  %964 = vmatprep.subr.bf16.mxu0 0
  %965 = vmatpush1.bf16.msra.mxu0 0
  %966 = vmatprep.subr.bf16.mxu0 0
  %967 = vmatpush1.bf16.msra.mxu0 0
  %968 = vmatprep.subr.bf16.mxu0 0
  %969 = vmatpush1.bf16.msra.mxu0 0
  %970 = vmatprep.subr.bf16.mxu0 0
  %971 = vmatpush1.bf16.msra.mxu0 0
  %972 = vmatprep.subr.bf16.mxu0 0
  %973 = vmatpush1.bf16.msra.mxu0 0
  %974 = vmatprep.subr.bf16.mxu0 0
  %975 = vmatpush1.bf16.msra.mxu0 0
  %976 = vmatprep.subr.bf16.mxu0 0
  %977 = vmatpush1.bf16.msra.mxu0 0
  %978 = vmatprep.subr.bf16.mxu0 0
  %979 = vmatpush1.bf16.msra.mxu0 0
  %980 = vmatprep.mubr.bf16.mxu0 0
  %981 = vmatmul.mubr.bf16.gmra.mrb[0].mxu0 %v15
  %v982 = vpop.f32.mrb[0].mxu0
  %v983 = vadd.f32 0.0, %v982
  %v984 = vpop.f32.mrb[0].mxu0
  %v985 = vadd.f32 0.0, %v984
  %v986 = vpop.f32.mrb[0].mxu0
  %v987 = vpop.f32.mrb[0].mxu0
  %988 = vdwg.mxu0
  %989 = vmatprep.subr.bf16.mxu0 %v539
  %990 = vmatpush1.bf16.msra.mxu0 %v538
  %991 = vmatprep.subr.bf16.mxu0 %v555
  %992 = vmatpush1.bf16.msra.mxu0 %v554
  %993 = vmatprep.subr.bf16.mxu0 %v571
  %994 = vmatpush1.bf16.msra.mxu0 %v570
  %995 = vmatprep.subr.bf16.mxu0 %v587
  %996 = vmatpush1.bf16.msra.mxu0 %v586
  %997 = vmatprep.subr.bf16.mxu0 %v603
  %998 = vmatpush1.bf16.msra.mxu0 %v602
  %999 = vmatprep.subr.bf16.mxu0 %v619
  %1000 = vmatpush1.bf16.msra.mxu0 %v618
  %1001 = vmatprep.subr.bf16.mxu0 %v635
  %1002 = vmatpush1.bf16.msra.mxu0 %v634
  %1003 = vmatprep.subr.bf16.mxu0 %v651
  %1004 = vmatpush1.bf16.msra.mxu0 %v650
  %1005 = vmatprep.subr.bf16.mxu0 0
  %1006 = vmatpush1.bf16.msra.mxu0 0
  %1007 = vmatprep.subr.bf16.mxu0 0
  %1008 = vmatpush1.bf16.msra.mxu0 0
  %1009 = vmatprep.subr.bf16.mxu0 0
  %1010 = vmatpush1.bf16.msra.mxu0 0
  %1011 = vmatprep.subr.bf16.mxu0 0
  %1012 = vmatpush1.bf16.msra.mxu0 0
  %1013 = vmatprep.subr.bf16.mxu0 0
  %1014 = vmatpush1.bf16.msra.mxu0 0
  %1015 = vmatprep.subr.bf16.mxu0 0
  %1016 = vmatpush1.bf16.msra.mxu0 0
  %1017 = vmatprep.subr.bf16.mxu0 0
  %1018 = vmatpush1.bf16.msra.mxu0 0
  %1019 = vmatprep.subr.bf16.mxu0 0
  %1020 = vmatpush1.bf16.msra.mxu0 0
  %1021 = vmatprep.mubr.bf16.mxu0 0
  %1022 = vmatmul.mubr.bf16.gmra.mrb[0].mxu0 %v15
  %v1023 = vpop.f32.mrb[0].mxu0
  %v1024 = vadd.f32 0.0, %v1023
  %v1025 = vpop.f32.mrb[0].mxu0
  %v1026 = vadd.f32 0.0, %v1025
  %v1027 = vpop.f32.mrb[0].mxu0
  %v1028 = vpop.f32.mrb[0].mxu0
  %1029 = vdwg.mxu0
  %1030 = vmatprep.subr.bf16.mxu0 %v541
  %1031 = vmatpush1.bf16.msra.mxu0 %v540
  %1032 = vmatprep.subr.bf16.mxu0 %v557
  %1033 = vmatpush1.bf16.msra.mxu0 %v556
  %1034 = vmatprep.subr.bf16.mxu0 %v573
  %1035 = vmatpush1.bf16.msra.mxu0 %v572
  %1036 = vmatprep.subr.bf16.mxu0 %v589
  %1037 = vmatpush1.bf16.msra.mxu0 %v588
  %1038 = vmatprep.subr.bf16.mxu0 %v605
  %1039 = vmatpush1.bf16.msra.mxu0 %v604
  %1040 = vmatprep.subr.bf16.mxu0 %v621
  %1041 = vmatpush1.bf16.msra.mxu0 %v620
  %1042 = vmatprep.subr.bf16.mxu0 %v637
  %1043 = vmatpush1.bf16.msra.mxu0 %v636
  %1044 = vmatprep.subr.bf16.mxu0 %v653
  %1045 = vmatpush1.bf16.msra.mxu0 %v652
  %1046 = vmatprep.subr.bf16.mxu0 0
  %1047 = vmatpush1.bf16.msra.mxu0 0
  %1048 = vmatprep.subr.bf16.mxu0 0
  %1049 = vmatpush1.bf16.msra.mxu0 0
  %1050 = vmatprep.subr.bf16.mxu0 0
  %1051 = vmatpush1.bf16.msra.mxu0 0
  %1052 = vmatprep.subr.bf16.mxu0 0
  %1053 = vmatpush1.bf16.msra.mxu0 0
  %1054 = vmatprep.subr.bf16.mxu0 0
  %1055 = vmatpush1.bf16.msra.mxu0 0
  %1056 = vmatprep.subr.bf16.mxu0 0
  %1057 = vmatpush1.bf16.msra.mxu0 0
  %1058 = vmatprep.subr.bf16.mxu0 0
  %1059 = vmatpush1.bf16.msra.mxu0 0
  %1060 = vmatprep.subr.bf16.mxu0 0
  %1061 = vmatpush1.bf16.msra.mxu0 0
  %1062 = vmatprep.mubr.bf16.mxu0 0
  %1063 = vmatmul.mubr.bf16.gmra.mrb[0].mxu0 %v15
  %v1064 = vpop.f32.mrb[0].mxu0
  %v1065 = vadd.f32 0.0, %v1064
  %v1066 = vpop.f32.mrb[0].mxu0
  %v1067 = vadd.f32 0.0, %v1066
  %v1068 = vpop.f32.mrb[0].mxu0
  %v1069 = vpop.f32.mrb[0].mxu0
  %1070 = vdwg.mxu0
  %1071 = vmatprep.subr.bf16.mxu0 %v543
  %1072 = vmatpush1.bf16.msra.mxu0 %v542
  %1073 = vmatprep.subr.bf16.mxu0 %v559
  %1074 = vmatpush1.bf16.msra.mxu0 %v558
  %1075 = vmatprep.subr.bf16.mxu0 %v575
  %1076 = vmatpush1.bf16.msra.mxu0 %v574
  %1077 = vmatprep.subr.bf16.mxu0 %v591
  %1078 = vmatpush1.bf16.msra.mxu0 %v590
  %1079 = vmatprep.subr.bf16.mxu0 %v607
  %1080 = vmatpush1.bf16.msra.mxu0 %v606
  %1081 = vmatprep.subr.bf16.mxu0 %v623
  %1082 = vmatpush1.bf16.msra.mxu0 %v622
  %1083 = vmatprep.subr.bf16.mxu0 %v639
  %1084 = vmatpush1.bf16.msra.mxu0 %v638
  %1085 = vmatprep.subr.bf16.mxu0 %v655
  %1086 = vmatpush1.bf16.msra.mxu0 %v654
  %1087 = vmatprep.subr.bf16.mxu0 0
  %1088 = vmatpush1.bf16.msra.mxu0 0
  %1089 = vmatprep.subr.bf16.mxu0 0
  %1090 = vmatpush1.bf16.msra.mxu0 0
  %1091 = vmatprep.subr.bf16.mxu0 0
  %1092 = vmatpush1.bf16.msra.mxu0 0
  %1093 = vmatprep.subr.bf16.mxu0 0
  %1094 = vmatpush1.bf16.msra.mxu0 0
  %1095 = vmatprep.subr.bf16.mxu0 0
  %1096 = vmatpush1.bf16.msra.mxu0 0
  %1097 = vmatprep.subr.bf16.mxu0 0
  %1098 = vmatpush1.bf16.msra.mxu0 0
  %1099 = vmatprep.subr.bf16.mxu0 0
  %1100 = vmatpush1.bf16.msra.mxu0 0
  %1101 = vmatprep.subr.bf16.mxu0 0
  %1102 = vmatpush1.bf16.msra.mxu0 0
  %1103 = vmatprep.mubr.bf16.mxu0 0
  %1104 = vmatmul.mubr.bf16.gmra.mrb[0].mxu0 %v15
  %v1105 = vpop.f32.mrb[0].mxu0
  %v1106 = vadd.f32 0.0, %v1105
  %v1107 = vpop.f32.mrb[0].mxu0
  %v1108 = vadd.f32 0.0, %v1107
  %v1109 = vpop.f32.mrb[0].mxu0
  %v1110 = vpop.f32.mrb[0].mxu0
  %1111 = vdwg.mxu0
  %v1112 = vpack.c.bf16 %v819, %v819
  %v1113 = vpack.c.bf16 %v821, %v821
  %v1114 = vpack.c.bf16 %v860, %v860
  %v1115 = vpack.c.bf16 %v862, %v862
  %v1116 = vpack.c.bf16 %v901, %v901
  %v1117 = vpack.c.bf16 %v903, %v903
  %v1118 = vpack.c.bf16 %v942, %v942
  %v1119 = vpack.c.bf16 %v944, %v944
  %v1120 = vpack.c.bf16 %v983, %v983
  %v1121 = vpack.c.bf16 %v985, %v985
  %v1122 = vpack.c.bf16 %v1024, %v1024
  %v1123 = vpack.c.bf16 %v1026, %v1026
  %v1124 = vpack.c.bf16 %v1065, %v1065
  %v1125 = vpack.c.bf16 %v1067, %v1067
  %v1126 = vpack.c.bf16 %v1106, %v1106
  %v1127 = vpack.c.bf16 %v1108, %v1108
  %v1144 = vunpack.c.l.b16 %v1112
  %v1145 = vunpack.c.l.b16 %v1113
  %v1146 = vunpack.c.l.b16 %v1114
  %v1147 = vunpack.c.l.b16 %v1115
  %v1148 = vunpack.c.l.b16 %v1116
  %v1149 = vunpack.c.l.b16 %v1117
  %v1150 = vunpack.c.l.b16 %v1118
  %v1151 = vunpack.c.l.b16 %v1119
  %v1152 = vunpack.c.l.b16 %v1120
  %v1153 = vunpack.c.l.b16 %v1121
  %v1154 = vunpack.c.l.b16 %v1122
  %v1155 = vunpack.c.l.b16 %v1123
  %v1156 = vunpack.c.l.b16 %v1124
  %v1157 = vunpack.c.l.b16 %v1125
  %v1158 = vunpack.c.l.b16 %v1126
  %v1159 = vunpack.c.l.b16 %v1127
  %v1160 = vpack.c.b16 %v1145, %v1144
  %v1161 = vpack.c.b16 %v1147, %v1146
  %v1162 = vpack.c.b16 %v1149, %v1148
  %v1163 = vpack.c.b16 %v1151, %v1150
  %v1164 = vpack.c.b16 %v1153, %v1152
  %v1165 = vpack.c.b16 %v1155, %v1154
  %v1166 = vpack.c.b16 %v1157, %v1156
  %v1167 = vpack.c.b16 %v1159, %v1158
  %1176 = vst [vmem:[%s2] sm:$0xff] %v1160
  %1177 = vst [vmem:[%s2 + $0x8] sm:$0xff] %v1161
  %1178 = vst [vmem:[%s2 + $0x10] sm:$0xff] %v1162
  %1179 = vst [vmem:[%s2 + $0x18] sm:$0xff] %v1163
  %1180 = vst [vmem:[%s2 + $0x20] sm:$0xff] %v1164
  %1181 = vst [vmem:[%s2 + $0x28] sm:$0xff] %v1165
  %1182 = vst [vmem:[%s2 + $0x30] sm:$0xff] %v1166
  %1183 = vst [vmem:[%s2 + $0x38] sm:$0xff] %v1167
  %v1184 = vadd.f32 %v819, 0.0
  %v1185 = vadd.f32 %v821, 0.0
  %v1186 = vadd.f32 %v860, 0.0
  %v1187 = vadd.f32 %v862, 0.0
  %v1188 = vadd.f32 %v901, 0.0
  %v1189 = vadd.f32 %v903, 0.0
  %v1190 = vadd.f32 %v942, 0.0
  %v1191 = vadd.f32 %v944, 0.0
  %v1192 = vadd.f32 %v983, 0.0
  %v1193 = vadd.f32 %v985, 0.0
  %v1194 = vadd.f32 %v1024, 0.0
  %v1195 = vadd.f32 %v1026, 0.0
  %v1196 = vadd.f32 %v1065, 0.0
  %v1197 = vadd.f32 %v1067, 0.0
  %v1198 = vadd.f32 %v1106, 0.0
  %v1199 = vadd.f32 %v1108, 0.0
  %v1200 = vmul.f32 %v819, %v819
  %v1201 = vmul.f32 %v821, %v821
  %v1202 = vmul.f32 %v860, %v860
  %v1203 = vmul.f32 %v862, %v862
  %v1204 = vmul.f32 %v901, %v901
  %v1205 = vmul.f32 %v903, %v903
  %v1206 = vmul.f32 %v942, %v942
  %v1207 = vmul.f32 %v944, %v944
  %v1208 = vmul.f32 %v983, %v983
  %v1209 = vmul.f32 %v985, %v985
  %v1210 = vmul.f32 %v1024, %v1024
  %v1211 = vmul.f32 %v1026, %v1026
  %v1212 = vmul.f32 %v1065, %v1065
  %v1213 = vmul.f32 %v1067, %v1067
  %v1214 = vmul.f32 %v1106, %v1106
  %v1215 = vmul.f32 %v1108, %v1108
  %v1216 = vadd.f32 %v1200, 0.0
  %v1217 = vadd.f32 %v1201, 0.0
  %v1218 = vadd.f32 %v1202, 0.0
  %v1219 = vadd.f32 %v1203, 0.0
  %v1220 = vadd.f32 %v1204, 0.0
  %v1221 = vadd.f32 %v1205, 0.0
  %v1222 = vadd.f32 %v1206, 0.0
  %v1223 = vadd.f32 %v1207, 0.0
  %v1224 = vadd.f32 %v1208, 0.0
  %v1225 = vadd.f32 %v1209, 0.0
  %v1226 = vadd.f32 %v1210, 0.0
  %v1227 = vadd.f32 %v1211, 0.0
  %v1228 = vadd.f32 %v1212, 0.0
  %v1229 = vadd.f32 %v1213, 0.0
  %v1230 = vadd.f32 %v1214, 0.0
  %v1231 = vadd.f32 %v1215, 0.0
  %1232 = vst [vmem:[%s3] sm:$0xff] %v1184
  %1233 = vst [vmem:[%s3 + $0x8] sm:$0xff] %v1185
  %1234 = vst [vmem:[%s3 + $0x10] sm:$0xff] %v1186
  %1235 = vst [vmem:[%s3 + $0x18] sm:$0xff] %v1187
  %1236 = vst [vmem:[%s3 + $0x20] sm:$0xff] %v1188
  %1237 = vst [vmem:[%s3 + $0x28] sm:$0xff] %v1189
  %1238 = vst [vmem:[%s3 + $0x30] sm:$0xff] %v1190
  %1239 = vst [vmem:[%s3 + $0x38] sm:$0xff] %v1191
  %1240 = vst [vmem:[%s3 + $0x40] sm:$0xff] %v1192
  %1241 = vst [vmem:[%s3 + $0x48] sm:$0xff] %v1193
  %1242 = vst [vmem:[%s3 + $0x50] sm:$0xff] %v1194
  %1243 = vst [vmem:[%s3 + $0x58] sm:$0xff] %v1195
  %1244 = vst [vmem:[%s3 + $0x60] sm:$0xff] %v1196
  %1245 = vst [vmem:[%s3 + $0x68] sm:$0xff] %v1197
  %1246 = vst [vmem:[%s3 + $0x70] sm:$0xff] %v1198
  %1247 = vst [vmem:[%s3 + $0x78] sm:$0xff] %v1199
  %1248 = vst [vmem:[%s4] sm:$0xff] %v1216
  %1249 = vst [vmem:[%s4 + $0x8] sm:$0xff] %v1217
  %1250 = vst [vmem:[%s4 + $0x10] sm:$0xff] %v1218
  %1251 = vst [vmem:[%s4 + $0x18] sm:$0xff] %v1219
  %1252 = vst [vmem:[%s4 + $0x20] sm:$0xff] %v1220
  %1253 = vst [vmem:[%s4 + $0x28] sm:$0xff] %v1221
  %1254 = vst [vmem:[%s4 + $0x30] sm:$0xff] %v1222
  %1255 = vst [vmem:[%s4 + $0x38] sm:$0xff] %v1223
  %1256 = vst [vmem:[%s4 + $0x40] sm:$0xff] %v1224
  %1257 = vst [vmem:[%s4 + $0x48] sm:$0xff] %v1225
  %1258 = vst [vmem:[%s4 + $0x50] sm:$0xff] %v1226
  %1259 = vst [vmem:[%s4 + $0x58] sm:$0xff] %v1227
  %1260 = vst [vmem:[%s4 + $0x60] sm:$0xff] %v1228
  %1261 = vst [vmem:[%s4 + $0x68] sm:$0xff] %v1229
  %1262 = vst [vmem:[%s4 + $0x70] sm:$0xff] %v1230
  %1263 = vst [vmem:[%s4 + $0x78] sm:$0xff] %v1231
  // Predicated region
  $region10: #{generator_forward.9} parent=0 // pred_check
    _
  $region11: #{generator_forward.9} parent=0 // pred_check_branch
    %1265 = sbr.rel (0) target = $region13
  $region12: #{generator_forward.9} parent=0 // pred_region
    _
  $region13: #{generator_forward.9} parent=0 // pred_fallthru
    _
  // Predicated region
  $region14: #{generator_forward.9} parent=0 // pred_check
    _
  $region15: #{generator_forward.9} parent=0 // pred_check_branch
    %1267 = sbr.rel (0) target = $region17
  $region16: #{generator_forward.9} parent=0 // pred_region
    _
  $region17: #{generator_forward.9} parent=0 // pred_fallthru
    _
  // Predicated region
  $region18: #{generator_forward.9} parent=0 // pred_check
    _
  $region19: #{generator_forward.9} parent=0 // pred_check_branch
    %1269 = sbr.rel (0) target = $region21
  $region20: #{generator_forward.9} parent=0 // pred_region
    _
  $region21: #{generator_forward.9} parent=0 // pred_fallthru
    _
  // Predicated region
  $region22: #{generator_forward.9} parent=0 // pred_check
    _
  $region23: #{generator_forward.9} parent=0 // pred_check_branch
    %1271 = sbr.rel (0) target = $region25
  $region24: #{generator_forward.9} parent=0 // pred_region
    _
  $region25: #{generator_forward.9} parent=0 // pred_fallthru
    _
  // Predicated region
  $region26: #{generator_forward.9} parent=0 // pred_check
    _
  $region27: #{generator_forward.9} parent=0 // pred_check_branch
    %1273 = sbr.rel (0) target = $region29
  $region28: #{generator_forward.9} parent=0 // pred_region
    _
  $region29: #{generator_forward.9} parent=0 // pred_fallthru
    _
  // Predicated region
  $region30: #{generator_forward.9} parent=0 // pred_check
    _
  $region31: #{generator_forward.9} parent=0 // pred_check_branch
    %1275 = sbr.rel (0) target = $region33
  $region32: #{generator_forward.9} parent=0 // pred_region
    _
  $region33: #{generator_forward.9} parent=0 // pred_fallthru
    _

// kernel: generator_forward.11
$region0: #{generator_forward.11}
  #allocation0 [shape = 'u32[]', space=smem, size = 0x4, offset = 0x4, fixed_abs, tag = 'smem constant byte address 0x4 - core index']
  #allocation1 [shape = 'u32[144,128]{1,0:T(1,128)}', space=vmem, size = 0x12000, scoped, tag = 'internal scratch']
  %s0 = inlined_call_operand.vmem [shape: bf16[4,32,512], index: 0, kind: input, shape index: {}]
  %s1 = inlined_call_operand.vmem [shape: bf16[4,512,128], index: 1, kind: input, shape index: {}]
  %s2 = inlined_call_operand.vmem [shape: bf16[4,32,128], index: 2, kind: output, shape index: {0}]
  %s3 = inlined_call_operand.vmem [shape: f32[4,8,128], index: 3, kind: output, shape index: {1}]
  %s4 = inlined_call_operand.vmem [shape: f32[4,8,128], index: 4, kind: output, shape index: {2}]
  %5 = xla_tuple %s2, %s3, %s4
  %s6 = sld [smem:[#allocation0]]
  $region57: #{generator_forward.11} parent=0
    _
  %s8 = ssub.s32 1, %s6
  %s9 = scalar_select 0, %s8, %s6
  loop: start=0, step=1, limit=6
  $region2: #{generator_forward.11} parent=0 // loop_pre_header
    _
  $region3: #{generator_forward.11} parent=0 // loop_header
    %s11 = sphi 0, %s15
    %p12 = scmp.ge.s32.totalorder %s11, 6
    %s18 = sphi 0, %s30
    %s19 = sphi 0, %s26
    %s20 = sphi 0, %s18
    %s21 = sphi 0, %s19
    %s22 = sphi 0, %s20
    %s23 = sphi 0, %s21
    %s35 = sphi 0, %s37
    %s38 = sphi 0, %s35
    %s39 = sphi 0, %s38
    %s55 = sphi 0, %s39
    %s61 = sphi 0, %s63
    %s64 = sphi 0, %s61
    %s65 = sphi 0, %s64
    %s81 = sphi 0, %s65
    %s89 = sphi 0, %s91
    %s92 = sphi 0, %s89
    %s93 = sphi 0, %s92
    %s109 = sphi 0, %s93
    %s117 = sphi 0, %s119
    %s120 = sphi 0, %s117
    %s121 = sphi 0, %s120
    %s137 = sphi 0, %s121
    %s145 = sphi 0, %s147
    %s148 = sphi 0, %s145
    %s149 = sphi 0, %s148
    %s165 = sphi 0, %s149
  $region4: #{generator_forward.11} parent=0 // loop_header_branch
    %14 = sbr.rel (%p12) target = $region8
  $region5: #{generator_forward.11} parent=0 // loop_body
    %s16 = ssub.s32 %s11, 1
    %s17 = ssub.s32 %s11, 2
    %s24 = sadd.s32 1, %s19
    %p25 = scmp.ge.s32.totalorder %s24, 1
    %s26 = scalar_select %p25, 0, %s24
    %s27 = sadd.s32 1, %s18
    %s28 = scalar_select %p25, %s27, %s18
    %p29 = scmp.ge.s32.totalorder %s28, 4
    %s30 = scalar_select %p29, 0, %s28
    %s31 = ssub.s32 %s18, %s30
    %s32 = ssub.s32 %s19, %s26
    %s33 = sor.u32 %s31, %s32
    %p34 = scmp.eq.s32.totalorder %s33, 0
    %s36 = sadd.s32 %s35, 1
    %s37 = scalar_select %p34, %s35, %s36
    %p40 = pneg %p34
    %p41 = scmp.eq.s32.totalorder %s11, 3
    %p42 = por %p40, %p41
    %p43 = scmp.ne.s32.totalorder %s35, %s38
    %p44 = scmp.eq.s32.totalorder %s11, 0
    %p45 = por %p43, %p44
    %p46 = scmp.ne.s32.totalorder %s35, %s38
    %p47 = scmp.eq.s32.totalorder %s16, 3
    %p48 = por %p46, %p47
    %p49 = scmp.ne.s32.totalorder %s38, %s39
    %p50 = scmp.eq.s32.totalorder %s16, 0
    %p51 = por %p49, %p50
    %p52 = scmp.ne.s32.totalorder %s38, %s39
    %p53 = scmp.eq.s32.totalorder %s17, 3
    %p54 = por %p52, %p53
    %p56 = scmp.ne.s32.totalorder %s39, %s55
    %p57 = scmp.eq.s32.totalorder %s17, 0
    %p58 = por %p56, %p57
    %s59 = ssub.s32 %s18, %s30
    %p60 = scmp.eq.s32.totalorder %s59, 0
    %s62 = sadd.s32 %s61, 1
    %s63 = scalar_select %p60, %s61, %s62
    %p66 = pneg %p60
    %p67 = scmp.eq.s32.totalorder %s11, 3
    %p68 = por %p66, %p67
    %p69 = scmp.ne.s32.totalorder %s61, %s64
    %p70 = scmp.eq.s32.totalorder %s11, 0
    %p71 = por %p69, %p70
    %p72 = scmp.ne.s32.totalorder %s61, %s64
    %p73 = scmp.eq.s32.totalorder %s16, 3
    %p74 = por %p72, %p73
    %p75 = scmp.ne.s32.totalorder %s64, %s65
    %p76 = scmp.eq.s32.totalorder %s16, 0
    %p77 = por %p75, %p76
    %p78 = scmp.ne.s32.totalorder %s64, %s65
    %p79 = scmp.eq.s32.totalorder %s17, 3
    %p80 = por %p78, %p79
    %p82 = scmp.ne.s32.totalorder %s65, %s81
    %p83 = scmp.eq.s32.totalorder %s17, 0
    %p84 = por %p82, %p83
    %s85 = ssub.s32 %s18, %s30
    %s86 = ssub.s32 %s19, %s26
    %s87 = sor.u32 %s85, %s86
    %p88 = scmp.eq.s32.totalorder %s87, 0
    %s90 = sadd.s32 %s89, 1
    %s91 = scalar_select %p88, %s89, %s90
    %p94 = pneg %p88
    %p95 = scmp.eq.s32.totalorder %s11, 3
    %p96 = por %p94, %p95
    %p97 = scmp.ne.s32.totalorder %s89, %s92
    %p98 = scmp.eq.s32.totalorder %s11, 0
    %p99 = por %p97, %p98
    %p100 = scmp.ne.s32.totalorder %s89, %s92
    %p101 = scmp.eq.s32.totalorder %s16, 3
    %p102 = por %p100, %p101
    %p103 = scmp.ne.s32.totalorder %s92, %s93
    %p104 = scmp.eq.s32.totalorder %s16, 0
    %p105 = por %p103, %p104
    %p106 = scmp.ne.s32.totalorder %s92, %s93
    %p107 = scmp.eq.s32.totalorder %s17, 3
    %p108 = por %p106, %p107
    %p110 = scmp.ne.s32.totalorder %s93, %s109
    %p111 = scmp.eq.s32.totalorder %s17, 0
    %p112 = por %p110, %p111
    %s113 = ssub.s32 %s18, %s30
    %s114 = ssub.s32 %s19, %s26
    %s115 = sor.u32 %s113, %s114
    %p116 = scmp.eq.s32.totalorder %s115, 0
    %s118 = sadd.s32 %s117, 1
    %s119 = scalar_select %p116, %s117, %s118
    %p122 = pneg %p116
    %p123 = scmp.eq.s32.totalorder %s11, 3
    %p124 = por %p122, %p123
    %p125 = scmp.ne.s32.totalorder %s117, %s120
    %p126 = scmp.eq.s32.totalorder %s11, 0
    %p127 = por %p125, %p126
    %p128 = scmp.ne.s32.totalorder %s117, %s120
    %p129 = scmp.eq.s32.totalorder %s16, 3
    %p130 = por %p128, %p129
    %p131 = scmp.ne.s32.totalorder %s120, %s121
    %p132 = scmp.eq.s32.totalorder %s16, 0
    %p133 = por %p131, %p132
    %p134 = scmp.ne.s32.totalorder %s120, %s121
    %p135 = scmp.eq.s32.totalorder %s17, 3
    %p136 = por %p134, %p135
    %p138 = scmp.ne.s32.totalorder %s121, %s137
    %p139 = scmp.eq.s32.totalorder %s17, 0
    %p140 = por %p138, %p139
    %s141 = ssub.s32 %s18, %s30
    %s142 = ssub.s32 %s19, %s26
    %s143 = sor.u32 %s141, %s142
    %p144 = scmp.eq.s32.totalorder %s143, 0
    %s146 = sadd.s32 %s145, 1
    %s147 = scalar_select %p144, %s145, %s146
    %p150 = pneg %p144
    %p151 = scmp.eq.s32.totalorder %s11, 3
    %p152 = por %p150, %p151
    %p153 = scmp.ne.s32.totalorder %s145, %s148
    %p154 = scmp.eq.s32.totalorder %s11, 0
    %p155 = por %p153, %p154
    %p156 = scmp.ne.s32.totalorder %s145, %s148
    %p157 = scmp.eq.s32.totalorder %s16, 3
    %p158 = por %p156, %p157
    %p159 = scmp.ne.s32.totalorder %s148, %s149
    %p160 = scmp.eq.s32.totalorder %s16, 0
    %p161 = por %p159, %p160
    %p162 = scmp.ne.s32.totalorder %s148, %s149
    %p163 = scmp.eq.s32.totalorder %s17, 3
    %p164 = por %p162, %p163
    %p166 = scmp.ne.s32.totalorder %s149, %s165
    %p167 = scmp.eq.s32.totalorder %s17, 0
    %p168 = por %p166, %p167
    %p169 = scmp.le.s32.totalorder 1, %s11
    %p170 = scmp.lt.s32.totalorder %s11, 5
    %p171 = pnand %p169, %p170
    %p172 = pneg %p171
    // Predicated region
    $region9: #{generator_forward.11} parent=5 // pred_check
      _
    $region10: #{generator_forward.11} parent=5 // pred_check_branch
      %174 = sbr.rel (%p171) target = $region12
    $region11: #{generator_forward.11} parent=5 // pred_region
      %s175 = ssub.s32 %s11, 1
    $region12: #{generator_forward.11} parent=5 // pred_fallthru
      _
    %p176 = scmp.lt.s32.totalorder %s11, 4
    // Predicated region
    $region13: #{generator_forward.11} parent=5 // pred_check
      %p177 = pneg %p176
    $region14: #{generator_forward.11} parent=5 // pred_check_branch
      %179 = sbr.rel (%p177) target = $region16
    $region15: #{generator_forward.11} parent=5 // pred_region
      // Predicated region
      $region17: #{generator_forward.11} parent=15 // pred_check
        %p180 = pneg %p45
      $region18: #{generator_forward.11} parent=15 // pred_check_branch
        %182 = sbr.rel (%p180) target = $region20
      $region19: #{generator_forward.11} parent=15 // pred_region
        %s183 = smul.u32 4, %s19
        %p184 = scmp.lt.s32.totalorder %s18, 3
        %s185 = scalar_select %p184, %s18, 3
        %p186 = scmp.lt.s32.totalorder %s183, 3
        %s187 = scalar_select %p186, %s183, 3
        %s188 = smul.addr %s187, 4
        %s189 = smul.addr %s185, 16
        %s190 = sadd.s32 %s188, %s189
        %s191 = smul.addr %s190, 4
        %s192 = scalar_lea.vmem %s0, %s191
        %s193 = smul.u32 4, %s19
      $region20: #{generator_forward.11} parent=15 // pred_fallthru
        _
      // Predicated region
      $region21: #{generator_forward.11} parent=15 // pred_check
        %p194 = pneg %p71
      $region22: #{generator_forward.11} parent=15 // pred_check_branch
        %196 = sbr.rel (%p194) target = $region24
      $region23: #{generator_forward.11} parent=15 // pred_region
        %p197 = scmp.lt.s32.totalorder %s18, 3
        %s198 = scalar_select %p197, %s18, 3
        %s199 = smul.addr %s198, 64
        %s200 = smul.addr %s199, 4
        %s201 = scalar_lea.vmem %s1, %s200
      $region24: #{generator_forward.11} parent=15 // pred_fallthru
        _
    $region16: #{generator_forward.11} parent=5 // pred_fallthru
      _
    %p202 = scmp.le.s32.totalorder 1, %s11
    %p203 = scmp.lt.s32.totalorder %s11, 5
    %p204 = pnand %p202, %p203
    %p205 = pneg %p204
    // Predicated region
    $region25: #{generator_forward.11} parent=5 // pred_check
      _
    $region26: #{generator_forward.11} parent=5 // pred_check_branch
      %207 = sbr.rel (%p204) target = $region28
    $region27: #{generator_forward.11} parent=5 // pred_region
      %s208 = ssub.s32 %s11, 1
      %s209 = smul.u32 4, %s21
      %p210 = scmp.lt.s32.totalorder %s20, 3
      %s211 = scalar_select %p210, %s20, 3
      %p212 = scmp.lt.s32.totalorder %s209, 3
      %s213 = scalar_select %p212, %s209, 3
      %s214 = smul.addr %s213, 4
      %s215 = smul.addr %s211, 16
      %s216 = sadd.s32 %s214, %s215
      %s217 = smul.addr %s216, 4
      %s218 = scalar_lea.vmem %s0, %s217
      %p219 = pneg %p51
      %p220 = pneg %p48
      %p221 = scmp.lt.s32.totalorder %s20, 3
      %s222 = scalar_select %p221, %s20, 3
      %s223 = smul.addr %s222, 64
      %s224 = smul.addr %s223, 4
      %s225 = scalar_lea.vmem %s1, %s224
      %p226 = pneg %p77
      %p227 = pneg %p74
      %p228 = pneg %p105
      %p229 = pneg %p102
      %s230 = smul.u32 4, %s21
      %p231 = scmp.lt.s32.totalorder %s20, 3
      %s232 = scalar_select %p231, %s20, 3
      %p233 = scmp.lt.s32.totalorder %s230, 3
      %s234 = scalar_select %p233, %s230, 3
      %s235 = smul.addr %s232, 4
      %s236 = sadd.s32 %s234, %s235
      %s237 = smul.addr %s236, 4
      %s238 = scalar_lea.vmem %s2, %s237
      %p239 = pneg %p133
      %p240 = pneg %p130
      %p241 = scmp.lt.s32.totalorder %s20, 3
      %s242 = scalar_select %p241, %s20, 3
      %p243 = scmp.lt.s32.totalorder %s21, 0
      %s244 = scalar_select %p243, %s21, 0
      %s245 = sadd.s32 %s244, %s242
      %s246 = smul.addr %s245, 8
      %s247 = scalar_lea.vmem %s3, %s246
      %p248 = pneg %p161
      %p249 = pneg %p158
      %p250 = scmp.lt.s32.totalorder %s20, 3
      %s251 = scalar_select %p250, %s20, 3
      %p252 = scmp.lt.s32.totalorder %s21, 0
      %s253 = scalar_select %p252, %s21, 0
      %s254 = sadd.s32 %s253, %s251
      %s255 = smul.addr %s254, 8
      %s256 = scalar_lea.vmem %s4, %s255
      %s257 = smul.u32 4, %s21
      %p258 = scmp.lt.s32.totalorder %s20, 3
      %s259 = scalar_select %p258, %s20, 3
      %p260 = scmp.lt.s32.totalorder %s257, 3
      %s261 = scalar_select %p260, %s257, 3
      %s262 = smul.addr %s261, 4
      %s263 = smul.addr %s259, 16
      %s264 = sadd.s32 %s262, %s263
      %s265 = smul.addr %s264, 4
      %s266 = scalar_lea.vmem %s0, %s265
      %s267 = smul.u32 4, %s21
      %p268 = scmp.lt.s32.totalorder %s20, 3
      %s269 = scalar_select %p268, %s20, 3
      %s270 = smul.addr %s269, 64
      %s271 = smul.addr %s270, 4
      %s272 = scalar_lea.vmem %s1, %s271
      %s273 = smul.u32 4, %s21
      %p274 = scmp.lt.s32.totalorder %s20, 3
      %s275 = scalar_select %p274, %s20, 3
      %p276 = scmp.lt.s32.totalorder %s273, 3
      %s277 = scalar_select %p276, %s273, 3
      %s278 = smul.addr %s275, 4
      %s279 = sadd.s32 %s277, %s278
      %s280 = smul.addr %s279, 4
      %s281 = scalar_lea.vmem %s2, %s280
      %s282 = smul.u32 4, %s21
      %p283 = scmp.lt.s32.totalorder %s20, 3
      %s284 = scalar_select %p283, %s20, 3
      %p285 = scmp.lt.s32.totalorder %s21, 0
      %s286 = scalar_select %p285, %s21, 0
      %s287 = sadd.s32 %s286, %s284
      %s288 = smul.addr %s287, 8
      %s289 = scalar_lea.vmem %s3, %s288
      %p290 = scmp.lt.s32.totalorder %s20, 3
      %s291 = scalar_select %p290, %s20, 3
      %p292 = scmp.lt.s32.totalorder %s21, 0
      %s293 = scalar_select %p292, %s21, 0
      %s294 = sadd.s32 %s293, %s291
      %s295 = smul.addr %s294, 8
      %s296 = scalar_lea.vmem %s4, %s295
      %v298 = vld [vmem:[%s266] sm:$0xff]
      %v299 = vld [vmem:[%s266 + $0x8] sm:$0xff]
      %v300 = vld [vmem:[%s266 + $0x10] sm:$0xff]
      %v301 = vld [vmem:[%s266 + $0x18] sm:$0xff]
      %v302 = vld [vmem:[%s266 + $0x20] sm:$0xff]
      %v303 = vld [vmem:[%s266 + $0x28] sm:$0xff]
      %v304 = vld [vmem:[%s266 + $0x30] sm:$0xff]
      %v305 = vld [vmem:[%s266 + $0x38] sm:$0xff]
      %v306 = vld [vmem:[%s272] sm:$0xf]
      %v307 = vld [vmem:[%s272 + $0x4] sm:$0xf]
      %v308 = vld [vmem:[%s272 + $0x8] sm:$0xf]
      %v309 = vld [vmem:[%s272 + $0xc] sm:$0xf]
      %v310 = vld [vmem:[%s272 + $0x10] sm:$0xf]
      %v311 = vld [vmem:[%s272 + $0x14] sm:$0xf]
      %v312 = vld [vmem:[%s272 + $0x18] sm:$0xf]
      %v313 = vld [vmem:[%s272 + $0x1c] sm:$0xf]
      %v314 = vld [vmem:[%s272 + $0x20] sm:$0xf]
      %v315 = vld [vmem:[%s272 + $0x24] sm:$0xf]
      %v316 = vld [vmem:[%s272 + $0x28] sm:$0xf]
      %v317 = vld [vmem:[%s272 + $0x2c] sm:$0xf]
      %v318 = vld [vmem:[%s272 + $0x30] sm:$0xf]
      %v319 = vld [vmem:[%s272 + $0x34] sm:$0xf]
      %v320 = vld [vmem:[%s272 + $0x38] sm:$0xf]
      %v321 = vld [vmem:[%s272 + $0x3c] sm:$0xf]
      %v322 = vld [vmem:[%s272 + $0x40] sm:$0xf]
      %v323 = vld [vmem:[%s272 + $0x44] sm:$0xf]
      %v324 = vld [vmem:[%s272 + $0x48] sm:$0xf]
      %v325 = vld [vmem:[%s272 + $0x4c] sm:$0xf]
      %v326 = vld [vmem:[%s272 + $0x50] sm:$0xf]
      %v327 = vld [vmem:[%s272 + $0x54] sm:$0xf]
      %v328 = vld [vmem:[%s272 + $0x58] sm:$0xf]
      %v329 = vld [vmem:[%s272 + $0x5c] sm:$0xf]
      %v330 = vld [vmem:[%s272 + $0x60] sm:$0xf]
      %v331 = vld [vmem:[%s272 + $0x64] sm:$0xf]
      %v332 = vld [vmem:[%s272 + $0x68] sm:$0xf]
      %v333 = vld [vmem:[%s272 + $0x6c] sm:$0xf]
      %v334 = vld [vmem:[%s272 + $0x70] sm:$0xf]
      %v335 = vld [vmem:[%s272 + $0x74] sm:$0xf]
      %v336 = vld [vmem:[%s272 + $0x78] sm:$0xf]
      %v337 = vld [vmem:[%s272 + $0x7c] sm:$0xf]
      %v338 = vld [vmem:[%s272 + $0x80] sm:$0xf]
      %v339 = vld [vmem:[%s272 + $0x84] sm:$0xf]
      %v340 = vld [vmem:[%s272 + $0x88] sm:$0xf]
      %v341 = vld [vmem:[%s272 + $0x8c] sm:$0xf]
      %v342 = vld [vmem:[%s272 + $0x90] sm:$0xf]
      %v343 = vld [vmem:[%s272 + $0x94] sm:$0xf]
      %v344 = vld [vmem:[%s272 + $0x98] sm:$0xf]
      %v345 = vld [vmem:[%s272 + $0x9c] sm:$0xf]
      %v346 = vld [vmem:[%s272 + $0xa0] sm:$0xf]
      %v347 = vld [vmem:[%s272 + $0xa4] sm:$0xf]
      %v348 = vld [vmem:[%s272 + $0xa8] sm:$0xf]
      %v349 = vld [vmem:[%s272 + $0xac] sm:$0xf]
      %v350 = vld [vmem:[%s272 + $0xb0] sm:$0xf]
      %v351 = vld [vmem:[%s272 + $0xb4] sm:$0xf]
      %v352 = vld [vmem:[%s272 + $0xb8] sm:$0xf]
      %v353 = vld [vmem:[%s272 + $0xbc] sm:$0xf]
      %v354 = vld [vmem:[%s272 + $0xc0] sm:$0xf]
      %v355 = vld [vmem:[%s272 + $0xc4] sm:$0xf]
      %v356 = vld [vmem:[%s272 + $0xc8] sm:$0xf]
      %v357 = vld [vmem:[%s272 + $0xcc] sm:$0xf]
      %v358 = vld [vmem:[%s272 + $0xd0] sm:$0xf]
      %v359 = vld [vmem:[%s272 + $0xd4] sm:$0xf]
      %v360 = vld [vmem:[%s272 + $0xd8] sm:$0xf]
      %v361 = vld [vmem:[%s272 + $0xdc] sm:$0xf]
      %v362 = vld [vmem:[%s272 + $0xe0] sm:$0xf]
      %v363 = vld [vmem:[%s272 + $0xe4] sm:$0xf]
      %v364 = vld [vmem:[%s272 + $0xe8] sm:$0xf]
      %v365 = vld [vmem:[%s272 + $0xec] sm:$0xf]
      %v366 = vld [vmem:[%s272 + $0xf0] sm:$0xf]
      %v367 = vld [vmem:[%s272 + $0xf4] sm:$0xf]
      %v368 = vld [vmem:[%s272 + $0xf8] sm:$0xf]
      %v369 = vld [vmem:[%s272 + $0xfc] sm:$0xf]
      %v378 = vunpack.c.l.b16 %v298
      %v379 = vunpack.c.h.b16 %v298
      %v380 = vunpack.c.l.b16 %v299
      %v381 = vunpack.c.h.b16 %v299
      %v382 = vunpack.c.l.b16 %v300
      %v383 = vunpack.c.h.b16 %v300
      %v384 = vunpack.c.l.b16 %v301
      %v385 = vunpack.c.h.b16 %v301
      %v386 = vunpack.c.l.b16 %v302
      %v387 = vunpack.c.h.b16 %v302
      %v388 = vunpack.c.l.b16 %v303
      %v389 = vunpack.c.h.b16 %v303
      %v390 = vunpack.c.l.b16 %v304
      %v391 = vunpack.c.h.b16 %v304
      %v392 = vunpack.c.l.b16 %v305
      %v393 = vunpack.c.h.b16 %v305
      %v394 = vpack.c.b16 %v382, %v378
      %v395 = vpack.c.b16 %v383, %v379
      %v396 = vpack.c.b16 %v384, %v380
      %v397 = vpack.c.b16 %v385, %v381
      %v398 = vpack.c.b16 %v390, %v386
      %v399 = vpack.c.b16 %v391, %v387
      %v400 = vpack.c.b16 %v392, %v388
      %v401 = vpack.c.b16 %v393, %v389
      %v474 = vunpack.c.l.b16 %v306
      %v475 = vunpack.c.l.b16 %v307
      %v476 = vunpack.c.l.b16 %v308
      %v477 = vunpack.c.l.b16 %v309
      %v478 = vunpack.c.l.b16 %v310
      %v479 = vunpack.c.l.b16 %v311
      %v480 = vunpack.c.l.b16 %v312
      %v481 = vunpack.c.l.b16 %v313
      %v482 = vunpack.c.l.b16 %v314
      %v483 = vunpack.c.l.b16 %v315
      %v484 = vunpack.c.l.b16 %v316
      %v485 = vunpack.c.l.b16 %v317
      %v486 = vunpack.c.l.b16 %v318
      %v487 = vunpack.c.l.b16 %v319
      %v488 = vunpack.c.l.b16 %v320
      %v489 = vunpack.c.l.b16 %v321
      %v490 = vunpack.c.l.b16 %v322
      %v491 = vunpack.c.l.b16 %v323
      %v492 = vunpack.c.l.b16 %v324
      %v493 = vunpack.c.l.b16 %v325
      %v494 = vunpack.c.l.b16 %v326
      %v495 = vunpack.c.l.b16 %v327
      %v496 = vunpack.c.l.b16 %v328
      %v497 = vunpack.c.l.b16 %v329
      %v498 = vunpack.c.l.b16 %v330
      %v499 = vunpack.c.l.b16 %v331
      %v500 = vunpack.c.l.b16 %v332
      %v501 = vunpack.c.l.b16 %v333
      %v502 = vunpack.c.l.b16 %v334
      %v503 = vunpack.c.l.b16 %v335
      %v504 = vunpack.c.l.b16 %v336
      %v505 = vunpack.c.l.b16 %v337
      %v506 = vunpack.c.l.b16 %v338
      %v507 = vunpack.c.l.b16 %v339
      %v508 = vunpack.c.l.b16 %v340
      %v509 = vunpack.c.l.b16 %v341
      %v510 = vunpack.c.l.b16 %v342
      %v511 = vunpack.c.l.b16 %v343
      %v512 = vunpack.c.l.b16 %v344
      %v513 = vunpack.c.l.b16 %v345
      %v514 = vunpack.c.l.b16 %v346
      %v515 = vunpack.c.l.b16 %v347
      %v516 = vunpack.c.l.b16 %v348
      %v517 = vunpack.c.l.b16 %v349
      %v518 = vunpack.c.l.b16 %v350
      %v519 = vunpack.c.l.b16 %v351
      %v520 = vunpack.c.l.b16 %v352
      %v521 = vunpack.c.l.b16 %v353
      %v522 = vunpack.c.l.b16 %v354
      %v523 = vunpack.c.l.b16 %v355
      %v524 = vunpack.c.l.b16 %v356
      %v525 = vunpack.c.l.b16 %v357
      %v526 = vunpack.c.l.b16 %v358
      %v527 = vunpack.c.l.b16 %v359
      %v528 = vunpack.c.l.b16 %v360
      %v529 = vunpack.c.l.b16 %v361
      %v530 = vunpack.c.l.b16 %v362
      %v531 = vunpack.c.l.b16 %v363
      %v532 = vunpack.c.l.b16 %v364
      %v533 = vunpack.c.l.b16 %v365
      %v534 = vunpack.c.l.b16 %v366
      %v535 = vunpack.c.l.b16 %v367
      %v536 = vunpack.c.l.b16 %v368
      %v537 = vunpack.c.l.b16 %v369
      %v538 = vpack.c.b16 %v475, %v474
      %v539 = vpack.c.b16 %v477, %v476
      %v540 = vpack.c.b16 %v479, %v478
      %v541 = vpack.c.b16 %v481, %v480
      %v542 = vpack.c.b16 %v483, %v482
      %v543 = vpack.c.b16 %v485, %v484
      %v544 = vpack.c.b16 %v487, %v486
      %v545 = vpack.c.b16 %v489, %v488
      %v546 = vpack.c.b16 %v491, %v490
      %v547 = vpack.c.b16 %v493, %v492
      %v548 = vpack.c.b16 %v495, %v494
      %v549 = vpack.c.b16 %v497, %v496
      %v550 = vpack.c.b16 %v499, %v498
      %v551 = vpack.c.b16 %v501, %v500
      %v552 = vpack.c.b16 %v503, %v502
      %v553 = vpack.c.b16 %v505, %v504
      %v554 = vpack.c.b16 %v507, %v506
      %v555 = vpack.c.b16 %v509, %v508
      %v556 = vpack.c.b16 %v511, %v510
      %v557 = vpack.c.b16 %v513, %v512
      %v558 = vpack.c.b16 %v515, %v514
      %v559 = vpack.c.b16 %v517, %v516
      %v560 = vpack.c.b16 %v519, %v518
      %v561 = vpack.c.b16 %v521, %v520
      %v562 = vpack.c.b16 %v523, %v522
      %v563 = vpack.c.b16 %v525, %v524
      %v564 = vpack.c.b16 %v527, %v526
      %v565 = vpack.c.b16 %v529, %v528
      %v566 = vpack.c.b16 %v531, %v530
      %v567 = vpack.c.b16 %v533, %v532
      %v568 = vpack.c.b16 %v535, %v534
      %v569 = vpack.c.b16 %v537, %v536
      %602 = vmatprep.subr.bf16.mxu0 0
      %603 = vmatpush1.bf16.msra.mxu0 %v538
      %604 = vmatprep.subr.bf16.mxu0 0
      %605 = vmatpush1.bf16.msra.mxu0 %v539
      %606 = vmatprep.subr.bf16.mxu0 0
      %607 = vmatpush1.bf16.msra.mxu0 %v540
      %608 = vmatprep.subr.bf16.mxu0 0
      %609 = vmatpush1.bf16.msra.mxu0 %v541
      %610 = vmatprep.subr.bf16.mxu0 0
      %611 = vmatpush1.bf16.msra.mxu0 %v542
      %612 = vmatprep.subr.bf16.mxu0 0
      %613 = vmatpush1.bf16.msra.mxu0 %v543
      %614 = vmatprep.subr.bf16.mxu0 0
      %615 = vmatpush1.bf16.msra.mxu0 %v544
      %616 = vmatprep.subr.bf16.mxu0 0
      %617 = vmatpush1.bf16.msra.mxu0 %v545
      %618 = vmatprep.subr.bf16.mxu0 0
      %619 = vmatpush1.bf16.msra.mxu0 %v546
      %620 = vmatprep.subr.bf16.mxu0 0
      %621 = vmatpush1.bf16.msra.mxu0 %v547
      %622 = vmatprep.subr.bf16.mxu0 0
      %623 = vmatpush1.bf16.msra.mxu0 %v548
      %624 = vmatprep.subr.bf16.mxu0 0
      %625 = vmatpush1.bf16.msra.mxu0 %v549
      %626 = vmatprep.subr.bf16.mxu0 0
      %627 = vmatpush1.bf16.msra.mxu0 %v550
      %628 = vmatprep.subr.bf16.mxu0 0
      %629 = vmatpush1.bf16.msra.mxu0 %v551
      %630 = vmatprep.subr.bf16.mxu0 0
      %631 = vmatpush1.bf16.msra.mxu0 %v552
      %632 = vmatprep.subr.bf16.mxu0 0
      %633 = vmatpush1.bf16.msra.mxu0 %v553
      %634 = vmatprep.mubr.bf16.mxu0 %v395
      %635 = vmatmul.mubr.bf16.gmra.mrb[0].mxu0 %v394
      %v636 = vpop.f32.mrb[0].mxu0
      %v637 = vadd.f32 0.0, %v636
      %v638 = vpop.f32.mrb[0].mxu0
      %v639 = vpop.f32.mrb[0].mxu0
      %v640 = vadd.f32 0.0, %v639
      %v641 = vpop.f32.mrb[0].mxu0
      %642 = vmatprep.mubr.bf16.mxu0 %v399
      %643 = vmatmul.mubr.bf16.gmra.mrb[0].mxu0 %v398
      %v644 = vpop.f32.mrb[0].mxu0
      %v645 = vadd.f32 0.0, %v644
      %v646 = vpop.f32.mrb[0].mxu0
      %v647 = vpop.f32.mrb[0].mxu0
      %v648 = vadd.f32 0.0, %v647
      %v649 = vpop.f32.mrb[0].mxu0
      %650 = vdwg.mxu0
      %651 = vmatprep.subr.bf16.mxu0 0
      %652 = vmatpush1.bf16.msra.mxu0 %v554
      %653 = vmatprep.subr.bf16.mxu0 0
      %654 = vmatpush1.bf16.msra.mxu0 %v555
      %655 = vmatprep.subr.bf16.mxu0 0
      %656 = vmatpush1.bf16.msra.mxu0 %v556
      %657 = vmatprep.subr.bf16.mxu0 0
      %658 = vmatpush1.bf16.msra.mxu0 %v557
      %659 = vmatprep.subr.bf16.mxu0 0
      %660 = vmatpush1.bf16.msra.mxu0 %v558
      %661 = vmatprep.subr.bf16.mxu0 0
      %662 = vmatpush1.bf16.msra.mxu0 %v559
      %663 = vmatprep.subr.bf16.mxu0 0
      %664 = vmatpush1.bf16.msra.mxu0 %v560
      %665 = vmatprep.subr.bf16.mxu0 0
      %666 = vmatpush1.bf16.msra.mxu0 %v561
      %667 = vmatprep.subr.bf16.mxu0 0
      %668 = vmatpush1.bf16.msra.mxu0 %v562
      %669 = vmatprep.subr.bf16.mxu0 0
      %670 = vmatpush1.bf16.msra.mxu0 %v563
      %671 = vmatprep.subr.bf16.mxu0 0
      %672 = vmatpush1.bf16.msra.mxu0 %v564
      %673 = vmatprep.subr.bf16.mxu0 0
      %674 = vmatpush1.bf16.msra.mxu0 %v565
      %675 = vmatprep.subr.bf16.mxu0 0
      %676 = vmatpush1.bf16.msra.mxu0 %v566
      %677 = vmatprep.subr.bf16.mxu0 0
      %678 = vmatpush1.bf16.msra.mxu0 %v567
      %679 = vmatprep.subr.bf16.mxu0 0
      %680 = vmatpush1.bf16.msra.mxu0 %v568
      %681 = vmatprep.subr.bf16.mxu0 0
      %682 = vmatpush1.bf16.msra.mxu0 %v569
      %683 = vmatprep.mubr.bf16.mxu0 %v397
      %684 = vmatmul.mubr.bf16.gmra.mrb[0].mxu0 %v396
      %v685 = vpop.f32.mrb[0].mxu0
      %v686 = vadd.f32 %v637, %v685
      %v687 = vpop.f32.mrb[0].mxu0
      %v688 = vpop.f32.mrb[0].mxu0
      %v689 = vadd.f32 %v640, %v688
      %v690 = vpop.f32.mrb[0].mxu0
      %691 = vmatprep.mubr.bf16.mxu0 %v401
      %692 = vmatmul.mubr.bf16.gmra.mrb[0].mxu0 %v400
      %v693 = vpop.f32.mrb[0].mxu0
      %v694 = vadd.f32 %v645, %v693
      %v695 = vpop.f32.mrb[0].mxu0
      %v696 = vpop.f32.mrb[0].mxu0
      %v697 = vadd.f32 %v648, %v696
      %v698 = vpop.f32.mrb[0].mxu0
      %699 = vdwg.mxu0
      %v700 = vpack.c.bf16 %v689, %v686
      %v701 = vpack.c.bf16 %v697, %v694
      %v704 = vunpack.c.l.b16 %v700
      %v705 = vunpack.c.h.b16 %v700
      %v706 = vunpack.c.l.b16 %v701
      %v707 = vunpack.c.h.b16 %v701
      %v708 = vpack.c.b16 %v704, %v704
      %v709 = vpack.c.b16 %v705, %v705
      %v710 = vpack.c.b16 %v706, %v706
      %v711 = vpack.c.b16 %v707, %v707
      %716 = vst [vmem:[%s281] sm:$0xf] %v708
      %717 = vst [vmem:[%s281 + $0x4] sm:$0xf] %v709
      %718 = vst [vmem:[%s281 + $0x8] sm:$0xf] %v710
      %719 = vst [vmem:[%s281 + $0xc] sm:$0xf] %v711
      %v720 = vadd.f32 %v686, %v689
      %v721 = vadd.f32 %v720, %v694
      %v722 = vadd.f32 %v721, %v697
      %v723 = vmul.f32 %v686, %v686
      %v724 = vmul.f32 %v689, %v689
      %v725 = vmul.f32 %v694, %v694
      %v726 = vmul.f32 %v697, %v697
      %v727 = vadd.f32 %v723, %v724
      %v728 = vadd.f32 %v727, %v725
      %v729 = vadd.f32 %v728, %v726
      %730 = vst [vmem:[%s289] sm:$0xff] %v722
      %731 = vst [vmem:[%s296] sm:$0xff] %v729
      %s732 = smul.u32 4, %s21
      %p733 = scmp.lt.s32.totalorder %s20, 3
      %s734 = scalar_select %p733, %s20, 3
      %p735 = scmp.lt.s32.totalorder %s732, 3
      %s736 = scalar_select %p735, %s732, 3
      %s737 = smul.addr %s734, 4
      %s738 = sadd.s32 %s736, %s737
      %s739 = smul.addr %s738, 4
      %s740 = scalar_lea.vmem %s2, %s739
      %p741 = scmp.lt.s32.totalorder %s20, 3
      %s742 = scalar_select %p741, %s20, 3
      %p743 = scmp.lt.s32.totalorder %s21, 0
      %s744 = scalar_select %p743, %s21, 0
      %s745 = sadd.s32 %s744, %s742
      %s746 = smul.addr %s745, 8
      %s747 = scalar_lea.vmem %s3, %s746
      %p748 = scmp.lt.s32.totalorder %s20, 3
      %s749 = scalar_select %p748, %s20, 3
      %p750 = scmp.lt.s32.totalorder %s21, 0
      %s751 = scalar_select %p750, %s21, 0
      %s752 = sadd.s32 %s751, %s749
      %s753 = smul.addr %s752, 8
      %s754 = scalar_lea.vmem %s4, %s753
      // Predicated region
      $region29: #{generator_forward.11} parent=27 // pred_check
        %p755 = pneg %p102
      $region30: #{generator_forward.11} parent=27 // pred_check_branch
        %757 = sbr.rel (%p755) target = $region32
      $region31: #{generator_forward.11} parent=27 // pred_region
        %s758 = smul.u32 4, %s21
      $region32: #{generator_forward.11} parent=27 // pred_fallthru
        _
      // Predicated region
      $region33: #{generator_forward.11} parent=27 // pred_check
        %p759 = pneg %p130
      $region34: #{generator_forward.11} parent=27 // pred_check_branch
        %761 = sbr.rel (%p759) target = $region36
      $region35: #{generator_forward.11} parent=27 // pred_region
        _
      $region36: #{generator_forward.11} parent=27 // pred_fallthru
        _
      // Predicated region
      $region37: #{generator_forward.11} parent=27 // pred_check
        %p762 = pneg %p158
      $region38: #{generator_forward.11} parent=27 // pred_check_branch
        %764 = sbr.rel (%p762) target = $region40
      $region39: #{generator_forward.11} parent=27 // pred_region
        _
      $region40: #{generator_forward.11} parent=27 // pred_fallthru
        _
    $region28: #{generator_forward.11} parent=5 // pred_fallthru
      _
    %p765 = scmp.le.s32.totalorder 2, %s11
    // Predicated region
    $region41: #{generator_forward.11} parent=5 // pred_check
      %p766 = pneg %p765
    $region42: #{generator_forward.11} parent=5 // pred_check_branch
      %768 = sbr.rel (%p766) target = $region44
    $region43: #{generator_forward.11} parent=5 // pred_region
      %s769 = ssub.s32 %s11, 2
      // Predicated region
      $region45: #{generator_forward.11} parent=43 // pred_check
        %p770 = pneg %p108
      $region46: #{generator_forward.11} parent=43 // pred_check_branch
        %772 = sbr.rel (%p770) target = $region48
      $region47: #{generator_forward.11} parent=43 // pred_region
        %s773 = smul.u32 4, %s23
        %p774 = scmp.lt.s32.totalorder %s22, 3
        %s775 = scalar_select %p774, %s22, 3
        %p776 = scmp.lt.s32.totalorder %s773, 3
        %s777 = scalar_select %p776, %s773, 3
        %s778 = smul.addr %s775, 4
        %s779 = sadd.s32 %s777, %s778
        %s780 = smul.addr %s779, 4
        %s781 = scalar_lea.vmem %s2, %s780
      $region48: #{generator_forward.11} parent=43 // pred_fallthru
        _
      // Predicated region
      $region49: #{generator_forward.11} parent=43 // pred_check
        %p782 = pneg %p136
      $region50: #{generator_forward.11} parent=43 // pred_check_branch
        %784 = sbr.rel (%p782) target = $region52
      $region51: #{generator_forward.11} parent=43 // pred_region
        %p785 = scmp.lt.s32.totalorder %s22, 3
        %s786 = scalar_select %p785, %s22, 3
        %p787 = scmp.lt.s32.totalorder %s23, 0
        %s788 = scalar_select %p787, %s23, 0
        %s789 = sadd.s32 %s788, %s786
        %s790 = smul.addr %s789, 8
        %s791 = scalar_lea.vmem %s3, %s790
      $region52: #{generator_forward.11} parent=43 // pred_fallthru
        _
      // Predicated region
      $region53: #{generator_forward.11} parent=43 // pred_check
        %p792 = pneg %p164
      $region54: #{generator_forward.11} parent=43 // pred_check_branch
        %794 = sbr.rel (%p792) target = $region56
      $region55: #{generator_forward.11} parent=43 // pred_region
        %p795 = scmp.lt.s32.totalorder %s22, 3
        %s796 = scalar_select %p795, %s22, 3
        %p797 = scmp.lt.s32.totalorder %s23, 0
        %s798 = scalar_select %p797, %s23, 0
        %s799 = sadd.s32 %s798, %s796
        %s800 = smul.addr %s799, 8
        %s801 = scalar_lea.vmem %s4, %s800
      $region56: #{generator_forward.11} parent=43 // pred_fallthru
        _
    $region44: #{generator_forward.11} parent=5 // pred_fallthru
      _
  $region6: #{generator_forward.11} parent=0 // loop_footer
    %s15 = sadd.s32 1, %s11
  $region7: #{generator_forward.11} parent=0 // loop_footer_branch
    %10 = sbr.rel target = $region3
  $region8: #{generator_forward.11} parent=0 // loop_exit
    _

// kernel: generator_forward.12
$region0: #{generator_forward.12}
  #allocation0 [shape = 'u32[]', space=smem, size = 0x4, offset = 0x4, fixed_abs, tag = 'smem constant byte address 0x4 - core index']
  #allocation1 [shape = 'u32[144,128]{1,0:T(1,128)}', space=vmem, size = 0x12000, scoped, tag = 'internal scratch']
  %s0 = inlined_call_operand.vmem [shape: bf16[128,128], index: 0, kind: input, shape index: {}]
  %s1 = inlined_call_operand.vmem [shape: f32[1,128], index: 1, kind: input, shape index: {}]
  %s2 = inlined_call_operand.vmem [shape: f32[1,128], index: 2, kind: input, shape index: {}]
  %s3 = inlined_call_operand.vmem [shape: bf16[128,128], index: 3, kind: output, shape index: {}]
  %s4 = sld [smem:[#allocation0]]
  $region22: #{generator_forward.12} parent=0
    _
  %s6 = ssub.s32 1, %s4
  %s7 = scalar_select 0, %s6, %s4
  // Predicated region
  $region2: #{generator_forward.12} parent=0 // pred_check
    _
  $region3: #{generator_forward.12} parent=0 // pred_check_branch
    %9 = sbr.rel (0) target = $region5
  $region4: #{generator_forward.12} parent=0 // pred_region
    _
  $region5: #{generator_forward.12} parent=0 // pred_fallthru
    _
  // Predicated region
  $region6: #{generator_forward.12} parent=0 // pred_check
    _
  $region7: #{generator_forward.12} parent=0 // pred_check_branch
    %11 = sbr.rel (0) target = $region9
  $region8: #{generator_forward.12} parent=0 // pred_region
    _
  $region9: #{generator_forward.12} parent=0 // pred_fallthru
    _
  // Predicated region
  $region10: #{generator_forward.12} parent=0 // pred_check
    _
  $region11: #{generator_forward.12} parent=0 // pred_check_branch
    %13 = sbr.rel (0) target = $region13
  $region12: #{generator_forward.12} parent=0 // pred_region
    _
  $region13: #{generator_forward.12} parent=0 // pred_fallthru
    _
  %v14 = vld [vmem:[%s0] sm:$0xf]
  %v15 = vld [vmem:[%s0 + $0x4] sm:$0xf]
  %v16 = vld [vmem:[%s0 + $0x8] sm:$0xf]
  %v17 = vld [vmem:[%s0 + $0xc] sm:$0xf]
  %v18 = vld [vmem:[%s0 + $0x10] sm:$0xf]
  %v19 = vld [vmem:[%s0 + $0x14] sm:$0xf]
  %v20 = vld [vmem:[%s0 + $0x18] sm:$0xf]
  %v21 = vld [vmem:[%s0 + $0x1c] sm:$0xf]
  %v22 = vld [vmem:[%s0 + $0x20] sm:$0xf]
  %v23 = vld [vmem:[%s0 + $0x24] sm:$0xf]
  %v24 = vld [vmem:[%s0 + $0x28] sm:$0xf]
  %v25 = vld [vmem:[%s0 + $0x2c] sm:$0xf]
  %v26 = vld [vmem:[%s0 + $0x30] sm:$0xf]
  %v27 = vld [vmem:[%s0 + $0x34] sm:$0xf]
  %v28 = vld [vmem:[%s0 + $0x38] sm:$0xf]
  %v29 = vld [vmem:[%s0 + $0x3c] sm:$0xf]
  %v30 = vunpack.c.l.bf16 %v14
  %v31 = vunpack.c.l.bf16 %v15
  %v32 = vunpack.c.l.bf16 %v16
  %v33 = vunpack.c.l.bf16 %v17
  %v34 = vunpack.c.l.bf16 %v18
  %v35 = vunpack.c.l.bf16 %v19
  %v36 = vunpack.c.l.bf16 %v20
  %v37 = vunpack.c.l.bf16 %v21
  %v38 = vunpack.c.l.bf16 %v22
  %v39 = vunpack.c.l.bf16 %v23
  %v40 = vunpack.c.l.bf16 %v24
  %v41 = vunpack.c.l.bf16 %v25
  %v42 = vunpack.c.l.bf16 %v26
  %v43 = vunpack.c.l.bf16 %v27
  %v44 = vunpack.c.l.bf16 %v28
  %v45 = vunpack.c.l.bf16 %v29
  %v46 = vld [vmem:[%s1] sm:$0x1]
  %v48 = vlaneseq
  %v49 = vshrl.u32 %v48, 7
  %v50 = vsub.s32 0, %v49
  %v51 = vrot.slane %v46, %v50
  %v53 = vmul.f32 %v30, %v51
  %v54 = vmul.f32 %v31, %v51
  %v55 = vmul.f32 %v32, %v51
  %v56 = vmul.f32 %v33, %v51
  %v57 = vmul.f32 %v34, %v51
  %v58 = vmul.f32 %v35, %v51
  %v59 = vmul.f32 %v36, %v51
  %v60 = vmul.f32 %v37, %v51
  %v61 = vmul.f32 %v38, %v51
  %v62 = vmul.f32 %v39, %v51
  %v63 = vmul.f32 %v40, %v51
  %v64 = vmul.f32 %v41, %v51
  %v65 = vmul.f32 %v42, %v51
  %v66 = vmul.f32 %v43, %v51
  %v67 = vmul.f32 %v44, %v51
  %v68 = vmul.f32 %v45, %v51
  %v69 = vld [vmem:[%s2] sm:$0x1]
  %v71 = vlaneseq
  %v72 = vshrl.u32 %v71, 7
  %v73 = vsub.s32 0, %v72
  %v74 = vrot.slane %v69, %v73
  %v76 = vadd.f32 %v53, %v74
  %v77 = vadd.f32 %v54, %v74
  %v78 = vadd.f32 %v55, %v74
  %v79 = vadd.f32 %v56, %v74
  %v80 = vadd.f32 %v57, %v74
  %v81 = vadd.f32 %v58, %v74
  %v82 = vadd.f32 %v59, %v74
  %v83 = vadd.f32 %v60, %v74
  %v84 = vadd.f32 %v61, %v74
  %v85 = vadd.f32 %v62, %v74
  %v86 = vadd.f32 %v63, %v74
  %v87 = vadd.f32 %v64, %v74
  %v88 = vadd.f32 %v65, %v74
  %v89 = vadd.f32 %v66, %v74
  %v90 = vadd.f32 %v67, %v74
  %v91 = vadd.f32 %v68, %v74
  %v92 = vmax.f32 %v76, 0.0
  %v93 = vmax.f32 %v77, 0.0
  %v94 = vmax.f32 %v78, 0.0
  %v95 = vmax.f32 %v79, 0.0
  %v96 = vmax.f32 %v80, 0.0
  %v97 = vmax.f32 %v81, 0.0
  %v98 = vmax.f32 %v82, 0.0
  %v99 = vmax.f32 %v83, 0.0
  %v100 = vmax.f32 %v84, 0.0
  %v101 = vmax.f32 %v85, 0.0
  %v102 = vmax.f32 %v86, 0.0
  %v103 = vmax.f32 %v87, 0.0
  %v104 = vmax.f32 %v88, 0.0
  %v105 = vmax.f32 %v89, 0.0
  %v106 = vmax.f32 %v90, 0.0
  %v107 = vmax.f32 %v91, 0.0
  %v108 = vpack.c.bf16 %v93, %v92
  %v109 = vpack.c.bf16 %v95, %v94
  %v110 = vpack.c.bf16 %v97, %v96
  %v111 = vpack.c.bf16 %v99, %v98
  %v112 = vpack.c.bf16 %v101, %v100
  %v113 = vpack.c.bf16 %v103, %v102
  %v114 = vpack.c.bf16 %v105, %v104
  %v115 = vpack.c.bf16 %v107, %v106
  %v124 = vunpack.c.l.b16 %v108
  %v125 = vunpack.c.h.b16 %v108
  %v126 = vunpack.c.l.b16 %v109
  %v127 = vunpack.c.h.b16 %v109
  %v128 = vunpack.c.l.b16 %v110
  %v129 = vunpack.c.h.b16 %v110
  %v130 = vunpack.c.l.b16 %v111
  %v131 = vunpack.c.h.b16 %v111
  %v132 = vunpack.c.l.b16 %v112
  %v133 = vunpack.c.h.b16 %v112
  %v134 = vunpack.c.l.b16 %v113
  %v135 = vunpack.c.h.b16 %v113
  %v136 = vunpack.c.l.b16 %v114
  %v137 = vunpack.c.h.b16 %v114
  %v138 = vunpack.c.l.b16 %v115
  %v139 = vunpack.c.h.b16 %v115
  %v140 = vpack.c.b16 %v124, %v124
  %v141 = vpack.c.b16 %v125, %v125
  %v142 = vpack.c.b16 %v126, %v126
  %v143 = vpack.c.b16 %v127, %v127
  %v144 = vpack.c.b16 %v128, %v128
  %v145 = vpack.c.b16 %v129, %v129
  %v146 = vpack.c.b16 %v130, %v130
  %v147 = vpack.c.b16 %v131, %v131
  %v148 = vpack.c.b16 %v132, %v132
  %v149 = vpack.c.b16 %v133, %v133
  %v150 = vpack.c.b16 %v134, %v134
  %v151 = vpack.c.b16 %v135, %v135
  %v152 = vpack.c.b16 %v136, %v136
  %v153 = vpack.c.b16 %v137, %v137
  %v154 = vpack.c.b16 %v138, %v138
  %v155 = vpack.c.b16 %v139, %v139
  %172 = vst [vmem:[%s3] sm:$0xf] %v140
  %173 = vst [vmem:[%s3 + $0x4] sm:$0xf] %v141
  %174 = vst [vmem:[%s3 + $0x8] sm:$0xf] %v142
  %175 = vst [vmem:[%s3 + $0xc] sm:$0xf] %v143
  %176 = vst [vmem:[%s3 + $0x10] sm:$0xf] %v144
  %177 = vst [vmem:[%s3 + $0x14] sm:$0xf] %v145
  %178 = vst [vmem:[%s3 + $0x18] sm:$0xf] %v146
  %179 = vst [vmem:[%s3 + $0x1c] sm:$0xf] %v147
  %180 = vst [vmem:[%s3 + $0x20] sm:$0xf] %v148
  %181 = vst [vmem:[%s3 + $0x24] sm:$0xf] %v149
  %182 = vst [vmem:[%s3 + $0x28] sm:$0xf] %v150
  %183 = vst [vmem:[%s3 + $0x2c] sm:$0xf] %v151
  %184 = vst [vmem:[%s3 + $0x30] sm:$0xf] %v152
  %185 = vst [vmem:[%s3 + $0x34] sm:$0xf] %v153
  %186 = vst [vmem:[%s3 + $0x38] sm:$0xf] %v154
  %187 = vst [vmem:[%s3 + $0x3c] sm:$0xf] %v155
  // Predicated region
  $region14: #{generator_forward.12} parent=0 // pred_check
    _
  $region15: #{generator_forward.12} parent=0 // pred_check_branch
    %189 = sbr.rel (0) target = $region17
  $region16: #{generator_forward.12} parent=0 // pred_region
    _
  $region17: #{generator_forward.12} parent=0 // pred_fallthru
    _
  // Predicated region
  $region18: #{generator_forward.12} parent=0 // pred_check
    _
  $region19: #{generator_forward.12} parent=0 // pred_check_branch
    %191 = sbr.rel (0) target = $region21
  $region20: #{generator_forward.12} parent=0 // pred_region
    _
  $region21: #{generator_forward.12} parent=0 // pred_fallthru
    _

// kernel: generator_forward.13
$region0: #{generator_forward.13}
  #allocation0 [shape = 'u32[]', space=smem, size = 0x4, offset = 0x4, fixed_abs, tag = 'smem constant byte address 0x4 - core index']
  #allocation1 [shape = 'u32[144,128]{1,0:T(1,128)}', space=vmem, size = 0x12000, scoped, tag = 'internal scratch']
  %s0 = inlined_call_operand.vmem [shape: bf16[4,128,256], index: 0, kind: input, shape index: {}]
  %s1 = inlined_call_operand.vmem [shape: bf16[4,256,128], index: 1, kind: input, shape index: {}]
  %s2 = inlined_call_operand.vmem [shape: bf16[4,128,128], index: 2, kind: output, shape index: {0}]
  %s3 = inlined_call_operand.vmem [shape: f32[4,8,128], index: 3, kind: output, shape index: {1}]
  %s4 = inlined_call_operand.vmem [shape: f32[4,8,128], index: 4, kind: output, shape index: {2}]
  %5 = xla_tuple %s2, %s3, %s4
  %s6 = sld [smem:[#allocation0]]
  $region57: #{generator_forward.13} parent=0
    _
  %s8 = ssub.s32 1, %s6
  %s9 = scalar_select 0, %s8, %s6
  loop: start=0, step=1, limit=6
  $region2: #{generator_forward.13} parent=0 // loop_pre_header
    _
  $region3: #{generator_forward.13} parent=0 // loop_header
    %s11 = sphi 0, %s15
    %p12 = scmp.ge.s32.totalorder %s11, 6
    %s18 = sphi 0, %s30
    %s19 = sphi 0, %s26
    %s20 = sphi 0, %s18
    %s21 = sphi 0, %s19
    %s22 = sphi 0, %s20
    %s23 = sphi 0, %s21
    %s35 = sphi 0, %s37
    %s38 = sphi 0, %s35
    %s39 = sphi 0, %s38
    %s55 = sphi 0, %s39
    %s61 = sphi 0, %s63
    %s64 = sphi 0, %s61
    %s65 = sphi 0, %s64
    %s81 = sphi 0, %s65
    %s89 = sphi 0, %s91
    %s92 = sphi 0, %s89
    %s93 = sphi 0, %s92
    %s109 = sphi 0, %s93
    %s117 = sphi 0, %s119
    %s120 = sphi 0, %s117
    %s121 = sphi 0, %s120
    %s137 = sphi 0, %s121
    %s145 = sphi 0, %s147
    %s148 = sphi 0, %s145
    %s149 = sphi 0, %s148
    %s165 = sphi 0, %s149
  $region4: #{generator_forward.13} parent=0 // loop_header_branch
    %14 = sbr.rel (%p12) target = $region8
  $region5: #{generator_forward.13} parent=0 // loop_body
    %s16 = ssub.s32 %s11, 1
    %s17 = ssub.s32 %s11, 2
    %s24 = sadd.s32 1, %s19
    %p25 = scmp.ge.s32.totalorder %s24, 1
    %s26 = scalar_select %p25, 0, %s24
    %s27 = sadd.s32 1, %s18
    %s28 = scalar_select %p25, %s27, %s18
    %p29 = scmp.ge.s32.totalorder %s28, 4
    %s30 = scalar_select %p29, 0, %s28
    %s31 = ssub.s32 %s18, %s30
    %s32 = ssub.s32 %s19, %s26
    %s33 = sor.u32 %s31, %s32
    %p34 = scmp.eq.s32.totalorder %s33, 0
    %s36 = sadd.s32 %s35, 1
    %s37 = scalar_select %p34, %s35, %s36
    %p40 = pneg %p34
    %p41 = scmp.eq.s32.totalorder %s11, 3
    %p42 = por %p40, %p41
    %p43 = scmp.ne.s32.totalorder %s35, %s38
    %p44 = scmp.eq.s32.totalorder %s11, 0
    %p45 = por %p43, %p44
    %p46 = scmp.ne.s32.totalorder %s35, %s38
    %p47 = scmp.eq.s32.totalorder %s16, 3
    %p48 = por %p46, %p47
    %p49 = scmp.ne.s32.totalorder %s38, %s39
    %p50 = scmp.eq.s32.totalorder %s16, 0
    %p51 = por %p49, %p50
    %p52 = scmp.ne.s32.totalorder %s38, %s39
    %p53 = scmp.eq.s32.totalorder %s17, 3
    %p54 = por %p52, %p53
    %p56 = scmp.ne.s32.totalorder %s39, %s55
    %p57 = scmp.eq.s32.totalorder %s17, 0
    %p58 = por %p56, %p57
    %s59 = ssub.s32 %s18, %s30
    %p60 = scmp.eq.s32.totalorder %s59, 0
    %s62 = sadd.s32 %s61, 1
    %s63 = scalar_select %p60, %s61, %s62
    %p66 = pneg %p60
    %p67 = scmp.eq.s32.totalorder %s11, 3
    %p68 = por %p66, %p67
    %p69 = scmp.ne.s32.totalorder %s61, %s64
    %p70 = scmp.eq.s32.totalorder %s11, 0
    %p71 = por %p69, %p70
    %p72 = scmp.ne.s32.totalorder %s61, %s64
    %p73 = scmp.eq.s32.totalorder %s16, 3
    %p74 = por %p72, %p73
    %p75 = scmp.ne.s32.totalorder %s64, %s65
    %p76 = scmp.eq.s32.totalorder %s16, 0
    %p77 = por %p75, %p76
    %p78 = scmp.ne.s32.totalorder %s64, %s65
    %p79 = scmp.eq.s32.totalorder %s17, 3
    %p80 = por %p78, %p79
    %p82 = scmp.ne.s32.totalorder %s65, %s81
    %p83 = scmp.eq.s32.totalorder %s17, 0
    %p84 = por %p82, %p83
    %s85 = ssub.s32 %s18, %s30
    %s86 = ssub.s32 %s19, %s26
    %s87 = sor.u32 %s85, %s86
    %p88 = scmp.eq.s32.totalorder %s87, 0
    %s90 = sadd.s32 %s89, 1
    %s91 = scalar_select %p88, %s89, %s90
    %p94 = pneg %p88
    %p95 = scmp.eq.s32.totalorder %s11, 3
    %p96 = por %p94, %p95
    %p97 = scmp.ne.s32.totalorder %s89, %s92
    %p98 = scmp.eq.s32.totalorder %s11, 0
    %p99 = por %p97, %p98
    %p100 = scmp.ne.s32.totalorder %s89, %s92
    %p101 = scmp.eq.s32.totalorder %s16, 3
    %p102 = por %p100, %p101
    %p103 = scmp.ne.s32.totalorder %s92, %s93
    %p104 = scmp.eq.s32.totalorder %s16, 0
    %p105 = por %p103, %p104
    %p106 = scmp.ne.s32.totalorder %s92, %s93
    %p107 = scmp.eq.s32.totalorder %s17, 3
    %p108 = por %p106, %p107
    %p110 = scmp.ne.s32.totalorder %s93, %s109
    %p111 = scmp.eq.s32.totalorder %s17, 0
    %p112 = por %p110, %p111
    %s113 = ssub.s32 %s18, %s30
    %s114 = ssub.s32 %s19, %s26
    %s115 = sor.u32 %s113, %s114
    %p116 = scmp.eq.s32.totalorder %s115, 0
    %s118 = sadd.s32 %s117, 1
    %s119 = scalar_select %p116, %s117, %s118
    %p122 = pneg %p116
    %p123 = scmp.eq.s32.totalorder %s11, 3
    %p124 = por %p122, %p123
    %p125 = scmp.ne.s32.totalorder %s117, %s120
    %p126 = scmp.eq.s32.totalorder %s11, 0
    %p127 = por %p125, %p126
    %p128 = scmp.ne.s32.totalorder %s117, %s120
    %p129 = scmp.eq.s32.totalorder %s16, 3
    %p130 = por %p128, %p129
    %p131 = scmp.ne.s32.totalorder %s120, %s121
    %p132 = scmp.eq.s32.totalorder %s16, 0
    %p133 = por %p131, %p132
    %p134 = scmp.ne.s32.totalorder %s120, %s121
    %p135 = scmp.eq.s32.totalorder %s17, 3
    %p136 = por %p134, %p135
    %p138 = scmp.ne.s32.totalorder %s121, %s137
    %p139 = scmp.eq.s32.totalorder %s17, 0
    %p140 = por %p138, %p139
    %s141 = ssub.s32 %s18, %s30
    %s142 = ssub.s32 %s19, %s26
    %s143 = sor.u32 %s141, %s142
    %p144 = scmp.eq.s32.totalorder %s143, 0
    %s146 = sadd.s32 %s145, 1
    %s147 = scalar_select %p144, %s145, %s146
    %p150 = pneg %p144
    %p151 = scmp.eq.s32.totalorder %s11, 3
    %p152 = por %p150, %p151
    %p153 = scmp.ne.s32.totalorder %s145, %s148
    %p154 = scmp.eq.s32.totalorder %s11, 0
    %p155 = por %p153, %p154
    %p156 = scmp.ne.s32.totalorder %s145, %s148
    %p157 = scmp.eq.s32.totalorder %s16, 3
    %p158 = por %p156, %p157
    %p159 = scmp.ne.s32.totalorder %s148, %s149
    %p160 = scmp.eq.s32.totalorder %s16, 0
    %p161 = por %p159, %p160
    %p162 = scmp.ne.s32.totalorder %s148, %s149
    %p163 = scmp.eq.s32.totalorder %s17, 3
    %p164 = por %p162, %p163
    %p166 = scmp.ne.s32.totalorder %s149, %s165
    %p167 = scmp.eq.s32.totalorder %s17, 0
    %p168 = por %p166, %p167
    %p169 = scmp.le.s32.totalorder 1, %s11
    %p170 = scmp.lt.s32.totalorder %s11, 5
    %p171 = pnand %p169, %p170
    %p172 = pneg %p171
    // Predicated region
    $region9: #{generator_forward.13} parent=5 // pred_check
      _
    $region10: #{generator_forward.13} parent=5 // pred_check_branch
      %174 = sbr.rel (%p171) target = $region12
    $region11: #{generator_forward.13} parent=5 // pred_region
      %s175 = ssub.s32 %s11, 1
    $region12: #{generator_forward.13} parent=5 // pred_fallthru
      _
    %p176 = scmp.lt.s32.totalorder %s11, 4
    // Predicated region
    $region13: #{generator_forward.13} parent=5 // pred_check
      %p177 = pneg %p176
    $region14: #{generator_forward.13} parent=5 // pred_check_branch
      %179 = sbr.rel (%p177) target = $region16
    $region15: #{generator_forward.13} parent=5 // pred_region
      // Predicated region
      $region17: #{generator_forward.13} parent=15 // pred_check
        %p180 = pneg %p45
      $region18: #{generator_forward.13} parent=15 // pred_check_branch
        %182 = sbr.rel (%p180) target = $region20
      $region19: #{generator_forward.13} parent=15 // pred_region
        %s183 = smul.u32 16, %s19
        %p184 = scmp.lt.s32.totalorder %s18, 3
        %s185 = scalar_select %p184, %s18, 3
        %p186 = scmp.lt.s32.totalorder %s183, 15
        %s187 = scalar_select %p186, %s183, 15
        %s188 = smul.addr %s187, 2
        %s189 = smul.addr %s185, 32
        %s190 = sadd.s32 %s188, %s189
        %s191 = smul.addr %s190, 4
        %s192 = scalar_lea.vmem %s0, %s191
        %s193 = smul.u32 16, %s19
      $region20: #{generator_forward.13} parent=15 // pred_fallthru
        _
      // Predicated region
      $region21: #{generator_forward.13} parent=15 // pred_check
        %p194 = pneg %p71
      $region22: #{generator_forward.13} parent=15 // pred_check_branch
        %196 = sbr.rel (%p194) target = $region24
      $region23: #{generator_forward.13} parent=15 // pred_region
        %p197 = scmp.lt.s32.totalorder %s18, 3
        %s198 = scalar_select %p197, %s18, 3
        %s199 = smul.addr %s198, 32
        %s200 = smul.addr %s199, 4
        %s201 = scalar_lea.vmem %s1, %s200
      $region24: #{generator_forward.13} parent=15 // pred_fallthru
        _
    $region16: #{generator_forward.13} parent=5 // pred_fallthru
      _
    %p202 = scmp.le.s32.totalorder 1, %s11
    %p203 = scmp.lt.s32.totalorder %s11, 5
    %p204 = pnand %p202, %p203
    %p205 = pneg %p204
    // Predicated region
    $region25: #{generator_forward.13} parent=5 // pred_check
      _
    $region26: #{generator_forward.13} parent=5 // pred_check_branch
      %207 = sbr.rel (%p204) target = $region28
    $region27: #{generator_forward.13} parent=5 // pred_region
      %s208 = ssub.s32 %s11, 1
      %s209 = smul.u32 16, %s21
      %p210 = scmp.lt.s32.totalorder %s20, 3
      %s211 = scalar_select %p210, %s20, 3
      %p212 = scmp.lt.s32.totalorder %s209, 15
      %s213 = scalar_select %p212, %s209, 15
      %s214 = smul.addr %s213, 2
      %s215 = smul.addr %s211, 32
      %s216 = sadd.s32 %s214, %s215
      %s217 = smul.addr %s216, 4
      %s218 = scalar_lea.vmem %s0, %s217
      %p219 = pneg %p51
      %p220 = pneg %p48
      %p221 = scmp.lt.s32.totalorder %s20, 3
      %s222 = scalar_select %p221, %s20, 3
      %s223 = smul.addr %s222, 32
      %s224 = smul.addr %s223, 4
      %s225 = scalar_lea.vmem %s1, %s224
      %p226 = pneg %p77
      %p227 = pneg %p74
      %p228 = pneg %p105
      %p229 = pneg %p102
      %s230 = smul.u32 16, %s21
      %p231 = scmp.lt.s32.totalorder %s20, 3
      %s232 = scalar_select %p231, %s20, 3
      %p233 = scmp.lt.s32.totalorder %s230, 15
      %s234 = scalar_select %p233, %s230, 15
      %s235 = smul.addr %s232, 16
      %s236 = sadd.s32 %s234, %s235
      %s237 = smul.addr %s236, 4
      %s238 = scalar_lea.vmem %s2, %s237
      %p239 = pneg %p133
      %p240 = pneg %p130
      %p241 = scmp.lt.s32.totalorder %s20, 3
      %s242 = scalar_select %p241, %s20, 3
      %p243 = scmp.lt.s32.totalorder %s21, 0
      %s244 = scalar_select %p243, %s21, 0
      %s245 = sadd.s32 %s244, %s242
      %s246 = smul.addr %s245, 8
      %s247 = scalar_lea.vmem %s3, %s246
      %p248 = pneg %p161
      %p249 = pneg %p158
      %p250 = scmp.lt.s32.totalorder %s20, 3
      %s251 = scalar_select %p250, %s20, 3
      %p252 = scmp.lt.s32.totalorder %s21, 0
      %s253 = scalar_select %p252, %s21, 0
      %s254 = sadd.s32 %s253, %s251
      %s255 = smul.addr %s254, 8
      %s256 = scalar_lea.vmem %s4, %s255
      %s257 = smul.u32 16, %s21
      %p258 = scmp.lt.s32.totalorder %s20, 3
      %s259 = scalar_select %p258, %s20, 3
      %p260 = scmp.lt.s32.totalorder %s257, 15
      %s261 = scalar_select %p260, %s257, 15
      %s262 = smul.addr %s261, 2
      %s263 = smul.addr %s259, 32
      %s264 = sadd.s32 %s262, %s263
      %s265 = smul.addr %s264, 4
      %s266 = scalar_lea.vmem %s0, %s265
      %s267 = smul.u32 16, %s21
      %p268 = scmp.lt.s32.totalorder %s20, 3
      %s269 = scalar_select %p268, %s20, 3
      %s270 = smul.addr %s269, 32
      %s271 = smul.addr %s270, 4
      %s272 = scalar_lea.vmem %s1, %s271
      %s273 = smul.u32 16, %s21
      %p274 = scmp.lt.s32.totalorder %s20, 3
      %s275 = scalar_select %p274, %s20, 3
      %p276 = scmp.lt.s32.totalorder %s273, 15
      %s277 = scalar_select %p276, %s273, 15
      %s278 = smul.addr %s275, 16
      %s279 = sadd.s32 %s277, %s278
      %s280 = smul.addr %s279, 4
      %s281 = scalar_lea.vmem %s2, %s280
      %s282 = smul.u32 16, %s21
      %p283 = scmp.lt.s32.totalorder %s20, 3
      %s284 = scalar_select %p283, %s20, 3
      %p285 = scmp.lt.s32.totalorder %s21, 0
      %s286 = scalar_select %p285, %s21, 0
      %s287 = sadd.s32 %s286, %s284
      %s288 = smul.addr %s287, 8
      %s289 = scalar_lea.vmem %s3, %s288
      %p290 = scmp.lt.s32.totalorder %s20, 3
      %s291 = scalar_select %p290, %s20, 3
      %p292 = scmp.lt.s32.totalorder %s21, 0
      %s293 = scalar_select %p292, %s21, 0
      %s294 = sadd.s32 %s293, %s291
      %s295 = smul.addr %s294, 8
      %s296 = scalar_lea.vmem %s4, %s295
      %v298 = vld [vmem:[%s266] sm:$0xff]
      %v299 = vld [vmem:[%s266 + $0x8] sm:$0xff]
      %v300 = vld [vmem:[%s266 + $0x10] sm:$0xff]
      %v301 = vld [vmem:[%s266 + $0x18] sm:$0xff]
      %v302 = vld [vmem:[%s266 + $0x20] sm:$0xff]
      %v303 = vld [vmem:[%s266 + $0x28] sm:$0xff]
      %v304 = vld [vmem:[%s266 + $0x30] sm:$0xff]
      %v305 = vld [vmem:[%s266 + $0x38] sm:$0xff]
      %v306 = vld [vmem:[%s266 + $0x40] sm:$0xff]
      %v307 = vld [vmem:[%s266 + $0x48] sm:$0xff]
      %v308 = vld [vmem:[%s266 + $0x50] sm:$0xff]
      %v309 = vld [vmem:[%s266 + $0x58] sm:$0xff]
      %v310 = vld [vmem:[%s266 + $0x60] sm:$0xff]
      %v311 = vld [vmem:[%s266 + $0x68] sm:$0xff]
      %v312 = vld [vmem:[%s266 + $0x70] sm:$0xff]
      %v313 = vld [vmem:[%s266 + $0x78] sm:$0xff]
      %v314 = vld [vmem:[%s272] sm:$0xf]
      %v315 = vld [vmem:[%s272 + $0x4] sm:$0xf]
      %v316 = vld [vmem:[%s272 + $0x8] sm:$0xf]
      %v317 = vld [vmem:[%s272 + $0xc] sm:$0xf]
      %v318 = vld [vmem:[%s272 + $0x10] sm:$0xf]
      %v319 = vld [vmem:[%s272 + $0x14] sm:$0xf]
      %v320 = vld [vmem:[%s272 + $0x18] sm:$0xf]
      %v321 = vld [vmem:[%s272 + $0x1c] sm:$0xf]
      %v322 = vld [vmem:[%s272 + $0x20] sm:$0xf]
      %v323 = vld [vmem:[%s272 + $0x24] sm:$0xf]
      %v324 = vld [vmem:[%s272 + $0x28] sm:$0xf]
      %v325 = vld [vmem:[%s272 + $0x2c] sm:$0xf]
      %v326 = vld [vmem:[%s272 + $0x30] sm:$0xf]
      %v327 = vld [vmem:[%s272 + $0x34] sm:$0xf]
      %v328 = vld [vmem:[%s272 + $0x38] sm:$0xf]
      %v329 = vld [vmem:[%s272 + $0x3c] sm:$0xf]
      %v330 = vld [vmem:[%s272 + $0x40] sm:$0xf]
      %v331 = vld [vmem:[%s272 + $0x44] sm:$0xf]
      %v332 = vld [vmem:[%s272 + $0x48] sm:$0xf]
      %v333 = vld [vmem:[%s272 + $0x4c] sm:$0xf]
      %v334 = vld [vmem:[%s272 + $0x50] sm:$0xf]
      %v335 = vld [vmem:[%s272 + $0x54] sm:$0xf]
      %v336 = vld [vmem:[%s272 + $0x58] sm:$0xf]
      %v337 = vld [vmem:[%s272 + $0x5c] sm:$0xf]
      %v338 = vld [vmem:[%s272 + $0x60] sm:$0xf]
      %v339 = vld [vmem:[%s272 + $0x64] sm:$0xf]
      %v340 = vld [vmem:[%s272 + $0x68] sm:$0xf]
      %v341 = vld [vmem:[%s272 + $0x6c] sm:$0xf]
      %v342 = vld [vmem:[%s272 + $0x70] sm:$0xf]
      %v343 = vld [vmem:[%s272 + $0x74] sm:$0xf]
      %v344 = vld [vmem:[%s272 + $0x78] sm:$0xf]
      %v345 = vld [vmem:[%s272 + $0x7c] sm:$0xf]
      %v362 = vunpack.c.l.b16 %v298
      %v363 = vunpack.c.h.b16 %v298
      %v364 = vunpack.c.l.b16 %v299
      %v365 = vunpack.c.h.b16 %v299
      %v366 = vunpack.c.l.b16 %v300
      %v367 = vunpack.c.h.b16 %v300
      %v368 = vunpack.c.l.b16 %v301
      %v369 = vunpack.c.h.b16 %v301
      %v370 = vunpack.c.l.b16 %v302
      %v371 = vunpack.c.h.b16 %v302
      %v372 = vunpack.c.l.b16 %v303
      %v373 = vunpack.c.h.b16 %v303
      %v374 = vunpack.c.l.b16 %v304
      %v375 = vunpack.c.h.b16 %v304
      %v376 = vunpack.c.l.b16 %v305
      %v377 = vunpack.c.h.b16 %v305
      %v378 = vunpack.c.l.b16 %v306
      %v379 = vunpack.c.h.b16 %v306
      %v380 = vunpack.c.l.b16 %v307
      %v381 = vunpack.c.h.b16 %v307
      %v382 = vunpack.c.l.b16 %v308
      %v383 = vunpack.c.h.b16 %v308
      %v384 = vunpack.c.l.b16 %v309
      %v385 = vunpack.c.h.b16 %v309
      %v386 = vunpack.c.l.b16 %v310
      %v387 = vunpack.c.h.b16 %v310
      %v388 = vunpack.c.l.b16 %v311
      %v389 = vunpack.c.h.b16 %v311
      %v390 = vunpack.c.l.b16 %v312
      %v391 = vunpack.c.h.b16 %v312
      %v392 = vunpack.c.l.b16 %v313
      %v393 = vunpack.c.h.b16 %v313
      %v394 = vpack.c.b16 %v364, %v362
      %v395 = vpack.c.b16 %v365, %v363
      %v396 = vpack.c.b16 %v368, %v366
      %v397 = vpack.c.b16 %v369, %v367
      %v398 = vpack.c.b16 %v372, %v370
      %v399 = vpack.c.b16 %v373, %v371
      %v400 = vpack.c.b16 %v376, %v374
      %v401 = vpack.c.b16 %v377, %v375
      %v402 = vpack.c.b16 %v380, %v378
      %v403 = vpack.c.b16 %v381, %v379
      %v404 = vpack.c.b16 %v384, %v382
      %v405 = vpack.c.b16 %v385, %v383
      %v406 = vpack.c.b16 %v388, %v386
      %v407 = vpack.c.b16 %v389, %v387
      %v408 = vpack.c.b16 %v392, %v390
      %v409 = vpack.c.b16 %v393, %v391
      %v458 = vunpack.c.l.b16 %v314
      %v459 = vunpack.c.l.b16 %v315
      %v460 = vunpack.c.l.b16 %v316
      %v461 = vunpack.c.l.b16 %v317
      %v462 = vunpack.c.l.b16 %v318
      %v463 = vunpack.c.l.b16 %v319
      %v464 = vunpack.c.l.b16 %v320
      %v465 = vunpack.c.l.b16 %v321
      %v466 = vunpack.c.l.b16 %v322
      %v467 = vunpack.c.l.b16 %v323
      %v468 = vunpack.c.l.b16 %v324
      %v469 = vunpack.c.l.b16 %v325
      %v470 = vunpack.c.l.b16 %v326
      %v471 = vunpack.c.l.b16 %v327
      %v472 = vunpack.c.l.b16 %v328
      %v473 = vunpack.c.l.b16 %v329
      %v474 = vunpack.c.l.b16 %v330
      %v475 = vunpack.c.l.b16 %v331
      %v476 = vunpack.c.l.b16 %v332
      %v477 = vunpack.c.l.b16 %v333
      %v478 = vunpack.c.l.b16 %v334
      %v479 = vunpack.c.l.b16 %v335
      %v480 = vunpack.c.l.b16 %v336
      %v481 = vunpack.c.l.b16 %v337
      %v482 = vunpack.c.l.b16 %v338
      %v483 = vunpack.c.l.b16 %v339
      %v484 = vunpack.c.l.b16 %v340
      %v485 = vunpack.c.l.b16 %v341
      %v486 = vunpack.c.l.b16 %v342
      %v487 = vunpack.c.l.b16 %v343
      %v488 = vunpack.c.l.b16 %v344
      %v489 = vunpack.c.l.b16 %v345
      %v490 = vpack.c.b16 %v459, %v458
      %v491 = vpack.c.b16 %v461, %v460
      %v492 = vpack.c.b16 %v463, %v462
      %v493 = vpack.c.b16 %v465, %v464
      %v494 = vpack.c.b16 %v467, %v466
      %v495 = vpack.c.b16 %v469, %v468
      %v496 = vpack.c.b16 %v471, %v470
      %v497 = vpack.c.b16 %v473, %v472
      %v498 = vpack.c.b16 %v475, %v474
      %v499 = vpack.c.b16 %v477, %v476
      %v500 = vpack.c.b16 %v479, %v478
      %v501 = vpack.c.b16 %v481, %v480
      %v502 = vpack.c.b16 %v483, %v482
      %v503 = vpack.c.b16 %v485, %v484
      %v504 = vpack.c.b16 %v487, %v486
      %v505 = vpack.c.b16 %v489, %v488
      %522 = vmatprep.subr.bf16.mxu0 0
      %523 = vmatpush1.bf16.msra.mxu0 %v490
      %524 = vmatprep.subr.bf16.mxu0 0
      %525 = vmatpush1.bf16.msra.mxu0 %v491
      %526 = vmatprep.subr.bf16.mxu0 0
      %527 = vmatpush1.bf16.msra.mxu0 %v492
      %528 = vmatprep.subr.bf16.mxu0 0
      %529 = vmatpush1.bf16.msra.mxu0 %v493
      %530 = vmatprep.subr.bf16.mxu0 0
      %531 = vmatpush1.bf16.msra.mxu0 %v494
      %532 = vmatprep.subr.bf16.mxu0 0
      %533 = vmatpush1.bf16.msra.mxu0 %v495
      %534 = vmatprep.subr.bf16.mxu0 0
      %535 = vmatpush1.bf16.msra.mxu0 %v496
      %536 = vmatprep.subr.bf16.mxu0 0
      %537 = vmatpush1.bf16.msra.mxu0 %v497
      %538 = vmatprep.subr.bf16.mxu0 0
      %539 = vmatpush1.bf16.msra.mxu0 %v498
      %540 = vmatprep.subr.bf16.mxu0 0
      %541 = vmatpush1.bf16.msra.mxu0 %v499
      %542 = vmatprep.subr.bf16.mxu0 0
      %543 = vmatpush1.bf16.msra.mxu0 %v500
      %544 = vmatprep.subr.bf16.mxu0 0
      %545 = vmatpush1.bf16.msra.mxu0 %v501
      %546 = vmatprep.subr.bf16.mxu0 0
      %547 = vmatpush1.bf16.msra.mxu0 %v502
      %548 = vmatprep.subr.bf16.mxu0 0
      %549 = vmatpush1.bf16.msra.mxu0 %v503
      %550 = vmatprep.subr.bf16.mxu0 0
      %551 = vmatpush1.bf16.msra.mxu0 %v504
      %552 = vmatprep.subr.bf16.mxu0 0
      %553 = vmatpush1.bf16.msra.mxu0 %v505
      %554 = vmatprep.mubr.bf16.mxu0 %v395
      %555 = vmatmul.mubr.bf16.gmra.mrb[0].mxu0 %v394
      %v556 = vpop.f32.mrb[0].mxu0
      %v557 = vadd.f32 0.0, %v556
      %v558 = vpop.f32.mrb[0].mxu0
      %v559 = vpop.f32.mrb[0].mxu0
      %v560 = vadd.f32 0.0, %v559
      %v561 = vpop.f32.mrb[0].mxu0
      %562 = vmatprep.mubr.bf16.mxu0 %v397
      %563 = vmatmul.mubr.bf16.gmra.mrb[0].mxu0 %v396
      %v564 = vpop.f32.mrb[0].mxu0
      %v565 = vadd.f32 0.0, %v564
      %v566 = vpop.f32.mrb[0].mxu0
      %v567 = vpop.f32.mrb[0].mxu0
      %v568 = vadd.f32 0.0, %v567
      %v569 = vpop.f32.mrb[0].mxu0
      %570 = vmatprep.mubr.bf16.mxu0 %v399
      %571 = vmatmul.mubr.bf16.gmra.mrb[0].mxu0 %v398
      %v572 = vpop.f32.mrb[0].mxu0
      %v573 = vadd.f32 0.0, %v572
      %v574 = vpop.f32.mrb[0].mxu0
      %v575 = vpop.f32.mrb[0].mxu0
      %v576 = vadd.f32 0.0, %v575
      %v577 = vpop.f32.mrb[0].mxu0
      %578 = vmatprep.mubr.bf16.mxu0 %v401
      %579 = vmatmul.mubr.bf16.gmra.mrb[0].mxu0 %v400
      %v580 = vpop.f32.mrb[0].mxu0
      %v581 = vadd.f32 0.0, %v580
      %v582 = vpop.f32.mrb[0].mxu0
      %v583 = vpop.f32.mrb[0].mxu0
      %v584 = vadd.f32 0.0, %v583
      %v585 = vpop.f32.mrb[0].mxu0
      %586 = vmatprep.mubr.bf16.mxu0 %v403
      %587 = vmatmul.mubr.bf16.gmra.mrb[0].mxu0 %v402
      %v588 = vpop.f32.mrb[0].mxu0
      %v589 = vadd.f32 0.0, %v588
      %v590 = vpop.f32.mrb[0].mxu0
      %v591 = vpop.f32.mrb[0].mxu0
      %v592 = vadd.f32 0.0, %v591
      %v593 = vpop.f32.mrb[0].mxu0
      %594 = vmatprep.mubr.bf16.mxu0 %v405
      %595 = vmatmul.mubr.bf16.gmra.mrb[0].mxu0 %v404
      %v596 = vpop.f32.mrb[0].mxu0
      %v597 = vadd.f32 0.0, %v596
      %v598 = vpop.f32.mrb[0].mxu0
      %v599 = vpop.f32.mrb[0].mxu0
      %v600 = vadd.f32 0.0, %v599
      %v601 = vpop.f32.mrb[0].mxu0
      %602 = vmatprep.mubr.bf16.mxu0 %v407
      %603 = vmatmul.mubr.bf16.gmra.mrb[0].mxu0 %v406
      %v604 = vpop.f32.mrb[0].mxu0
      %v605 = vadd.f32 0.0, %v604
      %v606 = vpop.f32.mrb[0].mxu0
      %v607 = vpop.f32.mrb[0].mxu0
      %v608 = vadd.f32 0.0, %v607
      %v609 = vpop.f32.mrb[0].mxu0
      %610 = vmatprep.mubr.bf16.mxu0 %v409
      %611 = vmatmul.mubr.bf16.gmra.mrb[0].mxu0 %v408
      %v612 = vpop.f32.mrb[0].mxu0
      %v613 = vadd.f32 0.0, %v612
      %v614 = vpop.f32.mrb[0].mxu0
      %v615 = vpop.f32.mrb[0].mxu0
      %v616 = vadd.f32 0.0, %v615
      %v617 = vpop.f32.mrb[0].mxu0
      %618 = vdwg.mxu0
      %v619 = vpack.c.bf16 %v560, %v557
      %v620 = vpack.c.bf16 %v568, %v565
      %v621 = vpack.c.bf16 %v576, %v573
      %v622 = vpack.c.bf16 %v584, %v581
      %v623 = vpack.c.bf16 %v592, %v589
      %v624 = vpack.c.bf16 %v600, %v597
      %v625 = vpack.c.bf16 %v608, %v605
      %v626 = vpack.c.bf16 %v616, %v613
      %v635 = vunpack.c.l.b16 %v619
      %v636 = vunpack.c.h.b16 %v619
      %v637 = vunpack.c.l.b16 %v620
      %v638 = vunpack.c.h.b16 %v620
      %v639 = vunpack.c.l.b16 %v621
      %v640 = vunpack.c.h.b16 %v621
      %v641 = vunpack.c.l.b16 %v622
      %v642 = vunpack.c.h.b16 %v622
      %v643 = vunpack.c.l.b16 %v623
      %v644 = vunpack.c.h.b16 %v623
      %v645 = vunpack.c.l.b16 %v624
      %v646 = vunpack.c.h.b16 %v624
      %v647 = vunpack.c.l.b16 %v625
      %v648 = vunpack.c.h.b16 %v625
      %v649 = vunpack.c.l.b16 %v626
      %v650 = vunpack.c.h.b16 %v626
      %v651 = vpack.c.b16 %v635, %v635
      %v652 = vpack.c.b16 %v636, %v636
      %v653 = vpack.c.b16 %v637, %v637
      %v654 = vpack.c.b16 %v638, %v638
      %v655 = vpack.c.b16 %v639, %v639
      %v656 = vpack.c.b16 %v640, %v640
      %v657 = vpack.c.b16 %v641, %v641
      %v658 = vpack.c.b16 %v642, %v642
      %v659 = vpack.c.b16 %v643, %v643
      %v660 = vpack.c.b16 %v644, %v644
      %v661 = vpack.c.b16 %v645, %v645
      %v662 = vpack.c.b16 %v646, %v646
      %v663 = vpack.c.b16 %v647, %v647
      %v664 = vpack.c.b16 %v648, %v648
      %v665 = vpack.c.b16 %v649, %v649
      %v666 = vpack.c.b16 %v650, %v650
      %683 = vst [vmem:[%s281] sm:$0xf] %v651
      %684 = vst [vmem:[%s281 + $0x4] sm:$0xf] %v652
      %685 = vst [vmem:[%s281 + $0x8] sm:$0xf] %v653
      %686 = vst [vmem:[%s281 + $0xc] sm:$0xf] %v654
      %687 = vst [vmem:[%s281 + $0x10] sm:$0xf] %v655
      %688 = vst [vmem:[%s281 + $0x14] sm:$0xf] %v656
      %689 = vst [vmem:[%s281 + $0x18] sm:$0xf] %v657
      %690 = vst [vmem:[%s281 + $0x1c] sm:$0xf] %v658
      %691 = vst [vmem:[%s281 + $0x20] sm:$0xf] %v659
      %692 = vst [vmem:[%s281 + $0x24] sm:$0xf] %v660
      %693 = vst [vmem:[%s281 + $0x28] sm:$0xf] %v661
      %694 = vst [vmem:[%s281 + $0x2c] sm:$0xf] %v662
      %695 = vst [vmem:[%s281 + $0x30] sm:$0xf] %v663
      %696 = vst [vmem:[%s281 + $0x34] sm:$0xf] %v664
      %697 = vst [vmem:[%s281 + $0x38] sm:$0xf] %v665
      %698 = vst [vmem:[%s281 + $0x3c] sm:$0xf] %v666
      %v699 = vadd.f32 %v557, %v560
      %v700 = vadd.f32 %v699, %v565
      %v701 = vadd.f32 %v700, %v568
      %v702 = vadd.f32 %v701, %v573
      %v703 = vadd.f32 %v702, %v576
      %v704 = vadd.f32 %v703, %v581
      %v705 = vadd.f32 %v704, %v584
      %v706 = vadd.f32 %v705, %v589
      %v707 = vadd.f32 %v706, %v592
      %v708 = vadd.f32 %v707, %v597
      %v709 = vadd.f32 %v708, %v600
      %v710 = vadd.f32 %v709, %v605
      %v711 = vadd.f32 %v710, %v608
      %v712 = vadd.f32 %v711, %v613
      %v713 = vadd.f32 %v712, %v616
      %v714 = vmul.f32 %v557, %v557
      %v715 = vmul.f32 %v560, %v560
      %v716 = vmul.f32 %v565, %v565
      %v717 = vmul.f32 %v568, %v568
      %v718 = vmul.f32 %v573, %v573
      %v719 = vmul.f32 %v576, %v576
      %v720 = vmul.f32 %v581, %v581
      %v721 = vmul.f32 %v584, %v584
      %v722 = vmul.f32 %v589, %v589
      %v723 = vmul.f32 %v592, %v592
      %v724 = vmul.f32 %v597, %v597
      %v725 = vmul.f32 %v600, %v600
      %v726 = vmul.f32 %v605, %v605
      %v727 = vmul.f32 %v608, %v608
      %v728 = vmul.f32 %v613, %v613
      %v729 = vmul.f32 %v616, %v616
      %v730 = vadd.f32 %v714, %v715
      %v731 = vadd.f32 %v730, %v716
      %v732 = vadd.f32 %v731, %v717
      %v733 = vadd.f32 %v732, %v718
      %v734 = vadd.f32 %v733, %v719
      %v735 = vadd.f32 %v734, %v720
      %v736 = vadd.f32 %v735, %v721
      %v737 = vadd.f32 %v736, %v722
      %v738 = vadd.f32 %v737, %v723
      %v739 = vadd.f32 %v738, %v724
      %v740 = vadd.f32 %v739, %v725
      %v741 = vadd.f32 %v740, %v726
      %v742 = vadd.f32 %v741, %v727
      %v743 = vadd.f32 %v742, %v728
      %v744 = vadd.f32 %v743, %v729
      %745 = vst [vmem:[%s289] sm:$0xff] %v713
      %746 = vst [vmem:[%s296] sm:$0xff] %v744
      %s747 = smul.u32 16, %s21
      %p748 = scmp.lt.s32.totalorder %s20, 3
      %s749 = scalar_select %p748, %s20, 3
      %p750 = scmp.lt.s32.totalorder %s747, 15
      %s751 = scalar_select %p750, %s747, 15
      %s752 = smul.addr %s749, 16
      %s753 = sadd.s32 %s751, %s752
      %s754 = smul.addr %s753, 4
      %s755 = scalar_lea.vmem %s2, %s754
      %p756 = scmp.lt.s32.totalorder %s20, 3
      %s757 = scalar_select %p756, %s20, 3
      %p758 = scmp.lt.s32.totalorder %s21, 0
      %s759 = scalar_select %p758, %s21, 0
      %s760 = sadd.s32 %s759, %s757
      %s761 = smul.addr %s760, 8
      %s762 = scalar_lea.vmem %s3, %s761
      %p763 = scmp.lt.s32.totalorder %s20, 3
      %s764 = scalar_select %p763, %s20, 3
      %p765 = scmp.lt.s32.totalorder %s21, 0
      %s766 = scalar_select %p765, %s21, 0
      %s767 = sadd.s32 %s766, %s764
      %s768 = smul.addr %s767, 8
      %s769 = scalar_lea.vmem %s4, %s768
      // Predicated region
      $region29: #{generator_forward.13} parent=27 // pred_check
        %p770 = pneg %p102
      $region30: #{generator_forward.13} parent=27 // pred_check_branch
        %772 = sbr.rel (%p770) target = $region32
      $region31: #{generator_forward.13} parent=27 // pred_region
        %s773 = smul.u32 16, %s21
      $region32: #{generator_forward.13} parent=27 // pred_fallthru
        _
      // Predicated region
      $region33: #{generator_forward.13} parent=27 // pred_check
        %p774 = pneg %p130
      $region34: #{generator_forward.13} parent=27 // pred_check_branch
        %776 = sbr.rel (%p774) target = $region36
      $region35: #{generator_forward.13} parent=27 // pred_region
        _
      $region36: #{generator_forward.13} parent=27 // pred_fallthru
        _
      // Predicated region
      $region37: #{generator_forward.13} parent=27 // pred_check
        %p777 = pneg %p158
      $region38: #{generator_forward.13} parent=27 // pred_check_branch
        %779 = sbr.rel (%p777) target = $region40
      $region39: #{generator_forward.13} parent=27 // pred_region
        _
      $region40: #{generator_forward.13} parent=27 // pred_fallthru
        _
    $region28: #{generator_forward.13} parent=5 // pred_fallthru
      _
    %p780 = scmp.le.s32.totalorder 2, %s11
    // Predicated region
    $region41: #{generator_forward.13} parent=5 // pred_check
      %p781 = pneg %p780
    $region42: #{generator_forward.13} parent=5 // pred_check_branch
      %783 = sbr.rel (%p781) target = $region44
    $region43: #{generator_forward.13} parent=5 // pred_region
      %s784 = ssub.s32 %s11, 2
      // Predicated region
      $region45: #{generator_forward.13} parent=43 // pred_check
        %p785 = pneg %p108
      $region46: #{generator_forward.13} parent=43 // pred_check_branch
        %787 = sbr.rel (%p785) target = $region48
      $region47: #{generator_forward.13} parent=43 // pred_region
        %s788 = smul.u32 16, %s23
        %p789 = scmp.lt.s32.totalorder %s22, 3
        %s790 = scalar_select %p789, %s22, 3
        %p791 = scmp.lt.s32.totalorder %s788, 15
        %s792 = scalar_select %p791, %s788, 15
        %s793 = smul.addr %s790, 16
        %s794 = sadd.s32 %s792, %s793
        %s795 = smul.addr %s794, 4
        %s796 = scalar_lea.vmem %s2, %s795
      $region48: #{generator_forward.13} parent=43 // pred_fallthru
        _
      // Predicated region
      $region49: #{generator_forward.13} parent=43 // pred_check
        %p797 = pneg %p136
      $region50: #{generator_forward.13} parent=43 // pred_check_branch
        %799 = sbr.rel (%p797) target = $region52
      $region51: #{generator_forward.13} parent=43 // pred_region
        %p800 = scmp.lt.s32.totalorder %s22, 3
        %s801 = scalar_select %p800, %s22, 3
        %p802 = scmp.lt.s32.totalorder %s23, 0
        %s803 = scalar_select %p802, %s23, 0
        %s804 = sadd.s32 %s803, %s801
        %s805 = smul.addr %s804, 8
        %s806 = scalar_lea.vmem %s3, %s805
      $region52: #{generator_forward.13} parent=43 // pred_fallthru
        _
      // Predicated region
      $region53: #{generator_forward.13} parent=43 // pred_check
        %p807 = pneg %p164
      $region54: #{generator_forward.13} parent=43 // pred_check_branch
        %809 = sbr.rel (%p807) target = $region56
      $region55: #{generator_forward.13} parent=43 // pred_region
        %p810 = scmp.lt.s32.totalorder %s22, 3
        %s811 = scalar_select %p810, %s22, 3
        %p812 = scmp.lt.s32.totalorder %s23, 0
        %s813 = scalar_select %p812, %s23, 0
        %s814 = sadd.s32 %s813, %s811
        %s815 = smul.addr %s814, 8
        %s816 = scalar_lea.vmem %s4, %s815
      $region56: #{generator_forward.13} parent=43 // pred_fallthru
        _
    $region44: #{generator_forward.13} parent=5 // pred_fallthru
      _
  $region6: #{generator_forward.13} parent=0 // loop_footer
    %s15 = sadd.s32 1, %s11
  $region7: #{generator_forward.13} parent=0 // loop_footer_branch
    %10 = sbr.rel target = $region3
  $region8: #{generator_forward.13} parent=0 // loop_exit
    _

// kernel: generator_forward.14
$region0: #{generator_forward.14}
  #allocation0 [shape = 'u32[]', space=smem, size = 0x4, offset = 0x4, fixed_abs, tag = 'smem constant byte address 0x4 - core index']
  #allocation1 [shape = 'u32[144,128]{1,0:T(1,128)}', space=vmem, size = 0x12000, scoped, tag = 'internal scratch']
  %s0 = inlined_call_operand.vmem [shape: bf16[512,128], index: 0, kind: input, shape index: {}]
  %s1 = inlined_call_operand.vmem [shape: f32[1,128], index: 1, kind: input, shape index: {}]
  %s2 = inlined_call_operand.vmem [shape: f32[1,128], index: 2, kind: input, shape index: {}]
  %s3 = inlined_call_operand.vmem [shape: bf16[512,128], index: 3, kind: output, shape index: {}]
  %s4 = sld [smem:[#allocation0]]
  $region22: #{generator_forward.14} parent=0
    _
  %s6 = ssub.s32 1, %s4
  %s7 = scalar_select 0, %s6, %s4
  // Predicated region
  $region2: #{generator_forward.14} parent=0 // pred_check
    _
  $region3: #{generator_forward.14} parent=0 // pred_check_branch
    %9 = sbr.rel (0) target = $region5
  $region4: #{generator_forward.14} parent=0 // pred_region
    _
  $region5: #{generator_forward.14} parent=0 // pred_fallthru
    _
  // Predicated region
  $region6: #{generator_forward.14} parent=0 // pred_check
    _
  $region7: #{generator_forward.14} parent=0 // pred_check_branch
    %11 = sbr.rel (0) target = $region9
  $region8: #{generator_forward.14} parent=0 // pred_region
    _
  $region9: #{generator_forward.14} parent=0 // pred_fallthru
    _
  // Predicated region
  $region10: #{generator_forward.14} parent=0 // pred_check
    _
  $region11: #{generator_forward.14} parent=0 // pred_check_branch
    %13 = sbr.rel (0) target = $region13
  $region12: #{generator_forward.14} parent=0 // pred_region
    _
  $region13: #{generator_forward.14} parent=0 // pred_fallthru
    _
  %v14 = vld [vmem:[%s0] sm:$0xf]
  %v15 = vld [vmem:[%s0 + $0x4] sm:$0xf]
  %v16 = vld [vmem:[%s0 + $0x8] sm:$0xf]
  %v17 = vld [vmem:[%s0 + $0xc] sm:$0xf]
  %v18 = vld [vmem:[%s0 + $0x10] sm:$0xf]
  %v19 = vld [vmem:[%s0 + $0x14] sm:$0xf]
  %v20 = vld [vmem:[%s0 + $0x18] sm:$0xf]
  %v21 = vld [vmem:[%s0 + $0x1c] sm:$0xf]
  %v22 = vld [vmem:[%s0 + $0x20] sm:$0xf]
  %v23 = vld [vmem:[%s0 + $0x24] sm:$0xf]
  %v24 = vld [vmem:[%s0 + $0x28] sm:$0xf]
  %v25 = vld [vmem:[%s0 + $0x2c] sm:$0xf]
  %v26 = vld [vmem:[%s0 + $0x30] sm:$0xf]
  %v27 = vld [vmem:[%s0 + $0x34] sm:$0xf]
  %v28 = vld [vmem:[%s0 + $0x38] sm:$0xf]
  %v29 = vld [vmem:[%s0 + $0x3c] sm:$0xf]
  %v30 = vld [vmem:[%s0 + $0x40] sm:$0xf]
  %v31 = vld [vmem:[%s0 + $0x44] sm:$0xf]
  %v32 = vld [vmem:[%s0 + $0x48] sm:$0xf]
  %v33 = vld [vmem:[%s0 + $0x4c] sm:$0xf]
  %v34 = vld [vmem:[%s0 + $0x50] sm:$0xf]
  %v35 = vld [vmem:[%s0 + $0x54] sm:$0xf]
  %v36 = vld [vmem:[%s0 + $0x58] sm:$0xf]
  %v37 = vld [vmem:[%s0 + $0x5c] sm:$0xf]
  %v38 = vld [vmem:[%s0 + $0x60] sm:$0xf]
  %v39 = vld [vmem:[%s0 + $0x64] sm:$0xf]
  %v40 = vld [vmem:[%s0 + $0x68] sm:$0xf]
  %v41 = vld [vmem:[%s0 + $0x6c] sm:$0xf]
  %v42 = vld [vmem:[%s0 + $0x70] sm:$0xf]
  %v43 = vld [vmem:[%s0 + $0x74] sm:$0xf]
  %v44 = vld [vmem:[%s0 + $0x78] sm:$0xf]
  %v45 = vld [vmem:[%s0 + $0x7c] sm:$0xf]
  %v46 = vld [vmem:[%s0 + $0x80] sm:$0xf]
  %v47 = vld [vmem:[%s0 + $0x84] sm:$0xf]
  %v48 = vld [vmem:[%s0 + $0x88] sm:$0xf]
  %v49 = vld [vmem:[%s0 + $0x8c] sm:$0xf]
  %v50 = vld [vmem:[%s0 + $0x90] sm:$0xf]
  %v51 = vld [vmem:[%s0 + $0x94] sm:$0xf]
  %v52 = vld [vmem:[%s0 + $0x98] sm:$0xf]
  %v53 = vld [vmem:[%s0 + $0x9c] sm:$0xf]
  %v54 = vld [vmem:[%s0 + $0xa0] sm:$0xf]
  %v55 = vld [vmem:[%s0 + $0xa4] sm:$0xf]
  %v56 = vld [vmem:[%s0 + $0xa8] sm:$0xf]
  %v57 = vld [vmem:[%s0 + $0xac] sm:$0xf]
  %v58 = vld [vmem:[%s0 + $0xb0] sm:$0xf]
  %v59 = vld [vmem:[%s0 + $0xb4] sm:$0xf]
  %v60 = vld [vmem:[%s0 + $0xb8] sm:$0xf]
  %v61 = vld [vmem:[%s0 + $0xbc] sm:$0xf]
  %v62 = vld [vmem:[%s0 + $0xc0] sm:$0xf]
  %v63 = vld [vmem:[%s0 + $0xc4] sm:$0xf]
  %v64 = vld [vmem:[%s0 + $0xc8] sm:$0xf]
  %v65 = vld [vmem:[%s0 + $0xcc] sm:$0xf]
  %v66 = vld [vmem:[%s0 + $0xd0] sm:$0xf]
  %v67 = vld [vmem:[%s0 + $0xd4] sm:$0xf]
  %v68 = vld [vmem:[%s0 + $0xd8] sm:$0xf]
  %v69 = vld [vmem:[%s0 + $0xdc] sm:$0xf]
  %v70 = vld [vmem:[%s0 + $0xe0] sm:$0xf]
  %v71 = vld [vmem:[%s0 + $0xe4] sm:$0xf]
  %v72 = vld [vmem:[%s0 + $0xe8] sm:$0xf]
  %v73 = vld [vmem:[%s0 + $0xec] sm:$0xf]
  %v74 = vld [vmem:[%s0 + $0xf0] sm:$0xf]
  %v75 = vld [vmem:[%s0 + $0xf4] sm:$0xf]
  %v76 = vld [vmem:[%s0 + $0xf8] sm:$0xf]
  %v77 = vld [vmem:[%s0 + $0xfc] sm:$0xf]
  %v78 = vunpack.c.l.bf16 %v14
  %v79 = vunpack.c.l.bf16 %v15
  %v80 = vunpack.c.l.bf16 %v16
  %v81 = vunpack.c.l.bf16 %v17
  %v82 = vunpack.c.l.bf16 %v18
  %v83 = vunpack.c.l.bf16 %v19
  %v84 = vunpack.c.l.bf16 %v20
  %v85 = vunpack.c.l.bf16 %v21
  %v86 = vunpack.c.l.bf16 %v22
  %v87 = vunpack.c.l.bf16 %v23
  %v88 = vunpack.c.l.bf16 %v24
  %v89 = vunpack.c.l.bf16 %v25
  %v90 = vunpack.c.l.bf16 %v26
  %v91 = vunpack.c.l.bf16 %v27
  %v92 = vunpack.c.l.bf16 %v28
  %v93 = vunpack.c.l.bf16 %v29
  %v94 = vunpack.c.l.bf16 %v30
  %v95 = vunpack.c.l.bf16 %v31
  %v96 = vunpack.c.l.bf16 %v32
  %v97 = vunpack.c.l.bf16 %v33
  %v98 = vunpack.c.l.bf16 %v34
  %v99 = vunpack.c.l.bf16 %v35
  %v100 = vunpack.c.l.bf16 %v36
  %v101 = vunpack.c.l.bf16 %v37
  %v102 = vunpack.c.l.bf16 %v38
  %v103 = vunpack.c.l.bf16 %v39
  %v104 = vunpack.c.l.bf16 %v40
  %v105 = vunpack.c.l.bf16 %v41
  %v106 = vunpack.c.l.bf16 %v42
  %v107 = vunpack.c.l.bf16 %v43
  %v108 = vunpack.c.l.bf16 %v44
  %v109 = vunpack.c.l.bf16 %v45
  %v110 = vunpack.c.l.bf16 %v46
  %v111 = vunpack.c.l.bf16 %v47
  %v112 = vunpack.c.l.bf16 %v48
  %v113 = vunpack.c.l.bf16 %v49
  %v114 = vunpack.c.l.bf16 %v50
  %v115 = vunpack.c.l.bf16 %v51
  %v116 = vunpack.c.l.bf16 %v52
  %v117 = vunpack.c.l.bf16 %v53
  %v118 = vunpack.c.l.bf16 %v54
  %v119 = vunpack.c.l.bf16 %v55
  %v120 = vunpack.c.l.bf16 %v56
  %v121 = vunpack.c.l.bf16 %v57
  %v122 = vunpack.c.l.bf16 %v58
  %v123 = vunpack.c.l.bf16 %v59
  %v124 = vunpack.c.l.bf16 %v60
  %v125 = vunpack.c.l.bf16 %v61
  %v126 = vunpack.c.l.bf16 %v62
  %v127 = vunpack.c.l.bf16 %v63
  %v128 = vunpack.c.l.bf16 %v64
  %v129 = vunpack.c.l.bf16 %v65
  %v130 = vunpack.c.l.bf16 %v66
  %v131 = vunpack.c.l.bf16 %v67
  %v132 = vunpack.c.l.bf16 %v68
  %v133 = vunpack.c.l.bf16 %v69
  %v134 = vunpack.c.l.bf16 %v70
  %v135 = vunpack.c.l.bf16 %v71
  %v136 = vunpack.c.l.bf16 %v72
  %v137 = vunpack.c.l.bf16 %v73
  %v138 = vunpack.c.l.bf16 %v74
  %v139 = vunpack.c.l.bf16 %v75
  %v140 = vunpack.c.l.bf16 %v76
  %v141 = vunpack.c.l.bf16 %v77
  %v142 = vld [vmem:[%s1] sm:$0x1]
  %v144 = vlaneseq
  %v145 = vshrl.u32 %v144, 7
  %v146 = vsub.s32 0, %v145
  %v147 = vrot.slane %v142, %v146
  %v149 = vmul.f32 %v78, %v147
  %v150 = vmul.f32 %v79, %v147
  %v151 = vmul.f32 %v80, %v147
  %v152 = vmul.f32 %v81, %v147
  %v153 = vmul.f32 %v82, %v147
  %v154 = vmul.f32 %v83, %v147
  %v155 = vmul.f32 %v84, %v147
  %v156 = vmul.f32 %v85, %v147
  %v157 = vmul.f32 %v86, %v147
  %v158 = vmul.f32 %v87, %v147
  %v159 = vmul.f32 %v88, %v147
  %v160 = vmul.f32 %v89, %v147
  %v161 = vmul.f32 %v90, %v147
  %v162 = vmul.f32 %v91, %v147
  %v163 = vmul.f32 %v92, %v147
  %v164 = vmul.f32 %v93, %v147
  %v165 = vmul.f32 %v94, %v147
  %v166 = vmul.f32 %v95, %v147
  %v167 = vmul.f32 %v96, %v147
  %v168 = vmul.f32 %v97, %v147
  %v169 = vmul.f32 %v98, %v147
  %v170 = vmul.f32 %v99, %v147
  %v171 = vmul.f32 %v100, %v147
  %v172 = vmul.f32 %v101, %v147
  %v173 = vmul.f32 %v102, %v147
  %v174 = vmul.f32 %v103, %v147
  %v175 = vmul.f32 %v104, %v147
  %v176 = vmul.f32 %v105, %v147
  %v177 = vmul.f32 %v106, %v147
  %v178 = vmul.f32 %v107, %v147
  %v179 = vmul.f32 %v108, %v147
  %v180 = vmul.f32 %v109, %v147
  %v181 = vmul.f32 %v110, %v147
  %v182 = vmul.f32 %v111, %v147
  %v183 = vmul.f32 %v112, %v147
  %v184 = vmul.f32 %v113, %v147
  %v185 = vmul.f32 %v114, %v147
  %v186 = vmul.f32 %v115, %v147
  %v187 = vmul.f32 %v116, %v147
  %v188 = vmul.f32 %v117, %v147
  %v189 = vmul.f32 %v118, %v147
  %v190 = vmul.f32 %v119, %v147
  %v191 = vmul.f32 %v120, %v147
  %v192 = vmul.f32 %v121, %v147
  %v193 = vmul.f32 %v122, %v147
  %v194 = vmul.f32 %v123, %v147
  %v195 = vmul.f32 %v124, %v147
  %v196 = vmul.f32 %v125, %v147
  %v197 = vmul.f32 %v126, %v147
  %v198 = vmul.f32 %v127, %v147
  %v199 = vmul.f32 %v128, %v147
  %v200 = vmul.f32 %v129, %v147
  %v201 = vmul.f32 %v130, %v147
  %v202 = vmul.f32 %v131, %v147
  %v203 = vmul.f32 %v132, %v147
  %v204 = vmul.f32 %v133, %v147
  %v205 = vmul.f32 %v134, %v147
  %v206 = vmul.f32 %v135, %v147
  %v207 = vmul.f32 %v136, %v147
  %v208 = vmul.f32 %v137, %v147
  %v209 = vmul.f32 %v138, %v147
  %v210 = vmul.f32 %v139, %v147
  %v211 = vmul.f32 %v140, %v147
  %v212 = vmul.f32 %v141, %v147
  %v213 = vld [vmem:[%s2] sm:$0x1]
  %v215 = vlaneseq
  %v216 = vshrl.u32 %v215, 7
  %v217 = vsub.s32 0, %v216
  %v218 = vrot.slane %v213, %v217
  %v220 = vadd.f32 %v149, %v218
  %v221 = vadd.f32 %v150, %v218
  %v222 = vadd.f32 %v151, %v218
  %v223 = vadd.f32 %v152, %v218
  %v224 = vadd.f32 %v153, %v218
  %v225 = vadd.f32 %v154, %v218
  %v226 = vadd.f32 %v155, %v218
  %v227 = vadd.f32 %v156, %v218
  %v228 = vadd.f32 %v157, %v218
  %v229 = vadd.f32 %v158, %v218
  %v230 = vadd.f32 %v159, %v218
  %v231 = vadd.f32 %v160, %v218
  %v232 = vadd.f32 %v161, %v218
  %v233 = vadd.f32 %v162, %v218
  %v234 = vadd.f32 %v163, %v218
  %v235 = vadd.f32 %v164, %v218
  %v236 = vadd.f32 %v165, %v218
  %v237 = vadd.f32 %v166, %v218
  %v238 = vadd.f32 %v167, %v218
  %v239 = vadd.f32 %v168, %v218
  %v240 = vadd.f32 %v169, %v218
  %v241 = vadd.f32 %v170, %v218
  %v242 = vadd.f32 %v171, %v218
  %v243 = vadd.f32 %v172, %v218
  %v244 = vadd.f32 %v173, %v218
  %v245 = vadd.f32 %v174, %v218
  %v246 = vadd.f32 %v175, %v218
  %v247 = vadd.f32 %v176, %v218
  %v248 = vadd.f32 %v177, %v218
  %v249 = vadd.f32 %v178, %v218
  %v250 = vadd.f32 %v179, %v218
  %v251 = vadd.f32 %v180, %v218
  %v252 = vadd.f32 %v181, %v218
  %v253 = vadd.f32 %v182, %v218
  %v254 = vadd.f32 %v183, %v218
  %v255 = vadd.f32 %v184, %v218
  %v256 = vadd.f32 %v185, %v218
  %v257 = vadd.f32 %v186, %v218
  %v258 = vadd.f32 %v187, %v218
  %v259 = vadd.f32 %v188, %v218
  %v260 = vadd.f32 %v189, %v218
  %v261 = vadd.f32 %v190, %v218
  %v262 = vadd.f32 %v191, %v218
  %v263 = vadd.f32 %v192, %v218
  %v264 = vadd.f32 %v193, %v218
  %v265 = vadd.f32 %v194, %v218
  %v266 = vadd.f32 %v195, %v218
  %v267 = vadd.f32 %v196, %v218
  %v268 = vadd.f32 %v197, %v218
  %v269 = vadd.f32 %v198, %v218
  %v270 = vadd.f32 %v199, %v218
  %v271 = vadd.f32 %v200, %v218
  %v272 = vadd.f32 %v201, %v218
  %v273 = vadd.f32 %v202, %v218
  %v274 = vadd.f32 %v203, %v218
  %v275 = vadd.f32 %v204, %v218
  %v276 = vadd.f32 %v205, %v218
  %v277 = vadd.f32 %v206, %v218
  %v278 = vadd.f32 %v207, %v218
  %v279 = vadd.f32 %v208, %v218
  %v280 = vadd.f32 %v209, %v218
  %v281 = vadd.f32 %v210, %v218
  %v282 = vadd.f32 %v211, %v218
  %v283 = vadd.f32 %v212, %v218
  %v284 = vmax.f32 %v220, 0.0
  %v285 = vmax.f32 %v221, 0.0
  %v286 = vmax.f32 %v222, 0.0
  %v287 = vmax.f32 %v223, 0.0
  %v288 = vmax.f32 %v224, 0.0
  %v289 = vmax.f32 %v225, 0.0
  %v290 = vmax.f32 %v226, 0.0
  %v291 = vmax.f32 %v227, 0.0
  %v292 = vmax.f32 %v228, 0.0
  %v293 = vmax.f32 %v229, 0.0
  %v294 = vmax.f32 %v230, 0.0
  %v295 = vmax.f32 %v231, 0.0
  %v296 = vmax.f32 %v232, 0.0
  %v297 = vmax.f32 %v233, 0.0
  %v298 = vmax.f32 %v234, 0.0
  %v299 = vmax.f32 %v235, 0.0
  %v300 = vmax.f32 %v236, 0.0
  %v301 = vmax.f32 %v237, 0.0
  %v302 = vmax.f32 %v238, 0.0
  %v303 = vmax.f32 %v239, 0.0
  %v304 = vmax.f32 %v240, 0.0
  %v305 = vmax.f32 %v241, 0.0
  %v306 = vmax.f32 %v242, 0.0
  %v307 = vmax.f32 %v243, 0.0
  %v308 = vmax.f32 %v244, 0.0
  %v309 = vmax.f32 %v245, 0.0
  %v310 = vmax.f32 %v246, 0.0
  %v311 = vmax.f32 %v247, 0.0
  %v312 = vmax.f32 %v248, 0.0
  %v313 = vmax.f32 %v249, 0.0
  %v314 = vmax.f32 %v250, 0.0
  %v315 = vmax.f32 %v251, 0.0
  %v316 = vmax.f32 %v252, 0.0
  %v317 = vmax.f32 %v253, 0.0
  %v318 = vmax.f32 %v254, 0.0
  %v319 = vmax.f32 %v255, 0.0
  %v320 = vmax.f32 %v256, 0.0
  %v321 = vmax.f32 %v257, 0.0
  %v322 = vmax.f32 %v258, 0.0
  %v323 = vmax.f32 %v259, 0.0
  %v324 = vmax.f32 %v260, 0.0
  %v325 = vmax.f32 %v261, 0.0
  %v326 = vmax.f32 %v262, 0.0
  %v327 = vmax.f32 %v263, 0.0
  %v328 = vmax.f32 %v264, 0.0
  %v329 = vmax.f32 %v265, 0.0
  %v330 = vmax.f32 %v266, 0.0
  %v331 = vmax.f32 %v267, 0.0
  %v332 = vmax.f32 %v268, 0.0
  %v333 = vmax.f32 %v269, 0.0
  %v334 = vmax.f32 %v270, 0.0
  %v335 = vmax.f32 %v271, 0.0
  %v336 = vmax.f32 %v272, 0.0
  %v337 = vmax.f32 %v273, 0.0
  %v338 = vmax.f32 %v274, 0.0
  %v339 = vmax.f32 %v275, 0.0
  %v340 = vmax.f32 %v276, 0.0
  %v341 = vmax.f32 %v277, 0.0
  %v342 = vmax.f32 %v278, 0.0
  %v343 = vmax.f32 %v279, 0.0
  %v344 = vmax.f32 %v280, 0.0
  %v345 = vmax.f32 %v281, 0.0
  %v346 = vmax.f32 %v282, 0.0
  %v347 = vmax.f32 %v283, 0.0
  %v348 = vpack.c.bf16 %v285, %v284
  %v349 = vpack.c.bf16 %v287, %v286
  %v350 = vpack.c.bf16 %v289, %v288
  %v351 = vpack.c.bf16 %v291, %v290
  %v352 = vpack.c.bf16 %v293, %v292
  %v353 = vpack.c.bf16 %v295, %v294
  %v354 = vpack.c.bf16 %v297, %v296
  %v355 = vpack.c.bf16 %v299, %v298
  %v356 = vpack.c.bf16 %v301, %v300
  %v357 = vpack.c.bf16 %v303, %v302
  %v358 = vpack.c.bf16 %v305, %v304
  %v359 = vpack.c.bf16 %v307, %v306
  %v360 = vpack.c.bf16 %v309, %v308
  %v361 = vpack.c.bf16 %v311, %v310
  %v362 = vpack.c.bf16 %v313, %v312
  %v363 = vpack.c.bf16 %v315, %v314
  %v364 = vpack.c.bf16 %v317, %v316
  %v365 = vpack.c.bf16 %v319, %v318
  %v366 = vpack.c.bf16 %v321, %v320
  %v367 = vpack.c.bf16 %v323, %v322
  %v368 = vpack.c.bf16 %v325, %v324
  %v369 = vpack.c.bf16 %v327, %v326
  %v370 = vpack.c.bf16 %v329, %v328
  %v371 = vpack.c.bf16 %v331, %v330
  %v372 = vpack.c.bf16 %v333, %v332
  %v373 = vpack.c.bf16 %v335, %v334
  %v374 = vpack.c.bf16 %v337, %v336
  %v375 = vpack.c.bf16 %v339, %v338
  %v376 = vpack.c.bf16 %v341, %v340
  %v377 = vpack.c.bf16 %v343, %v342
  %v378 = vpack.c.bf16 %v345, %v344
  %v379 = vpack.c.bf16 %v347, %v346
  %v412 = vunpack.c.l.b16 %v348
  %v413 = vunpack.c.h.b16 %v348
  %v414 = vunpack.c.l.b16 %v349
  %v415 = vunpack.c.h.b16 %v349
  %v416 = vunpack.c.l.b16 %v350
  %v417 = vunpack.c.h.b16 %v350
  %v418 = vunpack.c.l.b16 %v351
  %v419 = vunpack.c.h.b16 %v351
  %v420 = vunpack.c.l.b16 %v352
  %v421 = vunpack.c.h.b16 %v352
  %v422 = vunpack.c.l.b16 %v353
  %v423 = vunpack.c.h.b16 %v353
  %v424 = vunpack.c.l.b16 %v354
  %v425 = vunpack.c.h.b16 %v354
  %v426 = vunpack.c.l.b16 %v355
  %v427 = vunpack.c.h.b16 %v355
  %v428 = vunpack.c.l.b16 %v356
  %v429 = vunpack.c.h.b16 %v356
  %v430 = vunpack.c.l.b16 %v357
  %v431 = vunpack.c.h.b16 %v357
  %v432 = vunpack.c.l.b16 %v358
  %v433 = vunpack.c.h.b16 %v358
  %v434 = vunpack.c.l.b16 %v359
  %v435 = vunpack.c.h.b16 %v359
  %v436 = vunpack.c.l.b16 %v360
  %v437 = vunpack.c.h.b16 %v360
  %v438 = vunpack.c.l.b16 %v361
  %v439 = vunpack.c.h.b16 %v361
  %v440 = vunpack.c.l.b16 %v362
  %v441 = vunpack.c.h.b16 %v362
  %v442 = vunpack.c.l.b16 %v363
  %v443 = vunpack.c.h.b16 %v363
  %v444 = vunpack.c.l.b16 %v364
  %v445 = vunpack.c.h.b16 %v364
  %v446 = vunpack.c.l.b16 %v365
  %v447 = vunpack.c.h.b16 %v365
  %v448 = vunpack.c.l.b16 %v366
  %v449 = vunpack.c.h.b16 %v366
  %v450 = vunpack.c.l.b16 %v367
  %v451 = vunpack.c.h.b16 %v367
  %v452 = vunpack.c.l.b16 %v368
  %v453 = vunpack.c.h.b16 %v368
  %v454 = vunpack.c.l.b16 %v369
  %v455 = vunpack.c.h.b16 %v369
  %v456 = vunpack.c.l.b16 %v370
  %v457 = vunpack.c.h.b16 %v370
  %v458 = vunpack.c.l.b16 %v371
  %v459 = vunpack.c.h.b16 %v371
  %v460 = vunpack.c.l.b16 %v372
  %v461 = vunpack.c.h.b16 %v372
  %v462 = vunpack.c.l.b16 %v373
  %v463 = vunpack.c.h.b16 %v373
  %v464 = vunpack.c.l.b16 %v374
  %v465 = vunpack.c.h.b16 %v374
  %v466 = vunpack.c.l.b16 %v375
  %v467 = vunpack.c.h.b16 %v375
  %v468 = vunpack.c.l.b16 %v376
  %v469 = vunpack.c.h.b16 %v376
  %v470 = vunpack.c.l.b16 %v377
  %v471 = vunpack.c.h.b16 %v377
  %v472 = vunpack.c.l.b16 %v378
  %v473 = vunpack.c.h.b16 %v378
  %v474 = vunpack.c.l.b16 %v379
  %v475 = vunpack.c.h.b16 %v379
  %v476 = vpack.c.b16 %v412, %v412
  %v477 = vpack.c.b16 %v413, %v413
  %v478 = vpack.c.b16 %v414, %v414
  %v479 = vpack.c.b16 %v415, %v415
  %v480 = vpack.c.b16 %v416, %v416
  %v481 = vpack.c.b16 %v417, %v417
  %v482 = vpack.c.b16 %v418, %v418
  %v483 = vpack.c.b16 %v419, %v419
  %v484 = vpack.c.b16 %v420, %v420
  %v485 = vpack.c.b16 %v421, %v421
  %v486 = vpack.c.b16 %v422, %v422
  %v487 = vpack.c.b16 %v423, %v423
  %v488 = vpack.c.b16 %v424, %v424
  %v489 = vpack.c.b16 %v425, %v425
  %v490 = vpack.c.b16 %v426, %v426
  %v491 = vpack.c.b16 %v427, %v427
  %v492 = vpack.c.b16 %v428, %v428
  %v493 = vpack.c.b16 %v429, %v429
  %v494 = vpack.c.b16 %v430, %v430
  %v495 = vpack.c.b16 %v431, %v431
  %v496 = vpack.c.b16 %v432, %v432
  %v497 = vpack.c.b16 %v433, %v433
  %v498 = vpack.c.b16 %v434, %v434
  %v499 = vpack.c.b16 %v435, %v435
  %v500 = vpack.c.b16 %v436, %v436
  %v501 = vpack.c.b16 %v437, %v437
  %v502 = vpack.c.b16 %v438, %v438
  %v503 = vpack.c.b16 %v439, %v439
  %v504 = vpack.c.b16 %v440, %v440
  %v505 = vpack.c.b16 %v441, %v441
  %v506 = vpack.c.b16 %v442, %v442
  %v507 = vpack.c.b16 %v443, %v443
  %v508 = vpack.c.b16 %v444, %v444
  %v509 = vpack.c.b16 %v445, %v445
  %v510 = vpack.c.b16 %v446, %v446
  %v511 = vpack.c.b16 %v447, %v447
  %v512 = vpack.c.b16 %v448, %v448
  %v513 = vpack.c.b16 %v449, %v449
  %v514 = vpack.c.b16 %v450, %v450
  %v515 = vpack.c.b16 %v451, %v451
  %v516 = vpack.c.b16 %v452, %v452
  %v517 = vpack.c.b16 %v453, %v453
  %v518 = vpack.c.b16 %v454, %v454
  %v519 = vpack.c.b16 %v455, %v455
  %v520 = vpack.c.b16 %v456, %v456
  %v521 = vpack.c.b16 %v457, %v457
  %v522 = vpack.c.b16 %v458, %v458
  %v523 = vpack.c.b16 %v459, %v459
  %v524 = vpack.c.b16 %v460, %v460
  %v525 = vpack.c.b16 %v461, %v461
  %v526 = vpack.c.b16 %v462, %v462
  %v527 = vpack.c.b16 %v463, %v463
  %v528 = vpack.c.b16 %v464, %v464
  %v529 = vpack.c.b16 %v465, %v465
  %v530 = vpack.c.b16 %v466, %v466
  %v531 = vpack.c.b16 %v467, %v467
  %v532 = vpack.c.b16 %v468, %v468
  %v533 = vpack.c.b16 %v469, %v469
  %v534 = vpack.c.b16 %v470, %v470
  %v535 = vpack.c.b16 %v471, %v471
  %v536 = vpack.c.b16 %v472, %v472
  %v537 = vpack.c.b16 %v473, %v473
  %v538 = vpack.c.b16 %v474, %v474
  %v539 = vpack.c.b16 %v475, %v475
  %604 = vst [vmem:[%s3] sm:$0xf] %v476
  %605 = vst [vmem:[%s3 + $0x4] sm:$0xf] %v477
  %606 = vst [vmem:[%s3 + $0x8] sm:$0xf] %v478
  %607 = vst [vmem:[%s3 + $0xc] sm:$0xf] %v479
  %608 = vst [vmem:[%s3 + $0x10] sm:$0xf] %v480
  %609 = vst [vmem:[%s3 + $0x14] sm:$0xf] %v481
  %610 = vst [vmem:[%s3 + $0x18] sm:$0xf] %v482
  %611 = vst [vmem:[%s3 + $0x1c] sm:$0xf] %v483
  %612 = vst [vmem:[%s3 + $0x20] sm:$0xf] %v484
  %613 = vst [vmem:[%s3 + $0x24] sm:$0xf] %v485
  %614 = vst [vmem:[%s3 + $0x28] sm:$0xf] %v486
  %615 = vst [vmem:[%s3 + $0x2c] sm:$0xf] %v487
  %616 = vst [vmem:[%s3 + $0x30] sm:$0xf] %v488
  %617 = vst [vmem:[%s3 + $0x34] sm:$0xf] %v489
  %618 = vst [vmem:[%s3 + $0x38] sm:$0xf] %v490
  %619 = vst [vmem:[%s3 + $0x3c] sm:$0xf] %v491
  %620 = vst [vmem:[%s3 + $0x40] sm:$0xf] %v492
  %621 = vst [vmem:[%s3 + $0x44] sm:$0xf] %v493
  %622 = vst [vmem:[%s3 + $0x48] sm:$0xf] %v494
  %623 = vst [vmem:[%s3 + $0x4c] sm:$0xf] %v495
  %624 = vst [vmem:[%s3 + $0x50] sm:$0xf] %v496
  %625 = vst [vmem:[%s3 + $0x54] sm:$0xf] %v497
  %626 = vst [vmem:[%s3 + $0x58] sm:$0xf] %v498
  %627 = vst [vmem:[%s3 + $0x5c] sm:$0xf] %v499
  %628 = vst [vmem:[%s3 + $0x60] sm:$0xf] %v500
  %629 = vst [vmem:[%s3 + $0x64] sm:$0xf] %v501
  %630 = vst [vmem:[%s3 + $0x68] sm:$0xf] %v502
  %631 = vst [vmem:[%s3 + $0x6c] sm:$0xf] %v503
  %632 = vst [vmem:[%s3 + $0x70] sm:$0xf] %v504
  %633 = vst [vmem:[%s3 + $0x74] sm:$0xf] %v505
  %634 = vst [vmem:[%s3 + $0x78] sm:$0xf] %v506
  %635 = vst [vmem:[%s3 + $0x7c] sm:$0xf] %v507
  %636 = vst [vmem:[%s3 + $0x80] sm:$0xf] %v508
  %637 = vst [vmem:[%s3 + $0x84] sm:$0xf] %v509
  %638 = vst [vmem:[%s3 + $0x88] sm:$0xf] %v510
  %639 = vst [vmem:[%s3 + $0x8c] sm:$0xf] %v511
  %640 = vst [vmem:[%s3 + $0x90] sm:$0xf] %v512
  %641 = vst [vmem:[%s3 + $0x94] sm:$0xf] %v513
  %642 = vst [vmem:[%s3 + $0x98] sm:$0xf] %v514
  %643 = vst [vmem:[%s3 + $0x9c] sm:$0xf] %v515
  %644 = vst [vmem:[%s3 + $0xa0] sm:$0xf] %v516
  %645 = vst [vmem:[%s3 + $0xa4] sm:$0xf] %v517
  %646 = vst [vmem:[%s3 + $0xa8] sm:$0xf] %v518
  %647 = vst [vmem:[%s3 + $0xac] sm:$0xf] %v519
  %648 = vst [vmem:[%s3 + $0xb0] sm:$0xf] %v520
  %649 = vst [vmem:[%s3 + $0xb4] sm:$0xf] %v521
  %650 = vst [vmem:[%s3 + $0xb8] sm:$0xf] %v522
  %651 = vst [vmem:[%s3 + $0xbc] sm:$0xf] %v523
  %652 = vst [vmem:[%s3 + $0xc0] sm:$0xf] %v524
  %653 = vst [vmem:[%s3 + $0xc4] sm:$0xf] %v525
  %654 = vst [vmem:[%s3 + $0xc8] sm:$0xf] %v526
  %655 = vst [vmem:[%s3 + $0xcc] sm:$0xf] %v527
  %656 = vst [vmem:[%s3 + $0xd0] sm:$0xf] %v528
  %657 = vst [vmem:[%s3 + $0xd4] sm:$0xf] %v529
  %658 = vst [vmem:[%s3 + $0xd8] sm:$0xf] %v530
  %659 = vst [vmem:[%s3 + $0xdc] sm:$0xf] %v531
  %660 = vst [vmem:[%s3 + $0xe0] sm:$0xf] %v532
  %661 = vst [vmem:[%s3 + $0xe4] sm:$0xf] %v533
  %662 = vst [vmem:[%s3 + $0xe8] sm:$0xf] %v534
  %663 = vst [vmem:[%s3 + $0xec] sm:$0xf] %v535
  %664 = vst [vmem:[%s3 + $0xf0] sm:$0xf] %v536
  %665 = vst [vmem:[%s3 + $0xf4] sm:$0xf] %v537
  %666 = vst [vmem:[%s3 + $0xf8] sm:$0xf] %v538
  %667 = vst [vmem:[%s3 + $0xfc] sm:$0xf] %v539
  // Predicated region
  $region14: #{generator_forward.14} parent=0 // pred_check
    _
  $region15: #{generator_forward.14} parent=0 // pred_check_branch
    %669 = sbr.rel (0) target = $region17
  $region16: #{generator_forward.14} parent=0 // pred_region
    _
  $region17: #{generator_forward.14} parent=0 // pred_fallthru
    _
  // Predicated region
  $region18: #{generator_forward.14} parent=0 // pred_check
    _
  $region19: #{generator_forward.14} parent=0 // pred_check_branch
    %671 = sbr.rel (0) target = $region21
  $region20: #{generator_forward.14} parent=0 // pred_region
    _
  $region21: #{generator_forward.14} parent=0 // pred_fallthru
    _

// kernel: generator_forward.15
$region0: #{generator_forward.15}
  #allocation0 [shape = 'u32[]', space=smem, size = 0x4, offset = 0x4, fixed_abs, tag = 'smem constant byte address 0x4 - core index']
  #allocation1 [shape = 'u32[144,128]{1,0:T(1,128)}', space=vmem, size = 0x12000, scoped, tag = 'internal scratch']
  %s0 = inlined_call_operand.vmem [shape: bf16[4,512,128], index: 0, kind: input, shape index: {}]
  %s1 = inlined_call_operand.vmem [shape: bf16[4,128,128], index: 1, kind: input, shape index: {}]
  %s2 = inlined_call_operand.vmem [shape: bf16[4,512,128], index: 2, kind: output, shape index: {0}]
  %s3 = inlined_call_operand.vmem [shape: f32[4,8,128], index: 3, kind: output, shape index: {1}]
  %s4 = inlined_call_operand.vmem [shape: f32[4,8,128], index: 4, kind: output, shape index: {2}]
  %5 = xla_tuple %s2, %s3, %s4
  %s6 = sld [smem:[#allocation0]]
  $region57: #{generator_forward.15} parent=0
    _
  %s8 = ssub.s32 1, %s6
  %s9 = scalar_select 0, %s8, %s6
  loop: start=0, step=1, limit=6
  $region2: #{generator_forward.15} parent=0 // loop_pre_header
    _
  $region3: #{generator_forward.15} parent=0 // loop_header
    %s11 = sphi 0, %s15
    %p12 = scmp.ge.s32.totalorder %s11, 6
    %s18 = sphi 0, %s30
    %s19 = sphi 0, %s26
    %s20 = sphi 0, %s18
    %s21 = sphi 0, %s19
    %s22 = sphi 0, %s20
    %s23 = sphi 0, %s21
    %s35 = sphi 0, %s37
    %s38 = sphi 0, %s35
    %s39 = sphi 0, %s38
    %s55 = sphi 0, %s39
    %s61 = sphi 0, %s63
    %s64 = sphi 0, %s61
    %s65 = sphi 0, %s64
    %s81 = sphi 0, %s65
    %s89 = sphi 0, %s91
    %s92 = sphi 0, %s89
    %s93 = sphi 0, %s92
    %s109 = sphi 0, %s93
    %s117 = sphi 0, %s119
    %s120 = sphi 0, %s117
    %s121 = sphi 0, %s120
    %s137 = sphi 0, %s121
    %s145 = sphi 0, %s147
    %s148 = sphi 0, %s145
    %s149 = sphi 0, %s148
    %s165 = sphi 0, %s149
  $region4: #{generator_forward.15} parent=0 // loop_header_branch
    %14 = sbr.rel (%p12) target = $region8
  $region5: #{generator_forward.15} parent=0 // loop_body
    %s16 = ssub.s32 %s11, 1
    %s17 = ssub.s32 %s11, 2
    %s24 = sadd.s32 1, %s19
    %p25 = scmp.ge.s32.totalorder %s24, 1
    %s26 = scalar_select %p25, 0, %s24
    %s27 = sadd.s32 1, %s18
    %s28 = scalar_select %p25, %s27, %s18
    %p29 = scmp.ge.s32.totalorder %s28, 4
    %s30 = scalar_select %p29, 0, %s28
    %s31 = ssub.s32 %s18, %s30
    %s32 = ssub.s32 %s19, %s26
    %s33 = sor.u32 %s31, %s32
    %p34 = scmp.eq.s32.totalorder %s33, 0
    %s36 = sadd.s32 %s35, 1
    %s37 = scalar_select %p34, %s35, %s36
    %p40 = pneg %p34
    %p41 = scmp.eq.s32.totalorder %s11, 3
    %p42 = por %p40, %p41
    %p43 = scmp.ne.s32.totalorder %s35, %s38
    %p44 = scmp.eq.s32.totalorder %s11, 0
    %p45 = por %p43, %p44
    %p46 = scmp.ne.s32.totalorder %s35, %s38
    %p47 = scmp.eq.s32.totalorder %s16, 3
    %p48 = por %p46, %p47
    %p49 = scmp.ne.s32.totalorder %s38, %s39
    %p50 = scmp.eq.s32.totalorder %s16, 0
    %p51 = por %p49, %p50
    %p52 = scmp.ne.s32.totalorder %s38, %s39
    %p53 = scmp.eq.s32.totalorder %s17, 3
    %p54 = por %p52, %p53
    %p56 = scmp.ne.s32.totalorder %s39, %s55
    %p57 = scmp.eq.s32.totalorder %s17, 0
    %p58 = por %p56, %p57
    %s59 = ssub.s32 %s18, %s30
    %p60 = scmp.eq.s32.totalorder %s59, 0
    %s62 = sadd.s32 %s61, 1
    %s63 = scalar_select %p60, %s61, %s62
    %p66 = pneg %p60
    %p67 = scmp.eq.s32.totalorder %s11, 3
    %p68 = por %p66, %p67
    %p69 = scmp.ne.s32.totalorder %s61, %s64
    %p70 = scmp.eq.s32.totalorder %s11, 0
    %p71 = por %p69, %p70
    %p72 = scmp.ne.s32.totalorder %s61, %s64
    %p73 = scmp.eq.s32.totalorder %s16, 3
    %p74 = por %p72, %p73
    %p75 = scmp.ne.s32.totalorder %s64, %s65
    %p76 = scmp.eq.s32.totalorder %s16, 0
    %p77 = por %p75, %p76
    %p78 = scmp.ne.s32.totalorder %s64, %s65
    %p79 = scmp.eq.s32.totalorder %s17, 3
    %p80 = por %p78, %p79
    %p82 = scmp.ne.s32.totalorder %s65, %s81
    %p83 = scmp.eq.s32.totalorder %s17, 0
    %p84 = por %p82, %p83
    %s85 = ssub.s32 %s18, %s30
    %s86 = ssub.s32 %s19, %s26
    %s87 = sor.u32 %s85, %s86
    %p88 = scmp.eq.s32.totalorder %s87, 0
    %s90 = sadd.s32 %s89, 1
    %s91 = scalar_select %p88, %s89, %s90
    %p94 = pneg %p88
    %p95 = scmp.eq.s32.totalorder %s11, 3
    %p96 = por %p94, %p95
    %p97 = scmp.ne.s32.totalorder %s89, %s92
    %p98 = scmp.eq.s32.totalorder %s11, 0
    %p99 = por %p97, %p98
    %p100 = scmp.ne.s32.totalorder %s89, %s92
    %p101 = scmp.eq.s32.totalorder %s16, 3
    %p102 = por %p100, %p101
    %p103 = scmp.ne.s32.totalorder %s92, %s93
    %p104 = scmp.eq.s32.totalorder %s16, 0
    %p105 = por %p103, %p104
    %p106 = scmp.ne.s32.totalorder %s92, %s93
    %p107 = scmp.eq.s32.totalorder %s17, 3
    %p108 = por %p106, %p107
    %p110 = scmp.ne.s32.totalorder %s93, %s109
    %p111 = scmp.eq.s32.totalorder %s17, 0
    %p112 = por %p110, %p111
    %s113 = ssub.s32 %s18, %s30
    %s114 = ssub.s32 %s19, %s26
    %s115 = sor.u32 %s113, %s114
    %p116 = scmp.eq.s32.totalorder %s115, 0
    %s118 = sadd.s32 %s117, 1
    %s119 = scalar_select %p116, %s117, %s118
    %p122 = pneg %p116
    %p123 = scmp.eq.s32.totalorder %s11, 3
    %p124 = por %p122, %p123
    %p125 = scmp.ne.s32.totalorder %s117, %s120
    %p126 = scmp.eq.s32.totalorder %s11, 0
    %p127 = por %p125, %p126
    %p128 = scmp.ne.s32.totalorder %s117, %s120
    %p129 = scmp.eq.s32.totalorder %s16, 3
    %p130 = por %p128, %p129
    %p131 = scmp.ne.s32.totalorder %s120, %s121
    %p132 = scmp.eq.s32.totalorder %s16, 0
    %p133 = por %p131, %p132
    %p134 = scmp.ne.s32.totalorder %s120, %s121
    %p135 = scmp.eq.s32.totalorder %s17, 3
    %p136 = por %p134, %p135
    %p138 = scmp.ne.s32.totalorder %s121, %s137
    %p139 = scmp.eq.s32.totalorder %s17, 0
    %p140 = por %p138, %p139
    %s141 = ssub.s32 %s18, %s30
    %s142 = ssub.s32 %s19, %s26
    %s143 = sor.u32 %s141, %s142
    %p144 = scmp.eq.s32.totalorder %s143, 0
    %s146 = sadd.s32 %s145, 1
    %s147 = scalar_select %p144, %s145, %s146
    %p150 = pneg %p144
    %p151 = scmp.eq.s32.totalorder %s11, 3
    %p152 = por %p150, %p151
    %p153 = scmp.ne.s32.totalorder %s145, %s148
    %p154 = scmp.eq.s32.totalorder %s11, 0
    %p155 = por %p153, %p154
    %p156 = scmp.ne.s32.totalorder %s145, %s148
    %p157 = scmp.eq.s32.totalorder %s16, 3
    %p158 = por %p156, %p157
    %p159 = scmp.ne.s32.totalorder %s148, %s149
    %p160 = scmp.eq.s32.totalorder %s16, 0
    %p161 = por %p159, %p160
    %p162 = scmp.ne.s32.totalorder %s148, %s149
    %p163 = scmp.eq.s32.totalorder %s17, 3
    %p164 = por %p162, %p163
    %p166 = scmp.ne.s32.totalorder %s149, %s165
    %p167 = scmp.eq.s32.totalorder %s17, 0
    %p168 = por %p166, %p167
    %p169 = scmp.le.s32.totalorder 1, %s11
    %p170 = scmp.lt.s32.totalorder %s11, 5
    %p171 = pnand %p169, %p170
    %p172 = pneg %p171
    // Predicated region
    $region9: #{generator_forward.15} parent=5 // pred_check
      _
    $region10: #{generator_forward.15} parent=5 // pred_check_branch
      %174 = sbr.rel (%p171) target = $region12
    $region11: #{generator_forward.15} parent=5 // pred_region
      %s175 = ssub.s32 %s11, 1
    $region12: #{generator_forward.15} parent=5 // pred_fallthru
      _
    %p176 = scmp.lt.s32.totalorder %s11, 4
    // Predicated region
    $region13: #{generator_forward.15} parent=5 // pred_check
      %p177 = pneg %p176
    $region14: #{generator_forward.15} parent=5 // pred_check_branch
      %179 = sbr.rel (%p177) target = $region16
    $region15: #{generator_forward.15} parent=5 // pred_region
      // Predicated region
      $region17: #{generator_forward.15} parent=15 // pred_check
        %p180 = pneg %p45
      $region18: #{generator_forward.15} parent=15 // pred_check_branch
        %182 = sbr.rel (%p180) target = $region20
      $region19: #{generator_forward.15} parent=15 // pred_region
        %s183 = smul.u32 64, %s19
        %p184 = scmp.lt.s32.totalorder %s18, 3
        %s185 = scalar_select %p184, %s18, 3
        %p186 = scmp.lt.s32.totalorder %s183, 63
        %s187 = scalar_select %p186, %s183, 63
        %s188 = smul.addr %s185, 64
        %s189 = sadd.s32 %s187, %s188
        %s190 = smul.addr %s189, 4
        %s191 = scalar_lea.vmem %s0, %s190
        %s192 = smul.u32 64, %s19
      $region20: #{generator_forward.15} parent=15 // pred_fallthru
        _
      // Predicated region
      $region21: #{generator_forward.15} parent=15 // pred_check
        %p193 = pneg %p71
      $region22: #{generator_forward.15} parent=15 // pred_check_branch
        %195 = sbr.rel (%p193) target = $region24
      $region23: #{generator_forward.15} parent=15 // pred_region
        %p196 = scmp.lt.s32.totalorder %s18, 3
        %s197 = scalar_select %p196, %s18, 3
        %s198 = smul.addr %s197, 16
        %s199 = smul.addr %s198, 4
        %s200 = scalar_lea.vmem %s1, %s199
      $region24: #{generator_forward.15} parent=15 // pred_fallthru
        _
    $region16: #{generator_forward.15} parent=5 // pred_fallthru
      _
    %p201 = scmp.le.s32.totalorder 1, %s11
    %p202 = scmp.lt.s32.totalorder %s11, 5
    %p203 = pnand %p201, %p202
    %p204 = pneg %p203
    // Predicated region
    $region25: #{generator_forward.15} parent=5 // pred_check
      _
    $region26: #{generator_forward.15} parent=5 // pred_check_branch
      %206 = sbr.rel (%p203) target = $region28
    $region27: #{generator_forward.15} parent=5 // pred_region
      %s207 = ssub.s32 %s11, 1
      %s208 = smul.u32 64, %s21
      %p209 = scmp.lt.s32.totalorder %s20, 3
      %s210 = scalar_select %p209, %s20, 3
      %p211 = scmp.lt.s32.totalorder %s208, 63
      %s212 = scalar_select %p211, %s208, 63
      %s213 = smul.addr %s210, 64
      %s214 = sadd.s32 %s212, %s213
      %s215 = smul.addr %s214, 4
      %s216 = scalar_lea.vmem %s0, %s215
      %p217 = pneg %p51
      %p218 = pneg %p48
      %p219 = scmp.lt.s32.totalorder %s20, 3
      %s220 = scalar_select %p219, %s20, 3
      %s221 = smul.addr %s220, 16
      %s222 = smul.addr %s221, 4
      %s223 = scalar_lea.vmem %s1, %s222
      %p224 = pneg %p77
      %p225 = pneg %p74
      %p226 = pneg %p105
      %p227 = pneg %p102
      %s228 = smul.u32 64, %s21
      %p229 = scmp.lt.s32.totalorder %s20, 3
      %s230 = scalar_select %p229, %s20, 3
      %p231 = scmp.lt.s32.totalorder %s228, 63
      %s232 = scalar_select %p231, %s228, 63
      %s233 = smul.addr %s230, 64
      %s234 = sadd.s32 %s232, %s233
      %s235 = smul.addr %s234, 4
      %s236 = scalar_lea.vmem %s2, %s235
      %p237 = pneg %p133
      %p238 = pneg %p130
      %p239 = scmp.lt.s32.totalorder %s20, 3
      %s240 = scalar_select %p239, %s20, 3
      %p241 = scmp.lt.s32.totalorder %s21, 0
      %s242 = scalar_select %p241, %s21, 0
      %s243 = sadd.s32 %s242, %s240
      %s244 = smul.addr %s243, 8
      %s245 = scalar_lea.vmem %s3, %s244
      %p246 = pneg %p161
      %p247 = pneg %p158
      %p248 = scmp.lt.s32.totalorder %s20, 3
      %s249 = scalar_select %p248, %s20, 3
      %p250 = scmp.lt.s32.totalorder %s21, 0
      %s251 = scalar_select %p250, %s21, 0
      %s252 = sadd.s32 %s251, %s249
      %s253 = smul.addr %s252, 8
      %s254 = scalar_lea.vmem %s4, %s253
      %s255 = smul.u32 64, %s21
      %p256 = scmp.lt.s32.totalorder %s20, 3
      %s257 = scalar_select %p256, %s20, 3
      %p258 = scmp.lt.s32.totalorder %s255, 63
      %s259 = scalar_select %p258, %s255, 63
      %s260 = smul.addr %s257, 64
      %s261 = sadd.s32 %s259, %s260
      %s262 = smul.addr %s261, 4
      %s263 = scalar_lea.vmem %s0, %s262
      %s264 = smul.u32 64, %s21
      %p265 = scmp.lt.s32.totalorder %s20, 3
      %s266 = scalar_select %p265, %s20, 3
      %s267 = smul.addr %s266, 16
      %s268 = smul.addr %s267, 4
      %s269 = scalar_lea.vmem %s1, %s268
      %s270 = smul.u32 64, %s21
      %p271 = scmp.lt.s32.totalorder %s20, 3
      %s272 = scalar_select %p271, %s20, 3
      %p273 = scmp.lt.s32.totalorder %s270, 63
      %s274 = scalar_select %p273, %s270, 63
      %s275 = smul.addr %s272, 64
      %s276 = sadd.s32 %s274, %s275
      %s277 = smul.addr %s276, 4
      %s278 = scalar_lea.vmem %s2, %s277
      %s279 = smul.u32 64, %s21
      %p280 = scmp.lt.s32.totalorder %s20, 3
      %s281 = scalar_select %p280, %s20, 3
      %p282 = scmp.lt.s32.totalorder %s21, 0
      %s283 = scalar_select %p282, %s21, 0
      %s284 = sadd.s32 %s283, %s281
      %s285 = smul.addr %s284, 8
      %s286 = scalar_lea.vmem %s3, %s285
      %p287 = scmp.lt.s32.totalorder %s20, 3
      %s288 = scalar_select %p287, %s20, 3
      %p289 = scmp.lt.s32.totalorder %s21, 0
      %s290 = scalar_select %p289, %s21, 0
      %s291 = sadd.s32 %s290, %s288
      %s292 = smul.addr %s291, 8
      %s293 = scalar_lea.vmem %s4, %s292
      %v295 = vld [vmem:[%s263] sm:$0xf]
      %v296 = vld [vmem:[%s263 + $0x4] sm:$0xf]
      %v297 = vld [vmem:[%s263 + $0x8] sm:$0xf]
      %v298 = vld [vmem:[%s263 + $0xc] sm:$0xf]
      %v299 = vld [vmem:[%s263 + $0x10] sm:$0xf]
      %v300 = vld [vmem:[%s263 + $0x14] sm:$0xf]
      %v301 = vld [vmem:[%s263 + $0x18] sm:$0xf]
      %v302 = vld [vmem:[%s263 + $0x1c] sm:$0xf]
      %v303 = vld [vmem:[%s263 + $0x20] sm:$0xf]
      %v304 = vld [vmem:[%s263 + $0x24] sm:$0xf]
      %v305 = vld [vmem:[%s263 + $0x28] sm:$0xf]
      %v306 = vld [vmem:[%s263 + $0x2c] sm:$0xf]
      %v307 = vld [vmem:[%s263 + $0x30] sm:$0xf]
      %v308 = vld [vmem:[%s263 + $0x34] sm:$0xf]
      %v309 = vld [vmem:[%s263 + $0x38] sm:$0xf]
      %v310 = vld [vmem:[%s263 + $0x3c] sm:$0xf]
      %v311 = vld [vmem:[%s263 + $0x40] sm:$0xf]
      %v312 = vld [vmem:[%s263 + $0x44] sm:$0xf]
      %v313 = vld [vmem:[%s263 + $0x48] sm:$0xf]
      %v314 = vld [vmem:[%s263 + $0x4c] sm:$0xf]
      %v315 = vld [vmem:[%s263 + $0x50] sm:$0xf]
      %v316 = vld [vmem:[%s263 + $0x54] sm:$0xf]
      %v317 = vld [vmem:[%s263 + $0x58] sm:$0xf]
      %v318 = vld [vmem:[%s263 + $0x5c] sm:$0xf]
      %v319 = vld [vmem:[%s263 + $0x60] sm:$0xf]
      %v320 = vld [vmem:[%s263 + $0x64] sm:$0xf]
      %v321 = vld [vmem:[%s263 + $0x68] sm:$0xf]
      %v322 = vld [vmem:[%s263 + $0x6c] sm:$0xf]
      %v323 = vld [vmem:[%s263 + $0x70] sm:$0xf]
      %v324 = vld [vmem:[%s263 + $0x74] sm:$0xf]
      %v325 = vld [vmem:[%s263 + $0x78] sm:$0xf]
      %v326 = vld [vmem:[%s263 + $0x7c] sm:$0xf]
      %v327 = vld [vmem:[%s263 + $0x80] sm:$0xf]
      %v328 = vld [vmem:[%s263 + $0x84] sm:$0xf]
      %v329 = vld [vmem:[%s263 + $0x88] sm:$0xf]
      %v330 = vld [vmem:[%s263 + $0x8c] sm:$0xf]
      %v331 = vld [vmem:[%s263 + $0x90] sm:$0xf]
      %v332 = vld [vmem:[%s263 + $0x94] sm:$0xf]
      %v333 = vld [vmem:[%s263 + $0x98] sm:$0xf]
      %v334 = vld [vmem:[%s263 + $0x9c] sm:$0xf]
      %v335 = vld [vmem:[%s263 + $0xa0] sm:$0xf]
      %v336 = vld [vmem:[%s263 + $0xa4] sm:$0xf]
      %v337 = vld [vmem:[%s263 + $0xa8] sm:$0xf]
      %v338 = vld [vmem:[%s263 + $0xac] sm:$0xf]
      %v339 = vld [vmem:[%s263 + $0xb0] sm:$0xf]
      %v340 = vld [vmem:[%s263 + $0xb4] sm:$0xf]
      %v341 = vld [vmem:[%s263 + $0xb8] sm:$0xf]
      %v342 = vld [vmem:[%s263 + $0xbc] sm:$0xf]
      %v343 = vld [vmem:[%s263 + $0xc0] sm:$0xf]
      %v344 = vld [vmem:[%s263 + $0xc4] sm:$0xf]
      %v345 = vld [vmem:[%s263 + $0xc8] sm:$0xf]
      %v346 = vld [vmem:[%s263 + $0xcc] sm:$0xf]
      %v347 = vld [vmem:[%s263 + $0xd0] sm:$0xf]
      %v348 = vld [vmem:[%s263 + $0xd4] sm:$0xf]
      %v349 = vld [vmem:[%s263 + $0xd8] sm:$0xf]
      %v350 = vld [vmem:[%s263 + $0xdc] sm:$0xf]
      %v351 = vld [vmem:[%s263 + $0xe0] sm:$0xf]
      %v352 = vld [vmem:[%s263 + $0xe4] sm:$0xf]
      %v353 = vld [vmem:[%s263 + $0xe8] sm:$0xf]
      %v354 = vld [vmem:[%s263 + $0xec] sm:$0xf]
      %v355 = vld [vmem:[%s263 + $0xf0] sm:$0xf]
      %v356 = vld [vmem:[%s263 + $0xf4] sm:$0xf]
      %v357 = vld [vmem:[%s263 + $0xf8] sm:$0xf]
      %v358 = vld [vmem:[%s263 + $0xfc] sm:$0xf]
      %v359 = vld [vmem:[%s269] sm:$0xf]
      %v360 = vld [vmem:[%s269 + $0x4] sm:$0xf]
      %v361 = vld [vmem:[%s269 + $0x8] sm:$0xf]
      %v362 = vld [vmem:[%s269 + $0xc] sm:$0xf]
      %v363 = vld [vmem:[%s269 + $0x10] sm:$0xf]
      %v364 = vld [vmem:[%s269 + $0x14] sm:$0xf]
      %v365 = vld [vmem:[%s269 + $0x18] sm:$0xf]
      %v366 = vld [vmem:[%s269 + $0x1c] sm:$0xf]
      %v367 = vld [vmem:[%s269 + $0x20] sm:$0xf]
      %v368 = vld [vmem:[%s269 + $0x24] sm:$0xf]
      %v369 = vld [vmem:[%s269 + $0x28] sm:$0xf]
      %v370 = vld [vmem:[%s269 + $0x2c] sm:$0xf]
      %v371 = vld [vmem:[%s269 + $0x30] sm:$0xf]
      %v372 = vld [vmem:[%s269 + $0x34] sm:$0xf]
      %v373 = vld [vmem:[%s269 + $0x38] sm:$0xf]
      %v374 = vld [vmem:[%s269 + $0x3c] sm:$0xf]
      %v439 = vunpack.c.l.b16 %v295
      %v440 = vunpack.c.l.b16 %v296
      %v441 = vunpack.c.l.b16 %v297
      %v442 = vunpack.c.l.b16 %v298
      %v443 = vunpack.c.l.b16 %v299
      %v444 = vunpack.c.l.b16 %v300
      %v445 = vunpack.c.l.b16 %v301
      %v446 = vunpack.c.l.b16 %v302
      %v447 = vunpack.c.l.b16 %v303
      %v448 = vunpack.c.l.b16 %v304
      %v449 = vunpack.c.l.b16 %v305
      %v450 = vunpack.c.l.b16 %v306
      %v451 = vunpack.c.l.b16 %v307
      %v452 = vunpack.c.l.b16 %v308
      %v453 = vunpack.c.l.b16 %v309
      %v454 = vunpack.c.l.b16 %v310
      %v455 = vunpack.c.l.b16 %v311
      %v456 = vunpack.c.l.b16 %v312
      %v457 = vunpack.c.l.b16 %v313
      %v458 = vunpack.c.l.b16 %v314
      %v459 = vunpack.c.l.b16 %v315
      %v460 = vunpack.c.l.b16 %v316
      %v461 = vunpack.c.l.b16 %v317
      %v462 = vunpack.c.l.b16 %v318
      %v463 = vunpack.c.l.b16 %v319
      %v464 = vunpack.c.l.b16 %v320
      %v465 = vunpack.c.l.b16 %v321
      %v466 = vunpack.c.l.b16 %v322
      %v467 = vunpack.c.l.b16 %v323
      %v468 = vunpack.c.l.b16 %v324
      %v469 = vunpack.c.l.b16 %v325
      %v470 = vunpack.c.l.b16 %v326
      %v471 = vunpack.c.l.b16 %v327
      %v472 = vunpack.c.l.b16 %v328
      %v473 = vunpack.c.l.b16 %v329
      %v474 = vunpack.c.l.b16 %v330
      %v475 = vunpack.c.l.b16 %v331
      %v476 = vunpack.c.l.b16 %v332
      %v477 = vunpack.c.l.b16 %v333
      %v478 = vunpack.c.l.b16 %v334
      %v479 = vunpack.c.l.b16 %v335
      %v480 = vunpack.c.l.b16 %v336
      %v481 = vunpack.c.l.b16 %v337
      %v482 = vunpack.c.l.b16 %v338
      %v483 = vunpack.c.l.b16 %v339
      %v484 = vunpack.c.l.b16 %v340
      %v485 = vunpack.c.l.b16 %v341
      %v486 = vunpack.c.l.b16 %v342
      %v487 = vunpack.c.l.b16 %v343
      %v488 = vunpack.c.l.b16 %v344
      %v489 = vunpack.c.l.b16 %v345
      %v490 = vunpack.c.l.b16 %v346
      %v491 = vunpack.c.l.b16 %v347
      %v492 = vunpack.c.l.b16 %v348
      %v493 = vunpack.c.l.b16 %v349
      %v494 = vunpack.c.l.b16 %v350
      %v495 = vunpack.c.l.b16 %v351
      %v496 = vunpack.c.l.b16 %v352
      %v497 = vunpack.c.l.b16 %v353
      %v498 = vunpack.c.l.b16 %v354
      %v499 = vunpack.c.l.b16 %v355
      %v500 = vunpack.c.l.b16 %v356
      %v501 = vunpack.c.l.b16 %v357
      %v502 = vunpack.c.l.b16 %v358
      %v503 = vpack.c.b16 %v440, %v439
      %v504 = vpack.c.b16 %v442, %v441
      %v505 = vpack.c.b16 %v444, %v443
      %v506 = vpack.c.b16 %v446, %v445
      %v507 = vpack.c.b16 %v448, %v447
      %v508 = vpack.c.b16 %v450, %v449
      %v509 = vpack.c.b16 %v452, %v451
      %v510 = vpack.c.b16 %v454, %v453
      %v511 = vpack.c.b16 %v456, %v455
      %v512 = vpack.c.b16 %v458, %v457
      %v513 = vpack.c.b16 %v460, %v459
      %v514 = vpack.c.b16 %v462, %v461
      %v515 = vpack.c.b16 %v464, %v463
      %v516 = vpack.c.b16 %v466, %v465
      %v517 = vpack.c.b16 %v468, %v467
      %v518 = vpack.c.b16 %v470, %v469
      %v519 = vpack.c.b16 %v472, %v471
      %v520 = vpack.c.b16 %v474, %v473
      %v521 = vpack.c.b16 %v476, %v475
      %v522 = vpack.c.b16 %v478, %v477
      %v523 = vpack.c.b16 %v480, %v479
      %v524 = vpack.c.b16 %v482, %v481
      %v525 = vpack.c.b16 %v484, %v483
      %v526 = vpack.c.b16 %v486, %v485
      %v527 = vpack.c.b16 %v488, %v487
      %v528 = vpack.c.b16 %v490, %v489
      %v529 = vpack.c.b16 %v492, %v491
      %v530 = vpack.c.b16 %v494, %v493
      %v531 = vpack.c.b16 %v496, %v495
      %v532 = vpack.c.b16 %v498, %v497
      %v533 = vpack.c.b16 %v500, %v499
      %v534 = vpack.c.b16 %v502, %v501
      %v583 = vunpack.c.l.b16 %v359
      %v584 = vunpack.c.l.b16 %v360
      %v585 = vunpack.c.l.b16 %v361
      %v586 = vunpack.c.l.b16 %v362
      %v587 = vunpack.c.l.b16 %v363
      %v588 = vunpack.c.l.b16 %v364
      %v589 = vunpack.c.l.b16 %v365
      %v590 = vunpack.c.l.b16 %v366
      %v591 = vunpack.c.l.b16 %v367
      %v592 = vunpack.c.l.b16 %v368
      %v593 = vunpack.c.l.b16 %v369
      %v594 = vunpack.c.l.b16 %v370
      %v595 = vunpack.c.l.b16 %v371
      %v596 = vunpack.c.l.b16 %v372
      %v597 = vunpack.c.l.b16 %v373
      %v598 = vunpack.c.l.b16 %v374
      %v599 = vpack.c.b16 %v584, %v583
      %v600 = vpack.c.b16 %v586, %v585
      %v601 = vpack.c.b16 %v588, %v587
      %v602 = vpack.c.b16 %v590, %v589
      %v603 = vpack.c.b16 %v592, %v591
      %v604 = vpack.c.b16 %v594, %v593
      %v605 = vpack.c.b16 %v596, %v595
      %v606 = vpack.c.b16 %v598, %v597
      %615 = vmatprep.subr.bf16.mxu0 0
      %616 = vmatpush1.bf16.msra.mxu0 %v599
      %617 = vmatprep.subr.bf16.mxu0 0
      %618 = vmatpush1.bf16.msra.mxu0 %v600
      %619 = vmatprep.subr.bf16.mxu0 0
      %620 = vmatpush1.bf16.msra.mxu0 %v601
      %621 = vmatprep.subr.bf16.mxu0 0
      %622 = vmatpush1.bf16.msra.mxu0 %v602
      %623 = vmatprep.subr.bf16.mxu0 0
      %624 = vmatpush1.bf16.msra.mxu0 %v603
      %625 = vmatprep.subr.bf16.mxu0 0
      %626 = vmatpush1.bf16.msra.mxu0 %v604
      %627 = vmatprep.subr.bf16.mxu0 0
      %628 = vmatpush1.bf16.msra.mxu0 %v605
      %629 = vmatprep.subr.bf16.mxu0 0
      %630 = vmatpush1.bf16.msra.mxu0 %v606
      %631 = vmatprep.subr.bf16.mxu0 0
      %632 = vmatpush1.bf16.msra.mxu0 0
      %633 = vmatprep.subr.bf16.mxu0 0
      %634 = vmatpush1.bf16.msra.mxu0 0
      %635 = vmatprep.subr.bf16.mxu0 0
      %636 = vmatpush1.bf16.msra.mxu0 0
      %637 = vmatprep.subr.bf16.mxu0 0
      %638 = vmatpush1.bf16.msra.mxu0 0
      %639 = vmatprep.subr.bf16.mxu0 0
      %640 = vmatpush1.bf16.msra.mxu0 0
      %641 = vmatprep.subr.bf16.mxu0 0
      %642 = vmatpush1.bf16.msra.mxu0 0
      %643 = vmatprep.subr.bf16.mxu0 0
      %644 = vmatpush1.bf16.msra.mxu0 0
      %645 = vmatprep.subr.bf16.mxu0 0
      %646 = vmatpush1.bf16.msra.mxu0 0
      %647 = vmatprep.mubr.bf16.mxu0 0
      %648 = vmatmul.mubr.bf16.gmra.mrb[0].mxu0 %v503
      %v649 = vpop.f32.mrb[0].mxu0
      %v650 = vadd.f32 0.0, %v649
      %v651 = vpop.f32.mrb[0].mxu0
      %v652 = vpop.f32.mrb[0].mxu0
      %v653 = vadd.f32 0.0, %v652
      %v654 = vpop.f32.mrb[0].mxu0
      %655 = vmatprep.mubr.bf16.mxu0 0
      %656 = vmatmul.mubr.bf16.gmra.mrb[0].mxu0 %v504
      %v657 = vpop.f32.mrb[0].mxu0
      %v658 = vadd.f32 0.0, %v657
      %v659 = vpop.f32.mrb[0].mxu0
      %v660 = vpop.f32.mrb[0].mxu0
      %v661 = vadd.f32 0.0, %v660
      %v662 = vpop.f32.mrb[0].mxu0
      %663 = vmatprep.mubr.bf16.mxu0 0
      %664 = vmatmul.mubr.bf16.gmra.mrb[0].mxu0 %v505
      %v665 = vpop.f32.mrb[0].mxu0
      %v666 = vadd.f32 0.0, %v665
      %v667 = vpop.f32.mrb[0].mxu0
      %v668 = vpop.f32.mrb[0].mxu0
      %v669 = vadd.f32 0.0, %v668
      %v670 = vpop.f32.mrb[0].mxu0
      %671 = vmatprep.mubr.bf16.mxu0 0
      %672 = vmatmul.mubr.bf16.gmra.mrb[0].mxu0 %v506
      %v673 = vpop.f32.mrb[0].mxu0
      %v674 = vadd.f32 0.0, %v673
      %v675 = vpop.f32.mrb[0].mxu0
      %v676 = vpop.f32.mrb[0].mxu0
      %v677 = vadd.f32 0.0, %v676
      %v678 = vpop.f32.mrb[0].mxu0
      %679 = vmatprep.mubr.bf16.mxu0 0
      %680 = vmatmul.mubr.bf16.gmra.mrb[0].mxu0 %v507
      %v681 = vpop.f32.mrb[0].mxu0
      %v682 = vadd.f32 0.0, %v681
      %v683 = vpop.f32.mrb[0].mxu0
      %v684 = vpop.f32.mrb[0].mxu0
      %v685 = vadd.f32 0.0, %v684
      %v686 = vpop.f32.mrb[0].mxu0
      %687 = vmatprep.mubr.bf16.mxu0 0
      %688 = vmatmul.mubr.bf16.gmra.mrb[0].mxu0 %v508
      %v689 = vpop.f32.mrb[0].mxu0
      %v690 = vadd.f32 0.0, %v689
      %v691 = vpop.f32.mrb[0].mxu0
      %v692 = vpop.f32.mrb[0].mxu0
      %v693 = vadd.f32 0.0, %v692
      %v694 = vpop.f32.mrb[0].mxu0
      %695 = vmatprep.mubr.bf16.mxu0 0
      %696 = vmatmul.mubr.bf16.gmra.mrb[0].mxu0 %v509
      %v697 = vpop.f32.mrb[0].mxu0
      %v698 = vadd.f32 0.0, %v697
      %v699 = vpop.f32.mrb[0].mxu0
      %v700 = vpop.f32.mrb[0].mxu0
      %v701 = vadd.f32 0.0, %v700
      %v702 = vpop.f32.mrb[0].mxu0
      %703 = vmatprep.mubr.bf16.mxu0 0
      %704 = vmatmul.mubr.bf16.gmra.mrb[0].mxu0 %v510
      %v705 = vpop.f32.mrb[0].mxu0
      %v706 = vadd.f32 0.0, %v705
      %v707 = vpop.f32.mrb[0].mxu0
      %v708 = vpop.f32.mrb[0].mxu0
      %v709 = vadd.f32 0.0, %v708
      %v710 = vpop.f32.mrb[0].mxu0
      %711 = vmatprep.mubr.bf16.mxu0 0
      %712 = vmatmul.mubr.bf16.gmra.mrb[0].mxu0 %v511
      %v713 = vpop.f32.mrb[0].mxu0
      %v714 = vadd.f32 0.0, %v713
      %v715 = vpop.f32.mrb[0].mxu0
      %v716 = vpop.f32.mrb[0].mxu0
      %v717 = vadd.f32 0.0, %v716
      %v718 = vpop.f32.mrb[0].mxu0
      %719 = vmatprep.mubr.bf16.mxu0 0
      %720 = vmatmul.mubr.bf16.gmra.mrb[0].mxu0 %v512
      %v721 = vpop.f32.mrb[0].mxu0
      %v722 = vadd.f32 0.0, %v721
      %v723 = vpop.f32.mrb[0].mxu0
      %v724 = vpop.f32.mrb[0].mxu0
      %v725 = vadd.f32 0.0, %v724
      %v726 = vpop.f32.mrb[0].mxu0
      %727 = vmatprep.mubr.bf16.mxu0 0
      %728 = vmatmul.mubr.bf16.gmra.mrb[0].mxu0 %v513
      %v729 = vpop.f32.mrb[0].mxu0
      %v730 = vadd.f32 0.0, %v729
      %v731 = vpop.f32.mrb[0].mxu0
      %v732 = vpop.f32.mrb[0].mxu0
      %v733 = vadd.f32 0.0, %v732
      %v734 = vpop.f32.mrb[0].mxu0
      %735 = vmatprep.mubr.bf16.mxu0 0
      %736 = vmatmul.mubr.bf16.gmra.mrb[0].mxu0 %v514
      %v737 = vpop.f32.mrb[0].mxu0
      %v738 = vadd.f32 0.0, %v737
      %v739 = vpop.f32.mrb[0].mxu0
      %v740 = vpop.f32.mrb[0].mxu0
      %v741 = vadd.f32 0.0, %v740
      %v742 = vpop.f32.mrb[0].mxu0
      %743 = vmatprep.mubr.bf16.mxu0 0
      %744 = vmatmul.mubr.bf16.gmra.mrb[0].mxu0 %v515
      %v745 = vpop.f32.mrb[0].mxu0
      %v746 = vadd.f32 0.0, %v745
      %v747 = vpop.f32.mrb[0].mxu0
      %v748 = vpop.f32.mrb[0].mxu0
      %v749 = vadd.f32 0.0, %v748
      %v750 = vpop.f32.mrb[0].mxu0
      %751 = vmatprep.mubr.bf16.mxu0 0
      %752 = vmatmul.mubr.bf16.gmra.mrb[0].mxu0 %v516
      %v753 = vpop.f32.mrb[0].mxu0
      %v754 = vadd.f32 0.0, %v753
      %v755 = vpop.f32.mrb[0].mxu0
      %v756 = vpop.f32.mrb[0].mxu0
      %v757 = vadd.f32 0.0, %v756
      %v758 = vpop.f32.mrb[0].mxu0
      %759 = vmatprep.mubr.bf16.mxu0 0
      %760 = vmatmul.mubr.bf16.gmra.mrb[0].mxu0 %v517
      %v761 = vpop.f32.mrb[0].mxu0
      %v762 = vadd.f32 0.0, %v761
      %v763 = vpop.f32.mrb[0].mxu0
      %v764 = vpop.f32.mrb[0].mxu0
      %v765 = vadd.f32 0.0, %v764
      %v766 = vpop.f32.mrb[0].mxu0
      %767 = vmatprep.mubr.bf16.mxu0 0
      %768 = vmatmul.mubr.bf16.gmra.mrb[0].mxu0 %v518
      %v769 = vpop.f32.mrb[0].mxu0
      %v770 = vadd.f32 0.0, %v769
      %v771 = vpop.f32.mrb[0].mxu0
      %v772 = vpop.f32.mrb[0].mxu0
      %v773 = vadd.f32 0.0, %v772
      %v774 = vpop.f32.mrb[0].mxu0
      %775 = vmatprep.mubr.bf16.mxu0 0
      %776 = vmatmul.mubr.bf16.gmra.mrb[0].mxu0 %v519
      %v777 = vpop.f32.mrb[0].mxu0
      %v778 = vadd.f32 0.0, %v777
      %v779 = vpop.f32.mrb[0].mxu0
      %v780 = vpop.f32.mrb[0].mxu0
      %v781 = vadd.f32 0.0, %v780
      %v782 = vpop.f32.mrb[0].mxu0
      %783 = vmatprep.mubr.bf16.mxu0 0
      %784 = vmatmul.mubr.bf16.gmra.mrb[0].mxu0 %v520
      %v785 = vpop.f32.mrb[0].mxu0
      %v786 = vadd.f32 0.0, %v785
      %v787 = vpop.f32.mrb[0].mxu0
      %v788 = vpop.f32.mrb[0].mxu0
      %v789 = vadd.f32 0.0, %v788
      %v790 = vpop.f32.mrb[0].mxu0
      %791 = vmatprep.mubr.bf16.mxu0 0
      %792 = vmatmul.mubr.bf16.gmra.mrb[0].mxu0 %v521
      %v793 = vpop.f32.mrb[0].mxu0
      %v794 = vadd.f32 0.0, %v793
      %v795 = vpop.f32.mrb[0].mxu0
      %v796 = vpop.f32.mrb[0].mxu0
      %v797 = vadd.f32 0.0, %v796
      %v798 = vpop.f32.mrb[0].mxu0
      %799 = vmatprep.mubr.bf16.mxu0 0
      %800 = vmatmul.mubr.bf16.gmra.mrb[0].mxu0 %v522
      %v801 = vpop.f32.mrb[0].mxu0
      %v802 = vadd.f32 0.0, %v801
      %v803 = vpop.f32.mrb[0].mxu0
      %v804 = vpop.f32.mrb[0].mxu0
      %v805 = vadd.f32 0.0, %v804
      %v806 = vpop.f32.mrb[0].mxu0
      %807 = vmatprep.mubr.bf16.mxu0 0
      %808 = vmatmul.mubr.bf16.gmra.mrb[0].mxu0 %v523
      %v809 = vpop.f32.mrb[0].mxu0
      %v810 = vadd.f32 0.0, %v809
      %v811 = vpop.f32.mrb[0].mxu0
      %v812 = vpop.f32.mrb[0].mxu0
      %v813 = vadd.f32 0.0, %v812
      %v814 = vpop.f32.mrb[0].mxu0
      %815 = vmatprep.mubr.bf16.mxu0 0
      %816 = vmatmul.mubr.bf16.gmra.mrb[0].mxu0 %v524
      %v817 = vpop.f32.mrb[0].mxu0
      %v818 = vadd.f32 0.0, %v817
      %v819 = vpop.f32.mrb[0].mxu0
      %v820 = vpop.f32.mrb[0].mxu0
      %v821 = vadd.f32 0.0, %v820
      %v822 = vpop.f32.mrb[0].mxu0
      %823 = vmatprep.mubr.bf16.mxu0 0
      %824 = vmatmul.mubr.bf16.gmra.mrb[0].mxu0 %v525
      %v825 = vpop.f32.mrb[0].mxu0
      %v826 = vadd.f32 0.0, %v825
      %v827 = vpop.f32.mrb[0].mxu0
      %v828 = vpop.f32.mrb[0].mxu0
      %v829 = vadd.f32 0.0, %v828
      %v830 = vpop.f32.mrb[0].mxu0
      %831 = vmatprep.mubr.bf16.mxu0 0
      %832 = vmatmul.mubr.bf16.gmra.mrb[0].mxu0 %v526
      %v833 = vpop.f32.mrb[0].mxu0
      %v834 = vadd.f32 0.0, %v833
      %v835 = vpop.f32.mrb[0].mxu0
      %v836 = vpop.f32.mrb[0].mxu0
      %v837 = vadd.f32 0.0, %v836
      %v838 = vpop.f32.mrb[0].mxu0
      %839 = vmatprep.mubr.bf16.mxu0 0
      %840 = vmatmul.mubr.bf16.gmra.mrb[0].mxu0 %v527
      %v841 = vpop.f32.mrb[0].mxu0
      %v842 = vadd.f32 0.0, %v841
      %v843 = vpop.f32.mrb[0].mxu0
      %v844 = vpop.f32.mrb[0].mxu0
      %v845 = vadd.f32 0.0, %v844
      %v846 = vpop.f32.mrb[0].mxu0
      %847 = vmatprep.mubr.bf16.mxu0 0
      %848 = vmatmul.mubr.bf16.gmra.mrb[0].mxu0 %v528
      %v849 = vpop.f32.mrb[0].mxu0
      %v850 = vadd.f32 0.0, %v849
      %v851 = vpop.f32.mrb[0].mxu0
      %v852 = vpop.f32.mrb[0].mxu0
      %v853 = vadd.f32 0.0, %v852
      %v854 = vpop.f32.mrb[0].mxu0
      %855 = vmatprep.mubr.bf16.mxu0 0
      %856 = vmatmul.mubr.bf16.gmra.mrb[0].mxu0 %v529
      %v857 = vpop.f32.mrb[0].mxu0
      %v858 = vadd.f32 0.0, %v857
      %v859 = vpop.f32.mrb[0].mxu0
      %v860 = vpop.f32.mrb[0].mxu0
      %v861 = vadd.f32 0.0, %v860
      %v862 = vpop.f32.mrb[0].mxu0
      %863 = vmatprep.mubr.bf16.mxu0 0
      %864 = vmatmul.mubr.bf16.gmra.mrb[0].mxu0 %v530
      %v865 = vpop.f32.mrb[0].mxu0
      %v866 = vadd.f32 0.0, %v865
      %v867 = vpop.f32.mrb[0].mxu0
      %v868 = vpop.f32.mrb[0].mxu0
      %v869 = vadd.f32 0.0, %v868
      %v870 = vpop.f32.mrb[0].mxu0
      %871 = vmatprep.mubr.bf16.mxu0 0
      %872 = vmatmul.mubr.bf16.gmra.mrb[0].mxu0 %v531
      %v873 = vpop.f32.mrb[0].mxu0
      %v874 = vadd.f32 0.0, %v873
      %v875 = vpop.f32.mrb[0].mxu0
      %v876 = vpop.f32.mrb[0].mxu0
      %v877 = vadd.f32 0.0, %v876
      %v878 = vpop.f32.mrb[0].mxu0
      %879 = vmatprep.mubr.bf16.mxu0 0
      %880 = vmatmul.mubr.bf16.gmra.mrb[0].mxu0 %v532
      %v881 = vpop.f32.mrb[0].mxu0
      %v882 = vadd.f32 0.0, %v881
      %v883 = vpop.f32.mrb[0].mxu0
      %v884 = vpop.f32.mrb[0].mxu0
      %v885 = vadd.f32 0.0, %v884
      %v886 = vpop.f32.mrb[0].mxu0
      %887 = vmatprep.mubr.bf16.mxu0 0
      %888 = vmatmul.mubr.bf16.gmra.mrb[0].mxu0 %v533
      %v889 = vpop.f32.mrb[0].mxu0
      %v890 = vadd.f32 0.0, %v889
      %v891 = vpop.f32.mrb[0].mxu0
      %v892 = vpop.f32.mrb[0].mxu0
      %v893 = vadd.f32 0.0, %v892
      %v894 = vpop.f32.mrb[0].mxu0
      %895 = vmatprep.mubr.bf16.mxu0 0
      %896 = vmatmul.mubr.bf16.gmra.mrb[0].mxu0 %v534
      %v897 = vpop.f32.mrb[0].mxu0
      %v898 = vadd.f32 0.0, %v897
      %v899 = vpop.f32.mrb[0].mxu0
      %v900 = vpop.f32.mrb[0].mxu0
      %v901 = vadd.f32 0.0, %v900
      %v902 = vpop.f32.mrb[0].mxu0
      %903 = vdwg.mxu0
      %v904 = vpack.c.bf16 %v653, %v650
      %v905 = vpack.c.bf16 %v661, %v658
      %v906 = vpack.c.bf16 %v669, %v666
      %v907 = vpack.c.bf16 %v677, %v674
      %v908 = vpack.c.bf16 %v685, %v682
      %v909 = vpack.c.bf16 %v693, %v690
      %v910 = vpack.c.bf16 %v701, %v698
      %v911 = vpack.c.bf16 %v709, %v706
      %v912 = vpack.c.bf16 %v717, %v714
      %v913 = vpack.c.bf16 %v725, %v722
      %v914 = vpack.c.bf16 %v733, %v730
      %v915 = vpack.c.bf16 %v741, %v738
      %v916 = vpack.c.bf16 %v749, %v746
      %v917 = vpack.c.bf16 %v757, %v754
      %v918 = vpack.c.bf16 %v765, %v762
      %v919 = vpack.c.bf16 %v773, %v770
      %v920 = vpack.c.bf16 %v781, %v778
      %v921 = vpack.c.bf16 %v789, %v786
      %v922 = vpack.c.bf16 %v797, %v794
      %v923 = vpack.c.bf16 %v805, %v802
      %v924 = vpack.c.bf16 %v813, %v810
      %v925 = vpack.c.bf16 %v821, %v818
      %v926 = vpack.c.bf16 %v829, %v826
      %v927 = vpack.c.bf16 %v837, %v834
      %v928 = vpack.c.bf16 %v845, %v842
      %v929 = vpack.c.bf16 %v853, %v850
      %v930 = vpack.c.bf16 %v861, %v858
      %v931 = vpack.c.bf16 %v869, %v866
      %v932 = vpack.c.bf16 %v877, %v874
      %v933 = vpack.c.bf16 %v885, %v882
      %v934 = vpack.c.bf16 %v893, %v890
      %v935 = vpack.c.bf16 %v901, %v898
      %v968 = vunpack.c.l.b16 %v904
      %v969 = vunpack.c.h.b16 %v904
      %v970 = vunpack.c.l.b16 %v905
      %v971 = vunpack.c.h.b16 %v905
      %v972 = vunpack.c.l.b16 %v906
      %v973 = vunpack.c.h.b16 %v906
      %v974 = vunpack.c.l.b16 %v907
      %v975 = vunpack.c.h.b16 %v907
      %v976 = vunpack.c.l.b16 %v908
      %v977 = vunpack.c.h.b16 %v908
      %v978 = vunpack.c.l.b16 %v909
      %v979 = vunpack.c.h.b16 %v909
      %v980 = vunpack.c.l.b16 %v910
      %v981 = vunpack.c.h.b16 %v910
      %v982 = vunpack.c.l.b16 %v911
      %v983 = vunpack.c.h.b16 %v911
      %v984 = vunpack.c.l.b16 %v912
      %v985 = vunpack.c.h.b16 %v912
      %v986 = vunpack.c.l.b16 %v913
      %v987 = vunpack.c.h.b16 %v913
      %v988 = vunpack.c.l.b16 %v914
      %v989 = vunpack.c.h.b16 %v914
      %v990 = vunpack.c.l.b16 %v915
      %v991 = vunpack.c.h.b16 %v915
      %v992 = vunpack.c.l.b16 %v916
      %v993 = vunpack.c.h.b16 %v916
      %v994 = vunpack.c.l.b16 %v917
      %v995 = vunpack.c.h.b16 %v917
      %v996 = vunpack.c.l.b16 %v918
      %v997 = vunpack.c.h.b16 %v918
      %v998 = vunpack.c.l.b16 %v919
      %v999 = vunpack.c.h.b16 %v919
      %v1000 = vunpack.c.l.b16 %v920
      %v1001 = vunpack.c.h.b16 %v920
      %v1002 = vunpack.c.l.b16 %v921
      %v1003 = vunpack.c.h.b16 %v921
      %v1004 = vunpack.c.l.b16 %v922
      %v1005 = vunpack.c.h.b16 %v922
      %v1006 = vunpack.c.l.b16 %v923
      %v1007 = vunpack.c.h.b16 %v923
      %v1008 = vunpack.c.l.b16 %v924
      %v1009 = vunpack.c.h.b16 %v924
      %v1010 = vunpack.c.l.b16 %v925
      %v1011 = vunpack.c.h.b16 %v925
      %v1012 = vunpack.c.l.b16 %v926
      %v1013 = vunpack.c.h.b16 %v926
      %v1014 = vunpack.c.l.b16 %v927
      %v1015 = vunpack.c.h.b16 %v927
      %v1016 = vunpack.c.l.b16 %v928
      %v1017 = vunpack.c.h.b16 %v928
      %v1018 = vunpack.c.l.b16 %v929
      %v1019 = vunpack.c.h.b16 %v929
      %v1020 = vunpack.c.l.b16 %v930
      %v1021 = vunpack.c.h.b16 %v930
      %v1022 = vunpack.c.l.b16 %v931
      %v1023 = vunpack.c.h.b16 %v931
      %v1024 = vunpack.c.l.b16 %v932
      %v1025 = vunpack.c.h.b16 %v932
      %v1026 = vunpack.c.l.b16 %v933
      %v1027 = vunpack.c.h.b16 %v933
      %v1028 = vunpack.c.l.b16 %v934
      %v1029 = vunpack.c.h.b16 %v934
      %v1030 = vunpack.c.l.b16 %v935
      %v1031 = vunpack.c.h.b16 %v935
      %v1032 = vpack.c.b16 %v968, %v968
      %v1033 = vpack.c.b16 %v969, %v969
      %v1034 = vpack.c.b16 %v970, %v970
      %v1035 = vpack.c.b16 %v971, %v971
      %v1036 = vpack.c.b16 %v972, %v972
      %v1037 = vpack.c.b16 %v973, %v973
      %v1038 = vpack.c.b16 %v974, %v974
      %v1039 = vpack.c.b16 %v975, %v975
      %v1040 = vpack.c.b16 %v976, %v976
      %v1041 = vpack.c.b16 %v977, %v977
      %v1042 = vpack.c.b16 %v978, %v978
      %v1043 = vpack.c.b16 %v979, %v979
      %v1044 = vpack.c.b16 %v980, %v980
      %v1045 = vpack.c.b16 %v981, %v981
      %v1046 = vpack.c.b16 %v982, %v982
      %v1047 = vpack.c.b16 %v983, %v983
      %v1048 = vpack.c.b16 %v984, %v984
      %v1049 = vpack.c.b16 %v985, %v985
      %v1050 = vpack.c.b16 %v986, %v986
      %v1051 = vpack.c.b16 %v987, %v987
      %v1052 = vpack.c.b16 %v988, %v988
      %v1053 = vpack.c.b16 %v989, %v989
      %v1054 = vpack.c.b16 %v990, %v990
      %v1055 = vpack.c.b16 %v991, %v991
      %v1056 = vpack.c.b16 %v992, %v992
      %v1057 = vpack.c.b16 %v993, %v993
      %v1058 = vpack.c.b16 %v994, %v994
      %v1059 = vpack.c.b16 %v995, %v995
      %v1060 = vpack.c.b16 %v996, %v996
      %v1061 = vpack.c.b16 %v997, %v997
      %v1062 = vpack.c.b16 %v998, %v998
      %v1063 = vpack.c.b16 %v999, %v999
      %v1064 = vpack.c.b16 %v1000, %v1000
      %v1065 = vpack.c.b16 %v1001, %v1001
      %v1066 = vpack.c.b16 %v1002, %v1002
      %v1067 = vpack.c.b16 %v1003, %v1003
      %v1068 = vpack.c.b16 %v1004, %v1004
      %v1069 = vpack.c.b16 %v1005, %v1005
      %v1070 = vpack.c.b16 %v1006, %v1006
      %v1071 = vpack.c.b16 %v1007, %v1007
      %v1072 = vpack.c.b16 %v1008, %v1008
      %v1073 = vpack.c.b16 %v1009, %v1009
      %v1074 = vpack.c.b16 %v1010, %v1010
      %v1075 = vpack.c.b16 %v1011, %v1011
      %v1076 = vpack.c.b16 %v1012, %v1012
      %v1077 = vpack.c.b16 %v1013, %v1013
      %v1078 = vpack.c.b16 %v1014, %v1014
      %v1079 = vpack.c.b16 %v1015, %v1015
      %v1080 = vpack.c.b16 %v1016, %v1016
      %v1081 = vpack.c.b16 %v1017, %v1017
      %v1082 = vpack.c.b16 %v1018, %v1018
      %v1083 = vpack.c.b16 %v1019, %v1019
      %v1084 = vpack.c.b16 %v1020, %v1020
      %v1085 = vpack.c.b16 %v1021, %v1021
      %v1086 = vpack.c.b16 %v1022, %v1022
      %v1087 = vpack.c.b16 %v1023, %v1023
      %v1088 = vpack.c.b16 %v1024, %v1024
      %v1089 = vpack.c.b16 %v1025, %v1025
      %v1090 = vpack.c.b16 %v1026, %v1026
      %v1091 = vpack.c.b16 %v1027, %v1027
      %v1092 = vpack.c.b16 %v1028, %v1028
      %v1093 = vpack.c.b16 %v1029, %v1029
      %v1094 = vpack.c.b16 %v1030, %v1030
      %v1095 = vpack.c.b16 %v1031, %v1031
      %1160 = vst [vmem:[%s278] sm:$0xf] %v1032
      %1161 = vst [vmem:[%s278 + $0x4] sm:$0xf] %v1033
      %1162 = vst [vmem:[%s278 + $0x8] sm:$0xf] %v1034
      %1163 = vst [vmem:[%s278 + $0xc] sm:$0xf] %v1035
      %1164 = vst [vmem:[%s278 + $0x10] sm:$0xf] %v1036
      %1165 = vst [vmem:[%s278 + $0x14] sm:$0xf] %v1037
      %1166 = vst [vmem:[%s278 + $0x18] sm:$0xf] %v1038
      %1167 = vst [vmem:[%s278 + $0x1c] sm:$0xf] %v1039
      %1168 = vst [vmem:[%s278 + $0x20] sm:$0xf] %v1040
      %1169 = vst [vmem:[%s278 + $0x24] sm:$0xf] %v1041
      %1170 = vst [vmem:[%s278 + $0x28] sm:$0xf] %v1042
      %1171 = vst [vmem:[%s278 + $0x2c] sm:$0xf] %v1043
      %1172 = vst [vmem:[%s278 + $0x30] sm:$0xf] %v1044
      %1173 = vst [vmem:[%s278 + $0x34] sm:$0xf] %v1045
      %1174 = vst [vmem:[%s278 + $0x38] sm:$0xf] %v1046
      %1175 = vst [vmem:[%s278 + $0x3c] sm:$0xf] %v1047
      %1176 = vst [vmem:[%s278 + $0x40] sm:$0xf] %v1048
      %1177 = vst [vmem:[%s278 + $0x44] sm:$0xf] %v1049
      %1178 = vst [vmem:[%s278 + $0x48] sm:$0xf] %v1050
      %1179 = vst [vmem:[%s278 + $0x4c] sm:$0xf] %v1051
      %1180 = vst [vmem:[%s278 + $0x50] sm:$0xf] %v1052
      %1181 = vst [vmem:[%s278 + $0x54] sm:$0xf] %v1053
      %1182 = vst [vmem:[%s278 + $0x58] sm:$0xf] %v1054
      %1183 = vst [vmem:[%s278 + $0x5c] sm:$0xf] %v1055
      %1184 = vst [vmem:[%s278 + $0x60] sm:$0xf] %v1056
      %1185 = vst [vmem:[%s278 + $0x64] sm:$0xf] %v1057
      %1186 = vst [vmem:[%s278 + $0x68] sm:$0xf] %v1058
      %1187 = vst [vmem:[%s278 + $0x6c] sm:$0xf] %v1059
      %1188 = vst [vmem:[%s278 + $0x70] sm:$0xf] %v1060
      %1189 = vst [vmem:[%s278 + $0x74] sm:$0xf] %v1061
      %1190 = vst [vmem:[%s278 + $0x78] sm:$0xf] %v1062
      %1191 = vst [vmem:[%s278 + $0x7c] sm:$0xf] %v1063
      %1192 = vst [vmem:[%s278 + $0x80] sm:$0xf] %v1064
      %1193 = vst [vmem:[%s278 + $0x84] sm:$0xf] %v1065
      %1194 = vst [vmem:[%s278 + $0x88] sm:$0xf] %v1066
      %1195 = vst [vmem:[%s278 + $0x8c] sm:$0xf] %v1067
      %1196 = vst [vmem:[%s278 + $0x90] sm:$0xf] %v1068
      %1197 = vst [vmem:[%s278 + $0x94] sm:$0xf] %v1069
      %1198 = vst [vmem:[%s278 + $0x98] sm:$0xf] %v1070
      %1199 = vst [vmem:[%s278 + $0x9c] sm:$0xf] %v1071
      %1200 = vst [vmem:[%s278 + $0xa0] sm:$0xf] %v1072
      %1201 = vst [vmem:[%s278 + $0xa4] sm:$0xf] %v1073
      %1202 = vst [vmem:[%s278 + $0xa8] sm:$0xf] %v1074
      %1203 = vst [vmem:[%s278 + $0xac] sm:$0xf] %v1075
      %1204 = vst [vmem:[%s278 + $0xb0] sm:$0xf] %v1076
      %1205 = vst [vmem:[%s278 + $0xb4] sm:$0xf] %v1077
      %1206 = vst [vmem:[%s278 + $0xb8] sm:$0xf] %v1078
      %1207 = vst [vmem:[%s278 + $0xbc] sm:$0xf] %v1079
      %1208 = vst [vmem:[%s278 + $0xc0] sm:$0xf] %v1080
      %1209 = vst [vmem:[%s278 + $0xc4] sm:$0xf] %v1081
      %1210 = vst [vmem:[%s278 + $0xc8] sm:$0xf] %v1082
      %1211 = vst [vmem:[%s278 + $0xcc] sm:$0xf] %v1083
      %1212 = vst [vmem:[%s278 + $0xd0] sm:$0xf] %v1084
      %1213 = vst [vmem:[%s278 + $0xd4] sm:$0xf] %v1085
      %1214 = vst [vmem:[%s278 + $0xd8] sm:$0xf] %v1086
      %1215 = vst [vmem:[%s278 + $0xdc] sm:$0xf] %v1087
      %1216 = vst [vmem:[%s278 + $0xe0] sm:$0xf] %v1088
      %1217 = vst [vmem:[%s278 + $0xe4] sm:$0xf] %v1089
      %1218 = vst [vmem:[%s278 + $0xe8] sm:$0xf] %v1090
      %1219 = vst [vmem:[%s278 + $0xec] sm:$0xf] %v1091
      %1220 = vst [vmem:[%s278 + $0xf0] sm:$0xf] %v1092
      %1221 = vst [vmem:[%s278 + $0xf4] sm:$0xf] %v1093
      %1222 = vst [vmem:[%s278 + $0xf8] sm:$0xf] %v1094
      %1223 = vst [vmem:[%s278 + $0xfc] sm:$0xf] %v1095
      %v1224 = vadd.f32 %v650, %v653
      %v1225 = vadd.f32 %v1224, %v658
      %v1226 = vadd.f32 %v1225, %v661
      %v1227 = vadd.f32 %v1226, %v666
      %v1228 = vadd.f32 %v1227, %v669
      %v1229 = vadd.f32 %v1228, %v674
      %v1230 = vadd.f32 %v1229, %v677
      %v1231 = vadd.f32 %v1230, %v682
      %v1232 = vadd.f32 %v1231, %v685
      %v1233 = vadd.f32 %v1232, %v690
      %v1234 = vadd.f32 %v1233, %v693
      %v1235 = vadd.f32 %v1234, %v698
      %v1236 = vadd.f32 %v1235, %v701
      %v1237 = vadd.f32 %v1236, %v706
      %v1238 = vadd.f32 %v1237, %v709
      %v1239 = vadd.f32 %v1238, %v714
      %v1240 = vadd.f32 %v1239, %v717
      %v1241 = vadd.f32 %v1240, %v722
      %v1242 = vadd.f32 %v1241, %v725
      %v1243 = vadd.f32 %v1242, %v730
      %v1244 = vadd.f32 %v1243, %v733
      %v1245 = vadd.f32 %v1244, %v738
      %v1246 = vadd.f32 %v1245, %v741
      %v1247 = vadd.f32 %v1246, %v746
      %v1248 = vadd.f32 %v1247, %v749
      %v1249 = vadd.f32 %v1248, %v754
      %v1250 = vadd.f32 %v1249, %v757
      %v1251 = vadd.f32 %v1250, %v762
      %v1252 = vadd.f32 %v1251, %v765
      %v1253 = vadd.f32 %v1252, %v770
      %v1254 = vadd.f32 %v1253, %v773
      %v1255 = vadd.f32 %v1254, %v778
      %v1256 = vadd.f32 %v1255, %v781
      %v1257 = vadd.f32 %v1256, %v786
      %v1258 = vadd.f32 %v1257, %v789
      %v1259 = vadd.f32 %v1258, %v794
      %v1260 = vadd.f32 %v1259, %v797
      %v1261 = vadd.f32 %v1260, %v802
      %v1262 = vadd.f32 %v1261, %v805
      %v1263 = vadd.f32 %v1262, %v810
      %v1264 = vadd.f32 %v1263, %v813
      %v1265 = vadd.f32 %v1264, %v818
      %v1266 = vadd.f32 %v1265, %v821
      %v1267 = vadd.f32 %v1266, %v826
      %v1268 = vadd.f32 %v1267, %v829
      %v1269 = vadd.f32 %v1268, %v834
      %v1270 = vadd.f32 %v1269, %v837
      %v1271 = vadd.f32 %v1270, %v842
      %v1272 = vadd.f32 %v1271, %v845
      %v1273 = vadd.f32 %v1272, %v850
      %v1274 = vadd.f32 %v1273, %v853
      %v1275 = vadd.f32 %v1274, %v858
      %v1276 = vadd.f32 %v1275, %v861
      %v1277 = vadd.f32 %v1276, %v866
      %v1278 = vadd.f32 %v1277, %v869
      %v1279 = vadd.f32 %v1278, %v874
      %v1280 = vadd.f32 %v1279, %v877
      %v1281 = vadd.f32 %v1280, %v882
      %v1282 = vadd.f32 %v1281, %v885
      %v1283 = vadd.f32 %v1282, %v890
      %v1284 = vadd.f32 %v1283, %v893
      %v1285 = vadd.f32 %v1284, %v898
      %v1286 = vadd.f32 %v1285, %v901
      %v1287 = vmul.f32 %v650, %v650
      %v1288 = vmul.f32 %v653, %v653
      %v1289 = vmul.f32 %v658, %v658
      %v1290 = vmul.f32 %v661, %v661
      %v1291 = vmul.f32 %v666, %v666
      %v1292 = vmul.f32 %v669, %v669
      %v1293 = vmul.f32 %v674, %v674
      %v1294 = vmul.f32 %v677, %v677
      %v1295 = vmul.f32 %v682, %v682
      %v1296 = vmul.f32 %v685, %v685
      %v1297 = vmul.f32 %v690, %v690
      %v1298 = vmul.f32 %v693, %v693
      %v1299 = vmul.f32 %v698, %v698
      %v1300 = vmul.f32 %v701, %v701
      %v1301 = vmul.f32 %v706, %v706
      %v1302 = vmul.f32 %v709, %v709
      %v1303 = vmul.f32 %v714, %v714
      %v1304 = vmul.f32 %v717, %v717
      %v1305 = vmul.f32 %v722, %v722
      %v1306 = vmul.f32 %v725, %v725
      %v1307 = vmul.f32 %v730, %v730
      %v1308 = vmul.f32 %v733, %v733
      %v1309 = vmul.f32 %v738, %v738
      %v1310 = vmul.f32 %v741, %v741
      %v1311 = vmul.f32 %v746, %v746
      %v1312 = vmul.f32 %v749, %v749
      %v1313 = vmul.f32 %v754, %v754
      %v1314 = vmul.f32 %v757, %v757
      %v1315 = vmul.f32 %v762, %v762
      %v1316 = vmul.f32 %v765, %v765
      %v1317 = vmul.f32 %v770, %v770
      %v1318 = vmul.f32 %v773, %v773
      %v1319 = vmul.f32 %v778, %v778
      %v1320 = vmul.f32 %v781, %v781
      %v1321 = vmul.f32 %v786, %v786
      %v1322 = vmul.f32 %v789, %v789
      %v1323 = vmul.f32 %v794, %v794
      %v1324 = vmul.f32 %v797, %v797
      %v1325 = vmul.f32 %v802, %v802
      %v1326 = vmul.f32 %v805, %v805
      %v1327 = vmul.f32 %v810, %v810
      %v1328 = vmul.f32 %v813, %v813
      %v1329 = vmul.f32 %v818, %v818
      %v1330 = vmul.f32 %v821, %v821
      %v1331 = vmul.f32 %v826, %v826
      %v1332 = vmul.f32 %v829, %v829
      %v1333 = vmul.f32 %v834, %v834
      %v1334 = vmul.f32 %v837, %v837
      %v1335 = vmul.f32 %v842, %v842
      %v1336 = vmul.f32 %v845, %v845
      %v1337 = vmul.f32 %v850, %v850
      %v1338 = vmul.f32 %v853, %v853
      %v1339 = vmul.f32 %v858, %v858
      %v1340 = vmul.f32 %v861, %v861
      %v1341 = vmul.f32 %v866, %v866
      %v1342 = vmul.f32 %v869, %v869
      %v1343 = vmul.f32 %v874, %v874
      %v1344 = vmul.f32 %v877, %v877
      %v1345 = vmul.f32 %v882, %v882
      %v1346 = vmul.f32 %v885, %v885
      %v1347 = vmul.f32 %v890, %v890
      %v1348 = vmul.f32 %v893, %v893
      %v1349 = vmul.f32 %v898, %v898
      %v1350 = vmul.f32 %v901, %v901
      %v1351 = vadd.f32 %v1287, %v1288
      %v1352 = vadd.f32 %v1351, %v1289
      %v1353 = vadd.f32 %v1352, %v1290
      %v1354 = vadd.f32 %v1353, %v1291
      %v1355 = vadd.f32 %v1354, %v1292
      %v1356 = vadd.f32 %v1355, %v1293
      %v1357 = vadd.f32 %v1356, %v1294
      %v1358 = vadd.f32 %v1357, %v1295
      %v1359 = vadd.f32 %v1358, %v1296
      %v1360 = vadd.f32 %v1359, %v1297
      %v1361 = vadd.f32 %v1360, %v1298
      %v1362 = vadd.f32 %v1361, %v1299
      %v1363 = vadd.f32 %v1362, %v1300
      %v1364 = vadd.f32 %v1363, %v1301
      %v1365 = vadd.f32 %v1364, %v1302
      %v1366 = vadd.f32 %v1365, %v1303
      %v1367 = vadd.f32 %v1366, %v1304
      %v1368 = vadd.f32 %v1367, %v1305
      %v1369 = vadd.f32 %v1368, %v1306
      %v1370 = vadd.f32 %v1369, %v1307
      %v1371 = vadd.f32 %v1370, %v1308
      %v1372 = vadd.f32 %v1371, %v1309
      %v1373 = vadd.f32 %v1372, %v1310
      %v1374 = vadd.f32 %v1373, %v1311
      %v1375 = vadd.f32 %v1374, %v1312
      %v1376 = vadd.f32 %v1375, %v1313
      %v1377 = vadd.f32 %v1376, %v1314
      %v1378 = vadd.f32 %v1377, %v1315
      %v1379 = vadd.f32 %v1378, %v1316
      %v1380 = vadd.f32 %v1379, %v1317
      %v1381 = vadd.f32 %v1380, %v1318
      %v1382 = vadd.f32 %v1381, %v1319
      %v1383 = vadd.f32 %v1382, %v1320
      %v1384 = vadd.f32 %v1383, %v1321
      %v1385 = vadd.f32 %v1384, %v1322
      %v1386 = vadd.f32 %v1385, %v1323
      %v1387 = vadd.f32 %v1386, %v1324
      %v1388 = vadd.f32 %v1387, %v1325
      %v1389 = vadd.f32 %v1388, %v1326
      %v1390 = vadd.f32 %v1389, %v1327
      %v1391 = vadd.f32 %v1390, %v1328
      %v1392 = vadd.f32 %v1391, %v1329
      %v1393 = vadd.f32 %v1392, %v1330
      %v1394 = vadd.f32 %v1393, %v1331
      %v1395 = vadd.f32 %v1394, %v1332
      %v1396 = vadd.f32 %v1395, %v1333
      %v1397 = vadd.f32 %v1396, %v1334
      %v1398 = vadd.f32 %v1397, %v1335
      %v1399 = vadd.f32 %v1398, %v1336
      %v1400 = vadd.f32 %v1399, %v1337
      %v1401 = vadd.f32 %v1400, %v1338
      %v1402 = vadd.f32 %v1401, %v1339
      %v1403 = vadd.f32 %v1402, %v1340
      %v1404 = vadd.f32 %v1403, %v1341
      %v1405 = vadd.f32 %v1404, %v1342
      %v1406 = vadd.f32 %v1405, %v1343
      %v1407 = vadd.f32 %v1406, %v1344
      %v1408 = vadd.f32 %v1407, %v1345
      %v1409 = vadd.f32 %v1408, %v1346
      %v1410 = vadd.f32 %v1409, %v1347
      %v1411 = vadd.f32 %v1410, %v1348
      %v1412 = vadd.f32 %v1411, %v1349
      %v1413 = vadd.f32 %v1412, %v1350
      %1414 = vst [vmem:[%s286] sm:$0xff] %v1286
      %1415 = vst [vmem:[%s293] sm:$0xff] %v1413
      %s1416 = smul.u32 64, %s21
      %p1417 = scmp.lt.s32.totalorder %s20, 3
      %s1418 = scalar_select %p1417, %s20, 3
      %p1419 = scmp.lt.s32.totalorder %s1416, 63
      %s1420 = scalar_select %p1419, %s1416, 63
      %s1421 = smul.addr %s1418, 64
      %s1422 = sadd.s32 %s1420, %s1421
      %s1423 = smul.addr %s1422, 4
      %s1424 = scalar_lea.vmem %s2, %s1423
      %p1425 = scmp.lt.s32.totalorder %s20, 3
      %s1426 = scalar_select %p1425, %s20, 3
      %p1427 = scmp.lt.s32.totalorder %s21, 0
      %s1428 = scalar_select %p1427, %s21, 0
      %s1429 = sadd.s32 %s1428, %s1426
      %s1430 = smul.addr %s1429, 8
      %s1431 = scalar_lea.vmem %s3, %s1430
      %p1432 = scmp.lt.s32.totalorder %s20, 3
      %s1433 = scalar_select %p1432, %s20, 3
      %p1434 = scmp.lt.s32.totalorder %s21, 0
      %s1435 = scalar_select %p1434, %s21, 0
      %s1436 = sadd.s32 %s1435, %s1433
      %s1437 = smul.addr %s1436, 8
      %s1438 = scalar_lea.vmem %s4, %s1437
      // Predicated region
      $region29: #{generator_forward.15} parent=27 // pred_check
        %p1439 = pneg %p102
      $region30: #{generator_forward.15} parent=27 // pred_check_branch
        %1441 = sbr.rel (%p1439) target = $region32
      $region31: #{generator_forward.15} parent=27 // pred_region
        %s1442 = smul.u32 64, %s21
      $region32: #{generator_forward.15} parent=27 // pred_fallthru
        _
      // Predicated region
      $region33: #{generator_forward.15} parent=27 // pred_check
        %p1443 = pneg %p130
      $region34: #{generator_forward.15} parent=27 // pred_check_branch
        %1445 = sbr.rel (%p1443) target = $region36
      $region35: #{generator_forward.15} parent=27 // pred_region
        _
      $region36: #{generator_forward.15} parent=27 // pred_fallthru
        _
      // Predicated region
      $region37: #{generator_forward.15} parent=27 // pred_check
        %p1446 = pneg %p158
      $region38: #{generator_forward.15} parent=27 // pred_check_branch
        %1448 = sbr.rel (%p1446) target = $region40
      $region39: #{generator_forward.15} parent=27 // pred_region
        _
      $region40: #{generator_forward.15} parent=27 // pred_fallthru
        _
    $region28: #{generator_forward.15} parent=5 // pred_fallthru
      _
    %p1449 = scmp.le.s32.totalorder 2, %s11
    // Predicated region
    $region41: #{generator_forward.15} parent=5 // pred_check
      %p1450 = pneg %p1449
    $region42: #{generator_forward.15} parent=5 // pred_check_branch
      %1452 = sbr.rel (%p1450) target = $region44
    $region43: #{generator_forward.15} parent=5 // pred_region
      %s1453 = ssub.s32 %s11, 2
      // Predicated region
      $region45: #{generator_forward.15} parent=43 // pred_check
        %p1454 = pneg %p108
      $region46: #{generator_forward.15} parent=43 // pred_check_branch
        %1456 = sbr.rel (%p1454) target = $region48
      $region47: #{generator_forward.15} parent=43 // pred_region
        %s1457 = smul.u32 64, %s23
        %p1458 = scmp.lt.s32.totalorder %s22, 3
        %s1459 = scalar_select %p1458, %s22, 3
        %p1460 = scmp.lt.s32.totalorder %s1457, 63
        %s1461 = scalar_select %p1460, %s1457, 63
        %s1462 = smul.addr %s1459, 64
        %s1463 = sadd.s32 %s1461, %s1462
        %s1464 = smul.addr %s1463, 4
        %s1465 = scalar_lea.vmem %s2, %s1464
      $region48: #{generator_forward.15} parent=43 // pred_fallthru
        _
      // Predicated region
      $region49: #{generator_forward.15} parent=43 // pred_check
        %p1466 = pneg %p136
      $region50: #{generator_forward.15} parent=43 // pred_check_branch
        %1468 = sbr.rel (%p1466) target = $region52
      $region51: #{generator_forward.15} parent=43 // pred_region
        %p1469 = scmp.lt.s32.totalorder %s22, 3
        %s1470 = scalar_select %p1469, %s22, 3
        %p1471 = scmp.lt.s32.totalorder %s23, 0
        %s1472 = scalar_select %p1471, %s23, 0
        %s1473 = sadd.s32 %s1472, %s1470
        %s1474 = smul.addr %s1473, 8
        %s1475 = scalar_lea.vmem %s3, %s1474
      $region52: #{generator_forward.15} parent=43 // pred_fallthru
        _
      // Predicated region
      $region53: #{generator_forward.15} parent=43 // pred_check
        %p1476 = pneg %p164
      $region54: #{generator_forward.15} parent=43 // pred_check_branch
        %1478 = sbr.rel (%p1476) target = $region56
      $region55: #{generator_forward.15} parent=43 // pred_region
        %p1479 = scmp.lt.s32.totalorder %s22, 3
        %s1480 = scalar_select %p1479, %s22, 3
        %p1481 = scmp.lt.s32.totalorder %s23, 0
        %s1482 = scalar_select %p1481, %s23, 0
        %s1483 = sadd.s32 %s1482, %s1480
        %s1484 = smul.addr %s1483, 8
        %s1485 = scalar_lea.vmem %s4, %s1484
      $region56: #{generator_forward.15} parent=43 // pred_fallthru
        _
    $region44: #{generator_forward.15} parent=5 // pred_fallthru
      _
  $region6: #{generator_forward.15} parent=0 // loop_footer
    %s15 = sadd.s32 1, %s11
  $region7: #{generator_forward.15} parent=0 // loop_footer_branch
    %10 = sbr.rel target = $region3
  $region8: #{generator_forward.15} parent=0 // loop_exit
    _

// kernel: generator_forward.16
$region0: #{generator_forward.16}
  #allocation0 [shape = 'u32[]', space=smem, size = 0x4, offset = 0x4, fixed_abs, tag = 'smem constant byte address 0x4 - core index']
  #allocation1 [shape = 'u32[144,128]{1,0:T(1,128)}', space=vmem, size = 0x12000, scoped, tag = 'internal scratch']
  %s0 = inlined_call_operand.vmem [shape: bf16[2048,128], index: 0, kind: input, shape index: {}]
  %s1 = inlined_call_operand.vmem [shape: f32[1,128], index: 1, kind: input, shape index: {}]
  %s2 = inlined_call_operand.vmem [shape: f32[1,128], index: 2, kind: input, shape index: {}]
  %s3 = inlined_call_operand.vmem [shape: bf16[2048,128], index: 3, kind: output, shape index: {}]
  %s4 = sld [smem:[#allocation0]]
  $region45: #{generator_forward.16} parent=0
    _
  %s6 = ssub.s32 1, %s4
  %s7 = scalar_select 0, %s6, %s4
  loop: start=0, step=1, limit=4
  $region2: #{generator_forward.16} parent=0 // loop_pre_header
    _
  $region3: #{generator_forward.16} parent=0 // loop_header
    %s9 = sphi 0, %s13
    %p10 = scmp.ge.s32.totalorder %s9, 4
    %s19 = sphi 0, %s21
    %s22 = sphi 0, %s19
    %s23 = sphi 0, %s22
    %s39 = sphi 0, %s23
    %s43 = sphi 0, %s43
    %s45 = sphi 0, %s43
    %s46 = sphi 0, %s45
    %s60 = sphi 0, %s46
    %s64 = sphi 0, %s64
    %s66 = sphi 0, %s64
    %s67 = sphi 0, %s66
    %s81 = sphi 0, %s67
    %s87 = sphi 0, %s89
    %s90 = sphi 0, %s87
    %s91 = sphi 0, %s90
    %s107 = sphi 0, %s91
  $region4: #{generator_forward.16} parent=0 // loop_header_branch
    %12 = sbr.rel (%p10) target = $region8
  $region5: #{generator_forward.16} parent=0 // loop_body
    %s14 = ssub.s32 %s9, 1
    %s15 = ssub.s32 %s9, 2
    %s16 = sadd.s32 %s9, 1
    %s17 = ssub.s32 %s9, %s16
    %p18 = scmp.eq.s32.totalorder %s17, 0
    %s20 = sadd.s32 %s19, 1
    %s21 = scalar_select %p18, %s19, %s20
    %p24 = pneg %p18
    %p25 = scmp.eq.s32.totalorder %s9, 1
    %p26 = por %p24, %p25
    %p27 = scmp.ne.s32.totalorder %s19, %s22
    %p28 = scmp.eq.s32.totalorder %s9, 0
    %p29 = por %p27, %p28
    %p30 = scmp.ne.s32.totalorder %s19, %s22
    %p31 = scmp.eq.s32.totalorder %s14, 1
    %p32 = por %p30, %p31
    %p33 = scmp.ne.s32.totalorder %s22, %s23
    %p34 = scmp.eq.s32.totalorder %s14, 0
    %p35 = por %p33, %p34
    %p36 = scmp.ne.s32.totalorder %s22, %s23
    %p37 = scmp.eq.s32.totalorder %s15, 1
    %p38 = por %p36, %p37
    %p40 = scmp.ne.s32.totalorder %s23, %s39
    %p41 = scmp.eq.s32.totalorder %s15, 0
    %p42 = por %p40, %p41
    %s44 = sadd.s32 %s43, 1
    %p47 = scmp.eq.s32.totalorder %s9, 1
    %p48 = scmp.ne.s32.totalorder %s43, %s45
    %p49 = scmp.eq.s32.totalorder %s9, 0
    %p50 = por %p48, %p49
    %p51 = scmp.ne.s32.totalorder %s43, %s45
    %p52 = scmp.eq.s32.totalorder %s14, 1
    %p53 = por %p51, %p52
    %p54 = scmp.ne.s32.totalorder %s45, %s46
    %p55 = scmp.eq.s32.totalorder %s14, 0
    %p56 = por %p54, %p55
    %p57 = scmp.ne.s32.totalorder %s45, %s46
    %p58 = scmp.eq.s32.totalorder %s15, 1
    %p59 = por %p57, %p58
    %p61 = scmp.ne.s32.totalorder %s46, %s60
    %p62 = scmp.eq.s32.totalorder %s15, 0
    %p63 = por %p61, %p62
    %s65 = sadd.s32 %s64, 1
    %p68 = scmp.eq.s32.totalorder %s9, 1
    %p69 = scmp.ne.s32.totalorder %s64, %s66
    %p70 = scmp.eq.s32.totalorder %s9, 0
    %p71 = por %p69, %p70
    %p72 = scmp.ne.s32.totalorder %s64, %s66
    %p73 = scmp.eq.s32.totalorder %s14, 1
    %p74 = por %p72, %p73
    %p75 = scmp.ne.s32.totalorder %s66, %s67
    %p76 = scmp.eq.s32.totalorder %s14, 0
    %p77 = por %p75, %p76
    %p78 = scmp.ne.s32.totalorder %s66, %s67
    %p79 = scmp.eq.s32.totalorder %s15, 1
    %p80 = por %p78, %p79
    %p82 = scmp.ne.s32.totalorder %s67, %s81
    %p83 = scmp.eq.s32.totalorder %s15, 0
    %p84 = por %p82, %p83
    %s85 = ssub.s32 %s9, %s16
    %p86 = scmp.eq.s32.totalorder %s85, 0
    %s88 = sadd.s32 %s87, 1
    %s89 = scalar_select %p86, %s87, %s88
    %p92 = pneg %p86
    %p93 = scmp.eq.s32.totalorder %s9, 1
    %p94 = por %p92, %p93
    %p95 = scmp.ne.s32.totalorder %s87, %s90
    %p96 = scmp.eq.s32.totalorder %s9, 0
    %p97 = por %p95, %p96
    %p98 = scmp.ne.s32.totalorder %s87, %s90
    %p99 = scmp.eq.s32.totalorder %s14, 1
    %p100 = por %p98, %p99
    %p101 = scmp.ne.s32.totalorder %s90, %s91
    %p102 = scmp.eq.s32.totalorder %s14, 0
    %p103 = por %p101, %p102
    %p104 = scmp.ne.s32.totalorder %s90, %s91
    %p105 = scmp.eq.s32.totalorder %s15, 1
    %p106 = por %p104, %p105
    %p108 = scmp.ne.s32.totalorder %s91, %s107
    %p109 = scmp.eq.s32.totalorder %s15, 0
    %p110 = por %p108, %p109
    %p111 = scmp.le.s32.totalorder 1, %s9
    %p112 = scmp.lt.s32.totalorder %s9, 3
    %p113 = pnand %p111, %p112
    %p114 = pneg %p113
    // Predicated region
    $region9: #{generator_forward.16} parent=5 // pred_check
      _
    $region10: #{generator_forward.16} parent=5 // pred_check_branch
      %116 = sbr.rel (%p113) target = $region12
    $region11: #{generator_forward.16} parent=5 // pred_region
      %s117 = ssub.s32 %s9, 1
      // Predicated region
      $region13: #{generator_forward.16} parent=11 // pred_check
        %p118 = pneg %p56
      $region14: #{generator_forward.16} parent=11 // pred_check_branch
        %120 = sbr.rel (%p118) target = $region16
      $region15: #{generator_forward.16} parent=11 // pred_region
        _
      $region16: #{generator_forward.16} parent=11 // pred_fallthru
        _
      // Predicated region
      $region17: #{generator_forward.16} parent=11 // pred_check
        %p121 = pneg %p77
      $region18: #{generator_forward.16} parent=11 // pred_check_branch
        %123 = sbr.rel (%p121) target = $region20
      $region19: #{generator_forward.16} parent=11 // pred_region
        _
      $region20: #{generator_forward.16} parent=11 // pred_fallthru
        _
    $region12: #{generator_forward.16} parent=5 // pred_fallthru
      _
    %p124 = scmp.lt.s32.totalorder %s9, 2
    // Predicated region
    $region21: #{generator_forward.16} parent=5 // pred_check
      %p125 = pneg %p124
    $region22: #{generator_forward.16} parent=5 // pred_check_branch
      %127 = sbr.rel (%p125) target = $region24
    $region23: #{generator_forward.16} parent=5 // pred_region
      // Predicated region
      $region25: #{generator_forward.16} parent=23 // pred_check
        %p128 = pneg %p29
      $region26: #{generator_forward.16} parent=23 // pred_check_branch
        %130 = sbr.rel (%p128) target = $region28
      $region27: #{generator_forward.16} parent=23 // pred_region
        %s131 = smul.u32 128, %s9
        %p132 = scmp.lt.s32.totalorder %s131, 255
        %s133 = scalar_select %p132, %s131, 255
        %s134 = smul.addr %s133, 4
        %s135 = scalar_lea.vmem %s0, %s134
        %s136 = smul.u32 128, %s9
      $region28: #{generator_forward.16} parent=23 // pred_fallthru
        _
    $region24: #{generator_forward.16} parent=5 // pred_fallthru
      _
    %p137 = scmp.le.s32.totalorder 1, %s9
    %p138 = scmp.lt.s32.totalorder %s9, 3
    %p139 = pnand %p137, %p138
    %p140 = pneg %p139
    // Predicated region
    $region29: #{generator_forward.16} parent=5 // pred_check
      _
    $region30: #{generator_forward.16} parent=5 // pred_check_branch
      %142 = sbr.rel (%p139) target = $region32
    $region31: #{generator_forward.16} parent=5 // pred_region
      %s143 = ssub.s32 %s9, 1
      %s144 = smul.u32 128, %s14
      %p145 = scmp.lt.s32.totalorder %s144, 255
      %s146 = scalar_select %p145, %s144, 255
      %s147 = smul.addr %s146, 4
      %s148 = scalar_lea.vmem %s0, %s147
      %p149 = pneg %p35
      %p150 = pneg %p32
      %p151 = pneg %p56
      %p152 = pneg %p53
      %p153 = pneg %p77
      %p154 = pneg %p74
      %p155 = pneg %p103
      %p156 = pneg %p100
      %s157 = smul.u32 128, %s14
      %p158 = scmp.lt.s32.totalorder %s157, 255
      %s159 = scalar_select %p158, %s157, 255
      %s160 = smul.addr %s159, 4
      %s161 = scalar_lea.vmem %s3, %s160
      %s162 = smul.u32 128, %s14
      %p163 = scmp.lt.s32.totalorder %s162, 255
      %s164 = scalar_select %p163, %s162, 255
      %s165 = smul.addr %s164, 4
      %s166 = scalar_lea.vmem %s0, %s165
      %s167 = smul.u32 128, %s14
      %s168 = smul.u32 128, %s14
      %p169 = scmp.lt.s32.totalorder %s168, 255
      %s170 = scalar_select %p169, %s168, 255
      %s171 = smul.addr %s170, 4
      %s172 = scalar_lea.vmem %s3, %s171
      %s173 = smul.u32 128, %s14
      %v174 = vld [vmem:[%s166] sm:$0xf]
      %v175 = vld [vmem:[%s166 + $0x4] sm:$0xf]
      %v176 = vld [vmem:[%s166 + $0x8] sm:$0xf]
      %v177 = vld [vmem:[%s166 + $0xc] sm:$0xf]
      %v178 = vld [vmem:[%s166 + $0x10] sm:$0xf]
      %v179 = vld [vmem:[%s166 + $0x14] sm:$0xf]
      %v180 = vld [vmem:[%s166 + $0x18] sm:$0xf]
      %v181 = vld [vmem:[%s166 + $0x1c] sm:$0xf]
      %v182 = vld [vmem:[%s166 + $0x20] sm:$0xf]
      %v183 = vld [vmem:[%s166 + $0x24] sm:$0xf]
      %v184 = vld [vmem:[%s166 + $0x28] sm:$0xf]
      %v185 = vld [vmem:[%s166 + $0x2c] sm:$0xf]
      %v186 = vld [vmem:[%s166 + $0x30] sm:$0xf]
      %v187 = vld [vmem:[%s166 + $0x34] sm:$0xf]
      %v188 = vld [vmem:[%s166 + $0x38] sm:$0xf]
      %v189 = vld [vmem:[%s166 + $0x3c] sm:$0xf]
      %v190 = vld [vmem:[%s166 + $0x40] sm:$0xf]
      %v191 = vld [vmem:[%s166 + $0x44] sm:$0xf]
      %v192 = vld [vmem:[%s166 + $0x48] sm:$0xf]
      %v193 = vld [vmem:[%s166 + $0x4c] sm:$0xf]
      %v194 = vld [vmem:[%s166 + $0x50] sm:$0xf]
      %v195 = vld [vmem:[%s166 + $0x54] sm:$0xf]
      %v196 = vld [vmem:[%s166 + $0x58] sm:$0xf]
      %v197 = vld [vmem:[%s166 + $0x5c] sm:$0xf]
      %v198 = vld [vmem:[%s166 + $0x60] sm:$0xf]
      %v199 = vld [vmem:[%s166 + $0x64] sm:$0xf]
      %v200 = vld [vmem:[%s166 + $0x68] sm:$0xf]
      %v201 = vld [vmem:[%s166 + $0x6c] sm:$0xf]
      %v202 = vld [vmem:[%s166 + $0x70] sm:$0xf]
      %v203 = vld [vmem:[%s166 + $0x74] sm:$0xf]
      %v204 = vld [vmem:[%s166 + $0x78] sm:$0xf]
      %v205 = vld [vmem:[%s166 + $0x7c] sm:$0xf]
      %v206 = vld [vmem:[%s166 + $0x80] sm:$0xf]
      %v207 = vld [vmem:[%s166 + $0x84] sm:$0xf]
      %v208 = vld [vmem:[%s166 + $0x88] sm:$0xf]
      %v209 = vld [vmem:[%s166 + $0x8c] sm:$0xf]
      %v210 = vld [vmem:[%s166 + $0x90] sm:$0xf]
      %v211 = vld [vmem:[%s166 + $0x94] sm:$0xf]
      %v212 = vld [vmem:[%s166 + $0x98] sm:$0xf]
      %v213 = vld [vmem:[%s166 + $0x9c] sm:$0xf]
      %v214 = vld [vmem:[%s166 + $0xa0] sm:$0xf]
      %v215 = vld [vmem:[%s166 + $0xa4] sm:$0xf]
      %v216 = vld [vmem:[%s166 + $0xa8] sm:$0xf]
      %v217 = vld [vmem:[%s166 + $0xac] sm:$0xf]
      %v218 = vld [vmem:[%s166 + $0xb0] sm:$0xf]
      %v219 = vld [vmem:[%s166 + $0xb4] sm:$0xf]
      %v220 = vld [vmem:[%s166 + $0xb8] sm:$0xf]
      %v221 = vld [vmem:[%s166 + $0xbc] sm:$0xf]
      %v222 = vld [vmem:[%s166 + $0xc0] sm:$0xf]
      %v223 = vld [vmem:[%s166 + $0xc4] sm:$0xf]
      %v224 = vld [vmem:[%s166 + $0xc8] sm:$0xf]
      %v225 = vld [vmem:[%s166 + $0xcc] sm:$0xf]
      %v226 = vld [vmem:[%s166 + $0xd0] sm:$0xf]
      %v227 = vld [vmem:[%s166 + $0xd4] sm:$0xf]
      %v228 = vld [vmem:[%s166 + $0xd8] sm:$0xf]
      %v229 = vld [vmem:[%s166 + $0xdc] sm:$0xf]
      %v230 = vld [vmem:[%s166 + $0xe0] sm:$0xf]
      %v231 = vld [vmem:[%s166 + $0xe4] sm:$0xf]
      %v232 = vld [vmem:[%s166 + $0xe8] sm:$0xf]
      %v233 = vld [vmem:[%s166 + $0xec] sm:$0xf]
      %v234 = vld [vmem:[%s166 + $0xf0] sm:$0xf]
      %v235 = vld [vmem:[%s166 + $0xf4] sm:$0xf]
      %v236 = vld [vmem:[%s166 + $0xf8] sm:$0xf]
      %v237 = vld [vmem:[%s166 + $0xfc] sm:$0xf]
      %v238 = vld [vmem:[%s166 + $0x100] sm:$0xf]
      %v239 = vld [vmem:[%s166 + $0x104] sm:$0xf]
      %v240 = vld [vmem:[%s166 + $0x108] sm:$0xf]
      %v241 = vld [vmem:[%s166 + $0x10c] sm:$0xf]
      %v242 = vld [vmem:[%s166 + $0x110] sm:$0xf]
      %v243 = vld [vmem:[%s166 + $0x114] sm:$0xf]
      %v244 = vld [vmem:[%s166 + $0x118] sm:$0xf]
      %v245 = vld [vmem:[%s166 + $0x11c] sm:$0xf]
      %v246 = vld [vmem:[%s166 + $0x120] sm:$0xf]
      %v247 = vld [vmem:[%s166 + $0x124] sm:$0xf]
      %v248 = vld [vmem:[%s166 + $0x128] sm:$0xf]
      %v249 = vld [vmem:[%s166 + $0x12c] sm:$0xf]
      %v250 = vld [vmem:[%s166 + $0x130] sm:$0xf]
      %v251 = vld [vmem:[%s166 + $0x134] sm:$0xf]
      %v252 = vld [vmem:[%s166 + $0x138] sm:$0xf]
      %v253 = vld [vmem:[%s166 + $0x13c] sm:$0xf]
      %v254 = vld [vmem:[%s166 + $0x140] sm:$0xf]
      %v255 = vld [vmem:[%s166 + $0x144] sm:$0xf]
      %v256 = vld [vmem:[%s166 + $0x148] sm:$0xf]
      %v257 = vld [vmem:[%s166 + $0x14c] sm:$0xf]
      %v258 = vld [vmem:[%s166 + $0x150] sm:$0xf]
      %v259 = vld [vmem:[%s166 + $0x154] sm:$0xf]
      %v260 = vld [vmem:[%s166 + $0x158] sm:$0xf]
      %v261 = vld [vmem:[%s166 + $0x15c] sm:$0xf]
      %v262 = vld [vmem:[%s166 + $0x160] sm:$0xf]
      %v263 = vld [vmem:[%s166 + $0x164] sm:$0xf]
      %v264 = vld [vmem:[%s166 + $0x168] sm:$0xf]
      %v265 = vld [vmem:[%s166 + $0x16c] sm:$0xf]
      %v266 = vld [vmem:[%s166 + $0x170] sm:$0xf]
      %v267 = vld [vmem:[%s166 + $0x174] sm:$0xf]
      %v268 = vld [vmem:[%s166 + $0x178] sm:$0xf]
      %v269 = vld [vmem:[%s166 + $0x17c] sm:$0xf]
      %v270 = vld [vmem:[%s166 + $0x180] sm:$0xf]
      %v271 = vld [vmem:[%s166 + $0x184] sm:$0xf]
      %v272 = vld [vmem:[%s166 + $0x188] sm:$0xf]
      %v273 = vld [vmem:[%s166 + $0x18c] sm:$0xf]
      %v274 = vld [vmem:[%s166 + $0x190] sm:$0xf]
      %v275 = vld [vmem:[%s166 + $0x194] sm:$0xf]
      %v276 = vld [vmem:[%s166 + $0x198] sm:$0xf]
      %v277 = vld [vmem:[%s166 + $0x19c] sm:$0xf]
      %v278 = vld [vmem:[%s166 + $0x1a0] sm:$0xf]
      %v279 = vld [vmem:[%s166 + $0x1a4] sm:$0xf]
      %v280 = vld [vmem:[%s166 + $0x1a8] sm:$0xf]
      %v281 = vld [vmem:[%s166 + $0x1ac] sm:$0xf]
      %v282 = vld [vmem:[%s166 + $0x1b0] sm:$0xf]
      %v283 = vld [vmem:[%s166 + $0x1b4] sm:$0xf]
      %v284 = vld [vmem:[%s166 + $0x1b8] sm:$0xf]
      %v285 = vld [vmem:[%s166 + $0x1bc] sm:$0xf]
      %v286 = vld [vmem:[%s166 + $0x1c0] sm:$0xf]
      %v287 = vld [vmem:[%s166 + $0x1c4] sm:$0xf]
      %v288 = vld [vmem:[%s166 + $0x1c8] sm:$0xf]
      %v289 = vld [vmem:[%s166 + $0x1cc] sm:$0xf]
      %v290 = vld [vmem:[%s166 + $0x1d0] sm:$0xf]
      %v291 = vld [vmem:[%s166 + $0x1d4] sm:$0xf]
      %v292 = vld [vmem:[%s166 + $0x1d8] sm:$0xf]
      %v293 = vld [vmem:[%s166 + $0x1dc] sm:$0xf]
      %v294 = vld [vmem:[%s166 + $0x1e0] sm:$0xf]
      %v295 = vld [vmem:[%s166 + $0x1e4] sm:$0xf]
      %v296 = vld [vmem:[%s166 + $0x1e8] sm:$0xf]
      %v297 = vld [vmem:[%s166 + $0x1ec] sm:$0xf]
      %v298 = vld [vmem:[%s166 + $0x1f0] sm:$0xf]
      %v299 = vld [vmem:[%s166 + $0x1f4] sm:$0xf]
      %v300 = vld [vmem:[%s166 + $0x1f8] sm:$0xf]
      %v301 = vld [vmem:[%s166 + $0x1fc] sm:$0xf]
      %v302 = vunpack.c.l.bf16 %v174
      %v303 = vunpack.c.l.bf16 %v175
      %v304 = vunpack.c.l.bf16 %v176
      %v305 = vunpack.c.l.bf16 %v177
      %v306 = vunpack.c.l.bf16 %v178
      %v307 = vunpack.c.l.bf16 %v179
      %v308 = vunpack.c.l.bf16 %v180
      %v309 = vunpack.c.l.bf16 %v181
      %v310 = vunpack.c.l.bf16 %v182
      %v311 = vunpack.c.l.bf16 %v183
      %v312 = vunpack.c.l.bf16 %v184
      %v313 = vunpack.c.l.bf16 %v185
      %v314 = vunpack.c.l.bf16 %v186
      %v315 = vunpack.c.l.bf16 %v187
      %v316 = vunpack.c.l.bf16 %v188
      %v317 = vunpack.c.l.bf16 %v189
      %v318 = vunpack.c.l.bf16 %v190
      %v319 = vunpack.c.l.bf16 %v191
      %v320 = vunpack.c.l.bf16 %v192
      %v321 = vunpack.c.l.bf16 %v193
      %v322 = vunpack.c.l.bf16 %v194
      %v323 = vunpack.c.l.bf16 %v195
      %v324 = vunpack.c.l.bf16 %v196
      %v325 = vunpack.c.l.bf16 %v197
      %v326 = vunpack.c.l.bf16 %v198
      %v327 = vunpack.c.l.bf16 %v199
      %v328 = vunpack.c.l.bf16 %v200
      %v329 = vunpack.c.l.bf16 %v201
      %v330 = vunpack.c.l.bf16 %v202
      %v331 = vunpack.c.l.bf16 %v203
      %v332 = vunpack.c.l.bf16 %v204
      %v333 = vunpack.c.l.bf16 %v205
      %v334 = vunpack.c.l.bf16 %v206
      %v335 = vunpack.c.l.bf16 %v207
      %v336 = vunpack.c.l.bf16 %v208
      %v337 = vunpack.c.l.bf16 %v209
      %v338 = vunpack.c.l.bf16 %v210
      %v339 = vunpack.c.l.bf16 %v211
      %v340 = vunpack.c.l.bf16 %v212
      %v341 = vunpack.c.l.bf16 %v213
      %v342 = vunpack.c.l.bf16 %v214
      %v343 = vunpack.c.l.bf16 %v215
      %v344 = vunpack.c.l.bf16 %v216
      %v345 = vunpack.c.l.bf16 %v217
      %v346 = vunpack.c.l.bf16 %v218
      %v347 = vunpack.c.l.bf16 %v219
      %v348 = vunpack.c.l.bf16 %v220
      %v349 = vunpack.c.l.bf16 %v221
      %v350 = vunpack.c.l.bf16 %v222
      %v351 = vunpack.c.l.bf16 %v223
      %v352 = vunpack.c.l.bf16 %v224
      %v353 = vunpack.c.l.bf16 %v225
      %v354 = vunpack.c.l.bf16 %v226
      %v355 = vunpack.c.l.bf16 %v227
      %v356 = vunpack.c.l.bf16 %v228
      %v357 = vunpack.c.l.bf16 %v229
      %v358 = vunpack.c.l.bf16 %v230
      %v359 = vunpack.c.l.bf16 %v231
      %v360 = vunpack.c.l.bf16 %v232
      %v361 = vunpack.c.l.bf16 %v233
      %v362 = vunpack.c.l.bf16 %v234
      %v363 = vunpack.c.l.bf16 %v235
      %v364 = vunpack.c.l.bf16 %v236
      %v365 = vunpack.c.l.bf16 %v237
      %v366 = vunpack.c.l.bf16 %v238
      %v367 = vunpack.c.l.bf16 %v239
      %v368 = vunpack.c.l.bf16 %v240
      %v369 = vunpack.c.l.bf16 %v241
      %v370 = vunpack.c.l.bf16 %v242
      %v371 = vunpack.c.l.bf16 %v243
      %v372 = vunpack.c.l.bf16 %v244
      %v373 = vunpack.c.l.bf16 %v245
      %v374 = vunpack.c.l.bf16 %v246
      %v375 = vunpack.c.l.bf16 %v247
      %v376 = vunpack.c.l.bf16 %v248
      %v377 = vunpack.c.l.bf16 %v249
      %v378 = vunpack.c.l.bf16 %v250
      %v379 = vunpack.c.l.bf16 %v251
      %v380 = vunpack.c.l.bf16 %v252
      %v381 = vunpack.c.l.bf16 %v253
      %v382 = vunpack.c.l.bf16 %v254
      %v383 = vunpack.c.l.bf16 %v255
      %v384 = vunpack.c.l.bf16 %v256
      %v385 = vunpack.c.l.bf16 %v257
      %v386 = vunpack.c.l.bf16 %v258
      %v387 = vunpack.c.l.bf16 %v259
      %v388 = vunpack.c.l.bf16 %v260
      %v389 = vunpack.c.l.bf16 %v261
      %v390 = vunpack.c.l.bf16 %v262
      %v391 = vunpack.c.l.bf16 %v263
      %v392 = vunpack.c.l.bf16 %v264
      %v393 = vunpack.c.l.bf16 %v265
      %v394 = vunpack.c.l.bf16 %v266
      %v395 = vunpack.c.l.bf16 %v267
      %v396 = vunpack.c.l.bf16 %v268
      %v397 = vunpack.c.l.bf16 %v269
      %v398 = vunpack.c.l.bf16 %v270
      %v399 = vunpack.c.l.bf16 %v271
      %v400 = vunpack.c.l.bf16 %v272
      %v401 = vunpack.c.l.bf16 %v273
      %v402 = vunpack.c.l.bf16 %v274
      %v403 = vunpack.c.l.bf16 %v275
      %v404 = vunpack.c.l.bf16 %v276
      %v405 = vunpack.c.l.bf16 %v277
      %v406 = vunpack.c.l.bf16 %v278
      %v407 = vunpack.c.l.bf16 %v279
      %v408 = vunpack.c.l.bf16 %v280
      %v409 = vunpack.c.l.bf16 %v281
      %v410 = vunpack.c.l.bf16 %v282
      %v411 = vunpack.c.l.bf16 %v283
      %v412 = vunpack.c.l.bf16 %v284
      %v413 = vunpack.c.l.bf16 %v285
      %v414 = vunpack.c.l.bf16 %v286
      %v415 = vunpack.c.l.bf16 %v287
      %v416 = vunpack.c.l.bf16 %v288
      %v417 = vunpack.c.l.bf16 %v289
      %v418 = vunpack.c.l.bf16 %v290
      %v419 = vunpack.c.l.bf16 %v291
      %v420 = vunpack.c.l.bf16 %v292
      %v421 = vunpack.c.l.bf16 %v293
      %v422 = vunpack.c.l.bf16 %v294
      %v423 = vunpack.c.l.bf16 %v295
      %v424 = vunpack.c.l.bf16 %v296
      %v425 = vunpack.c.l.bf16 %v297
      %v426 = vunpack.c.l.bf16 %v298
      %v427 = vunpack.c.l.bf16 %v299
      %v428 = vunpack.c.l.bf16 %v300
      %v429 = vunpack.c.l.bf16 %v301
      %v430 = vld [vmem:[%s1] sm:$0x1]
      %v432 = vlaneseq
      %v433 = vshrl.u32 %v432, 7
      %v434 = vsub.s32 0, %v433
      %v435 = vrot.slane %v430, %v434
      %v437 = vmul.f32 %v302, %v435
      %v438 = vmul.f32 %v303, %v435
      %v439 = vmul.f32 %v304, %v435
      %v440 = vmul.f32 %v305, %v435
      %v441 = vmul.f32 %v306, %v435
      %v442 = vmul.f32 %v307, %v435
      %v443 = vmul.f32 %v308, %v435
      %v444 = vmul.f32 %v309, %v435
      %v445 = vmul.f32 %v310, %v435
      %v446 = vmul.f32 %v311, %v435
      %v447 = vmul.f32 %v312, %v435
      %v448 = vmul.f32 %v313, %v435
      %v449 = vmul.f32 %v314, %v435
      %v450 = vmul.f32 %v315, %v435
      %v451 = vmul.f32 %v316, %v435
      %v452 = vmul.f32 %v317, %v435
      %v453 = vmul.f32 %v318, %v435
      %v454 = vmul.f32 %v319, %v435
      %v455 = vmul.f32 %v320, %v435
      %v456 = vmul.f32 %v321, %v435
      %v457 = vmul.f32 %v322, %v435
      %v458 = vmul.f32 %v323, %v435
      %v459 = vmul.f32 %v324, %v435
      %v460 = vmul.f32 %v325, %v435
      %v461 = vmul.f32 %v326, %v435
      %v462 = vmul.f32 %v327, %v435
      %v463 = vmul.f32 %v328, %v435
      %v464 = vmul.f32 %v329, %v435
      %v465 = vmul.f32 %v330, %v435
      %v466 = vmul.f32 %v331, %v435
      %v467 = vmul.f32 %v332, %v435
      %v468 = vmul.f32 %v333, %v435
      %v469 = vmul.f32 %v334, %v435
      %v470 = vmul.f32 %v335, %v435
      %v471 = vmul.f32 %v336, %v435
      %v472 = vmul.f32 %v337, %v435
      %v473 = vmul.f32 %v338, %v435
      %v474 = vmul.f32 %v339, %v435
      %v475 = vmul.f32 %v340, %v435
      %v476 = vmul.f32 %v341, %v435
      %v477 = vmul.f32 %v342, %v435
      %v478 = vmul.f32 %v343, %v435
      %v479 = vmul.f32 %v344, %v435
      %v480 = vmul.f32 %v345, %v435
      %v481 = vmul.f32 %v346, %v435
      %v482 = vmul.f32 %v347, %v435
      %v483 = vmul.f32 %v348, %v435
      %v484 = vmul.f32 %v349, %v435
      %v485 = vmul.f32 %v350, %v435
      %v486 = vmul.f32 %v351, %v435
      %v487 = vmul.f32 %v352, %v435
      %v488 = vmul.f32 %v353, %v435
      %v489 = vmul.f32 %v354, %v435
      %v490 = vmul.f32 %v355, %v435
      %v491 = vmul.f32 %v356, %v435
      %v492 = vmul.f32 %v357, %v435
      %v493 = vmul.f32 %v358, %v435
      %v494 = vmul.f32 %v359, %v435
      %v495 = vmul.f32 %v360, %v435
      %v496 = vmul.f32 %v361, %v435
      %v497 = vmul.f32 %v362, %v435
      %v498 = vmul.f32 %v363, %v435
      %v499 = vmul.f32 %v364, %v435
      %v500 = vmul.f32 %v365, %v435
      %v501 = vmul.f32 %v366, %v435
      %v502 = vmul.f32 %v367, %v435
      %v503 = vmul.f32 %v368, %v435
      %v504 = vmul.f32 %v369, %v435
      %v505 = vmul.f32 %v370, %v435
      %v506 = vmul.f32 %v371, %v435
      %v507 = vmul.f32 %v372, %v435
      %v508 = vmul.f32 %v373, %v435
      %v509 = vmul.f32 %v374, %v435
      %v510 = vmul.f32 %v375, %v435
      %v511 = vmul.f32 %v376, %v435
      %v512 = vmul.f32 %v377, %v435
      %v513 = vmul.f32 %v378, %v435
      %v514 = vmul.f32 %v379, %v435
      %v515 = vmul.f32 %v380, %v435
      %v516 = vmul.f32 %v381, %v435
      %v517 = vmul.f32 %v382, %v435
      %v518 = vmul.f32 %v383, %v435
      %v519 = vmul.f32 %v384, %v435
      %v520 = vmul.f32 %v385, %v435
      %v521 = vmul.f32 %v386, %v435
      %v522 = vmul.f32 %v387, %v435
      %v523 = vmul.f32 %v388, %v435
      %v524 = vmul.f32 %v389, %v435
      %v525 = vmul.f32 %v390, %v435
      %v526 = vmul.f32 %v391, %v435
      %v527 = vmul.f32 %v392, %v435
      %v528 = vmul.f32 %v393, %v435
      %v529 = vmul.f32 %v394, %v435
      %v530 = vmul.f32 %v395, %v435
      %v531 = vmul.f32 %v396, %v435
      %v532 = vmul.f32 %v397, %v435
      %v533 = vmul.f32 %v398, %v435
      %v534 = vmul.f32 %v399, %v435
      %v535 = vmul.f32 %v400, %v435
      %v536 = vmul.f32 %v401, %v435
      %v537 = vmul.f32 %v402, %v435
      %v538 = vmul.f32 %v403, %v435
      %v539 = vmul.f32 %v404, %v435
      %v540 = vmul.f32 %v405, %v435
      %v541 = vmul.f32 %v406, %v435
      %v542 = vmul.f32 %v407, %v435
      %v543 = vmul.f32 %v408, %v435
      %v544 = vmul.f32 %v409, %v435
      %v545 = vmul.f32 %v410, %v435
      %v546 = vmul.f32 %v411, %v435
      %v547 = vmul.f32 %v412, %v435
      %v548 = vmul.f32 %v413, %v435
      %v549 = vmul.f32 %v414, %v435
      %v550 = vmul.f32 %v415, %v435
      %v551 = vmul.f32 %v416, %v435
      %v552 = vmul.f32 %v417, %v435
      %v553 = vmul.f32 %v418, %v435
      %v554 = vmul.f32 %v419, %v435
      %v555 = vmul.f32 %v420, %v435
      %v556 = vmul.f32 %v421, %v435
      %v557 = vmul.f32 %v422, %v435
      %v558 = vmul.f32 %v423, %v435
      %v559 = vmul.f32 %v424, %v435
      %v560 = vmul.f32 %v425, %v435
      %v561 = vmul.f32 %v426, %v435
      %v562 = vmul.f32 %v427, %v435
      %v563 = vmul.f32 %v428, %v435
      %v564 = vmul.f32 %v429, %v435
      %v565 = vld [vmem:[%s2] sm:$0x1]
      %v567 = vlaneseq
      %v568 = vshrl.u32 %v567, 7
      %v569 = vsub.s32 0, %v568
      %v570 = vrot.slane %v565, %v569
      %v572 = vadd.f32 %v437, %v570
      %v573 = vadd.f32 %v438, %v570
      %v574 = vadd.f32 %v439, %v570
      %v575 = vadd.f32 %v440, %v570
      %v576 = vadd.f32 %v441, %v570
      %v577 = vadd.f32 %v442, %v570
      %v578 = vadd.f32 %v443, %v570
      %v579 = vadd.f32 %v444, %v570
      %v580 = vadd.f32 %v445, %v570
      %v581 = vadd.f32 %v446, %v570
      %v582 = vadd.f32 %v447, %v570
      %v583 = vadd.f32 %v448, %v570
      %v584 = vadd.f32 %v449, %v570
      %v585 = vadd.f32 %v450, %v570
      %v586 = vadd.f32 %v451, %v570
      %v587 = vadd.f32 %v452, %v570
      %v588 = vadd.f32 %v453, %v570
      %v589 = vadd.f32 %v454, %v570
      %v590 = vadd.f32 %v455, %v570
      %v591 = vadd.f32 %v456, %v570
      %v592 = vadd.f32 %v457, %v570
      %v593 = vadd.f32 %v458, %v570
      %v594 = vadd.f32 %v459, %v570
      %v595 = vadd.f32 %v460, %v570
      %v596 = vadd.f32 %v461, %v570
      %v597 = vadd.f32 %v462, %v570
      %v598 = vadd.f32 %v463, %v570
      %v599 = vadd.f32 %v464, %v570
      %v600 = vadd.f32 %v465, %v570
      %v601 = vadd.f32 %v466, %v570
      %v602 = vadd.f32 %v467, %v570
      %v603 = vadd.f32 %v468, %v570
      %v604 = vadd.f32 %v469, %v570
      %v605 = vadd.f32 %v470, %v570
      %v606 = vadd.f32 %v471, %v570
      %v607 = vadd.f32 %v472, %v570
      %v608 = vadd.f32 %v473, %v570
      %v609 = vadd.f32 %v474, %v570
      %v610 = vadd.f32 %v475, %v570
      %v611 = vadd.f32 %v476, %v570
      %v612 = vadd.f32 %v477, %v570
      %v613 = vadd.f32 %v478, %v570
      %v614 = vadd.f32 %v479, %v570
      %v615 = vadd.f32 %v480, %v570
      %v616 = vadd.f32 %v481, %v570
      %v617 = vadd.f32 %v482, %v570
      %v618 = vadd.f32 %v483, %v570
      %v619 = vadd.f32 %v484, %v570
      %v620 = vadd.f32 %v485, %v570
      %v621 = vadd.f32 %v486, %v570
      %v622 = vadd.f32 %v487, %v570
      %v623 = vadd.f32 %v488, %v570
      %v624 = vadd.f32 %v489, %v570
      %v625 = vadd.f32 %v490, %v570
      %v626 = vadd.f32 %v491, %v570
      %v627 = vadd.f32 %v492, %v570
      %v628 = vadd.f32 %v493, %v570
      %v629 = vadd.f32 %v494, %v570
      %v630 = vadd.f32 %v495, %v570
      %v631 = vadd.f32 %v496, %v570
      %v632 = vadd.f32 %v497, %v570
      %v633 = vadd.f32 %v498, %v570
      %v634 = vadd.f32 %v499, %v570
      %v635 = vadd.f32 %v500, %v570
      %v636 = vadd.f32 %v501, %v570
      %v637 = vadd.f32 %v502, %v570
      %v638 = vadd.f32 %v503, %v570
      %v639 = vadd.f32 %v504, %v570
      %v640 = vadd.f32 %v505, %v570
      %v641 = vadd.f32 %v506, %v570
      %v642 = vadd.f32 %v507, %v570
      %v643 = vadd.f32 %v508, %v570
      %v644 = vadd.f32 %v509, %v570
      %v645 = vadd.f32 %v510, %v570
      %v646 = vadd.f32 %v511, %v570
      %v647 = vadd.f32 %v512, %v570
      %v648 = vadd.f32 %v513, %v570
      %v649 = vadd.f32 %v514, %v570
      %v650 = vadd.f32 %v515, %v570
      %v651 = vadd.f32 %v516, %v570
      %v652 = vadd.f32 %v517, %v570
      %v653 = vadd.f32 %v518, %v570
      %v654 = vadd.f32 %v519, %v570
      %v655 = vadd.f32 %v520, %v570
      %v656 = vadd.f32 %v521, %v570
      %v657 = vadd.f32 %v522, %v570
      %v658 = vadd.f32 %v523, %v570
      %v659 = vadd.f32 %v524, %v570
      %v660 = vadd.f32 %v525, %v570
      %v661 = vadd.f32 %v526, %v570
      %v662 = vadd.f32 %v527, %v570
      %v663 = vadd.f32 %v528, %v570
      %v664 = vadd.f32 %v529, %v570
      %v665 = vadd.f32 %v530, %v570
      %v666 = vadd.f32 %v531, %v570
      %v667 = vadd.f32 %v532, %v570
      %v668 = vadd.f32 %v533, %v570
      %v669 = vadd.f32 %v534, %v570
      %v670 = vadd.f32 %v535, %v570
      %v671 = vadd.f32 %v536, %v570
      %v672 = vadd.f32 %v537, %v570
      %v673 = vadd.f32 %v538, %v570
      %v674 = vadd.f32 %v539, %v570
      %v675 = vadd.f32 %v540, %v570
      %v676 = vadd.f32 %v541, %v570
      %v677 = vadd.f32 %v542, %v570
      %v678 = vadd.f32 %v543, %v570
      %v679 = vadd.f32 %v544, %v570
      %v680 = vadd.f32 %v545, %v570
      %v681 = vadd.f32 %v546, %v570
      %v682 = vadd.f32 %v547, %v570
      %v683 = vadd.f32 %v548, %v570
      %v684 = vadd.f32 %v549, %v570
      %v685 = vadd.f32 %v550, %v570
      %v686 = vadd.f32 %v551, %v570
      %v687 = vadd.f32 %v552, %v570
      %v688 = vadd.f32 %v553, %v570
      %v689 = vadd.f32 %v554, %v570
      %v690 = vadd.f32 %v555, %v570
      %v691 = vadd.f32 %v556, %v570
      %v692 = vadd.f32 %v557, %v570
      %v693 = vadd.f32 %v558, %v570
      %v694 = vadd.f32 %v559, %v570
      %v695 = vadd.f32 %v560, %v570
      %v696 = vadd.f32 %v561, %v570
      %v697 = vadd.f32 %v562, %v570
      %v698 = vadd.f32 %v563, %v570
      %v699 = vadd.f32 %v564, %v570
      %v700 = vmax.f32 %v572, 0.0
      %v701 = vmax.f32 %v573, 0.0
      %v702 = vmax.f32 %v574, 0.0
      %v703 = vmax.f32 %v575, 0.0
      %v704 = vmax.f32 %v576, 0.0
      %v705 = vmax.f32 %v577, 0.0
      %v706 = vmax.f32 %v578, 0.0
      %v707 = vmax.f32 %v579, 0.0
      %v708 = vmax.f32 %v580, 0.0
      %v709 = vmax.f32 %v581, 0.0
      %v710 = vmax.f32 %v582, 0.0
      %v711 = vmax.f32 %v583, 0.0
      %v712 = vmax.f32 %v584, 0.0
      %v713 = vmax.f32 %v585, 0.0
      %v714 = vmax.f32 %v586, 0.0
      %v715 = vmax.f32 %v587, 0.0
      %v716 = vmax.f32 %v588, 0.0
      %v717 = vmax.f32 %v589, 0.0
      %v718 = vmax.f32 %v590, 0.0
      %v719 = vmax.f32 %v591, 0.0
      %v720 = vmax.f32 %v592, 0.0
      %v721 = vmax.f32 %v593, 0.0
      %v722 = vmax.f32 %v594, 0.0
      %v723 = vmax.f32 %v595, 0.0
      %v724 = vmax.f32 %v596, 0.0
      %v725 = vmax.f32 %v597, 0.0
      %v726 = vmax.f32 %v598, 0.0
      %v727 = vmax.f32 %v599, 0.0
      %v728 = vmax.f32 %v600, 0.0
      %v729 = vmax.f32 %v601, 0.0
      %v730 = vmax.f32 %v602, 0.0
      %v731 = vmax.f32 %v603, 0.0
      %v732 = vmax.f32 %v604, 0.0
      %v733 = vmax.f32 %v605, 0.0
      %v734 = vmax.f32 %v606, 0.0
      %v735 = vmax.f32 %v607, 0.0
      %v736 = vmax.f32 %v608, 0.0
      %v737 = vmax.f32 %v609, 0.0
      %v738 = vmax.f32 %v610, 0.0
      %v739 = vmax.f32 %v611, 0.0
      %v740 = vmax.f32 %v612, 0.0
      %v741 = vmax.f32 %v613, 0.0
      %v742 = vmax.f32 %v614, 0.0
      %v743 = vmax.f32 %v615, 0.0
      %v744 = vmax.f32 %v616, 0.0
      %v745 = vmax.f32 %v617, 0.0
      %v746 = vmax.f32 %v618, 0.0
      %v747 = vmax.f32 %v619, 0.0
      %v748 = vmax.f32 %v620, 0.0
      %v749 = vmax.f32 %v621, 0.0
      %v750 = vmax.f32 %v622, 0.0
      %v751 = vmax.f32 %v623, 0.0
      %v752 = vmax.f32 %v624, 0.0
      %v753 = vmax.f32 %v625, 0.0
      %v754 = vmax.f32 %v626, 0.0
      %v755 = vmax.f32 %v627, 0.0
      %v756 = vmax.f32 %v628, 0.0
      %v757 = vmax.f32 %v629, 0.0
      %v758 = vmax.f32 %v630, 0.0
      %v759 = vmax.f32 %v631, 0.0
      %v760 = vmax.f32 %v632, 0.0
      %v761 = vmax.f32 %v633, 0.0
      %v762 = vmax.f32 %v634, 0.0
      %v763 = vmax.f32 %v635, 0.0
      %v764 = vmax.f32 %v636, 0.0
      %v765 = vmax.f32 %v637, 0.0
      %v766 = vmax.f32 %v638, 0.0
      %v767 = vmax.f32 %v639, 0.0
      %v768 = vmax.f32 %v640, 0.0
      %v769 = vmax.f32 %v641, 0.0
      %v770 = vmax.f32 %v642, 0.0
      %v771 = vmax.f32 %v643, 0.0
      %v772 = vmax.f32 %v644, 0.0
      %v773 = vmax.f32 %v645, 0.0
      %v774 = vmax.f32 %v646, 0.0
      %v775 = vmax.f32 %v647, 0.0
      %v776 = vmax.f32 %v648, 0.0
      %v777 = vmax.f32 %v649, 0.0
      %v778 = vmax.f32 %v650, 0.0
      %v779 = vmax.f32 %v651, 0.0
      %v780 = vmax.f32 %v652, 0.0
      %v781 = vmax.f32 %v653, 0.0
      %v782 = vmax.f32 %v654, 0.0
      %v783 = vmax.f32 %v655, 0.0
      %v784 = vmax.f32 %v656, 0.0
      %v785 = vmax.f32 %v657, 0.0
      %v786 = vmax.f32 %v658, 0.0
      %v787 = vmax.f32 %v659, 0.0
      %v788 = vmax.f32 %v660, 0.0
      %v789 = vmax.f32 %v661, 0.0
      %v790 = vmax.f32 %v662, 0.0
      %v791 = vmax.f32 %v663, 0.0
      %v792 = vmax.f32 %v664, 0.0
      %v793 = vmax.f32 %v665, 0.0
      %v794 = vmax.f32 %v666, 0.0
      %v795 = vmax.f32 %v667, 0.0
      %v796 = vmax.f32 %v668, 0.0
      %v797 = vmax.f32 %v669, 0.0
      %v798 = vmax.f32 %v670, 0.0
      %v799 = vmax.f32 %v671, 0.0
      %v800 = vmax.f32 %v672, 0.0
      %v801 = vmax.f32 %v673, 0.0
      %v802 = vmax.f32 %v674, 0.0
      %v803 = vmax.f32 %v675, 0.0
      %v804 = vmax.f32 %v676, 0.0
      %v805 = vmax.f32 %v677, 0.0
      %v806 = vmax.f32 %v678, 0.0
      %v807 = vmax.f32 %v679, 0.0
      %v808 = vmax.f32 %v680, 0.0
      %v809 = vmax.f32 %v681, 0.0
      %v810 = vmax.f32 %v682, 0.0
      %v811 = vmax.f32 %v683, 0.0
      %v812 = vmax.f32 %v684, 0.0
      %v813 = vmax.f32 %v685, 0.0
      %v814 = vmax.f32 %v686, 0.0
      %v815 = vmax.f32 %v687, 0.0
      %v816 = vmax.f32 %v688, 0.0
      %v817 = vmax.f32 %v689, 0.0
      %v818 = vmax.f32 %v690, 0.0
      %v819 = vmax.f32 %v691, 0.0
      %v820 = vmax.f32 %v692, 0.0
      %v821 = vmax.f32 %v693, 0.0
      %v822 = vmax.f32 %v694, 0.0
      %v823 = vmax.f32 %v695, 0.0
      %v824 = vmax.f32 %v696, 0.0
      %v825 = vmax.f32 %v697, 0.0
      %v826 = vmax.f32 %v698, 0.0
      %v827 = vmax.f32 %v699, 0.0
      %v828 = vpack.c.bf16 %v701, %v700
      %v829 = vpack.c.bf16 %v703, %v702
      %v830 = vpack.c.bf16 %v705, %v704
      %v831 = vpack.c.bf16 %v707, %v706
      %v832 = vpack.c.bf16 %v709, %v708
      %v833 = vpack.c.bf16 %v711, %v710
      %v834 = vpack.c.bf16 %v713, %v712
      %v835 = vpack.c.bf16 %v715, %v714
      %v836 = vpack.c.bf16 %v717, %v716
      %v837 = vpack.c.bf16 %v719, %v718
      %v838 = vpack.c.bf16 %v721, %v720
      %v839 = vpack.c.bf16 %v723, %v722
      %v840 = vpack.c.bf16 %v725, %v724
      %v841 = vpack.c.bf16 %v727, %v726
      %v842 = vpack.c.bf16 %v729, %v728
      %v843 = vpack.c.bf16 %v731, %v730
      %v844 = vpack.c.bf16 %v733, %v732
      %v845 = vpack.c.bf16 %v735, %v734
      %v846 = vpack.c.bf16 %v737, %v736
      %v847 = vpack.c.bf16 %v739, %v738
      %v848 = vpack.c.bf16 %v741, %v740
      %v849 = vpack.c.bf16 %v743, %v742
      %v850 = vpack.c.bf16 %v745, %v744
      %v851 = vpack.c.bf16 %v747, %v746
      %v852 = vpack.c.bf16 %v749, %v748
      %v853 = vpack.c.bf16 %v751, %v750
      %v854 = vpack.c.bf16 %v753, %v752
      %v855 = vpack.c.bf16 %v755, %v754
      %v856 = vpack.c.bf16 %v757, %v756
      %v857 = vpack.c.bf16 %v759, %v758
      %v858 = vpack.c.bf16 %v761, %v760
      %v859 = vpack.c.bf16 %v763, %v762
      %v860 = vpack.c.bf16 %v765, %v764
      %v861 = vpack.c.bf16 %v767, %v766
      %v862 = vpack.c.bf16 %v769, %v768
      %v863 = vpack.c.bf16 %v771, %v770
      %v864 = vpack.c.bf16 %v773, %v772
      %v865 = vpack.c.bf16 %v775, %v774
      %v866 = vpack.c.bf16 %v777, %v776
      %v867 = vpack.c.bf16 %v779, %v778
      %v868 = vpack.c.bf16 %v781, %v780
      %v869 = vpack.c.bf16 %v783, %v782
      %v870 = vpack.c.bf16 %v785, %v784
      %v871 = vpack.c.bf16 %v787, %v786
      %v872 = vpack.c.bf16 %v789, %v788
      %v873 = vpack.c.bf16 %v791, %v790
      %v874 = vpack.c.bf16 %v793, %v792
      %v875 = vpack.c.bf16 %v795, %v794
      %v876 = vpack.c.bf16 %v797, %v796
      %v877 = vpack.c.bf16 %v799, %v798
      %v878 = vpack.c.bf16 %v801, %v800
      %v879 = vpack.c.bf16 %v803, %v802
      %v880 = vpack.c.bf16 %v805, %v804
      %v881 = vpack.c.bf16 %v807, %v806
      %v882 = vpack.c.bf16 %v809, %v808
      %v883 = vpack.c.bf16 %v811, %v810
      %v884 = vpack.c.bf16 %v813, %v812
      %v885 = vpack.c.bf16 %v815, %v814
      %v886 = vpack.c.bf16 %v817, %v816
      %v887 = vpack.c.bf16 %v819, %v818
      %v888 = vpack.c.bf16 %v821, %v820
      %v889 = vpack.c.bf16 %v823, %v822
      %v890 = vpack.c.bf16 %v825, %v824
      %v891 = vpack.c.bf16 %v827, %v826
      %v956 = vunpack.c.l.b16 %v828
      %v957 = vunpack.c.h.b16 %v828
      %v958 = vunpack.c.l.b16 %v829
      %v959 = vunpack.c.h.b16 %v829
      %v960 = vunpack.c.l.b16 %v830
      %v961 = vunpack.c.h.b16 %v830
      %v962 = vunpack.c.l.b16 %v831
      %v963 = vunpack.c.h.b16 %v831
      %v964 = vunpack.c.l.b16 %v832
      %v965 = vunpack.c.h.b16 %v832
      %v966 = vunpack.c.l.b16 %v833
      %v967 = vunpack.c.h.b16 %v833
      %v968 = vunpack.c.l.b16 %v834
      %v969 = vunpack.c.h.b16 %v834
      %v970 = vunpack.c.l.b16 %v835
      %v971 = vunpack.c.h.b16 %v835
      %v972 = vunpack.c.l.b16 %v836
      %v973 = vunpack.c.h.b16 %v836
      %v974 = vunpack.c.l.b16 %v837
      %v975 = vunpack.c.h.b16 %v837
      %v976 = vunpack.c.l.b16 %v838
      %v977 = vunpack.c.h.b16 %v838
      %v978 = vunpack.c.l.b16 %v839
      %v979 = vunpack.c.h.b16 %v839
      %v980 = vunpack.c.l.b16 %v840
      %v981 = vunpack.c.h.b16 %v840
      %v982 = vunpack.c.l.b16 %v841
      %v983 = vunpack.c.h.b16 %v841
      %v984 = vunpack.c.l.b16 %v842
      %v985 = vunpack.c.h.b16 %v842
      %v986 = vunpack.c.l.b16 %v843
      %v987 = vunpack.c.h.b16 %v843
      %v988 = vunpack.c.l.b16 %v844
      %v989 = vunpack.c.h.b16 %v844
      %v990 = vunpack.c.l.b16 %v845
      %v991 = vunpack.c.h.b16 %v845
      %v992 = vunpack.c.l.b16 %v846
      %v993 = vunpack.c.h.b16 %v846
      %v994 = vunpack.c.l.b16 %v847
      %v995 = vunpack.c.h.b16 %v847
      %v996 = vunpack.c.l.b16 %v848
      %v997 = vunpack.c.h.b16 %v848
      %v998 = vunpack.c.l.b16 %v849
      %v999 = vunpack.c.h.b16 %v849
      %v1000 = vunpack.c.l.b16 %v850
      %v1001 = vunpack.c.h.b16 %v850
      %v1002 = vunpack.c.l.b16 %v851
      %v1003 = vunpack.c.h.b16 %v851
      %v1004 = vunpack.c.l.b16 %v852
      %v1005 = vunpack.c.h.b16 %v852
      %v1006 = vunpack.c.l.b16 %v853
      %v1007 = vunpack.c.h.b16 %v853
      %v1008 = vunpack.c.l.b16 %v854
      %v1009 = vunpack.c.h.b16 %v854
      %v1010 = vunpack.c.l.b16 %v855
      %v1011 = vunpack.c.h.b16 %v855
      %v1012 = vunpack.c.l.b16 %v856
      %v1013 = vunpack.c.h.b16 %v856
      %v1014 = vunpack.c.l.b16 %v857
      %v1015 = vunpack.c.h.b16 %v857
      %v1016 = vunpack.c.l.b16 %v858
      %v1017 = vunpack.c.h.b16 %v858
      %v1018 = vunpack.c.l.b16 %v859
      %v1019 = vunpack.c.h.b16 %v859
      %v1020 = vunpack.c.l.b16 %v860
      %v1021 = vunpack.c.h.b16 %v860
      %v1022 = vunpack.c.l.b16 %v861
      %v1023 = vunpack.c.h.b16 %v861
      %v1024 = vunpack.c.l.b16 %v862
      %v1025 = vunpack.c.h.b16 %v862
      %v1026 = vunpack.c.l.b16 %v863
      %v1027 = vunpack.c.h.b16 %v863
      %v1028 = vunpack.c.l.b16 %v864
      %v1029 = vunpack.c.h.b16 %v864
      %v1030 = vunpack.c.l.b16 %v865
      %v1031 = vunpack.c.h.b16 %v865
      %v1032 = vunpack.c.l.b16 %v866
      %v1033 = vunpack.c.h.b16 %v866
      %v1034 = vunpack.c.l.b16 %v867
      %v1035 = vunpack.c.h.b16 %v867
      %v1036 = vunpack.c.l.b16 %v868
      %v1037 = vunpack.c.h.b16 %v868
      %v1038 = vunpack.c.l.b16 %v869
      %v1039 = vunpack.c.h.b16 %v869
      %v1040 = vunpack.c.l.b16 %v870
      %v1041 = vunpack.c.h.b16 %v870
      %v1042 = vunpack.c.l.b16 %v871
      %v1043 = vunpack.c.h.b16 %v871
      %v1044 = vunpack.c.l.b16 %v872
      %v1045 = vunpack.c.h.b16 %v872
      %v1046 = vunpack.c.l.b16 %v873
      %v1047 = vunpack.c.h.b16 %v873
      %v1048 = vunpack.c.l.b16 %v874
      %v1049 = vunpack.c.h.b16 %v874
      %v1050 = vunpack.c.l.b16 %v875
      %v1051 = vunpack.c.h.b16 %v875
      %v1052 = vunpack.c.l.b16 %v876
      %v1053 = vunpack.c.h.b16 %v876
      %v1054 = vunpack.c.l.b16 %v877
      %v1055 = vunpack.c.h.b16 %v877
      %v1056 = vunpack.c.l.b16 %v878
      %v1057 = vunpack.c.h.b16 %v878
      %v1058 = vunpack.c.l.b16 %v879
      %v1059 = vunpack.c.h.b16 %v879
      %v1060 = vunpack.c.l.b16 %v880
      %v1061 = vunpack.c.h.b16 %v880
      %v1062 = vunpack.c.l.b16 %v881
      %v1063 = vunpack.c.h.b16 %v881
      %v1064 = vunpack.c.l.b16 %v882
      %v1065 = vunpack.c.h.b16 %v882
      %v1066 = vunpack.c.l.b16 %v883
      %v1067 = vunpack.c.h.b16 %v883
      %v1068 = vunpack.c.l.b16 %v884
      %v1069 = vunpack.c.h.b16 %v884
      %v1070 = vunpack.c.l.b16 %v885
      %v1071 = vunpack.c.h.b16 %v885
      %v1072 = vunpack.c.l.b16 %v886
      %v1073 = vunpack.c.h.b16 %v886
      %v1074 = vunpack.c.l.b16 %v887
      %v1075 = vunpack.c.h.b16 %v887
      %v1076 = vunpack.c.l.b16 %v888
      %v1077 = vunpack.c.h.b16 %v888
      %v1078 = vunpack.c.l.b16 %v889
      %v1079 = vunpack.c.h.b16 %v889
      %v1080 = vunpack.c.l.b16 %v890
      %v1081 = vunpack.c.h.b16 %v890
      %v1082 = vunpack.c.l.b16 %v891
      %v1083 = vunpack.c.h.b16 %v891
      %v1084 = vpack.c.b16 %v956, %v956
      %v1085 = vpack.c.b16 %v957, %v957
      %v1086 = vpack.c.b16 %v958, %v958
      %v1087 = vpack.c.b16 %v959, %v959
      %v1088 = vpack.c.b16 %v960, %v960
      %v1089 = vpack.c.b16 %v961, %v961
      %v1090 = vpack.c.b16 %v962, %v962
      %v1091 = vpack.c.b16 %v963, %v963
      %v1092 = vpack.c.b16 %v964, %v964
      %v1093 = vpack.c.b16 %v965, %v965
      %v1094 = vpack.c.b16 %v966, %v966
      %v1095 = vpack.c.b16 %v967, %v967
      %v1096 = vpack.c.b16 %v968, %v968
      %v1097 = vpack.c.b16 %v969, %v969
      %v1098 = vpack.c.b16 %v970, %v970
      %v1099 = vpack.c.b16 %v971, %v971
      %v1100 = vpack.c.b16 %v972, %v972
      %v1101 = vpack.c.b16 %v973, %v973
      %v1102 = vpack.c.b16 %v974, %v974
      %v1103 = vpack.c.b16 %v975, %v975
      %v1104 = vpack.c.b16 %v976, %v976
      %v1105 = vpack.c.b16 %v977, %v977
      %v1106 = vpack.c.b16 %v978, %v978
      %v1107 = vpack.c.b16 %v979, %v979
      %v1108 = vpack.c.b16 %v980, %v980
      %v1109 = vpack.c.b16 %v981, %v981
      %v1110 = vpack.c.b16 %v982, %v982
      %v1111 = vpack.c.b16 %v983, %v983
      %v1112 = vpack.c.b16 %v984, %v984
      %v1113 = vpack.c.b16 %v985, %v985
      %v1114 = vpack.c.b16 %v986, %v986
      %v1115 = vpack.c.b16 %v987, %v987
      %v1116 = vpack.c.b16 %v988, %v988
      %v1117 = vpack.c.b16 %v989, %v989
      %v1118 = vpack.c.b16 %v990, %v990
      %v1119 = vpack.c.b16 %v991, %v991
      %v1120 = vpack.c.b16 %v992, %v992
      %v1121 = vpack.c.b16 %v993, %v993
      %v1122 = vpack.c.b16 %v994, %v994
      %v1123 = vpack.c.b16 %v995, %v995
      %v1124 = vpack.c.b16 %v996, %v996
      %v1125 = vpack.c.b16 %v997, %v997
      %v1126 = vpack.c.b16 %v998, %v998
      %v1127 = vpack.c.b16 %v999, %v999
      %v1128 = vpack.c.b16 %v1000, %v1000
      %v1129 = vpack.c.b16 %v1001, %v1001
      %v1130 = vpack.c.b16 %v1002, %v1002
      %v1131 = vpack.c.b16 %v1003, %v1003
      %v1132 = vpack.c.b16 %v1004, %v1004
      %v1133 = vpack.c.b16 %v1005, %v1005
      %v1134 = vpack.c.b16 %v1006, %v1006
      %v1135 = vpack.c.b16 %v1007, %v1007
      %v1136 = vpack.c.b16 %v1008, %v1008
      %v1137 = vpack.c.b16 %v1009, %v1009
      %v1138 = vpack.c.b16 %v1010, %v1010
      %v1139 = vpack.c.b16 %v1011, %v1011
      %v1140 = vpack.c.b16 %v1012, %v1012
      %v1141 = vpack.c.b16 %v1013, %v1013
      %v1142 = vpack.c.b16 %v1014, %v1014
      %v1143 = vpack.c.b16 %v1015, %v1015
      %v1144 = vpack.c.b16 %v1016, %v1016
      %v1145 = vpack.c.b16 %v1017, %v1017
      %v1146 = vpack.c.b16 %v1018, %v1018
      %v1147 = vpack.c.b16 %v1019, %v1019
      %v1148 = vpack.c.b16 %v1020, %v1020
      %v1149 = vpack.c.b16 %v1021, %v1021
      %v1150 = vpack.c.b16 %v1022, %v1022
      %v1151 = vpack.c.b16 %v1023, %v1023
      %v1152 = vpack.c.b16 %v1024, %v1024
      %v1153 = vpack.c.b16 %v1025, %v1025
      %v1154 = vpack.c.b16 %v1026, %v1026
      %v1155 = vpack.c.b16 %v1027, %v1027
      %v1156 = vpack.c.b16 %v1028, %v1028
      %v1157 = vpack.c.b16 %v1029, %v1029
      %v1158 = vpack.c.b16 %v1030, %v1030
      %v1159 = vpack.c.b16 %v1031, %v1031
      %v1160 = vpack.c.b16 %v1032, %v1032
      %v1161 = vpack.c.b16 %v1033, %v1033
      %v1162 = vpack.c.b16 %v1034, %v1034
      %v1163 = vpack.c.b16 %v1035, %v1035
      %v1164 = vpack.c.b16 %v1036, %v1036
      %v1165 = vpack.c.b16 %v1037, %v1037
      %v1166 = vpack.c.b16 %v1038, %v1038
      %v1167 = vpack.c.b16 %v1039, %v1039
      %v1168 = vpack.c.b16 %v1040, %v1040
      %v1169 = vpack.c.b16 %v1041, %v1041
      %v1170 = vpack.c.b16 %v1042, %v1042
      %v1171 = vpack.c.b16 %v1043, %v1043
      %v1172 = vpack.c.b16 %v1044, %v1044
      %v1173 = vpack.c.b16 %v1045, %v1045
      %v1174 = vpack.c.b16 %v1046, %v1046
      %v1175 = vpack.c.b16 %v1047, %v1047
      %v1176 = vpack.c.b16 %v1048, %v1048
      %v1177 = vpack.c.b16 %v1049, %v1049
      %v1178 = vpack.c.b16 %v1050, %v1050
      %v1179 = vpack.c.b16 %v1051, %v1051
      %v1180 = vpack.c.b16 %v1052, %v1052
      %v1181 = vpack.c.b16 %v1053, %v1053
      %v1182 = vpack.c.b16 %v1054, %v1054
      %v1183 = vpack.c.b16 %v1055, %v1055
      %v1184 = vpack.c.b16 %v1056, %v1056
      %v1185 = vpack.c.b16 %v1057, %v1057
      %v1186 = vpack.c.b16 %v1058, %v1058
      %v1187 = vpack.c.b16 %v1059, %v1059
      %v1188 = vpack.c.b16 %v1060, %v1060
      %v1189 = vpack.c.b16 %v1061, %v1061
      %v1190 = vpack.c.b16 %v1062, %v1062
      %v1191 = vpack.c.b16 %v1063, %v1063
      %v1192 = vpack.c.b16 %v1064, %v1064
      %v1193 = vpack.c.b16 %v1065, %v1065
      %v1194 = vpack.c.b16 %v1066, %v1066
      %v1195 = vpack.c.b16 %v1067, %v1067
      %v1196 = vpack.c.b16 %v1068, %v1068
      %v1197 = vpack.c.b16 %v1069, %v1069
      %v1198 = vpack.c.b16 %v1070, %v1070
      %v1199 = vpack.c.b16 %v1071, %v1071
      %v1200 = vpack.c.b16 %v1072, %v1072
      %v1201 = vpack.c.b16 %v1073, %v1073
      %v1202 = vpack.c.b16 %v1074, %v1074
      %v1203 = vpack.c.b16 %v1075, %v1075
      %v1204 = vpack.c.b16 %v1076, %v1076
      %v1205 = vpack.c.b16 %v1077, %v1077
      %v1206 = vpack.c.b16 %v1078, %v1078
      %v1207 = vpack.c.b16 %v1079, %v1079
      %v1208 = vpack.c.b16 %v1080, %v1080
      %v1209 = vpack.c.b16 %v1081, %v1081
      %v1210 = vpack.c.b16 %v1082, %v1082
      %v1211 = vpack.c.b16 %v1083, %v1083
      %1340 = vst [vmem:[%s172] sm:$0xf] %v1084
      %1341 = vst [vmem:[%s172 + $0x4] sm:$0xf] %v1085
      %1342 = vst [vmem:[%s172 + $0x8] sm:$0xf] %v1086
      %1343 = vst [vmem:[%s172 + $0xc] sm:$0xf] %v1087
      %1344 = vst [vmem:[%s172 + $0x10] sm:$0xf] %v1088
      %1345 = vst [vmem:[%s172 + $0x14] sm:$0xf] %v1089
      %1346 = vst [vmem:[%s172 + $0x18] sm:$0xf] %v1090
      %1347 = vst [vmem:[%s172 + $0x1c] sm:$0xf] %v1091
      %1348 = vst [vmem:[%s172 + $0x20] sm:$0xf] %v1092
      %1349 = vst [vmem:[%s172 + $0x24] sm:$0xf] %v1093
      %1350 = vst [vmem:[%s172 + $0x28] sm:$0xf] %v1094
      %1351 = vst [vmem:[%s172 + $0x2c] sm:$0xf] %v1095
      %1352 = vst [vmem:[%s172 + $0x30] sm:$0xf] %v1096
      %1353 = vst [vmem:[%s172 + $0x34] sm:$0xf] %v1097
      %1354 = vst [vmem:[%s172 + $0x38] sm:$0xf] %v1098
      %1355 = vst [vmem:[%s172 + $0x3c] sm:$0xf] %v1099
      %1356 = vst [vmem:[%s172 + $0x40] sm:$0xf] %v1100
      %1357 = vst [vmem:[%s172 + $0x44] sm:$0xf] %v1101
      %1358 = vst [vmem:[%s172 + $0x48] sm:$0xf] %v1102
      %1359 = vst [vmem:[%s172 + $0x4c] sm:$0xf] %v1103
      %1360 = vst [vmem:[%s172 + $0x50] sm:$0xf] %v1104
      %1361 = vst [vmem:[%s172 + $0x54] sm:$0xf] %v1105
      %1362 = vst [vmem:[%s172 + $0x58] sm:$0xf] %v1106
      %1363 = vst [vmem:[%s172 + $0x5c] sm:$0xf] %v1107
      %1364 = vst [vmem:[%s172 + $0x60] sm:$0xf] %v1108
      %1365 = vst [vmem:[%s172 + $0x64] sm:$0xf] %v1109
      %1366 = vst [vmem:[%s172 + $0x68] sm:$0xf] %v1110
      %1367 = vst [vmem:[%s172 + $0x6c] sm:$0xf] %v1111
      %1368 = vst [vmem:[%s172 + $0x70] sm:$0xf] %v1112
      %1369 = vst [vmem:[%s172 + $0x74] sm:$0xf] %v1113
      %1370 = vst [vmem:[%s172 + $0x78] sm:$0xf] %v1114
      %1371 = vst [vmem:[%s172 + $0x7c] sm:$0xf] %v1115
      %1372 = vst [vmem:[%s172 + $0x80] sm:$0xf] %v1116
      %1373 = vst [vmem:[%s172 + $0x84] sm:$0xf] %v1117
      %1374 = vst [vmem:[%s172 + $0x88] sm:$0xf] %v1118
      %1375 = vst [vmem:[%s172 + $0x8c] sm:$0xf] %v1119
      %1376 = vst [vmem:[%s172 + $0x90] sm:$0xf] %v1120
      %1377 = vst [vmem:[%s172 + $0x94] sm:$0xf] %v1121
      %1378 = vst [vmem:[%s172 + $0x98] sm:$0xf] %v1122
      %1379 = vst [vmem:[%s172 + $0x9c] sm:$0xf] %v1123
      %1380 = vst [vmem:[%s172 + $0xa0] sm:$0xf] %v1124
      %1381 = vst [vmem:[%s172 + $0xa4] sm:$0xf] %v1125
      %1382 = vst [vmem:[%s172 + $0xa8] sm:$0xf] %v1126
      %1383 = vst [vmem:[%s172 + $0xac] sm:$0xf] %v1127
      %1384 = vst [vmem:[%s172 + $0xb0] sm:$0xf] %v1128
      %1385 = vst [vmem:[%s172 + $0xb4] sm:$0xf] %v1129
      %1386 = vst [vmem:[%s172 + $0xb8] sm:$0xf] %v1130
      %1387 = vst [vmem:[%s172 + $0xbc] sm:$0xf] %v1131
      %1388 = vst [vmem:[%s172 + $0xc0] sm:$0xf] %v1132
      %1389 = vst [vmem:[%s172 + $0xc4] sm:$0xf] %v1133
      %1390 = vst [vmem:[%s172 + $0xc8] sm:$0xf] %v1134
      %1391 = vst [vmem:[%s172 + $0xcc] sm:$0xf] %v1135
      %1392 = vst [vmem:[%s172 + $0xd0] sm:$0xf] %v1136
      %1393 = vst [vmem:[%s172 + $0xd4] sm:$0xf] %v1137
      %1394 = vst [vmem:[%s172 + $0xd8] sm:$0xf] %v1138
      %1395 = vst [vmem:[%s172 + $0xdc] sm:$0xf] %v1139
      %1396 = vst [vmem:[%s172 + $0xe0] sm:$0xf] %v1140
      %1397 = vst [vmem:[%s172 + $0xe4] sm:$0xf] %v1141
      %1398 = vst [vmem:[%s172 + $0xe8] sm:$0xf] %v1142
      %1399 = vst [vmem:[%s172 + $0xec] sm:$0xf] %v1143
      %1400 = vst [vmem:[%s172 + $0xf0] sm:$0xf] %v1144
      %1401 = vst [vmem:[%s172 + $0xf4] sm:$0xf] %v1145
      %1402 = vst [vmem:[%s172 + $0xf8] sm:$0xf] %v1146
      %1403 = vst [vmem:[%s172 + $0xfc] sm:$0xf] %v1147
      %1404 = vst [vmem:[%s172 + $0x100] sm:$0xf] %v1148
      %1405 = vst [vmem:[%s172 + $0x104] sm:$0xf] %v1149
      %1406 = vst [vmem:[%s172 + $0x108] sm:$0xf] %v1150
      %1407 = vst [vmem:[%s172 + $0x10c] sm:$0xf] %v1151
      %1408 = vst [vmem:[%s172 + $0x110] sm:$0xf] %v1152
      %1409 = vst [vmem:[%s172 + $0x114] sm:$0xf] %v1153
      %1410 = vst [vmem:[%s172 + $0x118] sm:$0xf] %v1154
      %1411 = vst [vmem:[%s172 + $0x11c] sm:$0xf] %v1155
      %1412 = vst [vmem:[%s172 + $0x120] sm:$0xf] %v1156
      %1413 = vst [vmem:[%s172 + $0x124] sm:$0xf] %v1157
      %1414 = vst [vmem:[%s172 + $0x128] sm:$0xf] %v1158
      %1415 = vst [vmem:[%s172 + $0x12c] sm:$0xf] %v1159
      %1416 = vst [vmem:[%s172 + $0x130] sm:$0xf] %v1160
      %1417 = vst [vmem:[%s172 + $0x134] sm:$0xf] %v1161
      %1418 = vst [vmem:[%s172 + $0x138] sm:$0xf] %v1162
      %1419 = vst [vmem:[%s172 + $0x13c] sm:$0xf] %v1163
      %1420 = vst [vmem:[%s172 + $0x140] sm:$0xf] %v1164
      %1421 = vst [vmem:[%s172 + $0x144] sm:$0xf] %v1165
      %1422 = vst [vmem:[%s172 + $0x148] sm:$0xf] %v1166
      %1423 = vst [vmem:[%s172 + $0x14c] sm:$0xf] %v1167
      %1424 = vst [vmem:[%s172 + $0x150] sm:$0xf] %v1168
      %1425 = vst [vmem:[%s172 + $0x154] sm:$0xf] %v1169
      %1426 = vst [vmem:[%s172 + $0x158] sm:$0xf] %v1170
      %1427 = vst [vmem:[%s172 + $0x15c] sm:$0xf] %v1171
      %1428 = vst [vmem:[%s172 + $0x160] sm:$0xf] %v1172
      %1429 = vst [vmem:[%s172 + $0x164] sm:$0xf] %v1173
      %1430 = vst [vmem:[%s172 + $0x168] sm:$0xf] %v1174
      %1431 = vst [vmem:[%s172 + $0x16c] sm:$0xf] %v1175
      %1432 = vst [vmem:[%s172 + $0x170] sm:$0xf] %v1176
      %1433 = vst [vmem:[%s172 + $0x174] sm:$0xf] %v1177
      %1434 = vst [vmem:[%s172 + $0x178] sm:$0xf] %v1178
      %1435 = vst [vmem:[%s172 + $0x17c] sm:$0xf] %v1179
      %1436 = vst [vmem:[%s172 + $0x180] sm:$0xf] %v1180
      %1437 = vst [vmem:[%s172 + $0x184] sm:$0xf] %v1181
      %1438 = vst [vmem:[%s172 + $0x188] sm:$0xf] %v1182
      %1439 = vst [vmem:[%s172 + $0x18c] sm:$0xf] %v1183
      %1440 = vst [vmem:[%s172 + $0x190] sm:$0xf] %v1184
      %1441 = vst [vmem:[%s172 + $0x194] sm:$0xf] %v1185
      %1442 = vst [vmem:[%s172 + $0x198] sm:$0xf] %v1186
      %1443 = vst [vmem:[%s172 + $0x19c] sm:$0xf] %v1187
      %1444 = vst [vmem:[%s172 + $0x1a0] sm:$0xf] %v1188
      %1445 = vst [vmem:[%s172 + $0x1a4] sm:$0xf] %v1189
      %1446 = vst [vmem:[%s172 + $0x1a8] sm:$0xf] %v1190
      %1447 = vst [vmem:[%s172 + $0x1ac] sm:$0xf] %v1191
      %1448 = vst [vmem:[%s172 + $0x1b0] sm:$0xf] %v1192
      %1449 = vst [vmem:[%s172 + $0x1b4] sm:$0xf] %v1193
      %1450 = vst [vmem:[%s172 + $0x1b8] sm:$0xf] %v1194
      %1451 = vst [vmem:[%s172 + $0x1bc] sm:$0xf] %v1195
      %1452 = vst [vmem:[%s172 + $0x1c0] sm:$0xf] %v1196
      %1453 = vst [vmem:[%s172 + $0x1c4] sm:$0xf] %v1197
      %1454 = vst [vmem:[%s172 + $0x1c8] sm:$0xf] %v1198
      %1455 = vst [vmem:[%s172 + $0x1cc] sm:$0xf] %v1199
      %1456 = vst [vmem:[%s172 + $0x1d0] sm:$0xf] %v1200
      %1457 = vst [vmem:[%s172 + $0x1d4] sm:$0xf] %v1201
      %1458 = vst [vmem:[%s172 + $0x1d8] sm:$0xf] %v1202
      %1459 = vst [vmem:[%s172 + $0x1dc] sm:$0xf] %v1203
      %1460 = vst [vmem:[%s172 + $0x1e0] sm:$0xf] %v1204
      %1461 = vst [vmem:[%s172 + $0x1e4] sm:$0xf] %v1205
      %1462 = vst [vmem:[%s172 + $0x1e8] sm:$0xf] %v1206
      %1463 = vst [vmem:[%s172 + $0x1ec] sm:$0xf] %v1207
      %1464 = vst [vmem:[%s172 + $0x1f0] sm:$0xf] %v1208
      %1465 = vst [vmem:[%s172 + $0x1f4] sm:$0xf] %v1209
      %1466 = vst [vmem:[%s172 + $0x1f8] sm:$0xf] %v1210
      %1467 = vst [vmem:[%s172 + $0x1fc] sm:$0xf] %v1211
      %s1468 = smul.u32 128, %s14
      %p1469 = scmp.lt.s32.totalorder %s1468, 255
      %s1470 = scalar_select %p1469, %s1468, 255
      %s1471 = smul.addr %s1470, 4
      %s1472 = scalar_lea.vmem %s3, %s1471
      // Predicated region
      $region33: #{generator_forward.16} parent=31 // pred_check
        %p1473 = pneg %p100
      $region34: #{generator_forward.16} parent=31 // pred_check_branch
        %1475 = sbr.rel (%p1473) target = $region36
      $region35: #{generator_forward.16} parent=31 // pred_region
        %s1476 = smul.u32 128, %s14
      $region36: #{generator_forward.16} parent=31 // pred_fallthru
        _
    $region32: #{generator_forward.16} parent=5 // pred_fallthru
      _
    %p1477 = scmp.le.s32.totalorder 2, %s9
    // Predicated region
    $region37: #{generator_forward.16} parent=5 // pred_check
      %p1478 = pneg %p1477
    $region38: #{generator_forward.16} parent=5 // pred_check_branch
      %1480 = sbr.rel (%p1478) target = $region40
    $region39: #{generator_forward.16} parent=5 // pred_region
      %s1481 = ssub.s32 %s9, 2
      // Predicated region
      $region41: #{generator_forward.16} parent=39 // pred_check
        %p1482 = pneg %p106
      $region42: #{generator_forward.16} parent=39 // pred_check_branch
        %1484 = sbr.rel (%p1482) target = $region44
      $region43: #{generator_forward.16} parent=39 // pred_region
        %s1485 = smul.u32 128, %s15
        %p1486 = scmp.lt.s32.totalorder %s1485, 255
        %s1487 = scalar_select %p1486, %s1485, 255
        %s1488 = smul.addr %s1487, 4
        %s1489 = scalar_lea.vmem %s3, %s1488
      $region44: #{generator_forward.16} parent=39 // pred_fallthru
        _
    $region40: #{generator_forward.16} parent=5 // pred_fallthru
      _
  $region6: #{generator_forward.16} parent=0 // loop_footer
    %s13 = sadd.s32 1, %s9
  $region7: #{generator_forward.16} parent=0 // loop_footer_branch
    %8 = sbr.rel target = $region3
  $region8: #{generator_forward.16} parent=0 // loop_exit
    _

// kernel: generator_forward.17
$region0: #{generator_forward.17}
  #allocation0 [shape = 'u32[]', space=smem, size = 0x4, offset = 0x4, fixed_abs, tag = 'smem constant byte address 0x4 - core index']
  #allocation1 [shape = 'u32[144,128]{1,0:T(1,128)}', space=vmem, size = 0x12000, scoped, tag = 'internal scratch']
  %s0 = inlined_call_operand.vmem [shape: bf16[4,2048,128], index: 0, kind: input, shape index: {}]
  %s1 = inlined_call_operand.vmem [shape: bf16[4,128,128], index: 1, kind: input, shape index: {}]
  %s2 = inlined_call_operand.vmem [shape: f32[4,2048,128], index: 2, kind: output, shape index: {}]
  %s3 = sld [smem:[#allocation0]]
  $region41: #{generator_forward.17} parent=0
    _
  %s5 = ssub.s32 1, %s3
  %s6 = scalar_select 0, %s5, %s3
  loop: start=0, step=1, limit=6
  $region2: #{generator_forward.17} parent=0 // loop_pre_header
    _
  $region3: #{generator_forward.17} parent=0 // loop_header
    %s8 = sphi 0, %s12
    %p9 = scmp.ge.s32.totalorder %s8, 6
    %s15 = sphi 0, %s27
    %s16 = sphi 0, %s23
    %s17 = sphi 0, %s15
    %s18 = sphi 0, %s16
    %s19 = sphi 0, %s17
    %s20 = sphi 0, %s18
    %s32 = sphi 0, %s34
    %s35 = sphi 0, %s32
    %s36 = sphi 0, %s35
    %s52 = sphi 0, %s36
    %s58 = sphi 0, %s60
    %s61 = sphi 0, %s58
    %s62 = sphi 0, %s61
    %s78 = sphi 0, %s62
    %s86 = sphi 0, %s88
    %s89 = sphi 0, %s86
    %s90 = sphi 0, %s89
    %s106 = sphi 0, %s90
  $region4: #{generator_forward.17} parent=0 // loop_header_branch
    %11 = sbr.rel (%p9) target = $region8
  $region5: #{generator_forward.17} parent=0 // loop_body
    %s13 = ssub.s32 %s8, 1
    %s14 = ssub.s32 %s8, 2
    %s21 = sadd.s32 1, %s16
    %p22 = scmp.ge.s32.totalorder %s21, 1
    %s23 = scalar_select %p22, 0, %s21
    %s24 = sadd.s32 1, %s15
    %s25 = scalar_select %p22, %s24, %s15
    %p26 = scmp.ge.s32.totalorder %s25, 4
    %s27 = scalar_select %p26, 0, %s25
    %s28 = ssub.s32 %s15, %s27
    %s29 = ssub.s32 %s16, %s23
    %s30 = sor.u32 %s28, %s29
    %p31 = scmp.eq.s32.totalorder %s30, 0
    %s33 = sadd.s32 %s32, 1
    %s34 = scalar_select %p31, %s32, %s33
    %p37 = pneg %p31
    %p38 = scmp.eq.s32.totalorder %s8, 3
    %p39 = por %p37, %p38
    %p40 = scmp.ne.s32.totalorder %s32, %s35
    %p41 = scmp.eq.s32.totalorder %s8, 0
    %p42 = por %p40, %p41
    %p43 = scmp.ne.s32.totalorder %s32, %s35
    %p44 = scmp.eq.s32.totalorder %s13, 3
    %p45 = por %p43, %p44
    %p46 = scmp.ne.s32.totalorder %s35, %s36
    %p47 = scmp.eq.s32.totalorder %s13, 0
    %p48 = por %p46, %p47
    %p49 = scmp.ne.s32.totalorder %s35, %s36
    %p50 = scmp.eq.s32.totalorder %s14, 3
    %p51 = por %p49, %p50
    %p53 = scmp.ne.s32.totalorder %s36, %s52
    %p54 = scmp.eq.s32.totalorder %s14, 0
    %p55 = por %p53, %p54
    %s56 = ssub.s32 %s15, %s27
    %p57 = scmp.eq.s32.totalorder %s56, 0
    %s59 = sadd.s32 %s58, 1
    %s60 = scalar_select %p57, %s58, %s59
    %p63 = pneg %p57
    %p64 = scmp.eq.s32.totalorder %s8, 3
    %p65 = por %p63, %p64
    %p66 = scmp.ne.s32.totalorder %s58, %s61
    %p67 = scmp.eq.s32.totalorder %s8, 0
    %p68 = por %p66, %p67
    %p69 = scmp.ne.s32.totalorder %s58, %s61
    %p70 = scmp.eq.s32.totalorder %s13, 3
    %p71 = por %p69, %p70
    %p72 = scmp.ne.s32.totalorder %s61, %s62
    %p73 = scmp.eq.s32.totalorder %s13, 0
    %p74 = por %p72, %p73
    %p75 = scmp.ne.s32.totalorder %s61, %s62
    %p76 = scmp.eq.s32.totalorder %s14, 3
    %p77 = por %p75, %p76
    %p79 = scmp.ne.s32.totalorder %s62, %s78
    %p80 = scmp.eq.s32.totalorder %s14, 0
    %p81 = por %p79, %p80
    %s82 = ssub.s32 %s15, %s27
    %s83 = ssub.s32 %s16, %s23
    %s84 = sor.u32 %s82, %s83
    %p85 = scmp.eq.s32.totalorder %s84, 0
    %s87 = sadd.s32 %s86, 1
    %s88 = scalar_select %p85, %s86, %s87
    %p91 = pneg %p85
    %p92 = scmp.eq.s32.totalorder %s8, 3
    %p93 = por %p91, %p92
    %p94 = scmp.ne.s32.totalorder %s86, %s89
    %p95 = scmp.eq.s32.totalorder %s8, 0
    %p96 = por %p94, %p95
    %p97 = scmp.ne.s32.totalorder %s86, %s89
    %p98 = scmp.eq.s32.totalorder %s13, 3
    %p99 = por %p97, %p98
    %p100 = scmp.ne.s32.totalorder %s89, %s90
    %p101 = scmp.eq.s32.totalorder %s13, 0
    %p102 = por %p100, %p101
    %p103 = scmp.ne.s32.totalorder %s89, %s90
    %p104 = scmp.eq.s32.totalorder %s14, 3
    %p105 = por %p103, %p104
    %p107 = scmp.ne.s32.totalorder %s90, %s106
    %p108 = scmp.eq.s32.totalorder %s14, 0
    %p109 = por %p107, %p108
    %p110 = scmp.le.s32.totalorder 1, %s8
    %p111 = scmp.lt.s32.totalorder %s8, 5
    %p112 = pnand %p110, %p111
    %p113 = pneg %p112
    // Predicated region
    $region9: #{generator_forward.17} parent=5 // pred_check
      _
    $region10: #{generator_forward.17} parent=5 // pred_check_branch
      %115 = sbr.rel (%p112) target = $region12
    $region11: #{generator_forward.17} parent=5 // pred_region
      %s116 = ssub.s32 %s8, 1
    $region12: #{generator_forward.17} parent=5 // pred_fallthru
      _
    %p117 = scmp.lt.s32.totalorder %s8, 4
    // Predicated region
    $region13: #{generator_forward.17} parent=5 // pred_check
      %p118 = pneg %p117
    $region14: #{generator_forward.17} parent=5 // pred_check_branch
      %120 = sbr.rel (%p118) target = $region16
    $region15: #{generator_forward.17} parent=5 // pred_region
      // Predicated region
      $region17: #{generator_forward.17} parent=15 // pred_check
        %p121 = pneg %p42
      $region18: #{generator_forward.17} parent=15 // pred_check_branch
        %123 = sbr.rel (%p121) target = $region20
      $region19: #{generator_forward.17} parent=15 // pred_region
        %s124 = smul.u32 256, %s16
        %p125 = scmp.lt.s32.totalorder %s15, 3
        %s126 = scalar_select %p125, %s15, 3
        %p127 = scmp.lt.s32.totalorder %s124, 255
        %s128 = scalar_select %p127, %s124, 255
        %s129 = smul.addr %s126, 256
        %s130 = sadd.s32 %s128, %s129
        %s131 = smul.addr %s130, 4
        %s132 = scalar_lea.vmem %s0, %s131
        %s133 = smul.u32 256, %s16
      $region20: #{generator_forward.17} parent=15 // pred_fallthru
        _
      // Predicated region
      $region21: #{generator_forward.17} parent=15 // pred_check
        %p134 = pneg %p68
      $region22: #{generator_forward.17} parent=15 // pred_check_branch
        %136 = sbr.rel (%p134) target = $region24
      $region23: #{generator_forward.17} parent=15 // pred_region
        %p137 = scmp.lt.s32.totalorder %s15, 3
        %s138 = scalar_select %p137, %s15, 3
        %s139 = smul.addr %s138, 16
        %s140 = smul.addr %s139, 4
        %s141 = scalar_lea.vmem %s1, %s140
      $region24: #{generator_forward.17} parent=15 // pred_fallthru
        _
    $region16: #{generator_forward.17} parent=5 // pred_fallthru
      _
    %p142 = scmp.le.s32.totalorder 1, %s8
    %p143 = scmp.lt.s32.totalorder %s8, 5
    %p144 = pnand %p142, %p143
    %p145 = pneg %p144
    // Predicated region
    $region25: #{generator_forward.17} parent=5 // pred_check
      _
    $region26: #{generator_forward.17} parent=5 // pred_check_branch
      %147 = sbr.rel (%p144) target = $region28
    $region27: #{generator_forward.17} parent=5 // pred_region
      %s148 = ssub.s32 %s8, 1
      %s149 = smul.u32 256, %s18
      %p150 = scmp.lt.s32.totalorder %s17, 3
      %s151 = scalar_select %p150, %s17, 3
      %p152 = scmp.lt.s32.totalorder %s149, 255
      %s153 = scalar_select %p152, %s149, 255
      %s154 = smul.addr %s151, 256
      %s155 = sadd.s32 %s153, %s154
      %s156 = smul.addr %s155, 4
      %s157 = scalar_lea.vmem %s0, %s156
      %p158 = pneg %p48
      %p159 = pneg %p45
      %p160 = scmp.lt.s32.totalorder %s17, 3
      %s161 = scalar_select %p160, %s17, 3
      %s162 = smul.addr %s161, 16
      %s163 = smul.addr %s162, 4
      %s164 = scalar_lea.vmem %s1, %s163
      %p165 = pneg %p74
      %p166 = pneg %p71
      %p167 = pneg %p102
      %p168 = pneg %p99
      %s169 = smul.u32 256, %s18
      %p170 = scmp.lt.s32.totalorder %s17, 3
      %s171 = scalar_select %p170, %s17, 3
      %p172 = scmp.lt.s32.totalorder %s169, 255
      %s173 = scalar_select %p172, %s169, 255
      %s174 = smul.addr %s171, 256
      %s175 = sadd.s32 %s173, %s174
      %s176 = smul.addr %s175, 8
      %s177 = scalar_lea.vmem %s2, %s176
      %s178 = smul.u32 256, %s18
      %p179 = scmp.lt.s32.totalorder %s17, 3
      %s180 = scalar_select %p179, %s17, 3
      %p181 = scmp.lt.s32.totalorder %s178, 255
      %s182 = scalar_select %p181, %s178, 255
      %s183 = smul.addr %s180, 256
      %s184 = sadd.s32 %s182, %s183
      %s185 = smul.addr %s184, 4
      %s186 = scalar_lea.vmem %s0, %s185
      %s187 = smul.u32 256, %s18
      %p188 = scmp.lt.s32.totalorder %s17, 3
      %s189 = scalar_select %p188, %s17, 3
      %s190 = smul.addr %s189, 16
      %s191 = smul.addr %s190, 4
      %s192 = scalar_lea.vmem %s1, %s191
      %s193 = smul.u32 256, %s18
      %p194 = scmp.lt.s32.totalorder %s17, 3
      %s195 = scalar_select %p194, %s17, 3
      %p196 = scmp.lt.s32.totalorder %s193, 255
      %s197 = scalar_select %p196, %s193, 255
      %s198 = smul.addr %s195, 256
      %s199 = sadd.s32 %s197, %s198
      %s200 = smul.addr %s199, 8
      %s201 = scalar_lea.vmem %s2, %s200
      %s202 = smul.u32 256, %s18
      %v204 = vld [vmem:[%s186] sm:$0xf]
      %v205 = vld [vmem:[%s186 + $0x4] sm:$0xf]
      %v206 = vld [vmem:[%s186 + $0x8] sm:$0xf]
      %v207 = vld [vmem:[%s186 + $0xc] sm:$0xf]
      %v208 = vld [vmem:[%s186 + $0x10] sm:$0xf]
      %v209 = vld [vmem:[%s186 + $0x14] sm:$0xf]
      %v210 = vld [vmem:[%s186 + $0x18] sm:$0xf]
      %v211 = vld [vmem:[%s186 + $0x1c] sm:$0xf]
      %v212 = vld [vmem:[%s186 + $0x20] sm:$0xf]
      %v213 = vld [vmem:[%s186 + $0x24] sm:$0xf]
      %v214 = vld [vmem:[%s186 + $0x28] sm:$0xf]
      %v215 = vld [vmem:[%s186 + $0x2c] sm:$0xf]
      %v216 = vld [vmem:[%s186 + $0x30] sm:$0xf]
      %v217 = vld [vmem:[%s186 + $0x34] sm:$0xf]
      %v218 = vld [vmem:[%s186 + $0x38] sm:$0xf]
      %v219 = vld [vmem:[%s186 + $0x3c] sm:$0xf]
      %v220 = vld [vmem:[%s186 + $0x40] sm:$0xf]
      %v221 = vld [vmem:[%s186 + $0x44] sm:$0xf]
      %v222 = vld [vmem:[%s186 + $0x48] sm:$0xf]
      %v223 = vld [vmem:[%s186 + $0x4c] sm:$0xf]
      %v224 = vld [vmem:[%s186 + $0x50] sm:$0xf]
      %v225 = vld [vmem:[%s186 + $0x54] sm:$0xf]
      %v226 = vld [vmem:[%s186 + $0x58] sm:$0xf]
      %v227 = vld [vmem:[%s186 + $0x5c] sm:$0xf]
      %v228 = vld [vmem:[%s186 + $0x60] sm:$0xf]
      %v229 = vld [vmem:[%s186 + $0x64] sm:$0xf]
      %v230 = vld [vmem:[%s186 + $0x68] sm:$0xf]
      %v231 = vld [vmem:[%s186 + $0x6c] sm:$0xf]
      %v232 = vld [vmem:[%s186 + $0x70] sm:$0xf]
      %v233 = vld [vmem:[%s186 + $0x74] sm:$0xf]
      %v234 = vld [vmem:[%s186 + $0x78] sm:$0xf]
      %v235 = vld [vmem:[%s186 + $0x7c] sm:$0xf]
      %v236 = vld [vmem:[%s186 + $0x80] sm:$0xf]
      %v237 = vld [vmem:[%s186 + $0x84] sm:$0xf]
      %v238 = vld [vmem:[%s186 + $0x88] sm:$0xf]
      %v239 = vld [vmem:[%s186 + $0x8c] sm:$0xf]
      %v240 = vld [vmem:[%s186 + $0x90] sm:$0xf]
      %v241 = vld [vmem:[%s186 + $0x94] sm:$0xf]
      %v242 = vld [vmem:[%s186 + $0x98] sm:$0xf]
      %v243 = vld [vmem:[%s186 + $0x9c] sm:$0xf]
      %v244 = vld [vmem:[%s186 + $0xa0] sm:$0xf]
      %v245 = vld [vmem:[%s186 + $0xa4] sm:$0xf]
      %v246 = vld [vmem:[%s186 + $0xa8] sm:$0xf]
      %v247 = vld [vmem:[%s186 + $0xac] sm:$0xf]
      %v248 = vld [vmem:[%s186 + $0xb0] sm:$0xf]
      %v249 = vld [vmem:[%s186 + $0xb4] sm:$0xf]
      %v250 = vld [vmem:[%s186 + $0xb8] sm:$0xf]
      %v251 = vld [vmem:[%s186 + $0xbc] sm:$0xf]
      %v252 = vld [vmem:[%s186 + $0xc0] sm:$0xf]
      %v253 = vld [vmem:[%s186 + $0xc4] sm:$0xf]
      %v254 = vld [vmem:[%s186 + $0xc8] sm:$0xf]
      %v255 = vld [vmem:[%s186 + $0xcc] sm:$0xf]
      %v256 = vld [vmem:[%s186 + $0xd0] sm:$0xf]
      %v257 = vld [vmem:[%s186 + $0xd4] sm:$0xf]
      %v258 = vld [vmem:[%s186 + $0xd8] sm:$0xf]
      %v259 = vld [vmem:[%s186 + $0xdc] sm:$0xf]
      %v260 = vld [vmem:[%s186 + $0xe0] sm:$0xf]
      %v261 = vld [vmem:[%s186 + $0xe4] sm:$0xf]
      %v262 = vld [vmem:[%s186 + $0xe8] sm:$0xf]
      %v263 = vld [vmem:[%s186 + $0xec] sm:$0xf]
      %v264 = vld [vmem:[%s186 + $0xf0] sm:$0xf]
      %v265 = vld [vmem:[%s186 + $0xf4] sm:$0xf]
      %v266 = vld [vmem:[%s186 + $0xf8] sm:$0xf]
      %v267 = vld [vmem:[%s186 + $0xfc] sm:$0xf]
      %v268 = vld [vmem:[%s186 + $0x100] sm:$0xf]
      %v269 = vld [vmem:[%s186 + $0x104] sm:$0xf]
      %v270 = vld [vmem:[%s186 + $0x108] sm:$0xf]
      %v271 = vld [vmem:[%s186 + $0x10c] sm:$0xf]
      %v272 = vld [vmem:[%s186 + $0x110] sm:$0xf]
      %v273 = vld [vmem:[%s186 + $0x114] sm:$0xf]
      %v274 = vld [vmem:[%s186 + $0x118] sm:$0xf]
      %v275 = vld [vmem:[%s186 + $0x11c] sm:$0xf]
      %v276 = vld [vmem:[%s186 + $0x120] sm:$0xf]
      %v277 = vld [vmem:[%s186 + $0x124] sm:$0xf]
      %v278 = vld [vmem:[%s186 + $0x128] sm:$0xf]
      %v279 = vld [vmem:[%s186 + $0x12c] sm:$0xf]
      %v280 = vld [vmem:[%s186 + $0x130] sm:$0xf]
      %v281 = vld [vmem:[%s186 + $0x134] sm:$0xf]
      %v282 = vld [vmem:[%s186 + $0x138] sm:$0xf]
      %v283 = vld [vmem:[%s186 + $0x13c] sm:$0xf]
      %v284 = vld [vmem:[%s186 + $0x140] sm:$0xf]
      %v285 = vld [vmem:[%s186 + $0x144] sm:$0xf]
      %v286 = vld [vmem:[%s186 + $0x148] sm:$0xf]
      %v287 = vld [vmem:[%s186 + $0x14c] sm:$0xf]
      %v288 = vld [vmem:[%s186 + $0x150] sm:$0xf]
      %v289 = vld [vmem:[%s186 + $0x154] sm:$0xf]
      %v290 = vld [vmem:[%s186 + $0x158] sm:$0xf]
      %v291 = vld [vmem:[%s186 + $0x15c] sm:$0xf]
      %v292 = vld [vmem:[%s186 + $0x160] sm:$0xf]
      %v293 = vld [vmem:[%s186 + $0x164] sm:$0xf]
      %v294 = vld [vmem:[%s186 + $0x168] sm:$0xf]
      %v295 = vld [vmem:[%s186 + $0x16c] sm:$0xf]
      %v296 = vld [vmem:[%s186 + $0x170] sm:$0xf]
      %v297 = vld [vmem:[%s186 + $0x174] sm:$0xf]
      %v298 = vld [vmem:[%s186 + $0x178] sm:$0xf]
      %v299 = vld [vmem:[%s186 + $0x17c] sm:$0xf]
      %v300 = vld [vmem:[%s186 + $0x180] sm:$0xf]
      %v301 = vld [vmem:[%s186 + $0x184] sm:$0xf]
      %v302 = vld [vmem:[%s186 + $0x188] sm:$0xf]
      %v303 = vld [vmem:[%s186 + $0x18c] sm:$0xf]
      %v304 = vld [vmem:[%s186 + $0x190] sm:$0xf]
      %v305 = vld [vmem:[%s186 + $0x194] sm:$0xf]
      %v306 = vld [vmem:[%s186 + $0x198] sm:$0xf]
      %v307 = vld [vmem:[%s186 + $0x19c] sm:$0xf]
      %v308 = vld [vmem:[%s186 + $0x1a0] sm:$0xf]
      %v309 = vld [vmem:[%s186 + $0x1a4] sm:$0xf]
      %v310 = vld [vmem:[%s186 + $0x1a8] sm:$0xf]
      %v311 = vld [vmem:[%s186 + $0x1ac] sm:$0xf]
      %v312 = vld [vmem:[%s186 + $0x1b0] sm:$0xf]
      %v313 = vld [vmem:[%s186 + $0x1b4] sm:$0xf]
      %v314 = vld [vmem:[%s186 + $0x1b8] sm:$0xf]
      %v315 = vld [vmem:[%s186 + $0x1bc] sm:$0xf]
      %v316 = vld [vmem:[%s186 + $0x1c0] sm:$0xf]
      %v317 = vld [vmem:[%s186 + $0x1c4] sm:$0xf]
      %v318 = vld [vmem:[%s186 + $0x1c8] sm:$0xf]
      %v319 = vld [vmem:[%s186 + $0x1cc] sm:$0xf]
      %v320 = vld [vmem:[%s186 + $0x1d0] sm:$0xf]
      %v321 = vld [vmem:[%s186 + $0x1d4] sm:$0xf]
      %v322 = vld [vmem:[%s186 + $0x1d8] sm:$0xf]
      %v323 = vld [vmem:[%s186 + $0x1dc] sm:$0xf]
      %v324 = vld [vmem:[%s186 + $0x1e0] sm:$0xf]
      %v325 = vld [vmem:[%s186 + $0x1e4] sm:$0xf]
      %v326 = vld [vmem:[%s186 + $0x1e8] sm:$0xf]
      %v327 = vld [vmem:[%s186 + $0x1ec] sm:$0xf]
      %v328 = vld [vmem:[%s186 + $0x1f0] sm:$0xf]
      %v329 = vld [vmem:[%s186 + $0x1f4] sm:$0xf]
      %v330 = vld [vmem:[%s186 + $0x1f8] sm:$0xf]
      %v331 = vld [vmem:[%s186 + $0x1fc] sm:$0xf]
      %v332 = vld [vmem:[%s186 + $0x200] sm:$0xf]
      %v333 = vld [vmem:[%s186 + $0x204] sm:$0xf]
      %v334 = vld [vmem:[%s186 + $0x208] sm:$0xf]
      %v335 = vld [vmem:[%s186 + $0x20c] sm:$0xf]
      %v336 = vld [vmem:[%s186 + $0x210] sm:$0xf]
      %v337 = vld [vmem:[%s186 + $0x214] sm:$0xf]
      %v338 = vld [vmem:[%s186 + $0x218] sm:$0xf]
      %v339 = vld [vmem:[%s186 + $0x21c] sm:$0xf]
      %v340 = vld [vmem:[%s186 + $0x220] sm:$0xf]
      %v341 = vld [vmem:[%s186 + $0x224] sm:$0xf]
      %v342 = vld [vmem:[%s186 + $0x228] sm:$0xf]
      %v343 = vld [vmem:[%s186 + $0x22c] sm:$0xf]
      %v344 = vld [vmem:[%s186 + $0x230] sm:$0xf]
      %v345 = vld [vmem:[%s186 + $0x234] sm:$0xf]
      %v346 = vld [vmem:[%s186 + $0x238] sm:$0xf]
      %v347 = vld [vmem:[%s186 + $0x23c] sm:$0xf]
      %v348 = vld [vmem:[%s186 + $0x240] sm:$0xf]
      %v349 = vld [vmem:[%s186 + $0x244] sm:$0xf]
      %v350 = vld [vmem:[%s186 + $0x248] sm:$0xf]
      %v351 = vld [vmem:[%s186 + $0x24c] sm:$0xf]
      %v352 = vld [vmem:[%s186 + $0x250] sm:$0xf]
      %v353 = vld [vmem:[%s186 + $0x254] sm:$0xf]
      %v354 = vld [vmem:[%s186 + $0x258] sm:$0xf]
      %v355 = vld [vmem:[%s186 + $0x25c] sm:$0xf]
      %v356 = vld [vmem:[%s186 + $0x260] sm:$0xf]
      %v357 = vld [vmem:[%s186 + $0x264] sm:$0xf]
      %v358 = vld [vmem:[%s186 + $0x268] sm:$0xf]
      %v359 = vld [vmem:[%s186 + $0x26c] sm:$0xf]
      %v360 = vld [vmem:[%s186 + $0x270] sm:$0xf]
      %v361 = vld [vmem:[%s186 + $0x274] sm:$0xf]
      %v362 = vld [vmem:[%s186 + $0x278] sm:$0xf]
      %v363 = vld [vmem:[%s186 + $0x27c] sm:$0xf]
      %v364 = vld [vmem:[%s186 + $0x280] sm:$0xf]
      %v365 = vld [vmem:[%s186 + $0x284] sm:$0xf]
      %v366 = vld [vmem:[%s186 + $0x288] sm:$0xf]
      %v367 = vld [vmem:[%s186 + $0x28c] sm:$0xf]
      %v368 = vld [vmem:[%s186 + $0x290] sm:$0xf]
      %v369 = vld [vmem:[%s186 + $0x294] sm:$0xf]
      %v370 = vld [vmem:[%s186 + $0x298] sm:$0xf]
      %v371 = vld [vmem:[%s186 + $0x29c] sm:$0xf]
      %v372 = vld [vmem:[%s186 + $0x2a0] sm:$0xf]
      %v373 = vld [vmem:[%s186 + $0x2a4] sm:$0xf]
      %v374 = vld [vmem:[%s186 + $0x2a8] sm:$0xf]
      %v375 = vld [vmem:[%s186 + $0x2ac] sm:$0xf]
      %v376 = vld [vmem:[%s186 + $0x2b0] sm:$0xf]
      %v377 = vld [vmem:[%s186 + $0x2b4] sm:$0xf]
      %v378 = vld [vmem:[%s186 + $0x2b8] sm:$0xf]
      %v379 = vld [vmem:[%s186 + $0x2bc] sm:$0xf]
      %v380 = vld [vmem:[%s186 + $0x2c0] sm:$0xf]
      %v381 = vld [vmem:[%s186 + $0x2c4] sm:$0xf]
      %v382 = vld [vmem:[%s186 + $0x2c8] sm:$0xf]
      %v383 = vld [vmem:[%s186 + $0x2cc] sm:$0xf]
      %v384 = vld [vmem:[%s186 + $0x2d0] sm:$0xf]
      %v385 = vld [vmem:[%s186 + $0x2d4] sm:$0xf]
      %v386 = vld [vmem:[%s186 + $0x2d8] sm:$0xf]
      %v387 = vld [vmem:[%s186 + $0x2dc] sm:$0xf]
      %v388 = vld [vmem:[%s186 + $0x2e0] sm:$0xf]
      %v389 = vld [vmem:[%s186 + $0x2e4] sm:$0xf]
      %v390 = vld [vmem:[%s186 + $0x2e8] sm:$0xf]
      %v391 = vld [vmem:[%s186 + $0x2ec] sm:$0xf]
      %v392 = vld [vmem:[%s186 + $0x2f0] sm:$0xf]
      %v393 = vld [vmem:[%s186 + $0x2f4] sm:$0xf]
      %v394 = vld [vmem:[%s186 + $0x2f8] sm:$0xf]
      %v395 = vld [vmem:[%s186 + $0x2fc] sm:$0xf]
      %v396 = vld [vmem:[%s186 + $0x300] sm:$0xf]
      %v397 = vld [vmem:[%s186 + $0x304] sm:$0xf]
      %v398 = vld [vmem:[%s186 + $0x308] sm:$0xf]
      %v399 = vld [vmem:[%s186 + $0x30c] sm:$0xf]
      %v400 = vld [vmem:[%s186 + $0x310] sm:$0xf]
      %v401 = vld [vmem:[%s186 + $0x314] sm:$0xf]
      %v402 = vld [vmem:[%s186 + $0x318] sm:$0xf]
      %v403 = vld [vmem:[%s186 + $0x31c] sm:$0xf]
      %v404 = vld [vmem:[%s186 + $0x320] sm:$0xf]
      %v405 = vld [vmem:[%s186 + $0x324] sm:$0xf]
      %v406 = vld [vmem:[%s186 + $0x328] sm:$0xf]
      %v407 = vld [vmem:[%s186 + $0x32c] sm:$0xf]
      %v408 = vld [vmem:[%s186 + $0x330] sm:$0xf]
      %v409 = vld [vmem:[%s186 + $0x334] sm:$0xf]
      %v410 = vld [vmem:[%s186 + $0x338] sm:$0xf]
      %v411 = vld [vmem:[%s186 + $0x33c] sm:$0xf]
      %v412 = vld [vmem:[%s186 + $0x340] sm:$0xf]
      %v413 = vld [vmem:[%s186 + $0x344] sm:$0xf]
      %v414 = vld [vmem:[%s186 + $0x348] sm:$0xf]
      %v415 = vld [vmem:[%s186 + $0x34c] sm:$0xf]
      %v416 = vld [vmem:[%s186 + $0x350] sm:$0xf]
      %v417 = vld [vmem:[%s186 + $0x354] sm:$0xf]
      %v418 = vld [vmem:[%s186 + $0x358] sm:$0xf]
      %v419 = vld [vmem:[%s186 + $0x35c] sm:$0xf]
      %v420 = vld [vmem:[%s186 + $0x360] sm:$0xf]
      %v421 = vld [vmem:[%s186 + $0x364] sm:$0xf]
      %v422 = vld [vmem:[%s186 + $0x368] sm:$0xf]
      %v423 = vld [vmem:[%s186 + $0x36c] sm:$0xf]
      %v424 = vld [vmem:[%s186 + $0x370] sm:$0xf]
      %v425 = vld [vmem:[%s186 + $0x374] sm:$0xf]
      %v426 = vld [vmem:[%s186 + $0x378] sm:$0xf]
      %v427 = vld [vmem:[%s186 + $0x37c] sm:$0xf]
      %v428 = vld [vmem:[%s186 + $0x380] sm:$0xf]
      %v429 = vld [vmem:[%s186 + $0x384] sm:$0xf]
      %v430 = vld [vmem:[%s186 + $0x388] sm:$0xf]
      %v431 = vld [vmem:[%s186 + $0x38c] sm:$0xf]
      %v432 = vld [vmem:[%s186 + $0x390] sm:$0xf]
      %v433 = vld [vmem:[%s186 + $0x394] sm:$0xf]
      %v434 = vld [vmem:[%s186 + $0x398] sm:$0xf]
      %v435 = vld [vmem:[%s186 + $0x39c] sm:$0xf]
      %v436 = vld [vmem:[%s186 + $0x3a0] sm:$0xf]
      %v437 = vld [vmem:[%s186 + $0x3a4] sm:$0xf]
      %v438 = vld [vmem:[%s186 + $0x3a8] sm:$0xf]
      %v439 = vld [vmem:[%s186 + $0x3ac] sm:$0xf]
      %v440 = vld [vmem:[%s186 + $0x3b0] sm:$0xf]
      %v441 = vld [vmem:[%s186 + $0x3b4] sm:$0xf]
      %v442 = vld [vmem:[%s186 + $0x3b8] sm:$0xf]
      %v443 = vld [vmem:[%s186 + $0x3bc] sm:$0xf]
      %v444 = vld [vmem:[%s186 + $0x3c0] sm:$0xf]
      %v445 = vld [vmem:[%s186 + $0x3c4] sm:$0xf]
      %v446 = vld [vmem:[%s186 + $0x3c8] sm:$0xf]
      %v447 = vld [vmem:[%s186 + $0x3cc] sm:$0xf]
      %v448 = vld [vmem:[%s186 + $0x3d0] sm:$0xf]
      %v449 = vld [vmem:[%s186 + $0x3d4] sm:$0xf]
      %v450 = vld [vmem:[%s186 + $0x3d8] sm:$0xf]
      %v451 = vld [vmem:[%s186 + $0x3dc] sm:$0xf]
      %v452 = vld [vmem:[%s186 + $0x3e0] sm:$0xf]
      %v453 = vld [vmem:[%s186 + $0x3e4] sm:$0xf]
      %v454 = vld [vmem:[%s186 + $0x3e8] sm:$0xf]
      %v455 = vld [vmem:[%s186 + $0x3ec] sm:$0xf]
      %v456 = vld [vmem:[%s186 + $0x3f0] sm:$0xf]
      %v457 = vld [vmem:[%s186 + $0x3f4] sm:$0xf]
      %v458 = vld [vmem:[%s186 + $0x3f8] sm:$0xf]
      %v459 = vld [vmem:[%s186 + $0x3fc] sm:$0xf]
      %v460 = vld [vmem:[%s192] sm:$0xf]
      %v461 = vld [vmem:[%s192 + $0x4] sm:$0xf]
      %v462 = vld [vmem:[%s192 + $0x8] sm:$0xf]
      %v463 = vld [vmem:[%s192 + $0xc] sm:$0xf]
      %v464 = vld [vmem:[%s192 + $0x10] sm:$0xf]
      %v465 = vld [vmem:[%s192 + $0x14] sm:$0xf]
      %v466 = vld [vmem:[%s192 + $0x18] sm:$0xf]
      %v467 = vld [vmem:[%s192 + $0x1c] sm:$0xf]
      %v468 = vld [vmem:[%s192 + $0x20] sm:$0xf]
      %v469 = vld [vmem:[%s192 + $0x24] sm:$0xf]
      %v470 = vld [vmem:[%s192 + $0x28] sm:$0xf]
      %v471 = vld [vmem:[%s192 + $0x2c] sm:$0xf]
      %v472 = vld [vmem:[%s192 + $0x30] sm:$0xf]
      %v473 = vld [vmem:[%s192 + $0x34] sm:$0xf]
      %v474 = vld [vmem:[%s192 + $0x38] sm:$0xf]
      %v475 = vld [vmem:[%s192 + $0x3c] sm:$0xf]
      %v732 = vunpack.c.l.b16 %v204
      %v733 = vunpack.c.l.b16 %v205
      %v734 = vunpack.c.l.b16 %v206
      %v735 = vunpack.c.l.b16 %v207
      %v736 = vunpack.c.l.b16 %v208
      %v737 = vunpack.c.l.b16 %v209
      %v738 = vunpack.c.l.b16 %v210
      %v739 = vunpack.c.l.b16 %v211
      %v740 = vunpack.c.l.b16 %v212
      %v741 = vunpack.c.l.b16 %v213
      %v742 = vunpack.c.l.b16 %v214
      %v743 = vunpack.c.l.b16 %v215
      %v744 = vunpack.c.l.b16 %v216
      %v745 = vunpack.c.l.b16 %v217
      %v746 = vunpack.c.l.b16 %v218
      %v747 = vunpack.c.l.b16 %v219
      %v748 = vunpack.c.l.b16 %v220
      %v749 = vunpack.c.l.b16 %v221
      %v750 = vunpack.c.l.b16 %v222
      %v751 = vunpack.c.l.b16 %v223
      %v752 = vunpack.c.l.b16 %v224
      %v753 = vunpack.c.l.b16 %v225
      %v754 = vunpack.c.l.b16 %v226
      %v755 = vunpack.c.l.b16 %v227
      %v756 = vunpack.c.l.b16 %v228
      %v757 = vunpack.c.l.b16 %v229
      %v758 = vunpack.c.l.b16 %v230
      %v759 = vunpack.c.l.b16 %v231
      %v760 = vunpack.c.l.b16 %v232
      %v761 = vunpack.c.l.b16 %v233
      %v762 = vunpack.c.l.b16 %v234
      %v763 = vunpack.c.l.b16 %v235
      %v764 = vunpack.c.l.b16 %v236
      %v765 = vunpack.c.l.b16 %v237
      %v766 = vunpack.c.l.b16 %v238
      %v767 = vunpack.c.l.b16 %v239
      %v768 = vunpack.c.l.b16 %v240
      %v769 = vunpack.c.l.b16 %v241
      %v770 = vunpack.c.l.b16 %v242
      %v771 = vunpack.c.l.b16 %v243
      %v772 = vunpack.c.l.b16 %v244
      %v773 = vunpack.c.l.b16 %v245
      %v774 = vunpack.c.l.b16 %v246
      %v775 = vunpack.c.l.b16 %v247
      %v776 = vunpack.c.l.b16 %v248
      %v777 = vunpack.c.l.b16 %v249
      %v778 = vunpack.c.l.b16 %v250
      %v779 = vunpack.c.l.b16 %v251
      %v780 = vunpack.c.l.b16 %v252
      %v781 = vunpack.c.l.b16 %v253
      %v782 = vunpack.c.l.b16 %v254
      %v783 = vunpack.c.l.b16 %v255
      %v784 = vunpack.c.l.b16 %v256
      %v785 = vunpack.c.l.b16 %v257
      %v786 = vunpack.c.l.b16 %v258
      %v787 = vunpack.c.l.b16 %v259
      %v788 = vunpack.c.l.b16 %v260
      %v789 = vunpack.c.l.b16 %v261
      %v790 = vunpack.c.l.b16 %v262
      %v791 = vunpack.c.l.b16 %v263
      %v792 = vunpack.c.l.b16 %v264
      %v793 = vunpack.c.l.b16 %v265
      %v794 = vunpack.c.l.b16 %v266
      %v795 = vunpack.c.l.b16 %v267
      %v796 = vunpack.c.l.b16 %v268
      %v797 = vunpack.c.l.b16 %v269
      %v798 = vunpack.c.l.b16 %v270
      %v799 = vunpack.c.l.b16 %v271
      %v800 = vunpack.c.l.b16 %v272
      %v801 = vunpack.c.l.b16 %v273
      %v802 = vunpack.c.l.b16 %v274
      %v803 = vunpack.c.l.b16 %v275
      %v804 = vunpack.c.l.b16 %v276
      %v805 = vunpack.c.l.b16 %v277
      %v806 = vunpack.c.l.b16 %v278
      %v807 = vunpack.c.l.b16 %v279
      %v808 = vunpack.c.l.b16 %v280
      %v809 = vunpack.c.l.b16 %v281
      %v810 = vunpack.c.l.b16 %v282
      %v811 = vunpack.c.l.b16 %v283
      %v812 = vunpack.c.l.b16 %v284
      %v813 = vunpack.c.l.b16 %v285
      %v814 = vunpack.c.l.b16 %v286
      %v815 = vunpack.c.l.b16 %v287
      %v816 = vunpack.c.l.b16 %v288
      %v817 = vunpack.c.l.b16 %v289
      %v818 = vunpack.c.l.b16 %v290
      %v819 = vunpack.c.l.b16 %v291
      %v820 = vunpack.c.l.b16 %v292
      %v821 = vunpack.c.l.b16 %v293
      %v822 = vunpack.c.l.b16 %v294
      %v823 = vunpack.c.l.b16 %v295
      %v824 = vunpack.c.l.b16 %v296
      %v825 = vunpack.c.l.b16 %v297
      %v826 = vunpack.c.l.b16 %v298
      %v827 = vunpack.c.l.b16 %v299
      %v828 = vunpack.c.l.b16 %v300
      %v829 = vunpack.c.l.b16 %v301
      %v830 = vunpack.c.l.b16 %v302
      %v831 = vunpack.c.l.b16 %v303
      %v832 = vunpack.c.l.b16 %v304
      %v833 = vunpack.c.l.b16 %v305
      %v834 = vunpack.c.l.b16 %v306
      %v835 = vunpack.c.l.b16 %v307
      %v836 = vunpack.c.l.b16 %v308
      %v837 = vunpack.c.l.b16 %v309
      %v838 = vunpack.c.l.b16 %v310
      %v839 = vunpack.c.l.b16 %v311
      %v840 = vunpack.c.l.b16 %v312
      %v841 = vunpack.c.l.b16 %v313
      %v842 = vunpack.c.l.b16 %v314
      %v843 = vunpack.c.l.b16 %v315
      %v844 = vunpack.c.l.b16 %v316
      %v845 = vunpack.c.l.b16 %v317
      %v846 = vunpack.c.l.b16 %v318
      %v847 = vunpack.c.l.b16 %v319
      %v848 = vunpack.c.l.b16 %v320
      %v849 = vunpack.c.l.b16 %v321
      %v850 = vunpack.c.l.b16 %v322
      %v851 = vunpack.c.l.b16 %v323
      %v852 = vunpack.c.l.b16 %v324
      %v853 = vunpack.c.l.b16 %v325
      %v854 = vunpack.c.l.b16 %v326
      %v855 = vunpack.c.l.b16 %v327
      %v856 = vunpack.c.l.b16 %v328
      %v857 = vunpack.c.l.b16 %v329
      %v858 = vunpack.c.l.b16 %v330
      %v859 = vunpack.c.l.b16 %v331
      %v860 = vunpack.c.l.b16 %v332
      %v861 = vunpack.c.l.b16 %v333
      %v862 = vunpack.c.l.b16 %v334
      %v863 = vunpack.c.l.b16 %v335
      %v864 = vunpack.c.l.b16 %v336
      %v865 = vunpack.c.l.b16 %v337
      %v866 = vunpack.c.l.b16 %v338
      %v867 = vunpack.c.l.b16 %v339
      %v868 = vunpack.c.l.b16 %v340
      %v869 = vunpack.c.l.b16 %v341
      %v870 = vunpack.c.l.b16 %v342
      %v871 = vunpack.c.l.b16 %v343
      %v872 = vunpack.c.l.b16 %v344
      %v873 = vunpack.c.l.b16 %v345
      %v874 = vunpack.c.l.b16 %v346
      %v875 = vunpack.c.l.b16 %v347
      %v876 = vunpack.c.l.b16 %v348
      %v877 = vunpack.c.l.b16 %v349
      %v878 = vunpack.c.l.b16 %v350
      %v879 = vunpack.c.l.b16 %v351
      %v880 = vunpack.c.l.b16 %v352
      %v881 = vunpack.c.l.b16 %v353
      %v882 = vunpack.c.l.b16 %v354
      %v883 = vunpack.c.l.b16 %v355
      %v884 = vunpack.c.l.b16 %v356
      %v885 = vunpack.c.l.b16 %v357
      %v886 = vunpack.c.l.b16 %v358
      %v887 = vunpack.c.l.b16 %v359
      %v888 = vunpack.c.l.b16 %v360
      %v889 = vunpack.c.l.b16 %v361
      %v890 = vunpack.c.l.b16 %v362
      %v891 = vunpack.c.l.b16 %v363
      %v892 = vunpack.c.l.b16 %v364
      %v893 = vunpack.c.l.b16 %v365
      %v894 = vunpack.c.l.b16 %v366
      %v895 = vunpack.c.l.b16 %v367
      %v896 = vunpack.c.l.b16 %v368
      %v897 = vunpack.c.l.b16 %v369
      %v898 = vunpack.c.l.b16 %v370
      %v899 = vunpack.c.l.b16 %v371
      %v900 = vunpack.c.l.b16 %v372
      %v901 = vunpack.c.l.b16 %v373
      %v902 = vunpack.c.l.b16 %v374
      %v903 = vunpack.c.l.b16 %v375
      %v904 = vunpack.c.l.b16 %v376
      %v905 = vunpack.c.l.b16 %v377
      %v906 = vunpack.c.l.b16 %v378
      %v907 = vunpack.c.l.b16 %v379
      %v908 = vunpack.c.l.b16 %v380
      %v909 = vunpack.c.l.b16 %v381
      %v910 = vunpack.c.l.b16 %v382
      %v911 = vunpack.c.l.b16 %v383
      %v912 = vunpack.c.l.b16 %v384
      %v913 = vunpack.c.l.b16 %v385
      %v914 = vunpack.c.l.b16 %v386
      %v915 = vunpack.c.l.b16 %v387
      %v916 = vunpack.c.l.b16 %v388
      %v917 = vunpack.c.l.b16 %v389
      %v918 = vunpack.c.l.b16 %v390
      %v919 = vunpack.c.l.b16 %v391
      %v920 = vunpack.c.l.b16 %v392
      %v921 = vunpack.c.l.b16 %v393
      %v922 = vunpack.c.l.b16 %v394
      %v923 = vunpack.c.l.b16 %v395
      %v924 = vunpack.c.l.b16 %v396
      %v925 = vunpack.c.l.b16 %v397
      %v926 = vunpack.c.l.b16 %v398
      %v927 = vunpack.c.l.b16 %v399
      %v928 = vunpack.c.l.b16 %v400
      %v929 = vunpack.c.l.b16 %v401
      %v930 = vunpack.c.l.b16 %v402
      %v931 = vunpack.c.l.b16 %v403
      %v932 = vunpack.c.l.b16 %v404
      %v933 = vunpack.c.l.b16 %v405
      %v934 = vunpack.c.l.b16 %v406
      %v935 = vunpack.c.l.b16 %v407
      %v936 = vunpack.c.l.b16 %v408
      %v937 = vunpack.c.l.b16 %v409
      %v938 = vunpack.c.l.b16 %v410
      %v939 = vunpack.c.l.b16 %v411
      %v940 = vunpack.c.l.b16 %v412
      %v941 = vunpack.c.l.b16 %v413
      %v942 = vunpack.c.l.b16 %v414
      %v943 = vunpack.c.l.b16 %v415
      %v944 = vunpack.c.l.b16 %v416
      %v945 = vunpack.c.l.b16 %v417
      %v946 = vunpack.c.l.b16 %v418
      %v947 = vunpack.c.l.b16 %v419
      %v948 = vunpack.c.l.b16 %v420
      %v949 = vunpack.c.l.b16 %v421
      %v950 = vunpack.c.l.b16 %v422
      %v951 = vunpack.c.l.b16 %v423
      %v952 = vunpack.c.l.b16 %v424
      %v953 = vunpack.c.l.b16 %v425
      %v954 = vunpack.c.l.b16 %v426
      %v955 = vunpack.c.l.b16 %v427
      %v956 = vunpack.c.l.b16 %v428
      %v957 = vunpack.c.l.b16 %v429
      %v958 = vunpack.c.l.b16 %v430
      %v959 = vunpack.c.l.b16 %v431
      %v960 = vunpack.c.l.b16 %v432
      %v961 = vunpack.c.l.b16 %v433
      %v962 = vunpack.c.l.b16 %v434
      %v963 = vunpack.c.l.b16 %v435
      %v964 = vunpack.c.l.b16 %v436
      %v965 = vunpack.c.l.b16 %v437
      %v966 = vunpack.c.l.b16 %v438
      %v967 = vunpack.c.l.b16 %v439
      %v968 = vunpack.c.l.b16 %v440
      %v969 = vunpack.c.l.b16 %v441
      %v970 = vunpack.c.l.b16 %v442
      %v971 = vunpack.c.l.b16 %v443
      %v972 = vunpack.c.l.b16 %v444
      %v973 = vunpack.c.l.b16 %v445
      %v974 = vunpack.c.l.b16 %v446
      %v975 = vunpack.c.l.b16 %v447
      %v976 = vunpack.c.l.b16 %v448
      %v977 = vunpack.c.l.b16 %v449
      %v978 = vunpack.c.l.b16 %v450
      %v979 = vunpack.c.l.b16 %v451
      %v980 = vunpack.c.l.b16 %v452
      %v981 = vunpack.c.l.b16 %v453
      %v982 = vunpack.c.l.b16 %v454
      %v983 = vunpack.c.l.b16 %v455
      %v984 = vunpack.c.l.b16 %v456
      %v985 = vunpack.c.l.b16 %v457
      %v986 = vunpack.c.l.b16 %v458
      %v987 = vunpack.c.l.b16 %v459
      %v988 = vpack.c.b16 %v733, %v732
      %v989 = vpack.c.b16 %v735, %v734
      %v990 = vpack.c.b16 %v737, %v736
      %v991 = vpack.c.b16 %v739, %v738
      %v992 = vpack.c.b16 %v741, %v740
      %v993 = vpack.c.b16 %v743, %v742
      %v994 = vpack.c.b16 %v745, %v744
      %v995 = vpack.c.b16 %v747, %v746
      %v996 = vpack.c.b16 %v749, %v748
      %v997 = vpack.c.b16 %v751, %v750
      %v998 = vpack.c.b16 %v753, %v752
      %v999 = vpack.c.b16 %v755, %v754
      %v1000 = vpack.c.b16 %v757, %v756
      %v1001 = vpack.c.b16 %v759, %v758
      %v1002 = vpack.c.b16 %v761, %v760
      %v1003 = vpack.c.b16 %v763, %v762
      %v1004 = vpack.c.b16 %v765, %v764
      %v1005 = vpack.c.b16 %v767, %v766
      %v1006 = vpack.c.b16 %v769, %v768
      %v1007 = vpack.c.b16 %v771, %v770
      %v1008 = vpack.c.b16 %v773, %v772
      %v1009 = vpack.c.b16 %v775, %v774
      %v1010 = vpack.c.b16 %v777, %v776
      %v1011 = vpack.c.b16 %v779, %v778
      %v1012 = vpack.c.b16 %v781, %v780
      %v1013 = vpack.c.b16 %v783, %v782
      %v1014 = vpack.c.b16 %v785, %v784
      %v1015 = vpack.c.b16 %v787, %v786
      %v1016 = vpack.c.b16 %v789, %v788
      %v1017 = vpack.c.b16 %v791, %v790
      %v1018 = vpack.c.b16 %v793, %v792
      %v1019 = vpack.c.b16 %v795, %v794
      %v1020 = vpack.c.b16 %v797, %v796
      %v1021 = vpack.c.b16 %v799, %v798
      %v1022 = vpack.c.b16 %v801, %v800
      %v1023 = vpack.c.b16 %v803, %v802
      %v1024 = vpack.c.b16 %v805, %v804
      %v1025 = vpack.c.b16 %v807, %v806
      %v1026 = vpack.c.b16 %v809, %v808
      %v1027 = vpack.c.b16 %v811, %v810
      %v1028 = vpack.c.b16 %v813, %v812
      %v1029 = vpack.c.b16 %v815, %v814
      %v1030 = vpack.c.b16 %v817, %v816
      %v1031 = vpack.c.b16 %v819, %v818
      %v1032 = vpack.c.b16 %v821, %v820
      %v1033 = vpack.c.b16 %v823, %v822
      %v1034 = vpack.c.b16 %v825, %v824
      %v1035 = vpack.c.b16 %v827, %v826
      %v1036 = vpack.c.b16 %v829, %v828
      %v1037 = vpack.c.b16 %v831, %v830
      %v1038 = vpack.c.b16 %v833, %v832
      %v1039 = vpack.c.b16 %v835, %v834
      %v1040 = vpack.c.b16 %v837, %v836
      %v1041 = vpack.c.b16 %v839, %v838
      %v1042 = vpack.c.b16 %v841, %v840
      %v1043 = vpack.c.b16 %v843, %v842
      %v1044 = vpack.c.b16 %v845, %v844
      %v1045 = vpack.c.b16 %v847, %v846
      %v1046 = vpack.c.b16 %v849, %v848
      %v1047 = vpack.c.b16 %v851, %v850
      %v1048 = vpack.c.b16 %v853, %v852
      %v1049 = vpack.c.b16 %v855, %v854
      %v1050 = vpack.c.b16 %v857, %v856
      %v1051 = vpack.c.b16 %v859, %v858
      %v1052 = vpack.c.b16 %v861, %v860
      %v1053 = vpack.c.b16 %v863, %v862
      %v1054 = vpack.c.b16 %v865, %v864
      %v1055 = vpack.c.b16 %v867, %v866
      %v1056 = vpack.c.b16 %v869, %v868
      %v1057 = vpack.c.b16 %v871, %v870
      %v1058 = vpack.c.b16 %v873, %v872
      %v1059 = vpack.c.b16 %v875, %v874
      %v1060 = vpack.c.b16 %v877, %v876
      %v1061 = vpack.c.b16 %v879, %v878
      %v1062 = vpack.c.b16 %v881, %v880
      %v1063 = vpack.c.b16 %v883, %v882
      %v1064 = vpack.c.b16 %v885, %v884
      %v1065 = vpack.c.b16 %v887, %v886
      %v1066 = vpack.c.b16 %v889, %v888
      %v1067 = vpack.c.b16 %v891, %v890
      %v1068 = vpack.c.b16 %v893, %v892
      %v1069 = vpack.c.b16 %v895, %v894
      %v1070 = vpack.c.b16 %v897, %v896
      %v1071 = vpack.c.b16 %v899, %v898
      %v1072 = vpack.c.b16 %v901, %v900
      %v1073 = vpack.c.b16 %v903, %v902
      %v1074 = vpack.c.b16 %v905, %v904
      %v1075 = vpack.c.b16 %v907, %v906
      %v1076 = vpack.c.b16 %v909, %v908
      %v1077 = vpack.c.b16 %v911, %v910
      %v1078 = vpack.c.b16 %v913, %v912
      %v1079 = vpack.c.b16 %v915, %v914
      %v1080 = vpack.c.b16 %v917, %v916
      %v1081 = vpack.c.b16 %v919, %v918
      %v1082 = vpack.c.b16 %v921, %v920
      %v1083 = vpack.c.b16 %v923, %v922
      %v1084 = vpack.c.b16 %v925, %v924
      %v1085 = vpack.c.b16 %v927, %v926
      %v1086 = vpack.c.b16 %v929, %v928
      %v1087 = vpack.c.b16 %v931, %v930
      %v1088 = vpack.c.b16 %v933, %v932
      %v1089 = vpack.c.b16 %v935, %v934
      %v1090 = vpack.c.b16 %v937, %v936
      %v1091 = vpack.c.b16 %v939, %v938
      %v1092 = vpack.c.b16 %v941, %v940
      %v1093 = vpack.c.b16 %v943, %v942
      %v1094 = vpack.c.b16 %v945, %v944
      %v1095 = vpack.c.b16 %v947, %v946
      %v1096 = vpack.c.b16 %v949, %v948
      %v1097 = vpack.c.b16 %v951, %v950
      %v1098 = vpack.c.b16 %v953, %v952
      %v1099 = vpack.c.b16 %v955, %v954
      %v1100 = vpack.c.b16 %v957, %v956
      %v1101 = vpack.c.b16 %v959, %v958
      %v1102 = vpack.c.b16 %v961, %v960
      %v1103 = vpack.c.b16 %v963, %v962
      %v1104 = vpack.c.b16 %v965, %v964
      %v1105 = vpack.c.b16 %v967, %v966
      %v1106 = vpack.c.b16 %v969, %v968
      %v1107 = vpack.c.b16 %v971, %v970
      %v1108 = vpack.c.b16 %v973, %v972
      %v1109 = vpack.c.b16 %v975, %v974
      %v1110 = vpack.c.b16 %v977, %v976
      %v1111 = vpack.c.b16 %v979, %v978
      %v1112 = vpack.c.b16 %v981, %v980
      %v1113 = vpack.c.b16 %v983, %v982
      %v1114 = vpack.c.b16 %v985, %v984
      %v1115 = vpack.c.b16 %v987, %v986
      %v1260 = vunpack.c.l.b16 %v460
      %v1261 = vunpack.c.l.b16 %v461
      %v1262 = vunpack.c.l.b16 %v462
      %v1263 = vunpack.c.l.b16 %v463
      %v1264 = vunpack.c.l.b16 %v464
      %v1265 = vunpack.c.l.b16 %v465
      %v1266 = vunpack.c.l.b16 %v466
      %v1267 = vunpack.c.l.b16 %v467
      %v1268 = vunpack.c.l.b16 %v468
      %v1269 = vunpack.c.l.b16 %v469
      %v1270 = vunpack.c.l.b16 %v470
      %v1271 = vunpack.c.l.b16 %v471
      %v1272 = vunpack.c.l.b16 %v472
      %v1273 = vunpack.c.l.b16 %v473
      %v1274 = vunpack.c.l.b16 %v474
      %v1275 = vunpack.c.l.b16 %v475
      %v1276 = vpack.c.b16 %v1261, %v1260
      %v1277 = vpack.c.b16 %v1263, %v1262
      %v1278 = vpack.c.b16 %v1265, %v1264
      %v1279 = vpack.c.b16 %v1267, %v1266
      %v1280 = vpack.c.b16 %v1269, %v1268
      %v1281 = vpack.c.b16 %v1271, %v1270
      %v1282 = vpack.c.b16 %v1273, %v1272
      %v1283 = vpack.c.b16 %v1275, %v1274
      %1292 = vmatprep.subr.bf16.mxu0 0
      %1293 = vmatpush1.bf16.msra.mxu0 %v1276
      %1294 = vmatprep.subr.bf16.mxu0 0
      %1295 = vmatpush1.bf16.msra.mxu0 %v1277
      %1296 = vmatprep.subr.bf16.mxu0 0
      %1297 = vmatpush1.bf16.msra.mxu0 %v1278
      %1298 = vmatprep.subr.bf16.mxu0 0
      %1299 = vmatpush1.bf16.msra.mxu0 %v1279
      %1300 = vmatprep.subr.bf16.mxu0 0
      %1301 = vmatpush1.bf16.msra.mxu0 %v1280
      %1302 = vmatprep.subr.bf16.mxu0 0
      %1303 = vmatpush1.bf16.msra.mxu0 %v1281
      %1304 = vmatprep.subr.bf16.mxu0 0
      %1305 = vmatpush1.bf16.msra.mxu0 %v1282
      %1306 = vmatprep.subr.bf16.mxu0 0
      %1307 = vmatpush1.bf16.msra.mxu0 %v1283
      %1308 = vmatprep.subr.bf16.mxu0 0
      %1309 = vmatpush1.bf16.msra.mxu0 0
      %1310 = vmatprep.subr.bf16.mxu0 0
      %1311 = vmatpush1.bf16.msra.mxu0 0
      %1312 = vmatprep.subr.bf16.mxu0 0
      %1313 = vmatpush1.bf16.msra.mxu0 0
      %1314 = vmatprep.subr.bf16.mxu0 0
      %1315 = vmatpush1.bf16.msra.mxu0 0
      %1316 = vmatprep.subr.bf16.mxu0 0
      %1317 = vmatpush1.bf16.msra.mxu0 0
      %1318 = vmatprep.subr.bf16.mxu0 0
      %1319 = vmatpush1.bf16.msra.mxu0 0
      %1320 = vmatprep.subr.bf16.mxu0 0
      %1321 = vmatpush1.bf16.msra.mxu0 0
      %1322 = vmatprep.subr.bf16.mxu0 0
      %1323 = vmatpush1.bf16.msra.mxu0 0
      %1324 = vmatprep.mubr.bf16.mxu0 0
      %1325 = vmatmul.mubr.bf16.gmra.mrb[0].mxu0 %v988
      %v1326 = vpop.f32.mrb[0].mxu0
      %v1327 = vadd.f32 0.0, %v1326
      %v1328 = vpop.f32.mrb[0].mxu0
      %v1329 = vpop.f32.mrb[0].mxu0
      %v1330 = vadd.f32 0.0, %v1329
      %v1331 = vpop.f32.mrb[0].mxu0
      %1332 = vmatprep.mubr.bf16.mxu0 0
      %1333 = vmatmul.mubr.bf16.gmra.mrb[0].mxu0 %v989
      %v1334 = vpop.f32.mrb[0].mxu0
      %v1335 = vadd.f32 0.0, %v1334
      %v1336 = vpop.f32.mrb[0].mxu0
      %v1337 = vpop.f32.mrb[0].mxu0
      %v1338 = vadd.f32 0.0, %v1337
      %v1339 = vpop.f32.mrb[0].mxu0
      %1340 = vmatprep.mubr.bf16.mxu0 0
      %1341 = vmatmul.mubr.bf16.gmra.mrb[0].mxu0 %v990
      %v1342 = vpop.f32.mrb[0].mxu0
      %v1343 = vadd.f32 0.0, %v1342
      %v1344 = vpop.f32.mrb[0].mxu0
      %v1345 = vpop.f32.mrb[0].mxu0
      %v1346 = vadd.f32 0.0, %v1345
      %v1347 = vpop.f32.mrb[0].mxu0
      %1348 = vmatprep.mubr.bf16.mxu0 0
      %1349 = vmatmul.mubr.bf16.gmra.mrb[0].mxu0 %v991
      %v1350 = vpop.f32.mrb[0].mxu0
      %v1351 = vadd.f32 0.0, %v1350
      %v1352 = vpop.f32.mrb[0].mxu0
      %v1353 = vpop.f32.mrb[0].mxu0
      %v1354 = vadd.f32 0.0, %v1353
      %v1355 = vpop.f32.mrb[0].mxu0
      %1356 = vmatprep.mubr.bf16.mxu0 0
      %1357 = vmatmul.mubr.bf16.gmra.mrb[0].mxu0 %v992
      %v1358 = vpop.f32.mrb[0].mxu0
      %v1359 = vadd.f32 0.0, %v1358
      %v1360 = vpop.f32.mrb[0].mxu0
      %v1361 = vpop.f32.mrb[0].mxu0
      %v1362 = vadd.f32 0.0, %v1361
      %v1363 = vpop.f32.mrb[0].mxu0
      %1364 = vmatprep.mubr.bf16.mxu0 0
      %1365 = vmatmul.mubr.bf16.gmra.mrb[0].mxu0 %v993
      %v1366 = vpop.f32.mrb[0].mxu0
      %v1367 = vadd.f32 0.0, %v1366
      %v1368 = vpop.f32.mrb[0].mxu0
      %v1369 = vpop.f32.mrb[0].mxu0
      %v1370 = vadd.f32 0.0, %v1369
      %v1371 = vpop.f32.mrb[0].mxu0
      %1372 = vmatprep.mubr.bf16.mxu0 0
      %1373 = vmatmul.mubr.bf16.gmra.mrb[0].mxu0 %v994
      %v1374 = vpop.f32.mrb[0].mxu0
      %v1375 = vadd.f32 0.0, %v1374
      %v1376 = vpop.f32.mrb[0].mxu0
      %v1377 = vpop.f32.mrb[0].mxu0
      %v1378 = vadd.f32 0.0, %v1377
      %v1379 = vpop.f32.mrb[0].mxu0
      %1380 = vmatprep.mubr.bf16.mxu0 0
      %1381 = vmatmul.mubr.bf16.gmra.mrb[0].mxu0 %v995
      %v1382 = vpop.f32.mrb[0].mxu0
      %v1383 = vadd.f32 0.0, %v1382
      %v1384 = vpop.f32.mrb[0].mxu0
      %v1385 = vpop.f32.mrb[0].mxu0
      %v1386 = vadd.f32 0.0, %v1385
      %v1387 = vpop.f32.mrb[0].mxu0
      %1388 = vmatprep.mubr.bf16.mxu0 0
      %1389 = vmatmul.mubr.bf16.gmra.mrb[0].mxu0 %v996
      %v1390 = vpop.f32.mrb[0].mxu0
      %v1391 = vadd.f32 0.0, %v1390
      %v1392 = vpop.f32.mrb[0].mxu0
      %v1393 = vpop.f32.mrb[0].mxu0
      %v1394 = vadd.f32 0.0, %v1393
      %v1395 = vpop.f32.mrb[0].mxu0
      %1396 = vmatprep.mubr.bf16.mxu0 0
      %1397 = vmatmul.mubr.bf16.gmra.mrb[0].mxu0 %v997
      %v1398 = vpop.f32.mrb[0].mxu0
      %v1399 = vadd.f32 0.0, %v1398
      %v1400 = vpop.f32.mrb[0].mxu0
      %v1401 = vpop.f32.mrb[0].mxu0
      %v1402 = vadd.f32 0.0, %v1401
      %v1403 = vpop.f32.mrb[0].mxu0
      %1404 = vmatprep.mubr.bf16.mxu0 0
      %1405 = vmatmul.mubr.bf16.gmra.mrb[0].mxu0 %v998
      %v1406 = vpop.f32.mrb[0].mxu0
      %v1407 = vadd.f32 0.0, %v1406
      %v1408 = vpop.f32.mrb[0].mxu0
      %v1409 = vpop.f32.mrb[0].mxu0
      %v1410 = vadd.f32 0.0, %v1409
      %v1411 = vpop.f32.mrb[0].mxu0
      %1412 = vmatprep.mubr.bf16.mxu0 0
      %1413 = vmatmul.mubr.bf16.gmra.mrb[0].mxu0 %v999
      %v1414 = vpop.f32.mrb[0].mxu0
      %v1415 = vadd.f32 0.0, %v1414
      %v1416 = vpop.f32.mrb[0].mxu0
      %v1417 = vpop.f32.mrb[0].mxu0
      %v1418 = vadd.f32 0.0, %v1417
      %v1419 = vpop.f32.mrb[0].mxu0
      %1420 = vmatprep.mubr.bf16.mxu0 0
      %1421 = vmatmul.mubr.bf16.gmra.mrb[0].mxu0 %v1000
      %v1422 = vpop.f32.mrb[0].mxu0
      %v1423 = vadd.f32 0.0, %v1422
      %v1424 = vpop.f32.mrb[0].mxu0
      %v1425 = vpop.f32.mrb[0].mxu0
      %v1426 = vadd.f32 0.0, %v1425
      %v1427 = vpop.f32.mrb[0].mxu0
      %1428 = vmatprep.mubr.bf16.mxu0 0
      %1429 = vmatmul.mubr.bf16.gmra.mrb[0].mxu0 %v1001
      %v1430 = vpop.f32.mrb[0].mxu0
      %v1431 = vadd.f32 0.0, %v1430
      %v1432 = vpop.f32.mrb[0].mxu0
      %v1433 = vpop.f32.mrb[0].mxu0
      %v1434 = vadd.f32 0.0, %v1433
      %v1435 = vpop.f32.mrb[0].mxu0
      %1436 = vmatprep.mubr.bf16.mxu0 0
      %1437 = vmatmul.mubr.bf16.gmra.mrb[0].mxu0 %v1002
      %v1438 = vpop.f32.mrb[0].mxu0
      %v1439 = vadd.f32 0.0, %v1438
      %v1440 = vpop.f32.mrb[0].mxu0
      %v1441 = vpop.f32.mrb[0].mxu0
      %v1442 = vadd.f32 0.0, %v1441
      %v1443 = vpop.f32.mrb[0].mxu0
      %1444 = vmatprep.mubr.bf16.mxu0 0
      %1445 = vmatmul.mubr.bf16.gmra.mrb[0].mxu0 %v1003
      %v1446 = vpop.f32.mrb[0].mxu0
      %v1447 = vadd.f32 0.0, %v1446
      %v1448 = vpop.f32.mrb[0].mxu0
      %v1449 = vpop.f32.mrb[0].mxu0
      %v1450 = vadd.f32 0.0, %v1449
      %v1451 = vpop.f32.mrb[0].mxu0
      %1452 = vmatprep.mubr.bf16.mxu0 0
      %1453 = vmatmul.mubr.bf16.gmra.mrb[0].mxu0 %v1004
      %v1454 = vpop.f32.mrb[0].mxu0
      %v1455 = vadd.f32 0.0, %v1454
      %v1456 = vpop.f32.mrb[0].mxu0
      %v1457 = vpop.f32.mrb[0].mxu0
      %v1458 = vadd.f32 0.0, %v1457
      %v1459 = vpop.f32.mrb[0].mxu0
      %1460 = vmatprep.mubr.bf16.mxu0 0
      %1461 = vmatmul.mubr.bf16.gmra.mrb[0].mxu0 %v1005
      %v1462 = vpop.f32.mrb[0].mxu0
      %v1463 = vadd.f32 0.0, %v1462
      %v1464 = vpop.f32.mrb[0].mxu0
      %v1465 = vpop.f32.mrb[0].mxu0
      %v1466 = vadd.f32 0.0, %v1465
      %v1467 = vpop.f32.mrb[0].mxu0
      %1468 = vmatprep.mubr.bf16.mxu0 0
      %1469 = vmatmul.mubr.bf16.gmra.mrb[0].mxu0 %v1006
      %v1470 = vpop.f32.mrb[0].mxu0
      %v1471 = vadd.f32 0.0, %v1470
      %v1472 = vpop.f32.mrb[0].mxu0
      %v1473 = vpop.f32.mrb[0].mxu0
      %v1474 = vadd.f32 0.0, %v1473
      %v1475 = vpop.f32.mrb[0].mxu0
      %1476 = vmatprep.mubr.bf16.mxu0 0
      %1477 = vmatmul.mubr.bf16.gmra.mrb[0].mxu0 %v1007
      %v1478 = vpop.f32.mrb[0].mxu0
      %v1479 = vadd.f32 0.0, %v1478
      %v1480 = vpop.f32.mrb[0].mxu0
      %v1481 = vpop.f32.mrb[0].mxu0
      %v1482 = vadd.f32 0.0, %v1481
      %v1483 = vpop.f32.mrb[0].mxu0
      %1484 = vmatprep.mubr.bf16.mxu0 0
      %1485 = vmatmul.mubr.bf16.gmra.mrb[0].mxu0 %v1008
      %v1486 = vpop.f32.mrb[0].mxu0
      %v1487 = vadd.f32 0.0, %v1486
      %v1488 = vpop.f32.mrb[0].mxu0
      %v1489 = vpop.f32.mrb[0].mxu0
      %v1490 = vadd.f32 0.0, %v1489
      %v1491 = vpop.f32.mrb[0].mxu0
      %1492 = vmatprep.mubr.bf16.mxu0 0
      %1493 = vmatmul.mubr.bf16.gmra.mrb[0].mxu0 %v1009
      %v1494 = vpop.f32.mrb[0].mxu0
      %v1495 = vadd.f32 0.0, %v1494
      %v1496 = vpop.f32.mrb[0].mxu0
      %v1497 = vpop.f32.mrb[0].mxu0
      %v1498 = vadd.f32 0.0, %v1497
      %v1499 = vpop.f32.mrb[0].mxu0
      %1500 = vmatprep.mubr.bf16.mxu0 0
      %1501 = vmatmul.mubr.bf16.gmra.mrb[0].mxu0 %v1010
      %v1502 = vpop.f32.mrb[0].mxu0
      %v1503 = vadd.f32 0.0, %v1502
      %v1504 = vpop.f32.mrb[0].mxu0
      %v1505 = vpop.f32.mrb[0].mxu0
      %v1506 = vadd.f32 0.0, %v1505
      %v1507 = vpop.f32.mrb[0].mxu0
      %1508 = vmatprep.mubr.bf16.mxu0 0
      %1509 = vmatmul.mubr.bf16.gmra.mrb[0].mxu0 %v1011
      %v1510 = vpop.f32.mrb[0].mxu0
      %v1511 = vadd.f32 0.0, %v1510
      %v1512 = vpop.f32.mrb[0].mxu0
      %v1513 = vpop.f32.mrb[0].mxu0
      %v1514 = vadd.f32 0.0, %v1513
      %v1515 = vpop.f32.mrb[0].mxu0
      %1516 = vmatprep.mubr.bf16.mxu0 0
      %1517 = vmatmul.mubr.bf16.gmra.mrb[0].mxu0 %v1012
      %v1518 = vpop.f32.mrb[0].mxu0
      %v1519 = vadd.f32 0.0, %v1518
      %v1520 = vpop.f32.mrb[0].mxu0
      %v1521 = vpop.f32.mrb[0].mxu0
      %v1522 = vadd.f32 0.0, %v1521
      %v1523 = vpop.f32.mrb[0].mxu0
      %1524 = vmatprep.mubr.bf16.mxu0 0
      %1525 = vmatmul.mubr.bf16.gmra.mrb[0].mxu0 %v1013
      %v1526 = vpop.f32.mrb[0].mxu0
      %v1527 = vadd.f32 0.0, %v1526
      %v1528 = vpop.f32.mrb[0].mxu0
      %v1529 = vpop.f32.mrb[0].mxu0
      %v1530 = vadd.f32 0.0, %v1529
      %v1531 = vpop.f32.mrb[0].mxu0
      %1532 = vmatprep.mubr.bf16.mxu0 0
      %1533 = vmatmul.mubr.bf16.gmra.mrb[0].mxu0 %v1014
      %v1534 = vpop.f32.mrb[0].mxu0
      %v1535 = vadd.f32 0.0, %v1534
      %v1536 = vpop.f32.mrb[0].mxu0
      %v1537 = vpop.f32.mrb[0].mxu0
      %v1538 = vadd.f32 0.0, %v1537
      %v1539 = vpop.f32.mrb[0].mxu0
      %1540 = vmatprep.mubr.bf16.mxu0 0
      %1541 = vmatmul.mubr.bf16.gmra.mrb[0].mxu0 %v1015
      %v1542 = vpop.f32.mrb[0].mxu0
      %v1543 = vadd.f32 0.0, %v1542
      %v1544 = vpop.f32.mrb[0].mxu0
      %v1545 = vpop.f32.mrb[0].mxu0
      %v1546 = vadd.f32 0.0, %v1545
      %v1547 = vpop.f32.mrb[0].mxu0
      %1548 = vmatprep.mubr.bf16.mxu0 0
      %1549 = vmatmul.mubr.bf16.gmra.mrb[0].mxu0 %v1016
      %v1550 = vpop.f32.mrb[0].mxu0
      %v1551 = vadd.f32 0.0, %v1550
      %v1552 = vpop.f32.mrb[0].mxu0
      %v1553 = vpop.f32.mrb[0].mxu0
      %v1554 = vadd.f32 0.0, %v1553
      %v1555 = vpop.f32.mrb[0].mxu0
      %1556 = vmatprep.mubr.bf16.mxu0 0
      %1557 = vmatmul.mubr.bf16.gmra.mrb[0].mxu0 %v1017
      %v1558 = vpop.f32.mrb[0].mxu0
      %v1559 = vadd.f32 0.0, %v1558
      %v1560 = vpop.f32.mrb[0].mxu0
      %v1561 = vpop.f32.mrb[0].mxu0
      %v1562 = vadd.f32 0.0, %v1561
      %v1563 = vpop.f32.mrb[0].mxu0
      %1564 = vmatprep.mubr.bf16.mxu0 0
      %1565 = vmatmul.mubr.bf16.gmra.mrb[0].mxu0 %v1018
      %v1566 = vpop.f32.mrb[0].mxu0
      %v1567 = vadd.f32 0.0, %v1566
      %v1568 = vpop.f32.mrb[0].mxu0
      %v1569 = vpop.f32.mrb[0].mxu0
      %v1570 = vadd.f32 0.0, %v1569
      %v1571 = vpop.f32.mrb[0].mxu0
      %1572 = vmatprep.mubr.bf16.mxu0 0
      %1573 = vmatmul.mubr.bf16.gmra.mrb[0].mxu0 %v1019
      %v1574 = vpop.f32.mrb[0].mxu0
      %v1575 = vadd.f32 0.0, %v1574
      %v1576 = vpop.f32.mrb[0].mxu0
      %v1577 = vpop.f32.mrb[0].mxu0
      %v1578 = vadd.f32 0.0, %v1577
      %v1579 = vpop.f32.mrb[0].mxu0
      %1580 = vmatprep.mubr.bf16.mxu0 0
      %1581 = vmatmul.mubr.bf16.gmra.mrb[0].mxu0 %v1020
      %v1582 = vpop.f32.mrb[0].mxu0
      %v1583 = vadd.f32 0.0, %v1582
      %v1584 = vpop.f32.mrb[0].mxu0
      %v1585 = vpop.f32.mrb[0].mxu0
      %v1586 = vadd.f32 0.0, %v1585
      %v1587 = vpop.f32.mrb[0].mxu0
      %1588 = vmatprep.mubr.bf16.mxu0 0
      %1589 = vmatmul.mubr.bf16.gmra.mrb[0].mxu0 %v1021
      %v1590 = vpop.f32.mrb[0].mxu0
      %v1591 = vadd.f32 0.0, %v1590
      %v1592 = vpop.f32.mrb[0].mxu0
      %v1593 = vpop.f32.mrb[0].mxu0
      %v1594 = vadd.f32 0.0, %v1593
      %v1595 = vpop.f32.mrb[0].mxu0
      %1596 = vmatprep.mubr.bf16.mxu0 0
      %1597 = vmatmul.mubr.bf16.gmra.mrb[0].mxu0 %v1022
      %v1598 = vpop.f32.mrb[0].mxu0
      %v1599 = vadd.f32 0.0, %v1598
      %v1600 = vpop.f32.mrb[0].mxu0
      %v1601 = vpop.f32.mrb[0].mxu0
      %v1602 = vadd.f32 0.0, %v1601
      %v1603 = vpop.f32.mrb[0].mxu0
      %1604 = vmatprep.mubr.bf16.mxu0 0
      %1605 = vmatmul.mubr.bf16.gmra.mrb[0].mxu0 %v1023
      %v1606 = vpop.f32.mrb[0].mxu0
      %v1607 = vadd.f32 0.0, %v1606
      %v1608 = vpop.f32.mrb[0].mxu0
      %v1609 = vpop.f32.mrb[0].mxu0
      %v1610 = vadd.f32 0.0, %v1609
      %v1611 = vpop.f32.mrb[0].mxu0
      %1612 = vmatprep.mubr.bf16.mxu0 0
      %1613 = vmatmul.mubr.bf16.gmra.mrb[0].mxu0 %v1024
      %v1614 = vpop.f32.mrb[0].mxu0
      %v1615 = vadd.f32 0.0, %v1614
      %v1616 = vpop.f32.mrb[0].mxu0
      %v1617 = vpop.f32.mrb[0].mxu0
      %v1618 = vadd.f32 0.0, %v1617
      %v1619 = vpop.f32.mrb[0].mxu0
      %1620 = vmatprep.mubr.bf16.mxu0 0
      %1621 = vmatmul.mubr.bf16.gmra.mrb[0].mxu0 %v1025
      %v1622 = vpop.f32.mrb[0].mxu0
      %v1623 = vadd.f32 0.0, %v1622
      %v1624 = vpop.f32.mrb[0].mxu0
      %v1625 = vpop.f32.mrb[0].mxu0
      %v1626 = vadd.f32 0.0, %v1625
      %v1627 = vpop.f32.mrb[0].mxu0
      %1628 = vmatprep.mubr.bf16.mxu0 0
      %1629 = vmatmul.mubr.bf16.gmra.mrb[0].mxu0 %v1026
      %v1630 = vpop.f32.mrb[0].mxu0
      %v1631 = vadd.f32 0.0, %v1630
      %v1632 = vpop.f32.mrb[0].mxu0
      %v1633 = vpop.f32.mrb[0].mxu0
      %v1634 = vadd.f32 0.0, %v1633
      %v1635 = vpop.f32.mrb[0].mxu0
      %1636 = vmatprep.mubr.bf16.mxu0 0
      %1637 = vmatmul.mubr.bf16.gmra.mrb[0].mxu0 %v1027
      %v1638 = vpop.f32.mrb[0].mxu0
      %v1639 = vadd.f32 0.0, %v1638
      %v1640 = vpop.f32.mrb[0].mxu0
      %v1641 = vpop.f32.mrb[0].mxu0
      %v1642 = vadd.f32 0.0, %v1641
      %v1643 = vpop.f32.mrb[0].mxu0
      %1644 = vmatprep.mubr.bf16.mxu0 0
      %1645 = vmatmul.mubr.bf16.gmra.mrb[0].mxu0 %v1028
      %v1646 = vpop.f32.mrb[0].mxu0
      %v1647 = vadd.f32 0.0, %v1646
      %v1648 = vpop.f32.mrb[0].mxu0
      %v1649 = vpop.f32.mrb[0].mxu0
      %v1650 = vadd.f32 0.0, %v1649
      %v1651 = vpop.f32.mrb[0].mxu0
      %1652 = vmatprep.mubr.bf16.mxu0 0
      %1653 = vmatmul.mubr.bf16.gmra.mrb[0].mxu0 %v1029
      %v1654 = vpop.f32.mrb[0].mxu0
      %v1655 = vadd.f32 0.0, %v1654
      %v1656 = vpop.f32.mrb[0].mxu0
      %v1657 = vpop.f32.mrb[0].mxu0
      %v1658 = vadd.f32 0.0, %v1657
      %v1659 = vpop.f32.mrb[0].mxu0
      %1660 = vmatprep.mubr.bf16.mxu0 0
      %1661 = vmatmul.mubr.bf16.gmra.mrb[0].mxu0 %v1030
      %v1662 = vpop.f32.mrb[0].mxu0
      %v1663 = vadd.f32 0.0, %v1662
      %v1664 = vpop.f32.mrb[0].mxu0
      %v1665 = vpop.f32.mrb[0].mxu0
      %v1666 = vadd.f32 0.0, %v1665
      %v1667 = vpop.f32.mrb[0].mxu0
      %1668 = vmatprep.mubr.bf16.mxu0 0
      %1669 = vmatmul.mubr.bf16.gmra.mrb[0].mxu0 %v1031
      %v1670 = vpop.f32.mrb[0].mxu0
      %v1671 = vadd.f32 0.0, %v1670
      %v1672 = vpop.f32.mrb[0].mxu0
      %v1673 = vpop.f32.mrb[0].mxu0
      %v1674 = vadd.f32 0.0, %v1673
      %v1675 = vpop.f32.mrb[0].mxu0
      %1676 = vmatprep.mubr.bf16.mxu0 0
      %1677 = vmatmul.mubr.bf16.gmra.mrb[0].mxu0 %v1032
      %v1678 = vpop.f32.mrb[0].mxu0
      %v1679 = vadd.f32 0.0, %v1678
      %v1680 = vpop.f32.mrb[0].mxu0
      %v1681 = vpop.f32.mrb[0].mxu0
      %v1682 = vadd.f32 0.0, %v1681
      %v1683 = vpop.f32.mrb[0].mxu0
      %1684 = vmatprep.mubr.bf16.mxu0 0
      %1685 = vmatmul.mubr.bf16.gmra.mrb[0].mxu0 %v1033
      %v1686 = vpop.f32.mrb[0].mxu0
      %v1687 = vadd.f32 0.0, %v1686
      %v1688 = vpop.f32.mrb[0].mxu0
      %v1689 = vpop.f32.mrb[0].mxu0
      %v1690 = vadd.f32 0.0, %v1689
      %v1691 = vpop.f32.mrb[0].mxu0
      %1692 = vmatprep.mubr.bf16.mxu0 0
      %1693 = vmatmul.mubr.bf16.gmra.mrb[0].mxu0 %v1034
      %v1694 = vpop.f32.mrb[0].mxu0
      %v1695 = vadd.f32 0.0, %v1694
      %v1696 = vpop.f32.mrb[0].mxu0
      %v1697 = vpop.f32.mrb[0].mxu0
      %v1698 = vadd.f32 0.0, %v1697
      %v1699 = vpop.f32.mrb[0].mxu0
      %1700 = vmatprep.mubr.bf16.mxu0 0
      %1701 = vmatmul.mubr.bf16.gmra.mrb[0].mxu0 %v1035
      %v1702 = vpop.f32.mrb[0].mxu0
      %v1703 = vadd.f32 0.0, %v1702
      %v1704 = vpop.f32.mrb[0].mxu0
      %v1705 = vpop.f32.mrb[0].mxu0
      %v1706 = vadd.f32 0.0, %v1705
      %v1707 = vpop.f32.mrb[0].mxu0
      %1708 = vmatprep.mubr.bf16.mxu0 0
      %1709 = vmatmul.mubr.bf16.gmra.mrb[0].mxu0 %v1036
      %v1710 = vpop.f32.mrb[0].mxu0
      %v1711 = vadd.f32 0.0, %v1710
      %v1712 = vpop.f32.mrb[0].mxu0
      %v1713 = vpop.f32.mrb[0].mxu0
      %v1714 = vadd.f32 0.0, %v1713
      %v1715 = vpop.f32.mrb[0].mxu0
      %1716 = vmatprep.mubr.bf16.mxu0 0
      %1717 = vmatmul.mubr.bf16.gmra.mrb[0].mxu0 %v1037
      %v1718 = vpop.f32.mrb[0].mxu0
      %v1719 = vadd.f32 0.0, %v1718
      %v1720 = vpop.f32.mrb[0].mxu0
      %v1721 = vpop.f32.mrb[0].mxu0
      %v1722 = vadd.f32 0.0, %v1721
      %v1723 = vpop.f32.mrb[0].mxu0
      %1724 = vmatprep.mubr.bf16.mxu0 0
      %1725 = vmatmul.mubr.bf16.gmra.mrb[0].mxu0 %v1038
      %v1726 = vpop.f32.mrb[0].mxu0
      %v1727 = vadd.f32 0.0, %v1726
      %v1728 = vpop.f32.mrb[0].mxu0
      %v1729 = vpop.f32.mrb[0].mxu0
      %v1730 = vadd.f32 0.0, %v1729
      %v1731 = vpop.f32.mrb[0].mxu0
      %1732 = vmatprep.mubr.bf16.mxu0 0
      %1733 = vmatmul.mubr.bf16.gmra.mrb[0].mxu0 %v1039
      %v1734 = vpop.f32.mrb[0].mxu0
      %v1735 = vadd.f32 0.0, %v1734
      %v1736 = vpop.f32.mrb[0].mxu0
      %v1737 = vpop.f32.mrb[0].mxu0
      %v1738 = vadd.f32 0.0, %v1737
      %v1739 = vpop.f32.mrb[0].mxu0
      %1740 = vmatprep.mubr.bf16.mxu0 0
      %1741 = vmatmul.mubr.bf16.gmra.mrb[0].mxu0 %v1040
      %v1742 = vpop.f32.mrb[0].mxu0
      %v1743 = vadd.f32 0.0, %v1742
      %v1744 = vpop.f32.mrb[0].mxu0
      %v1745 = vpop.f32.mrb[0].mxu0
      %v1746 = vadd.f32 0.0, %v1745
      %v1747 = vpop.f32.mrb[0].mxu0
      %1748 = vmatprep.mubr.bf16.mxu0 0
      %1749 = vmatmul.mubr.bf16.gmra.mrb[0].mxu0 %v1041
      %v1750 = vpop.f32.mrb[0].mxu0
      %v1751 = vadd.f32 0.0, %v1750
      %v1752 = vpop.f32.mrb[0].mxu0
      %v1753 = vpop.f32.mrb[0].mxu0
      %v1754 = vadd.f32 0.0, %v1753
      %v1755 = vpop.f32.mrb[0].mxu0
      %1756 = vmatprep.mubr.bf16.mxu0 0
      %1757 = vmatmul.mubr.bf16.gmra.mrb[0].mxu0 %v1042
      %v1758 = vpop.f32.mrb[0].mxu0
      %v1759 = vadd.f32 0.0, %v1758
      %v1760 = vpop.f32.mrb[0].mxu0
      %v1761 = vpop.f32.mrb[0].mxu0
      %v1762 = vadd.f32 0.0, %v1761
      %v1763 = vpop.f32.mrb[0].mxu0
      %1764 = vmatprep.mubr.bf16.mxu0 0
      %1765 = vmatmul.mubr.bf16.gmra.mrb[0].mxu0 %v1043
      %v1766 = vpop.f32.mrb[0].mxu0
      %v1767 = vadd.f32 0.0, %v1766
      %v1768 = vpop.f32.mrb[0].mxu0
      %v1769 = vpop.f32.mrb[0].mxu0
      %v1770 = vadd.f32 0.0, %v1769
      %v1771 = vpop.f32.mrb[0].mxu0
      %1772 = vmatprep.mubr.bf16.mxu0 0
      %1773 = vmatmul.mubr.bf16.gmra.mrb[0].mxu0 %v1044
      %v1774 = vpop.f32.mrb[0].mxu0
      %v1775 = vadd.f32 0.0, %v1774
      %v1776 = vpop.f32.mrb[0].mxu0
      %v1777 = vpop.f32.mrb[0].mxu0
      %v1778 = vadd.f32 0.0, %v1777
      %v1779 = vpop.f32.mrb[0].mxu0
      %1780 = vmatprep.mubr.bf16.mxu0 0
      %1781 = vmatmul.mubr.bf16.gmra.mrb[0].mxu0 %v1045
      %v1782 = vpop.f32.mrb[0].mxu0
      %v1783 = vadd.f32 0.0, %v1782
      %v1784 = vpop.f32.mrb[0].mxu0
      %v1785 = vpop.f32.mrb[0].mxu0
      %v1786 = vadd.f32 0.0, %v1785
      %v1787 = vpop.f32.mrb[0].mxu0
      %1788 = vmatprep.mubr.bf16.mxu0 0
      %1789 = vmatmul.mubr.bf16.gmra.mrb[0].mxu0 %v1046
      %v1790 = vpop.f32.mrb[0].mxu0
      %v1791 = vadd.f32 0.0, %v1790
      %v1792 = vpop.f32.mrb[0].mxu0
      %v1793 = vpop.f32.mrb[0].mxu0
      %v1794 = vadd.f32 0.0, %v1793
      %v1795 = vpop.f32.mrb[0].mxu0
      %1796 = vmatprep.mubr.bf16.mxu0 0
      %1797 = vmatmul.mubr.bf16.gmra.mrb[0].mxu0 %v1047
      %v1798 = vpop.f32.mrb[0].mxu0
      %v1799 = vadd.f32 0.0, %v1798
      %v1800 = vpop.f32.mrb[0].mxu0
      %v1801 = vpop.f32.mrb[0].mxu0
      %v1802 = vadd.f32 0.0, %v1801
      %v1803 = vpop.f32.mrb[0].mxu0
      %1804 = vmatprep.mubr.bf16.mxu0 0
      %1805 = vmatmul.mubr.bf16.gmra.mrb[0].mxu0 %v1048
      %v1806 = vpop.f32.mrb[0].mxu0
      %v1807 = vadd.f32 0.0, %v1806
      %v1808 = vpop.f32.mrb[0].mxu0
      %v1809 = vpop.f32.mrb[0].mxu0
      %v1810 = vadd.f32 0.0, %v1809
      %v1811 = vpop.f32.mrb[0].mxu0
      %1812 = vmatprep.mubr.bf16.mxu0 0
      %1813 = vmatmul.mubr.bf16.gmra.mrb[0].mxu0 %v1049
      %v1814 = vpop.f32.mrb[0].mxu0
      %v1815 = vadd.f32 0.0, %v1814
      %v1816 = vpop.f32.mrb[0].mxu0
      %v1817 = vpop.f32.mrb[0].mxu0
      %v1818 = vadd.f32 0.0, %v1817
      %v1819 = vpop.f32.mrb[0].mxu0
      %1820 = vmatprep.mubr.bf16.mxu0 0
      %1821 = vmatmul.mubr.bf16.gmra.mrb[0].mxu0 %v1050
      %v1822 = vpop.f32.mrb[0].mxu0
      %v1823 = vadd.f32 0.0, %v1822
      %v1824 = vpop.f32.mrb[0].mxu0
      %v1825 = vpop.f32.mrb[0].mxu0
      %v1826 = vadd.f32 0.0, %v1825
      %v1827 = vpop.f32.mrb[0].mxu0
      %1828 = vmatprep.mubr.bf16.mxu0 0
      %1829 = vmatmul.mubr.bf16.gmra.mrb[0].mxu0 %v1051
      %v1830 = vpop.f32.mrb[0].mxu0
      %v1831 = vadd.f32 0.0, %v1830
      %v1832 = vpop.f32.mrb[0].mxu0
      %v1833 = vpop.f32.mrb[0].mxu0
      %v1834 = vadd.f32 0.0, %v1833
      %v1835 = vpop.f32.mrb[0].mxu0
      %1836 = vmatprep.mubr.bf16.mxu0 0
      %1837 = vmatmul.mubr.bf16.gmra.mrb[0].mxu0 %v1052
      %v1838 = vpop.f32.mrb[0].mxu0
      %v1839 = vadd.f32 0.0, %v1838
      %v1840 = vpop.f32.mrb[0].mxu0
      %v1841 = vpop.f32.mrb[0].mxu0
      %v1842 = vadd.f32 0.0, %v1841
      %v1843 = vpop.f32.mrb[0].mxu0
      %1844 = vmatprep.mubr.bf16.mxu0 0
      %1845 = vmatmul.mubr.bf16.gmra.mrb[0].mxu0 %v1053
      %v1846 = vpop.f32.mrb[0].mxu0
      %v1847 = vadd.f32 0.0, %v1846
      %v1848 = vpop.f32.mrb[0].mxu0
      %v1849 = vpop.f32.mrb[0].mxu0
      %v1850 = vadd.f32 0.0, %v1849
      %v1851 = vpop.f32.mrb[0].mxu0
      %1852 = vmatprep.mubr.bf16.mxu0 0
      %1853 = vmatmul.mubr.bf16.gmra.mrb[0].mxu0 %v1054
      %v1854 = vpop.f32.mrb[0].mxu0
      %v1855 = vadd.f32 0.0, %v1854
      %v1856 = vpop.f32.mrb[0].mxu0
      %v1857 = vpop.f32.mrb[0].mxu0
      %v1858 = vadd.f32 0.0, %v1857
      %v1859 = vpop.f32.mrb[0].mxu0
      %1860 = vmatprep.mubr.bf16.mxu0 0
      %1861 = vmatmul.mubr.bf16.gmra.mrb[0].mxu0 %v1055
      %v1862 = vpop.f32.mrb[0].mxu0
      %v1863 = vadd.f32 0.0, %v1862
      %v1864 = vpop.f32.mrb[0].mxu0
      %v1865 = vpop.f32.mrb[0].mxu0
      %v1866 = vadd.f32 0.0, %v1865
      %v1867 = vpop.f32.mrb[0].mxu0
      %1868 = vmatprep.mubr.bf16.mxu0 0
      %1869 = vmatmul.mubr.bf16.gmra.mrb[0].mxu0 %v1056
      %v1870 = vpop.f32.mrb[0].mxu0
      %v1871 = vadd.f32 0.0, %v1870
      %v1872 = vpop.f32.mrb[0].mxu0
      %v1873 = vpop.f32.mrb[0].mxu0
      %v1874 = vadd.f32 0.0, %v1873
      %v1875 = vpop.f32.mrb[0].mxu0
      %1876 = vmatprep.mubr.bf16.mxu0 0
      %1877 = vmatmul.mubr.bf16.gmra.mrb[0].mxu0 %v1057
      %v1878 = vpop.f32.mrb[0].mxu0
      %v1879 = vadd.f32 0.0, %v1878
      %v1880 = vpop.f32.mrb[0].mxu0
      %v1881 = vpop.f32.mrb[0].mxu0
      %v1882 = vadd.f32 0.0, %v1881
      %v1883 = vpop.f32.mrb[0].mxu0
      %1884 = vmatprep.mubr.bf16.mxu0 0
      %1885 = vmatmul.mubr.bf16.gmra.mrb[0].mxu0 %v1058
      %v1886 = vpop.f32.mrb[0].mxu0
      %v1887 = vadd.f32 0.0, %v1886
      %v1888 = vpop.f32.mrb[0].mxu0
      %v1889 = vpop.f32.mrb[0].mxu0
      %v1890 = vadd.f32 0.0, %v1889
      %v1891 = vpop.f32.mrb[0].mxu0
      %1892 = vmatprep.mubr.bf16.mxu0 0
      %1893 = vmatmul.mubr.bf16.gmra.mrb[0].mxu0 %v1059
      %v1894 = vpop.f32.mrb[0].mxu0
      %v1895 = vadd.f32 0.0, %v1894
      %v1896 = vpop.f32.mrb[0].mxu0
      %v1897 = vpop.f32.mrb[0].mxu0
      %v1898 = vadd.f32 0.0, %v1897
      %v1899 = vpop.f32.mrb[0].mxu0
      %1900 = vmatprep.mubr.bf16.mxu0 0
      %1901 = vmatmul.mubr.bf16.gmra.mrb[0].mxu0 %v1060
      %v1902 = vpop.f32.mrb[0].mxu0
      %v1903 = vadd.f32 0.0, %v1902
      %v1904 = vpop.f32.mrb[0].mxu0
      %v1905 = vpop.f32.mrb[0].mxu0
      %v1906 = vadd.f32 0.0, %v1905
      %v1907 = vpop.f32.mrb[0].mxu0
      %1908 = vmatprep.mubr.bf16.mxu0 0
      %1909 = vmatmul.mubr.bf16.gmra.mrb[0].mxu0 %v1061
      %v1910 = vpop.f32.mrb[0].mxu0
      %v1911 = vadd.f32 0.0, %v1910
      %v1912 = vpop.f32.mrb[0].mxu0
      %v1913 = vpop.f32.mrb[0].mxu0
      %v1914 = vadd.f32 0.0, %v1913
      %v1915 = vpop.f32.mrb[0].mxu0
      %1916 = vmatprep.mubr.bf16.mxu0 0
      %1917 = vmatmul.mubr.bf16.gmra.mrb[0].mxu0 %v1062
      %v1918 = vpop.f32.mrb[0].mxu0
      %v1919 = vadd.f32 0.0, %v1918
      %v1920 = vpop.f32.mrb[0].mxu0
      %v1921 = vpop.f32.mrb[0].mxu0
      %v1922 = vadd.f32 0.0, %v1921
      %v1923 = vpop.f32.mrb[0].mxu0
      %1924 = vmatprep.mubr.bf16.mxu0 0
      %1925 = vmatmul.mubr.bf16.gmra.mrb[0].mxu0 %v1063
      %v1926 = vpop.f32.mrb[0].mxu0
      %v1927 = vadd.f32 0.0, %v1926
      %v1928 = vpop.f32.mrb[0].mxu0
      %v1929 = vpop.f32.mrb[0].mxu0
      %v1930 = vadd.f32 0.0, %v1929
      %v1931 = vpop.f32.mrb[0].mxu0
      %1932 = vmatprep.mubr.bf16.mxu0 0
      %1933 = vmatmul.mubr.bf16.gmra.mrb[0].mxu0 %v1064
      %v1934 = vpop.f32.mrb[0].mxu0
      %v1935 = vadd.f32 0.0, %v1934
      %v1936 = vpop.f32.mrb[0].mxu0
      %v1937 = vpop.f32.mrb[0].mxu0
      %v1938 = vadd.f32 0.0, %v1937
      %v1939 = vpop.f32.mrb[0].mxu0
      %1940 = vmatprep.mubr.bf16.mxu0 0
      %1941 = vmatmul.mubr.bf16.gmra.mrb[0].mxu0 %v1065
      %v1942 = vpop.f32.mrb[0].mxu0
      %v1943 = vadd.f32 0.0, %v1942
      %v1944 = vpop.f32.mrb[0].mxu0
      %v1945 = vpop.f32.mrb[0].mxu0
      %v1946 = vadd.f32 0.0, %v1945
      %v1947 = vpop.f32.mrb[0].mxu0
      %1948 = vmatprep.mubr.bf16.mxu0 0
      %1949 = vmatmul.mubr.bf16.gmra.mrb[0].mxu0 %v1066
      %v1950 = vpop.f32.mrb[0].mxu0
      %v1951 = vadd.f32 0.0, %v1950
      %v1952 = vpop.f32.mrb[0].mxu0
      %v1953 = vpop.f32.mrb[0].mxu0
      %v1954 = vadd.f32 0.0, %v1953
      %v1955 = vpop.f32.mrb[0].mxu0
      %1956 = vmatprep.mubr.bf16.mxu0 0
      %1957 = vmatmul.mubr.bf16.gmra.mrb[0].mxu0 %v1067
      %v1958 = vpop.f32.mrb[0].mxu0
      %v1959 = vadd.f32 0.0, %v1958
      %v1960 = vpop.f32.mrb[0].mxu0
      %v1961 = vpop.f32.mrb[0].mxu0
      %v1962 = vadd.f32 0.0, %v1961
      %v1963 = vpop.f32.mrb[0].mxu0
      %1964 = vmatprep.mubr.bf16.mxu0 0
      %1965 = vmatmul.mubr.bf16.gmra.mrb[0].mxu0 %v1068
      %v1966 = vpop.f32.mrb[0].mxu0
      %v1967 = vadd.f32 0.0, %v1966
      %v1968 = vpop.f32.mrb[0].mxu0
      %v1969 = vpop.f32.mrb[0].mxu0
      %v1970 = vadd.f32 0.0, %v1969
      %v1971 = vpop.f32.mrb[0].mxu0
      %1972 = vmatprep.mubr.bf16.mxu0 0
      %1973 = vmatmul.mubr.bf16.gmra.mrb[0].mxu0 %v1069
      %v1974 = vpop.f32.mrb[0].mxu0
      %v1975 = vadd.f32 0.0, %v1974
      %v1976 = vpop.f32.mrb[0].mxu0
      %v1977 = vpop.f32.mrb[0].mxu0
      %v1978 = vadd.f32 0.0, %v1977
      %v1979 = vpop.f32.mrb[0].mxu0
      %1980 = vmatprep.mubr.bf16.mxu0 0
      %1981 = vmatmul.mubr.bf16.gmra.mrb[0].mxu0 %v1070
      %v1982 = vpop.f32.mrb[0].mxu0
      %v1983 = vadd.f32 0.0, %v1982
      %v1984 = vpop.f32.mrb[0].mxu0
      %v1985 = vpop.f32.mrb[0].mxu0
      %v1986 = vadd.f32 0.0, %v1985
      %v1987 = vpop.f32.mrb[0].mxu0
      %1988 = vmatprep.mubr.bf16.mxu0 0
      %1989 = vmatmul.mubr.bf16.gmra.mrb[0].mxu0 %v1071
      %v1990 = vpop.f32.mrb[0].mxu0
      %v1991 = vadd.f32 0.0, %v1990
      %v1992 = vpop.f32.mrb[0].mxu0
      %v1993 = vpop.f32.mrb[0].mxu0
      %v1994 = vadd.f32 0.0, %v1993
      %v1995 = vpop.f32.mrb[0].mxu0
      %1996 = vmatprep.mubr.bf16.mxu0 0
      %1997 = vmatmul.mubr.bf16.gmra.mrb[0].mxu0 %v1072
      %v1998 = vpop.f32.mrb[0].mxu0
      %v1999 = vadd.f32 0.0, %v1998
      %v2000 = vpop.f32.mrb[0].mxu0
      %v2001 = vpop.f32.mrb[0].mxu0
      %v2002 = vadd.f32 0.0, %v2001
      %v2003 = vpop.f32.mrb[0].mxu0
      %2004 = vmatprep.mubr.bf16.mxu0 0
      %2005 = vmatmul.mubr.bf16.gmra.mrb[0].mxu0 %v1073
      %v2006 = vpop.f32.mrb[0].mxu0
      %v2007 = vadd.f32 0.0, %v2006
      %v2008 = vpop.f32.mrb[0].mxu0
      %v2009 = vpop.f32.mrb[0].mxu0
      %v2010 = vadd.f32 0.0, %v2009
      %v2011 = vpop.f32.mrb[0].mxu0
      %2012 = vmatprep.mubr.bf16.mxu0 0
      %2013 = vmatmul.mubr.bf16.gmra.mrb[0].mxu0 %v1074
      %v2014 = vpop.f32.mrb[0].mxu0
      %v2015 = vadd.f32 0.0, %v2014
      %v2016 = vpop.f32.mrb[0].mxu0
      %v2017 = vpop.f32.mrb[0].mxu0
      %v2018 = vadd.f32 0.0, %v2017
      %v2019 = vpop.f32.mrb[0].mxu0
      %2020 = vmatprep.mubr.bf16.mxu0 0
      %2021 = vmatmul.mubr.bf16.gmra.mrb[0].mxu0 %v1075
      %v2022 = vpop.f32.mrb[0].mxu0
      %v2023 = vadd.f32 0.0, %v2022
      %v2024 = vpop.f32.mrb[0].mxu0
      %v2025 = vpop.f32.mrb[0].mxu0
      %v2026 = vadd.f32 0.0, %v2025
      %v2027 = vpop.f32.mrb[0].mxu0
      %2028 = vmatprep.mubr.bf16.mxu0 0
      %2029 = vmatmul.mubr.bf16.gmra.mrb[0].mxu0 %v1076
      %v2030 = vpop.f32.mrb[0].mxu0
      %v2031 = vadd.f32 0.0, %v2030
      %v2032 = vpop.f32.mrb[0].mxu0
      %v2033 = vpop.f32.mrb[0].mxu0
      %v2034 = vadd.f32 0.0, %v2033
      %v2035 = vpop.f32.mrb[0].mxu0
      %2036 = vmatprep.mubr.bf16.mxu0 0
      %2037 = vmatmul.mubr.bf16.gmra.mrb[0].mxu0 %v1077
      %v2038 = vpop.f32.mrb[0].mxu0
      %v2039 = vadd.f32 0.0, %v2038
      %v2040 = vpop.f32.mrb[0].mxu0
      %v2041 = vpop.f32.mrb[0].mxu0
      %v2042 = vadd.f32 0.0, %v2041
      %v2043 = vpop.f32.mrb[0].mxu0
      %2044 = vmatprep.mubr.bf16.mxu0 0
      %2045 = vmatmul.mubr.bf16.gmra.mrb[0].mxu0 %v1078
      %v2046 = vpop.f32.mrb[0].mxu0
      %v2047 = vadd.f32 0.0, %v2046
      %v2048 = vpop.f32.mrb[0].mxu0
      %v2049 = vpop.f32.mrb[0].mxu0
      %v2050 = vadd.f32 0.0, %v2049
      %v2051 = vpop.f32.mrb[0].mxu0
      %2052 = vmatprep.mubr.bf16.mxu0 0
      %2053 = vmatmul.mubr.bf16.gmra.mrb[0].mxu0 %v1079
      %v2054 = vpop.f32.mrb[0].mxu0
      %v2055 = vadd.f32 0.0, %v2054
      %v2056 = vpop.f32.mrb[0].mxu0
      %v2057 = vpop.f32.mrb[0].mxu0
      %v2058 = vadd.f32 0.0, %v2057
      %v2059 = vpop.f32.mrb[0].mxu0
      %2060 = vmatprep.mubr.bf16.mxu0 0
      %2061 = vmatmul.mubr.bf16.gmra.mrb[0].mxu0 %v1080
      %v2062 = vpop.f32.mrb[0].mxu0
      %v2063 = vadd.f32 0.0, %v2062
      %v2064 = vpop.f32.mrb[0].mxu0
      %v2065 = vpop.f32.mrb[0].mxu0
      %v2066 = vadd.f32 0.0, %v2065
      %v2067 = vpop.f32.mrb[0].mxu0
      %2068 = vmatprep.mubr.bf16.mxu0 0
      %2069 = vmatmul.mubr.bf16.gmra.mrb[0].mxu0 %v1081
      %v2070 = vpop.f32.mrb[0].mxu0
      %v2071 = vadd.f32 0.0, %v2070
      %v2072 = vpop.f32.mrb[0].mxu0
      %v2073 = vpop.f32.mrb[0].mxu0
      %v2074 = vadd.f32 0.0, %v2073
      %v2075 = vpop.f32.mrb[0].mxu0
      %2076 = vmatprep.mubr.bf16.mxu0 0
      %2077 = vmatmul.mubr.bf16.gmra.mrb[0].mxu0 %v1082
      %v2078 = vpop.f32.mrb[0].mxu0
      %v2079 = vadd.f32 0.0, %v2078
      %v2080 = vpop.f32.mrb[0].mxu0
      %v2081 = vpop.f32.mrb[0].mxu0
      %v2082 = vadd.f32 0.0, %v2081
      %v2083 = vpop.f32.mrb[0].mxu0
      %2084 = vmatprep.mubr.bf16.mxu0 0
      %2085 = vmatmul.mubr.bf16.gmra.mrb[0].mxu0 %v1083
      %v2086 = vpop.f32.mrb[0].mxu0
      %v2087 = vadd.f32 0.0, %v2086
      %v2088 = vpop.f32.mrb[0].mxu0
      %v2089 = vpop.f32.mrb[0].mxu0
      %v2090 = vadd.f32 0.0, %v2089
      %v2091 = vpop.f32.mrb[0].mxu0
      %2092 = vmatprep.mubr.bf16.mxu0 0
      %2093 = vmatmul.mubr.bf16.gmra.mrb[0].mxu0 %v1084
      %v2094 = vpop.f32.mrb[0].mxu0
      %v2095 = vadd.f32 0.0, %v2094
      %v2096 = vpop.f32.mrb[0].mxu0
      %v2097 = vpop.f32.mrb[0].mxu0
      %v2098 = vadd.f32 0.0, %v2097
      %v2099 = vpop.f32.mrb[0].mxu0
      %2100 = vmatprep.mubr.bf16.mxu0 0
      %2101 = vmatmul.mubr.bf16.gmra.mrb[0].mxu0 %v1085
      %v2102 = vpop.f32.mrb[0].mxu0
      %v2103 = vadd.f32 0.0, %v2102
      %v2104 = vpop.f32.mrb[0].mxu0
      %v2105 = vpop.f32.mrb[0].mxu0
      %v2106 = vadd.f32 0.0, %v2105
      %v2107 = vpop.f32.mrb[0].mxu0
      %2108 = vmatprep.mubr.bf16.mxu0 0
      %2109 = vmatmul.mubr.bf16.gmra.mrb[0].mxu0 %v1086
      %v2110 = vpop.f32.mrb[0].mxu0
      %v2111 = vadd.f32 0.0, %v2110
      %v2112 = vpop.f32.mrb[0].mxu0
      %v2113 = vpop.f32.mrb[0].mxu0
      %v2114 = vadd.f32 0.0, %v2113
      %v2115 = vpop.f32.mrb[0].mxu0
      %2116 = vmatprep.mubr.bf16.mxu0 0
      %2117 = vmatmul.mubr.bf16.gmra.mrb[0].mxu0 %v1087
      %v2118 = vpop.f32.mrb[0].mxu0
      %v2119 = vadd.f32 0.0, %v2118
      %v2120 = vpop.f32.mrb[0].mxu0
      %v2121 = vpop.f32.mrb[0].mxu0
      %v2122 = vadd.f32 0.0, %v2121
      %v2123 = vpop.f32.mrb[0].mxu0
      %2124 = vmatprep.mubr.bf16.mxu0 0
      %2125 = vmatmul.mubr.bf16.gmra.mrb[0].mxu0 %v1088
      %v2126 = vpop.f32.mrb[0].mxu0
      %v2127 = vadd.f32 0.0, %v2126
      %v2128 = vpop.f32.mrb[0].mxu0
      %v2129 = vpop.f32.mrb[0].mxu0
      %v2130 = vadd.f32 0.0, %v2129
      %v2131 = vpop.f32.mrb[0].mxu0
      %2132 = vmatprep.mubr.bf16.mxu0 0
      %2133 = vmatmul.mubr.bf16.gmra.mrb[0].mxu0 %v1089
      %v2134 = vpop.f32.mrb[0].mxu0
      %v2135 = vadd.f32 0.0, %v2134
      %v2136 = vpop.f32.mrb[0].mxu0
      %v2137 = vpop.f32.mrb[0].mxu0
      %v2138 = vadd.f32 0.0, %v2137
      %v2139 = vpop.f32.mrb[0].mxu0
      %2140 = vmatprep.mubr.bf16.mxu0 0
      %2141 = vmatmul.mubr.bf16.gmra.mrb[0].mxu0 %v1090
      %v2142 = vpop.f32.mrb[0].mxu0
      %v2143 = vadd.f32 0.0, %v2142
      %v2144 = vpop.f32.mrb[0].mxu0
      %v2145 = vpop.f32.mrb[0].mxu0
      %v2146 = vadd.f32 0.0, %v2145
      %v2147 = vpop.f32.mrb[0].mxu0
      %2148 = vmatprep.mubr.bf16.mxu0 0
      %2149 = vmatmul.mubr.bf16.gmra.mrb[0].mxu0 %v1091
      %v2150 = vpop.f32.mrb[0].mxu0
      %v2151 = vadd.f32 0.0, %v2150
      %v2152 = vpop.f32.mrb[0].mxu0
      %v2153 = vpop.f32.mrb[0].mxu0
      %v2154 = vadd.f32 0.0, %v2153
      %v2155 = vpop.f32.mrb[0].mxu0
      %2156 = vmatprep.mubr.bf16.mxu0 0
      %2157 = vmatmul.mubr.bf16.gmra.mrb[0].mxu0 %v1092
      %v2158 = vpop.f32.mrb[0].mxu0
      %v2159 = vadd.f32 0.0, %v2158
      %v2160 = vpop.f32.mrb[0].mxu0
      %v2161 = vpop.f32.mrb[0].mxu0
      %v2162 = vadd.f32 0.0, %v2161
      %v2163 = vpop.f32.mrb[0].mxu0
      %2164 = vmatprep.mubr.bf16.mxu0 0
      %2165 = vmatmul.mubr.bf16.gmra.mrb[0].mxu0 %v1093
      %v2166 = vpop.f32.mrb[0].mxu0
      %v2167 = vadd.f32 0.0, %v2166
      %v2168 = vpop.f32.mrb[0].mxu0
      %v2169 = vpop.f32.mrb[0].mxu0
      %v2170 = vadd.f32 0.0, %v2169
      %v2171 = vpop.f32.mrb[0].mxu0
      %2172 = vmatprep.mubr.bf16.mxu0 0
      %2173 = vmatmul.mubr.bf16.gmra.mrb[0].mxu0 %v1094
      %v2174 = vpop.f32.mrb[0].mxu0
      %v2175 = vadd.f32 0.0, %v2174
      %v2176 = vpop.f32.mrb[0].mxu0
      %v2177 = vpop.f32.mrb[0].mxu0
      %v2178 = vadd.f32 0.0, %v2177
      %v2179 = vpop.f32.mrb[0].mxu0
      %2180 = vmatprep.mubr.bf16.mxu0 0
      %2181 = vmatmul.mubr.bf16.gmra.mrb[0].mxu0 %v1095
      %v2182 = vpop.f32.mrb[0].mxu0
      %v2183 = vadd.f32 0.0, %v2182
      %v2184 = vpop.f32.mrb[0].mxu0
      %v2185 = vpop.f32.mrb[0].mxu0
      %v2186 = vadd.f32 0.0, %v2185
      %v2187 = vpop.f32.mrb[0].mxu0
      %2188 = vmatprep.mubr.bf16.mxu0 0
      %2189 = vmatmul.mubr.bf16.gmra.mrb[0].mxu0 %v1096
      %v2190 = vpop.f32.mrb[0].mxu0
      %v2191 = vadd.f32 0.0, %v2190
      %v2192 = vpop.f32.mrb[0].mxu0
      %v2193 = vpop.f32.mrb[0].mxu0
      %v2194 = vadd.f32 0.0, %v2193
      %v2195 = vpop.f32.mrb[0].mxu0
      %2196 = vmatprep.mubr.bf16.mxu0 0
      %2197 = vmatmul.mubr.bf16.gmra.mrb[0].mxu0 %v1097
      %v2198 = vpop.f32.mrb[0].mxu0
      %v2199 = vadd.f32 0.0, %v2198
      %v2200 = vpop.f32.mrb[0].mxu0
      %v2201 = vpop.f32.mrb[0].mxu0
      %v2202 = vadd.f32 0.0, %v2201
      %v2203 = vpop.f32.mrb[0].mxu0
      %2204 = vmatprep.mubr.bf16.mxu0 0
      %2205 = vmatmul.mubr.bf16.gmra.mrb[0].mxu0 %v1098
      %v2206 = vpop.f32.mrb[0].mxu0
      %v2207 = vadd.f32 0.0, %v2206
      %v2208 = vpop.f32.mrb[0].mxu0
      %v2209 = vpop.f32.mrb[0].mxu0
      %v2210 = vadd.f32 0.0, %v2209
      %v2211 = vpop.f32.mrb[0].mxu0
      %2212 = vmatprep.mubr.bf16.mxu0 0
      %2213 = vmatmul.mubr.bf16.gmra.mrb[0].mxu0 %v1099
      %v2214 = vpop.f32.mrb[0].mxu0
      %v2215 = vadd.f32 0.0, %v2214
      %v2216 = vpop.f32.mrb[0].mxu0
      %v2217 = vpop.f32.mrb[0].mxu0
      %v2218 = vadd.f32 0.0, %v2217
      %v2219 = vpop.f32.mrb[0].mxu0
      %2220 = vmatprep.mubr.bf16.mxu0 0
      %2221 = vmatmul.mubr.bf16.gmra.mrb[0].mxu0 %v1100
      %v2222 = vpop.f32.mrb[0].mxu0
      %v2223 = vadd.f32 0.0, %v2222
      %v2224 = vpop.f32.mrb[0].mxu0
      %v2225 = vpop.f32.mrb[0].mxu0
      %v2226 = vadd.f32 0.0, %v2225
      %v2227 = vpop.f32.mrb[0].mxu0
      %2228 = vmatprep.mubr.bf16.mxu0 0
      %2229 = vmatmul.mubr.bf16.gmra.mrb[0].mxu0 %v1101
      %v2230 = vpop.f32.mrb[0].mxu0
      %v2231 = vadd.f32 0.0, %v2230
      %v2232 = vpop.f32.mrb[0].mxu0
      %v2233 = vpop.f32.mrb[0].mxu0
      %v2234 = vadd.f32 0.0, %v2233
      %v2235 = vpop.f32.mrb[0].mxu0
      %2236 = vmatprep.mubr.bf16.mxu0 0
      %2237 = vmatmul.mubr.bf16.gmra.mrb[0].mxu0 %v1102
      %v2238 = vpop.f32.mrb[0].mxu0
      %v2239 = vadd.f32 0.0, %v2238
      %v2240 = vpop.f32.mrb[0].mxu0
      %v2241 = vpop.f32.mrb[0].mxu0
      %v2242 = vadd.f32 0.0, %v2241
      %v2243 = vpop.f32.mrb[0].mxu0
      %2244 = vmatprep.mubr.bf16.mxu0 0
      %2245 = vmatmul.mubr.bf16.gmra.mrb[0].mxu0 %v1103
      %v2246 = vpop.f32.mrb[0].mxu0
      %v2247 = vadd.f32 0.0, %v2246
      %v2248 = vpop.f32.mrb[0].mxu0
      %v2249 = vpop.f32.mrb[0].mxu0
      %v2250 = vadd.f32 0.0, %v2249
      %v2251 = vpop.f32.mrb[0].mxu0
      %2252 = vmatprep.mubr.bf16.mxu0 0
      %2253 = vmatmul.mubr.bf16.gmra.mrb[0].mxu0 %v1104
      %v2254 = vpop.f32.mrb[0].mxu0
      %v2255 = vadd.f32 0.0, %v2254
      %v2256 = vpop.f32.mrb[0].mxu0
      %v2257 = vpop.f32.mrb[0].mxu0
      %v2258 = vadd.f32 0.0, %v2257
      %v2259 = vpop.f32.mrb[0].mxu0
      %2260 = vmatprep.mubr.bf16.mxu0 0
      %2261 = vmatmul.mubr.bf16.gmra.mrb[0].mxu0 %v1105
      %v2262 = vpop.f32.mrb[0].mxu0
      %v2263 = vadd.f32 0.0, %v2262
      %v2264 = vpop.f32.mrb[0].mxu0
      %v2265 = vpop.f32.mrb[0].mxu0
      %v2266 = vadd.f32 0.0, %v2265
      %v2267 = vpop.f32.mrb[0].mxu0
      %2268 = vmatprep.mubr.bf16.mxu0 0
      %2269 = vmatmul.mubr.bf16.gmra.mrb[0].mxu0 %v1106
      %v2270 = vpop.f32.mrb[0].mxu0
      %v2271 = vadd.f32 0.0, %v2270
      %v2272 = vpop.f32.mrb[0].mxu0
      %v2273 = vpop.f32.mrb[0].mxu0
      %v2274 = vadd.f32 0.0, %v2273
      %v2275 = vpop.f32.mrb[0].mxu0
      %2276 = vmatprep.mubr.bf16.mxu0 0
      %2277 = vmatmul.mubr.bf16.gmra.mrb[0].mxu0 %v1107
      %v2278 = vpop.f32.mrb[0].mxu0
      %v2279 = vadd.f32 0.0, %v2278
      %v2280 = vpop.f32.mrb[0].mxu0
      %v2281 = vpop.f32.mrb[0].mxu0
      %v2282 = vadd.f32 0.0, %v2281
      %v2283 = vpop.f32.mrb[0].mxu0
      %2284 = vmatprep.mubr.bf16.mxu0 0
      %2285 = vmatmul.mubr.bf16.gmra.mrb[0].mxu0 %v1108
      %v2286 = vpop.f32.mrb[0].mxu0
      %v2287 = vadd.f32 0.0, %v2286
      %v2288 = vpop.f32.mrb[0].mxu0
      %v2289 = vpop.f32.mrb[0].mxu0
      %v2290 = vadd.f32 0.0, %v2289
      %v2291 = vpop.f32.mrb[0].mxu0
      %2292 = vmatprep.mubr.bf16.mxu0 0
      %2293 = vmatmul.mubr.bf16.gmra.mrb[0].mxu0 %v1109
      %v2294 = vpop.f32.mrb[0].mxu0
      %v2295 = vadd.f32 0.0, %v2294
      %v2296 = vpop.f32.mrb[0].mxu0
      %v2297 = vpop.f32.mrb[0].mxu0
      %v2298 = vadd.f32 0.0, %v2297
      %v2299 = vpop.f32.mrb[0].mxu0
      %2300 = vmatprep.mubr.bf16.mxu0 0
      %2301 = vmatmul.mubr.bf16.gmra.mrb[0].mxu0 %v1110
      %v2302 = vpop.f32.mrb[0].mxu0
      %v2303 = vadd.f32 0.0, %v2302
      %v2304 = vpop.f32.mrb[0].mxu0
      %v2305 = vpop.f32.mrb[0].mxu0
      %v2306 = vadd.f32 0.0, %v2305
      %v2307 = vpop.f32.mrb[0].mxu0
      %2308 = vmatprep.mubr.bf16.mxu0 0
      %2309 = vmatmul.mubr.bf16.gmra.mrb[0].mxu0 %v1111
      %v2310 = vpop.f32.mrb[0].mxu0
      %v2311 = vadd.f32 0.0, %v2310
      %v2312 = vpop.f32.mrb[0].mxu0
      %v2313 = vpop.f32.mrb[0].mxu0
      %v2314 = vadd.f32 0.0, %v2313
      %v2315 = vpop.f32.mrb[0].mxu0
      %2316 = vmatprep.mubr.bf16.mxu0 0
      %2317 = vmatmul.mubr.bf16.gmra.mrb[0].mxu0 %v1112
      %v2318 = vpop.f32.mrb[0].mxu0
      %v2319 = vadd.f32 0.0, %v2318
      %v2320 = vpop.f32.mrb[0].mxu0
      %v2321 = vpop.f32.mrb[0].mxu0
      %v2322 = vadd.f32 0.0, %v2321
      %v2323 = vpop.f32.mrb[0].mxu0
      %2324 = vmatprep.mubr.bf16.mxu0 0
      %2325 = vmatmul.mubr.bf16.gmra.mrb[0].mxu0 %v1113
      %v2326 = vpop.f32.mrb[0].mxu0
      %v2327 = vadd.f32 0.0, %v2326
      %v2328 = vpop.f32.mrb[0].mxu0
      %v2329 = vpop.f32.mrb[0].mxu0
      %v2330 = vadd.f32 0.0, %v2329
      %v2331 = vpop.f32.mrb[0].mxu0
      %2332 = vmatprep.mubr.bf16.mxu0 0
      %2333 = vmatmul.mubr.bf16.gmra.mrb[0].mxu0 %v1114
      %v2334 = vpop.f32.mrb[0].mxu0
      %v2335 = vadd.f32 0.0, %v2334
      %v2336 = vpop.f32.mrb[0].mxu0
      %v2337 = vpop.f32.mrb[0].mxu0
      %v2338 = vadd.f32 0.0, %v2337
      %v2339 = vpop.f32.mrb[0].mxu0
      %2340 = vmatprep.mubr.bf16.mxu0 0
      %2341 = vmatmul.mubr.bf16.gmra.mrb[0].mxu0 %v1115
      %v2342 = vpop.f32.mrb[0].mxu0
      %v2343 = vadd.f32 0.0, %v2342
      %v2344 = vpop.f32.mrb[0].mxu0
      %v2345 = vpop.f32.mrb[0].mxu0
      %v2346 = vadd.f32 0.0, %v2345
      %v2347 = vpop.f32.mrb[0].mxu0
      %2348 = vdwg.mxu0
      %v2349 = vtanh.pop %v1327
      %v2350 = vtanh.pop %v1330
      %v2351 = vtanh.pop %v1335
      %v2352 = vtanh.pop %v1338
      %v2353 = vtanh.pop %v1343
      %v2354 = vtanh.pop %v1346
      %v2355 = vtanh.pop %v1351
      %v2356 = vtanh.pop %v1354
      %v2357 = vtanh.pop %v1359
      %v2358 = vtanh.pop %v1362
      %v2359 = vtanh.pop %v1367
      %v2360 = vtanh.pop %v1370
      %v2361 = vtanh.pop %v1375
      %v2362 = vtanh.pop %v1378
      %v2363 = vtanh.pop %v1383
      %v2364 = vtanh.pop %v1386
      %v2365 = vtanh.pop %v1391
      %v2366 = vtanh.pop %v1394
      %v2367 = vtanh.pop %v1399
      %v2368 = vtanh.pop %v1402
      %v2369 = vtanh.pop %v1407
      %v2370 = vtanh.pop %v1410
      %v2371 = vtanh.pop %v1415
      %v2372 = vtanh.pop %v1418
      %v2373 = vtanh.pop %v1423
      %v2374 = vtanh.pop %v1426
      %v2375 = vtanh.pop %v1431
      %v2376 = vtanh.pop %v1434
      %v2377 = vtanh.pop %v1439
      %v2378 = vtanh.pop %v1442
      %v2379 = vtanh.pop %v1447
      %v2380 = vtanh.pop %v1450
      %v2381 = vtanh.pop %v1455
      %v2382 = vtanh.pop %v1458
      %v2383 = vtanh.pop %v1463
      %v2384 = vtanh.pop %v1466
      %v2385 = vtanh.pop %v1471
      %v2386 = vtanh.pop %v1474
      %v2387 = vtanh.pop %v1479
      %v2388 = vtanh.pop %v1482
      %v2389 = vtanh.pop %v1487
      %v2390 = vtanh.pop %v1490
      %v2391 = vtanh.pop %v1495
      %v2392 = vtanh.pop %v1498
      %v2393 = vtanh.pop %v1503
      %v2394 = vtanh.pop %v1506
      %v2395 = vtanh.pop %v1511
      %v2396 = vtanh.pop %v1514
      %v2397 = vtanh.pop %v1519
      %v2398 = vtanh.pop %v1522
      %v2399 = vtanh.pop %v1527
      %v2400 = vtanh.pop %v1530
      %v2401 = vtanh.pop %v1535
      %v2402 = vtanh.pop %v1538
      %v2403 = vtanh.pop %v1543
      %v2404 = vtanh.pop %v1546
      %v2405 = vtanh.pop %v1551
      %v2406 = vtanh.pop %v1554
      %v2407 = vtanh.pop %v1559
      %v2408 = vtanh.pop %v1562
      %v2409 = vtanh.pop %v1567
      %v2410 = vtanh.pop %v1570
      %v2411 = vtanh.pop %v1575
      %v2412 = vtanh.pop %v1578
      %v2413 = vtanh.pop %v1583
      %v2414 = vtanh.pop %v1586
      %v2415 = vtanh.pop %v1591
      %v2416 = vtanh.pop %v1594
      %v2417 = vtanh.pop %v1599
      %v2418 = vtanh.pop %v1602
      %v2419 = vtanh.pop %v1607
      %v2420 = vtanh.pop %v1610
      %v2421 = vtanh.pop %v1615
      %v2422 = vtanh.pop %v1618
      %v2423 = vtanh.pop %v1623
      %v2424 = vtanh.pop %v1626
      %v2425 = vtanh.pop %v1631
      %v2426 = vtanh.pop %v1634
      %v2427 = vtanh.pop %v1639
      %v2428 = vtanh.pop %v1642
      %v2429 = vtanh.pop %v1647
      %v2430 = vtanh.pop %v1650
      %v2431 = vtanh.pop %v1655
      %v2432 = vtanh.pop %v1658
      %v2433 = vtanh.pop %v1663
      %v2434 = vtanh.pop %v1666
      %v2435 = vtanh.pop %v1671
      %v2436 = vtanh.pop %v1674
      %v2437 = vtanh.pop %v1679
      %v2438 = vtanh.pop %v1682
      %v2439 = vtanh.pop %v1687
      %v2440 = vtanh.pop %v1690
      %v2441 = vtanh.pop %v1695
      %v2442 = vtanh.pop %v1698
      %v2443 = vtanh.pop %v1703
      %v2444 = vtanh.pop %v1706
      %v2445 = vtanh.pop %v1711
      %v2446 = vtanh.pop %v1714
      %v2447 = vtanh.pop %v1719
      %v2448 = vtanh.pop %v1722
      %v2449 = vtanh.pop %v1727
      %v2450 = vtanh.pop %v1730
      %v2451 = vtanh.pop %v1735
      %v2452 = vtanh.pop %v1738
      %v2453 = vtanh.pop %v1743
      %v2454 = vtanh.pop %v1746
      %v2455 = vtanh.pop %v1751
      %v2456 = vtanh.pop %v1754
      %v2457 = vtanh.pop %v1759
      %v2458 = vtanh.pop %v1762
      %v2459 = vtanh.pop %v1767
      %v2460 = vtanh.pop %v1770
      %v2461 = vtanh.pop %v1775
      %v2462 = vtanh.pop %v1778
      %v2463 = vtanh.pop %v1783
      %v2464 = vtanh.pop %v1786
      %v2465 = vtanh.pop %v1791
      %v2466 = vtanh.pop %v1794
      %v2467 = vtanh.pop %v1799
      %v2468 = vtanh.pop %v1802
      %v2469 = vtanh.pop %v1807
      %v2470 = vtanh.pop %v1810
      %v2471 = vtanh.pop %v1815
      %v2472 = vtanh.pop %v1818
      %v2473 = vtanh.pop %v1823
      %v2474 = vtanh.pop %v1826
      %v2475 = vtanh.pop %v1831
      %v2476 = vtanh.pop %v1834
      %v2477 = vtanh.pop %v1839
      %v2478 = vtanh.pop %v1842
      %v2479 = vtanh.pop %v1847
      %v2480 = vtanh.pop %v1850
      %v2481 = vtanh.pop %v1855
      %v2482 = vtanh.pop %v1858
      %v2483 = vtanh.pop %v1863
      %v2484 = vtanh.pop %v1866
      %v2485 = vtanh.pop %v1871
      %v2486 = vtanh.pop %v1874
      %v2487 = vtanh.pop %v1879
      %v2488 = vtanh.pop %v1882
      %v2489 = vtanh.pop %v1887
      %v2490 = vtanh.pop %v1890
      %v2491 = vtanh.pop %v1895
      %v2492 = vtanh.pop %v1898
      %v2493 = vtanh.pop %v1903
      %v2494 = vtanh.pop %v1906
      %v2495 = vtanh.pop %v1911
      %v2496 = vtanh.pop %v1914
      %v2497 = vtanh.pop %v1919
      %v2498 = vtanh.pop %v1922
      %v2499 = vtanh.pop %v1927
      %v2500 = vtanh.pop %v1930
      %v2501 = vtanh.pop %v1935
      %v2502 = vtanh.pop %v1938
      %v2503 = vtanh.pop %v1943
      %v2504 = vtanh.pop %v1946
      %v2505 = vtanh.pop %v1951
      %v2506 = vtanh.pop %v1954
      %v2507 = vtanh.pop %v1959
      %v2508 = vtanh.pop %v1962
      %v2509 = vtanh.pop %v1967
      %v2510 = vtanh.pop %v1970
      %v2511 = vtanh.pop %v1975
      %v2512 = vtanh.pop %v1978
      %v2513 = vtanh.pop %v1983
      %v2514 = vtanh.pop %v1986
      %v2515 = vtanh.pop %v1991
      %v2516 = vtanh.pop %v1994
      %v2517 = vtanh.pop %v1999
      %v2518 = vtanh.pop %v2002
      %v2519 = vtanh.pop %v2007
      %v2520 = vtanh.pop %v2010
      %v2521 = vtanh.pop %v2015
      %v2522 = vtanh.pop %v2018
      %v2523 = vtanh.pop %v2023
      %v2524 = vtanh.pop %v2026
      %v2525 = vtanh.pop %v2031
      %v2526 = vtanh.pop %v2034
      %v2527 = vtanh.pop %v2039
      %v2528 = vtanh.pop %v2042
      %v2529 = vtanh.pop %v2047
      %v2530 = vtanh.pop %v2050
      %v2531 = vtanh.pop %v2055
      %v2532 = vtanh.pop %v2058
      %v2533 = vtanh.pop %v2063
      %v2534 = vtanh.pop %v2066
      %v2535 = vtanh.pop %v2071
      %v2536 = vtanh.pop %v2074
      %v2537 = vtanh.pop %v2079
      %v2538 = vtanh.pop %v2082
      %v2539 = vtanh.pop %v2087
      %v2540 = vtanh.pop %v2090
      %v2541 = vtanh.pop %v2095
      %v2542 = vtanh.pop %v2098
      %v2543 = vtanh.pop %v2103
      %v2544 = vtanh.pop %v2106
      %v2545 = vtanh.pop %v2111
      %v2546 = vtanh.pop %v2114
      %v2547 = vtanh.pop %v2119
      %v2548 = vtanh.pop %v2122
      %v2549 = vtanh.pop %v2127
      %v2550 = vtanh.pop %v2130
      %v2551 = vtanh.pop %v2135
      %v2552 = vtanh.pop %v2138
      %v2553 = vtanh.pop %v2143
      %v2554 = vtanh.pop %v2146
      %v2555 = vtanh.pop %v2151
      %v2556 = vtanh.pop %v2154
      %v2557 = vtanh.pop %v2159
      %v2558 = vtanh.pop %v2162
      %v2559 = vtanh.pop %v2167
      %v2560 = vtanh.pop %v2170
      %v2561 = vtanh.pop %v2175
      %v2562 = vtanh.pop %v2178
      %v2563 = vtanh.pop %v2183
      %v2564 = vtanh.pop %v2186
      %v2565 = vtanh.pop %v2191
      %v2566 = vtanh.pop %v2194
      %v2567 = vtanh.pop %v2199
      %v2568 = vtanh.pop %v2202
      %v2569 = vtanh.pop %v2207
      %v2570 = vtanh.pop %v2210
      %v2571 = vtanh.pop %v2215
      %v2572 = vtanh.pop %v2218
      %v2573 = vtanh.pop %v2223
      %v2574 = vtanh.pop %v2226
      %v2575 = vtanh.pop %v2231
      %v2576 = vtanh.pop %v2234
      %v2577 = vtanh.pop %v2239
      %v2578 = vtanh.pop %v2242
      %v2579 = vtanh.pop %v2247
      %v2580 = vtanh.pop %v2250
      %v2581 = vtanh.pop %v2255
      %v2582 = vtanh.pop %v2258
      %v2583 = vtanh.pop %v2263
      %v2584 = vtanh.pop %v2266
      %v2585 = vtanh.pop %v2271
      %v2586 = vtanh.pop %v2274
      %v2587 = vtanh.pop %v2279
      %v2588 = vtanh.pop %v2282
      %v2589 = vtanh.pop %v2287
      %v2590 = vtanh.pop %v2290
      %v2591 = vtanh.pop %v2295
      %v2592 = vtanh.pop %v2298
      %v2593 = vtanh.pop %v2303
      %v2594 = vtanh.pop %v2306
      %v2595 = vtanh.pop %v2311
      %v2596 = vtanh.pop %v2314
      %v2597 = vtanh.pop %v2319
      %v2598 = vtanh.pop %v2322
      %v2599 = vtanh.pop %v2327
      %v2600 = vtanh.pop %v2330
      %v2601 = vtanh.pop %v2335
      %v2602 = vtanh.pop %v2338
      %v2603 = vtanh.pop %v2343
      %v2604 = vtanh.pop %v2346
      %2605 = vst [vmem:[%s201] sm:$0xff] %v2349
      %2606 = vst [vmem:[%s201 + $0x8] sm:$0xff] %v2350
      %2607 = vst [vmem:[%s201 + $0x10] sm:$0xff] %v2351
      %2608 = vst [vmem:[%s201 + $0x18] sm:$0xff] %v2352
      %2609 = vst [vmem:[%s201 + $0x20] sm:$0xff] %v2353
      %2610 = vst [vmem:[%s201 + $0x28] sm:$0xff] %v2354
      %2611 = vst [vmem:[%s201 + $0x30] sm:$0xff] %v2355
      %2612 = vst [vmem:[%s201 + $0x38] sm:$0xff] %v2356
      %2613 = vst [vmem:[%s201 + $0x40] sm:$0xff] %v2357
      %2614 = vst [vmem:[%s201 + $0x48] sm:$0xff] %v2358
      %2615 = vst [vmem:[%s201 + $0x50] sm:$0xff] %v2359
      %2616 = vst [vmem:[%s201 + $0x58] sm:$0xff] %v2360
      %2617 = vst [vmem:[%s201 + $0x60] sm:$0xff] %v2361
      %2618 = vst [vmem:[%s201 + $0x68] sm:$0xff] %v2362
      %2619 = vst [vmem:[%s201 + $0x70] sm:$0xff] %v2363
      %2620 = vst [vmem:[%s201 + $0x78] sm:$0xff] %v2364
      %2621 = vst [vmem:[%s201 + $0x80] sm:$0xff] %v2365
      %2622 = vst [vmem:[%s201 + $0x88] sm:$0xff] %v2366
      %2623 = vst [vmem:[%s201 + $0x90] sm:$0xff] %v2367
      %2624 = vst [vmem:[%s201 + $0x98] sm:$0xff] %v2368
      %2625 = vst [vmem:[%s201 + $0xa0] sm:$0xff] %v2369
      %2626 = vst [vmem:[%s201 + $0xa8] sm:$0xff] %v2370
      %2627 = vst [vmem:[%s201 + $0xb0] sm:$0xff] %v2371
      %2628 = vst [vmem:[%s201 + $0xb8] sm:$0xff] %v2372
      %2629 = vst [vmem:[%s201 + $0xc0] sm:$0xff] %v2373
      %2630 = vst [vmem:[%s201 + $0xc8] sm:$0xff] %v2374
      %2631 = vst [vmem:[%s201 + $0xd0] sm:$0xff] %v2375
      %2632 = vst [vmem:[%s201 + $0xd8] sm:$0xff] %v2376
      %2633 = vst [vmem:[%s201 + $0xe0] sm:$0xff] %v2377
      %2634 = vst [vmem:[%s201 + $0xe8] sm:$0xff] %v2378
      %2635 = vst [vmem:[%s201 + $0xf0] sm:$0xff] %v2379
      %2636 = vst [vmem:[%s201 + $0xf8] sm:$0xff] %v2380
      %2637 = vst [vmem:[%s201 + $0x100] sm:$0xff] %v2381
      %2638 = vst [vmem:[%s201 + $0x108] sm:$0xff] %v2382
      %2639 = vst [vmem:[%s201 + $0x110] sm:$0xff] %v2383
      %2640 = vst [vmem:[%s201 + $0x118] sm:$0xff] %v2384
      %2641 = vst [vmem:[%s201 + $0x120] sm:$0xff] %v2385
      %2642 = vst [vmem:[%s201 + $0x128] sm:$0xff] %v2386
      %2643 = vst [vmem:[%s201 + $0x130] sm:$0xff] %v2387
      %2644 = vst [vmem:[%s201 + $0x138] sm:$0xff] %v2388
      %2645 = vst [vmem:[%s201 + $0x140] sm:$0xff] %v2389
      %2646 = vst [vmem:[%s201 + $0x148] sm:$0xff] %v2390
      %2647 = vst [vmem:[%s201 + $0x150] sm:$0xff] %v2391
      %2648 = vst [vmem:[%s201 + $0x158] sm:$0xff] %v2392
      %2649 = vst [vmem:[%s201 + $0x160] sm:$0xff] %v2393
      %2650 = vst [vmem:[%s201 + $0x168] sm:$0xff] %v2394
      %2651 = vst [vmem:[%s201 + $0x170] sm:$0xff] %v2395
      %2652 = vst [vmem:[%s201 + $0x178] sm:$0xff] %v2396
      %2653 = vst [vmem:[%s201 + $0x180] sm:$0xff] %v2397
      %2654 = vst [vmem:[%s201 + $0x188] sm:$0xff] %v2398
      %2655 = vst [vmem:[%s201 + $0x190] sm:$0xff] %v2399
      %2656 = vst [vmem:[%s201 + $0x198] sm:$0xff] %v2400
      %2657 = vst [vmem:[%s201 + $0x1a0] sm:$0xff] %v2401
      %2658 = vst [vmem:[%s201 + $0x1a8] sm:$0xff] %v2402
      %2659 = vst [vmem:[%s201 + $0x1b0] sm:$0xff] %v2403
      %2660 = vst [vmem:[%s201 + $0x1b8] sm:$0xff] %v2404
      %2661 = vst [vmem:[%s201 + $0x1c0] sm:$0xff] %v2405
      %2662 = vst [vmem:[%s201 + $0x1c8] sm:$0xff] %v2406
      %2663 = vst [vmem:[%s201 + $0x1d0] sm:$0xff] %v2407
      %2664 = vst [vmem:[%s201 + $0x1d8] sm:$0xff] %v2408
      %2665 = vst [vmem:[%s201 + $0x1e0] sm:$0xff] %v2409
      %2666 = vst [vmem:[%s201 + $0x1e8] sm:$0xff] %v2410
      %2667 = vst [vmem:[%s201 + $0x1f0] sm:$0xff] %v2411
      %2668 = vst [vmem:[%s201 + $0x1f8] sm:$0xff] %v2412
      %2669 = vst [vmem:[%s201 + $0x200] sm:$0xff] %v2413
      %2670 = vst [vmem:[%s201 + $0x208] sm:$0xff] %v2414
      %2671 = vst [vmem:[%s201 + $0x210] sm:$0xff] %v2415
      %2672 = vst [vmem:[%s201 + $0x218] sm:$0xff] %v2416
      %2673 = vst [vmem:[%s201 + $0x220] sm:$0xff] %v2417
      %2674 = vst [vmem:[%s201 + $0x228] sm:$0xff] %v2418
      %2675 = vst [vmem:[%s201 + $0x230] sm:$0xff] %v2419
      %2676 = vst [vmem:[%s201 + $0x238] sm:$0xff] %v2420
      %2677 = vst [vmem:[%s201 + $0x240] sm:$0xff] %v2421
      %2678 = vst [vmem:[%s201 + $0x248] sm:$0xff] %v2422
      %2679 = vst [vmem:[%s201 + $0x250] sm:$0xff] %v2423
      %2680 = vst [vmem:[%s201 + $0x258] sm:$0xff] %v2424
      %2681 = vst [vmem:[%s201 + $0x260] sm:$0xff] %v2425
      %2682 = vst [vmem:[%s201 + $0x268] sm:$0xff] %v2426
      %2683 = vst [vmem:[%s201 + $0x270] sm:$0xff] %v2427
      %2684 = vst [vmem:[%s201 + $0x278] sm:$0xff] %v2428
      %2685 = vst [vmem:[%s201 + $0x280] sm:$0xff] %v2429
      %2686 = vst [vmem:[%s201 + $0x288] sm:$0xff] %v2430
      %2687 = vst [vmem:[%s201 + $0x290] sm:$0xff] %v2431
      %2688 = vst [vmem:[%s201 + $0x298] sm:$0xff] %v2432
      %2689 = vst [vmem:[%s201 + $0x2a0] sm:$0xff] %v2433
      %2690 = vst [vmem:[%s201 + $0x2a8] sm:$0xff] %v2434
      %2691 = vst [vmem:[%s201 + $0x2b0] sm:$0xff] %v2435
      %2692 = vst [vmem:[%s201 + $0x2b8] sm:$0xff] %v2436
      %2693 = vst [vmem:[%s201 + $0x2c0] sm:$0xff] %v2437
      %2694 = vst [vmem:[%s201 + $0x2c8] sm:$0xff] %v2438
      %2695 = vst [vmem:[%s201 + $0x2d0] sm:$0xff] %v2439
      %2696 = vst [vmem:[%s201 + $0x2d8] sm:$0xff] %v2440
      %2697 = vst [vmem:[%s201 + $0x2e0] sm:$0xff] %v2441
      %2698 = vst [vmem:[%s201 + $0x2e8] sm:$0xff] %v2442
      %2699 = vst [vmem:[%s201 + $0x2f0] sm:$0xff] %v2443
      %2700 = vst [vmem:[%s201 + $0x2f8] sm:$0xff] %v2444
      %2701 = vst [vmem:[%s201 + $0x300] sm:$0xff] %v2445
      %2702 = vst [vmem:[%s201 + $0x308] sm:$0xff] %v2446
      %2703 = vst [vmem:[%s201 + $0x310] sm:$0xff] %v2447
      %2704 = vst [vmem:[%s201 + $0x318] sm:$0xff] %v2448
      %2705 = vst [vmem:[%s201 + $0x320] sm:$0xff] %v2449
      %2706 = vst [vmem:[%s201 + $0x328] sm:$0xff] %v2450
      %2707 = vst [vmem:[%s201 + $0x330] sm:$0xff] %v2451
      %2708 = vst [vmem:[%s201 + $0x338] sm:$0xff] %v2452
      %2709 = vst [vmem:[%s201 + $0x340] sm:$0xff] %v2453
      %2710 = vst [vmem:[%s201 + $0x348] sm:$0xff] %v2454
      %2711 = vst [vmem:[%s201 + $0x350] sm:$0xff] %v2455
      %2712 = vst [vmem:[%s201 + $0x358] sm:$0xff] %v2456
      %2713 = vst [vmem:[%s201 + $0x360] sm:$0xff] %v2457
      %2714 = vst [vmem:[%s201 + $0x368] sm:$0xff] %v2458
      %2715 = vst [vmem:[%s201 + $0x370] sm:$0xff] %v2459
      %2716 = vst [vmem:[%s201 + $0x378] sm:$0xff] %v2460
      %2717 = vst [vmem:[%s201 + $0x380] sm:$0xff] %v2461
      %2718 = vst [vmem:[%s201 + $0x388] sm:$0xff] %v2462
      %2719 = vst [vmem:[%s201 + $0x390] sm:$0xff] %v2463
      %2720 = vst [vmem:[%s201 + $0x398] sm:$0xff] %v2464
      %2721 = vst [vmem:[%s201 + $0x3a0] sm:$0xff] %v2465
      %2722 = vst [vmem:[%s201 + $0x3a8] sm:$0xff] %v2466
      %2723 = vst [vmem:[%s201 + $0x3b0] sm:$0xff] %v2467
      %2724 = vst [vmem:[%s201 + $0x3b8] sm:$0xff] %v2468
      %2725 = vst [vmem:[%s201 + $0x3c0] sm:$0xff] %v2469
      %2726 = vst [vmem:[%s201 + $0x3c8] sm:$0xff] %v2470
      %2727 = vst [vmem:[%s201 + $0x3d0] sm:$0xff] %v2471
      %2728 = vst [vmem:[%s201 + $0x3d8] sm:$0xff] %v2472
      %2729 = vst [vmem:[%s201 + $0x3e0] sm:$0xff] %v2473
      %2730 = vst [vmem:[%s201 + $0x3e8] sm:$0xff] %v2474
      %2731 = vst [vmem:[%s201 + $0x3f0] sm:$0xff] %v2475
      %2732 = vst [vmem:[%s201 + $0x3f8] sm:$0xff] %v2476
      %2733 = vst [vmem:[%s201 + $0x400] sm:$0xff] %v2477
      %2734 = vst [vmem:[%s201 + $0x408] sm:$0xff] %v2478
      %2735 = vst [vmem:[%s201 + $0x410] sm:$0xff] %v2479
      %2736 = vst [vmem:[%s201 + $0x418] sm:$0xff] %v2480
      %2737 = vst [vmem:[%s201 + $0x420] sm:$0xff] %v2481
      %2738 = vst [vmem:[%s201 + $0x428] sm:$0xff] %v2482
      %2739 = vst [vmem:[%s201 + $0x430] sm:$0xff] %v2483
      %2740 = vst [vmem:[%s201 + $0x438] sm:$0xff] %v2484
      %2741 = vst [vmem:[%s201 + $0x440] sm:$0xff] %v2485
      %2742 = vst [vmem:[%s201 + $0x448] sm:$0xff] %v2486
      %2743 = vst [vmem:[%s201 + $0x450] sm:$0xff] %v2487
      %2744 = vst [vmem:[%s201 + $0x458] sm:$0xff] %v2488
      %2745 = vst [vmem:[%s201 + $0x460] sm:$0xff] %v2489
      %2746 = vst [vmem:[%s201 + $0x468] sm:$0xff] %v2490
      %2747 = vst [vmem:[%s201 + $0x470] sm:$0xff] %v2491
      %2748 = vst [vmem:[%s201 + $0x478] sm:$0xff] %v2492
      %2749 = vst [vmem:[%s201 + $0x480] sm:$0xff] %v2493
      %2750 = vst [vmem:[%s201 + $0x488] sm:$0xff] %v2494
      %2751 = vst [vmem:[%s201 + $0x490] sm:$0xff] %v2495
      %2752 = vst [vmem:[%s201 + $0x498] sm:$0xff] %v2496
      %2753 = vst [vmem:[%s201 + $0x4a0] sm:$0xff] %v2497
      %2754 = vst [vmem:[%s201 + $0x4a8] sm:$0xff] %v2498
      %2755 = vst [vmem:[%s201 + $0x4b0] sm:$0xff] %v2499
      %2756 = vst [vmem:[%s201 + $0x4b8] sm:$0xff] %v2500
      %2757 = vst [vmem:[%s201 + $0x4c0] sm:$0xff] %v2501
      %2758 = vst [vmem:[%s201 + $0x4c8] sm:$0xff] %v2502
      %2759 = vst [vmem:[%s201 + $0x4d0] sm:$0xff] %v2503
      %2760 = vst [vmem:[%s201 + $0x4d8] sm:$0xff] %v2504
      %2761 = vst [vmem:[%s201 + $0x4e0] sm:$0xff] %v2505
      %2762 = vst [vmem:[%s201 + $0x4e8] sm:$0xff] %v2506
      %2763 = vst [vmem:[%s201 + $0x4f0] sm:$0xff] %v2507
      %2764 = vst [vmem:[%s201 + $0x4f8] sm:$0xff] %v2508
      %2765 = vst [vmem:[%s201 + $0x500] sm:$0xff] %v2509
      %2766 = vst [vmem:[%s201 + $0x508] sm:$0xff] %v2510
      %2767 = vst [vmem:[%s201 + $0x510] sm:$0xff] %v2511
      %2768 = vst [vmem:[%s201 + $0x518] sm:$0xff] %v2512
      %2769 = vst [vmem:[%s201 + $0x520] sm:$0xff] %v2513
      %2770 = vst [vmem:[%s201 + $0x528] sm:$0xff] %v2514
      %2771 = vst [vmem:[%s201 + $0x530] sm:$0xff] %v2515
      %2772 = vst [vmem:[%s201 + $0x538] sm:$0xff] %v2516
      %2773 = vst [vmem:[%s201 + $0x540] sm:$0xff] %v2517
      %2774 = vst [vmem:[%s201 + $0x548] sm:$0xff] %v2518
      %2775 = vst [vmem:[%s201 + $0x550] sm:$0xff] %v2519
      %2776 = vst [vmem:[%s201 + $0x558] sm:$0xff] %v2520
      %2777 = vst [vmem:[%s201 + $0x560] sm:$0xff] %v2521
      %2778 = vst [vmem:[%s201 + $0x568] sm:$0xff] %v2522
      %2779 = vst [vmem:[%s201 + $0x570] sm:$0xff] %v2523
      %2780 = vst [vmem:[%s201 + $0x578] sm:$0xff] %v2524
      %2781 = vst [vmem:[%s201 + $0x580] sm:$0xff] %v2525
      %2782 = vst [vmem:[%s201 + $0x588] sm:$0xff] %v2526
      %2783 = vst [vmem:[%s201 + $0x590] sm:$0xff] %v2527
      %2784 = vst [vmem:[%s201 + $0x598] sm:$0xff] %v2528
      %2785 = vst [vmem:[%s201 + $0x5a0] sm:$0xff] %v2529
      %2786 = vst [vmem:[%s201 + $0x5a8] sm:$0xff] %v2530
      %2787 = vst [vmem:[%s201 + $0x5b0] sm:$0xff] %v2531
      %2788 = vst [vmem:[%s201 + $0x5b8] sm:$0xff] %v2532
      %2789 = vst [vmem:[%s201 + $0x5c0] sm:$0xff] %v2533
      %2790 = vst [vmem:[%s201 + $0x5c8] sm:$0xff] %v2534
      %2791 = vst [vmem:[%s201 + $0x5d0] sm:$0xff] %v2535
      %2792 = vst [vmem:[%s201 + $0x5d8] sm:$0xff] %v2536
      %2793 = vst [vmem:[%s201 + $0x5e0] sm:$0xff] %v2537
      %2794 = vst [vmem:[%s201 + $0x5e8] sm:$0xff] %v2538
      %2795 = vst [vmem:[%s201 + $0x5f0] sm:$0xff] %v2539
      %2796 = vst [vmem:[%s201 + $0x5f8] sm:$0xff] %v2540
      %2797 = vst [vmem:[%s201 + $0x600] sm:$0xff] %v2541
      %2798 = vst [vmem:[%s201 + $0x608] sm:$0xff] %v2542
      %2799 = vst [vmem:[%s201 + $0x610] sm:$0xff] %v2543
      %2800 = vst [vmem:[%s201 + $0x618] sm:$0xff] %v2544
      %2801 = vst [vmem:[%s201 + $0x620] sm:$0xff] %v2545
      %2802 = vst [vmem:[%s201 + $0x628] sm:$0xff] %v2546
      %2803 = vst [vmem:[%s201 + $0x630] sm:$0xff] %v2547
      %2804 = vst [vmem:[%s201 + $0x638] sm:$0xff] %v2548
      %2805 = vst [vmem:[%s201 + $0x640] sm:$0xff] %v2549
      %2806 = vst [vmem:[%s201 + $0x648] sm:$0xff] %v2550
      %2807 = vst [vmem:[%s201 + $0x650] sm:$0xff] %v2551
      %2808 = vst [vmem:[%s201 + $0x658] sm:$0xff] %v2552
      %2809 = vst [vmem:[%s201 + $0x660] sm:$0xff] %v2553
      %2810 = vst [vmem:[%s201 + $0x668] sm:$0xff] %v2554
      %2811 = vst [vmem:[%s201 + $0x670] sm:$0xff] %v2555
      %2812 = vst [vmem:[%s201 + $0x678] sm:$0xff] %v2556
      %2813 = vst [vmem:[%s201 + $0x680] sm:$0xff] %v2557
      %2814 = vst [vmem:[%s201 + $0x688] sm:$0xff] %v2558
      %2815 = vst [vmem:[%s201 + $0x690] sm:$0xff] %v2559
      %2816 = vst [vmem:[%s201 + $0x698] sm:$0xff] %v2560
      %2817 = vst [vmem:[%s201 + $0x6a0] sm:$0xff] %v2561
      %2818 = vst [vmem:[%s201 + $0x6a8] sm:$0xff] %v2562
      %2819 = vst [vmem:[%s201 + $0x6b0] sm:$0xff] %v2563
      %2820 = vst [vmem:[%s201 + $0x6b8] sm:$0xff] %v2564
      %2821 = vst [vmem:[%s201 + $0x6c0] sm:$0xff] %v2565
      %2822 = vst [vmem:[%s201 + $0x6c8] sm:$0xff] %v2566
      %2823 = vst [vmem:[%s201 + $0x6d0] sm:$0xff] %v2567
      %2824 = vst [vmem:[%s201 + $0x6d8] sm:$0xff] %v2568
      %2825 = vst [vmem:[%s201 + $0x6e0] sm:$0xff] %v2569
      %2826 = vst [vmem:[%s201 + $0x6e8] sm:$0xff] %v2570
      %2827 = vst [vmem:[%s201 + $0x6f0] sm:$0xff] %v2571
      %2828 = vst [vmem:[%s201 + $0x6f8] sm:$0xff] %v2572
      %2829 = vst [vmem:[%s201 + $0x700] sm:$0xff] %v2573
      %2830 = vst [vmem:[%s201 + $0x708] sm:$0xff] %v2574
      %2831 = vst [vmem:[%s201 + $0x710] sm:$0xff] %v2575
      %2832 = vst [vmem:[%s201 + $0x718] sm:$0xff] %v2576
      %2833 = vst [vmem:[%s201 + $0x720] sm:$0xff] %v2577
      %2834 = vst [vmem:[%s201 + $0x728] sm:$0xff] %v2578
      %2835 = vst [vmem:[%s201 + $0x730] sm:$0xff] %v2579
      %2836 = vst [vmem:[%s201 + $0x738] sm:$0xff] %v2580
      %2837 = vst [vmem:[%s201 + $0x740] sm:$0xff] %v2581
      %2838 = vst [vmem:[%s201 + $0x748] sm:$0xff] %v2582
      %2839 = vst [vmem:[%s201 + $0x750] sm:$0xff] %v2583
      %2840 = vst [vmem:[%s201 + $0x758] sm:$0xff] %v2584
      %2841 = vst [vmem:[%s201 + $0x760] sm:$0xff] %v2585
      %2842 = vst [vmem:[%s201 + $0x768] sm:$0xff] %v2586
      %2843 = vst [vmem:[%s201 + $0x770] sm:$0xff] %v2587
      %2844 = vst [vmem:[%s201 + $0x778] sm:$0xff] %v2588
      %2845 = vst [vmem:[%s201 + $0x780] sm:$0xff] %v2589
      %2846 = vst [vmem:[%s201 + $0x788] sm:$0xff] %v2590
      %2847 = vst [vmem:[%s201 + $0x790] sm:$0xff] %v2591
      %2848 = vst [vmem:[%s201 + $0x798] sm:$0xff] %v2592
      %2849 = vst [vmem:[%s201 + $0x7a0] sm:$0xff] %v2593
      %2850 = vst [vmem:[%s201 + $0x7a8] sm:$0xff] %v2594
      %2851 = vst [vmem:[%s201 + $0x7b0] sm:$0xff] %v2595
      %2852 = vst [vmem:[%s201 + $0x7b8] sm:$0xff] %v2596
      %2853 = vst [vmem:[%s201 + $0x7c0] sm:$0xff] %v2597
      %2854 = vst [vmem:[%s201 + $0x7c8] sm:$0xff] %v2598
      %2855 = vst [vmem:[%s201 + $0x7d0] sm:$0xff] %v2599
      %2856 = vst [vmem:[%s201 + $0x7d8] sm:$0xff] %v2600
      %2857 = vst [vmem:[%s201 + $0x7e0] sm:$0xff] %v2601
      %2858 = vst [vmem:[%s201 + $0x7e8] sm:$0xff] %v2602
      %2859 = vst [vmem:[%s201 + $0x7f0] sm:$0xff] %v2603
      %2860 = vst [vmem:[%s201 + $0x7f8] sm:$0xff] %v2604
      %s2861 = smul.u32 256, %s18
      %p2862 = scmp.lt.s32.totalorder %s17, 3
      %s2863 = scalar_select %p2862, %s17, 3
      %p2864 = scmp.lt.s32.totalorder %s2861, 255
      %s2865 = scalar_select %p2864, %s2861, 255
      %s2866 = smul.addr %s2863, 256
      %s2867 = sadd.s32 %s2865, %s2866
      %s2868 = smul.addr %s2867, 8
      %s2869 = scalar_lea.vmem %s2, %s2868
      // Predicated region
      $region29: #{generator_forward.17} parent=27 // pred_check
        %p2870 = pneg %p99
      $region30: #{generator_forward.17} parent=27 // pred_check_branch
        %2872 = sbr.rel (%p2870) target = $region32
      $region31: #{generator_forward.17} parent=27 // pred_region
        %s2873 = smul.u32 256, %s18
      $region32: #{generator_forward.17} parent=27 // pred_fallthru
        _
    $region28: #{generator_forward.17} parent=5 // pred_fallthru
      _
    %p2874 = scmp.le.s32.totalorder 2, %s8
    // Predicated region
    $region33: #{generator_forward.17} parent=5 // pred_check
      %p2875 = pneg %p2874
    $region34: #{generator_forward.17} parent=5 // pred_check_branch
      %2877 = sbr.rel (%p2875) target = $region36
    $region35: #{generator_forward.17} parent=5 // pred_region
      %s2878 = ssub.s32 %s8, 2
      // Predicated region
      $region37: #{generator_forward.17} parent=35 // pred_check
        %p2879 = pneg %p105
      $region38: #{generator_forward.17} parent=35 // pred_check_branch
        %2881 = sbr.rel (%p2879) target = $region40
      $region39: #{generator_forward.17} parent=35 // pred_region
        %s2882 = smul.u32 256, %s20
        %p2883 = scmp.lt.s32.totalorder %s19, 3
        %s2884 = scalar_select %p2883, %s19, 3
        %p2885 = scmp.lt.s32.totalorder %s2882, 255
        %s2886 = scalar_select %p2885, %s2882, 255
        %s2887 = smul.addr %s2884, 256
        %s2888 = sadd.s32 %s2886, %s2887
        %s2889 = smul.addr %s2888, 8
        %s2890 = scalar_lea.vmem %s2, %s2889
      $region40: #{generator_forward.17} parent=35 // pred_fallthru
        _
    $region36: #{generator_forward.17} parent=5 // pred_fallthru
      _
  $region6: #{generator_forward.17} parent=0 // loop_footer
    %s12 = sadd.s32 1, %s8
  $region7: #{generator_forward.17} parent=0 // loop_footer_branch
    %7 = sbr.rel target = $region3
  $region8: #{generator_forward.17} parent=0 // loop_exit
    _

</llo_original>
